<compile_context>
chip_gen: v6e
topology: v6e:2x2x1
jax: 0.10.0
libtpu: 0.0.40
codegen_flags: <defaults>
</compile_context>

<pallas_src>
import functools

import jax
import jax.numpy as jnp
from jax.experimental import pallas as pl
from jax.experimental.pallas import tpu as pltpu

# ----------------------------- static config --------------------------------
B = 2
EXTRAP_T = 4            # observed timesteps T
NT = 8                  # timeline length; output has NT - 1 = 7 steps
N_EXTRA = NT - EXTRAP_T - 1
D_CONTENT = 8
SPATIAL = 8
D_THEME = 16
HID = 256               # LSTM hidden_size == input_size
SPLIT = 128
BN_EPS = 1e-5


# ------------------------------ fused kernel ---------------------------------
def _fused_forward_kernel(
        p1_ref, zt_ref,
        w1_ref, b1_ref, w2_ref, b2_ref,
        wcl_ref, bcl_ref, wfc_ref, bfc_ref,
        wih_hbm, whh_hbm, blstm_ref,
        h0_ref, c0_ref,
        wth_ref, bth_ref, wct_hbm, bct_ref,
        out_theme_ref, out_content_ref,
        wih_vmem, whh_vmem, wct_vmem, dma_sem,
        *, t_obs, n_extra, hid, bsz, split):
    f32 = jnp.float32
    bf16 = jnp.bfloat16
    n_img = bsz * t_obs          # number of (b, t) images = 8

    # ---- kick off the big-weight DMAs; they overlap the conv front-end -------
    cp_ih = pltpu.make_async_copy(wih_hbm, wih_vmem, dma_sem.at[0])
    cp_hh = pltpu.make_async_copy(whh_hbm, whh_vmem, dma_sem.at[1])
    cp_ct = pltpu.make_async_copy(wct_hbm, wct_vmem, dma_sem.at[2])
    cp_ih.start()
    cp_hh.start()
    cp_ct.start()

    # ---- conv1 (BN folded, ReLU): relu(p1 @ W1 + b1) -------------------------
    # p1 rows ordered (pos = oh*4+ow, n = t*B+b), cols ordered (kh, kw, cin).
    y1 = jnp.dot(p1_ref[...], w1_ref[...], preferred_element_type=f32)
    y1 = jnp.maximum(y1 + b1_ref[...], 0.0)           # [16*n_img, 16] f32, VMEM only

    # ---- conv2 (3x3, s2, p1 on the 4x4 map) + AvgPool2d(2) as ONE matmul -----
    # Assemble the [4*n_img, 9*16] im2col block from the VMEM-resident y1 with
    # static slices (zero blocks for the padding taps), then a single
    # [32,144] x [144,32] dot.  AvgPool = mean over the 4 position row-groups.
    zero_blk = jnp.zeros((n_img, 16), f32)
    pos_rows = []
    for oh2 in range(2):
        for ow2 in range(2):
            taps = []
            for kh in range(3):
                for kw in range(3):
                    r = 2 * oh2 + kh - 1
                    c = 2 * ow2 + kw - 1
                    if 0 <= r < 4 and 0 <= c < 4:
                        pos = r * 4 + c
                        taps.append(y1[pos * n_img:(pos + 1) * n_img, :])
                    else:                              # padding tap -> zeros
                        taps.append(zero_blk)
            pos_rows.append(jnp.concatenate(taps, axis=1))   # [n_img, 144]
    x2 = jnp.concatenate(pos_rows, axis=0)                   # [4*n_img, 144]
    y2 = jnp.maximum(
        jnp.dot(x2.astype(bf16), w2_ref[...], preferred_element_type=f32)
        + b2_ref[...], 0.0)                                  # [32, 32]
    zc = (y2[0 * n_img:1 * n_img] + y2[1 * n_img:2 * n_img]
          + y2[2 * n_img:3 * n_img] + y2[3 * n_img:4 * n_img]) * 0.25   # [8, 32]

    # ---- conv_linear_model + fc_model ---------------------------------------
    zcl = jnp.dot(zc.astype(bf16), wcl_ref[...],
                  preferred_element_type=f32) + bcl_ref[...]
    zt = jnp.tanh(jnp.dot(zt_ref[...], wfc_ref[...], preferred_element_type=f32)
                  + bfc_ref[...])                     # [8, 128] each, rows (t, b)

    blstm = blstm_ref[...]                            # [1, 4*hid]

    # ---- LSTM: batched input projection for all observed steps --------------
    # x_obs = [zc_lin | zt]  ->  x_obs @ W_ih == zcl @ W_ih[:128] + zt @ W_ih[128:]
    cp_ih.wait()                                      # W_ih landed in VMEM
    gx = (jnp.dot(zcl.astype(bf16), wih_vmem[pl.ds(0, split), :],
                  preferred_element_type=f32)
          + jnp.dot(zt.astype(bf16), wih_vmem[pl.ds(split, hid - split), :],
                    preferred_element_type=f32)
          + blstm)                                    # [8, 4*hid] f32 (SSA value)

    cp_hh.wait()                                      # W_hh landed in VMEM

    # h/c carried as SSA values (no VMEM scratch on the serial critical path)
    h = h0_ref[...]                                   # [bsz, hid] f32
    c = c0_ref[...]

    def lstm_step(gates, c_prev):
        i_g = jax.nn.sigmoid(gates[:, 0 * hid:1 * hid])
        f_g = jax.nn.sigmoid(gates[:, 1 * hid:2 * hid])
        g_g = jnp.tanh(gates[:, 2 * hid:3 * hid])
        o_g = jax.nn.sigmoid(gates[:, 3 * hid:4 * hid])
        c_new = f_g * c_prev + i_g * g_g
        h_new = o_g * jnp.tanh(c_new)
        return h_new, c_new

    hs = []
    # observed steps: gates = precomputed(x_t @ W_ih + b) + h @ W_hh
    for t in range(t_obs):
        gates = gx[t * bsz:(t + 1) * bsz, :] + jnp.dot(
            h.astype(bf16), whh_vmem[...], preferred_element_type=f32)
        h, c = lstm_step(gates, c)
        hs.append(h)

    # autoregressive steps: x_t == h_{t-1} -> gates = h@W_ih + h@W_hh + b
    # (two dots from VMEM instead of streaming a redundant W_ih+W_hh from HBM)
    blstm_b = jnp.broadcast_to(blstm, (bsz, 4 * hid))   # hoisted out of the loop
    for _ in range(n_extra):
        hb = h.astype(bf16)
        gates = (jnp.dot(hb, wih_vmem[...], preferred_element_type=f32)
                 + jnp.dot(hb, whh_vmem[...], preferred_element_type=f32)
                 + blstm_b)
        h, c = lstm_step(gates, c)
        hs.append(h)

    # ---- epilogue: both upsample heads as batched matmuls over all 14 rows ---
    hall = jnp.concatenate(hs, axis=0)                # [bsz*(t_obs+n_extra), hid]
    theme_h = hall[:, 0:split].astype(bf16)
    content_h = hall[:, split:hid].astype(bf16)
    out_theme_ref[...] = (jnp.dot(theme_h, wth_ref[...], preferred_element_type=f32)
                          + bth_ref[...]).astype(out_theme_ref.dtype)
    cp_ct.wait()                                      # upsample_content weight landed
    out_content_ref[...] = (jnp.dot(content_h, wct_vmem[...],
                                    preferred_element_type=f32)
                            + bct_ref[...]).astype(out_content_ref.dtype)


def fused_forward(p1, zt_in, params, h0, c0, bsz, t_obs, n_extra):
    n_rows = bsz * (t_obs + n_extra)                  # 14 LSTM output rows (t, b)
    inputs = [
        p1, zt_in,
        params["conv1_w"], params["conv1_b"],
        params["conv2_w"], params["conv2_b"],
        params["convlin_w"], params["convlin_b"],
        params["fc_w"], params["fc_b"],
        params["w_ih"], params["w_hh"], params["lstm_b"],
        h0, c0,
        params["upth_w"], params["upth_b"],
        params["upct_w"], params["upct_b"],
    ]
    # Big weights (W_ih, W_hh, upsample_content) stay in HBM and are DMA'd
    # manually inside the kernel so the copy overlaps the conv front-end.
    manual_dma_idx = {10, 11, 17}
    in_specs = []
    for idx, a in enumerate(inputs):
        if idx in manual_dma_idx:
            in_specs.append(pl.BlockSpec(memory_space=pl.ANY))
        else:
            in_specs.append(pl.BlockSpec(a.shape, lambda i: (0, 0)))

    kernel = functools.partial(_fused_forward_kernel, t_obs=t_obs, n_extra=n_extra,
                               hid=HID, bsz=bsz, split=SPLIT)
    return pl.pallas_call(
        kernel,
        out_shape=(jax.ShapeDtypeStruct((n_rows, SPLIT), jnp.float32),
                   jax.ShapeDtypeStruct((n_rows, 64 * 16), jnp.float32)),
        grid=(1,),
        in_specs=in_specs,
        out_specs=(pl.BlockSpec((n_rows, SPLIT), lambda i: (0, 0)),
                   pl.BlockSpec((n_rows, 64 * 16), lambda i: (0, 0))),
        scratch_shapes=[
            pltpu.VMEM((HID, 4 * HID), jnp.bfloat16),          # W_ih landing buffer
            pltpu.VMEM((HID, 4 * HID), jnp.bfloat16),          # W_hh landing buffer
            pltpu.VMEM((HID - SPLIT, 64 * 16), jnp.bfloat16),  # upsample_content weight
            pltpu.SemaphoreType.DMA((3,)),                     # one sem per weight DMA
        ],
        compiler_params=pltpu.CompilerParams(dimension_semantics=("arbitrary",)),
    )(*inputs)


# ------------------------------ glue helpers ---------------------------------
def conv1_patches(x_nchw):
    """Raw-input im2col for conv1 (k=3, s=2, p=1 on 8x8).
    Returns [16*N, 9*C]; rows ordered (oh*4+ow, n), cols ordered (kh, kw, cin)."""
    n, c, _, _ = x_nchw.shape
    xp = jnp.pad(x_nchw, ((0, 0), (0, 0), (1, 1), (1, 1)))
    slcs = []
    for kh in range(3):
        for kw in range(3):
            slcs.append(xp[:, :, kh:kh + 8:2, kw:kw + 8:2])   # [n, c, 4, 4]
    p = jnp.stack(slcs, axis=0)                               # [9, n, c, 4, 4]
    p = p.transpose(3, 4, 1, 0, 2)                            # [4, 4, n, 9, c]
    return p.reshape(16 * n, 9 * c)


def fold_bn(w, gamma, beta, mean, var):
    """Fold eval-mode BatchNorm2d into the conv.
    Returns weight as [(kh,kw,cin), out_c] (matches patch column order) and bias."""
    scale = gamma / jnp.sqrt(var + BN_EPS)
    w_f = w * scale[:, None, None, None]                      # [out, cin, kh, kw]
    b_f = beta - mean * scale
    w_mat = jnp.transpose(w_f, (2, 3, 1, 0)).reshape(-1, w.shape[0])
    return w_mat, b_f


def init_params(key):
    ks = iter(jax.random.split(key, 32))

    def rnd(shape, scale=0.1):
        return jax.random.normal(next(ks), shape, jnp.float32) * scale

    bf16 = jnp.bfloat16
    p = {}
    # conv_model layer 1: Conv2d(8,16,3,s=2,p=1,bias=False) + BN(16) + ReLU
    w1 = rnd((16, D_CONTENT, 3, 3))
    w1m, b1 = fold_bn(w1, 1.0 + rnd((16,), 0.1), rnd((16,), 0.05),
                      rnd((16,), 0.02), 1.0 + jnp.abs(rnd((16,), 0.1)))
    p["conv1_w"], p["conv1_b"] = w1m.astype(bf16), b1.reshape(1, -1)
    # conv_model layer 2: Conv2d(16,32,3,s=2,p=1,bias=False) + BN(32) + ReLU
    w2 = rnd((32, 16, 3, 3))
    w2m, b2 = fold_bn(w2, 1.0 + rnd((32,), 0.1), rnd((32,), 0.05),
                      rnd((32,), 0.02), 1.0 + jnp.abs(rnd((32,), 0.1)))
    p["conv2_w"], p["conv2_b"] = w2m.astype(bf16), b2.reshape(1, -1)
    # conv_linear_model: Linear(32, 128)
    p["convlin_w"] = rnd((32, 128)).astype(bf16)
    p["convlin_b"] = rnd((128,), 0.05).reshape(1, -1)
    # fc_model: Linear(16, 128) + Tanh
    p["fc_w"] = rnd((D_THEME, 128)).astype(bf16)
    p["fc_b"] = rnd((128,), 0.05).reshape(1, -1)
    # recurrent_model: LSTM(256, 256), gate order i,f,g,o; weights stored transposed
    p["w_ih"] = rnd((HID, 4 * HID), 0.05).astype(bf16)
    p["w_hh"] = rnd((HID, 4 * HID), 0.05).astype(bf16)
    p["lstm_b"] = (rnd((4 * HID,), 0.05) + rnd((4 * HID,), 0.05)).reshape(1, -1)
    p["h_0"] = jnp.zeros((1, HID), jnp.float32)
    p["c_0"] = jnp.zeros((1, HID), jnp.float32)
    # upsample_content: ConvTranspose2d(128, 64, 4) on 1x1 input == matmul
    wct = rnd((HID - SPLIT, 64, 4, 4))
    bct = rnd((64,), 0.05)
    p["upct_w"] = wct.reshape(HID - SPLIT, 64 * 16).astype(bf16)
    p["upct_b"] = jnp.repeat(bct, 16).reshape(1, -1)
    # upsample_theme: Linear(128, 128)
    p["upth_w"] = rnd((SPLIT, SPLIT)).astype(bf16)
    p["upth_b"] = rnd((SPLIT,), 0.05).reshape(1, -1)
    return p


# ------------------------------ forward pass ---------------------------------
def forward(params, z_theme, z_content):
    Bb, T = z_content.shape[0], z_content.shape[1]
    # order everything (t, b) so per-timestep rows are contiguous inside the kernel
    x = jnp.transpose(z_content, (1, 0, 2, 3, 4)).reshape(
        T * Bb, D_CONTENT, SPATIAL, SPATIAL)
    p1 = conv1_patches(x).astype(jnp.bfloat16)                 # [128, 72]
    zt_in = jnp.transpose(z_theme, (1, 0, 2)).reshape(T * Bb, D_THEME).astype(jnp.bfloat16)
    h0 = jnp.tile(params["h_0"], (Bb, 1))
    c0 = jnp.tile(params["c_0"], (Bb, 1))

    oth, octn = fused_forward(p1, zt_in, params, h0, c0, Bb, T, N_EXTRA)

    n_out = T + N_EXTRA                                        # NT - 1 = 7
    out_theme = oth.reshape(n_out, Bb, SPLIT).transpose(1, 0, 2)
    out_content = octn.reshape(n_out, Bb, 64, 4, 4).transpose(1, 0, 2, 3, 4)
    return out_theme, out_content


# --------------------------------- main ---------------------------------------
if __name__ == "__main__":
    key = jax.random.PRNGKey(0)
    k_theme, k_content, k_params = jax.random.split(key, 3)
    params = init_params(k_params)

    z_theme = jax.random.normal(k_theme, (B, EXTRAP_T, D_THEME), jnp.float32)
    z_content = jax.random.normal(
        k_content, (B, EXTRAP_T, D_CONTENT, SPATIAL, SPATIAL), jnp.float32)

    out_theme, out_content = jax.jit(forward)(params, z_theme, z_content)
    jax.block_until_ready((out_theme, out_content))

    assert out_theme.shape == (B, NT - 1, 128), out_theme.shape
    assert out_content.shape == (B, NT - 1, 64, 4, 4), out_content.shape
    assert bool(jnp.all(jnp.isfinite(out_theme)))
    assert bool(jnp.all(jnp.isfinite(out_content)))
    print("KERNEL_OK")
</pallas_src>

<mosaic_0001>
module attributes {stable_mosaic.version = 11 : i64} {
  func.func @_fused_forward_kernel(%arg0: i32, %arg1: memref<128x72xbf16, #tpu.memory_space<vmem>>, %arg2: memref<8x16xbf16, #tpu.memory_space<vmem>>, %arg3: memref<72x16xbf16, #tpu.memory_space<vmem>>, %arg4: memref<1x16xf32, #tpu.memory_space<vmem>>, %arg5: memref<144x32xbf16, #tpu.memory_space<vmem>>, %arg6: memref<1x32xf32, #tpu.memory_space<vmem>>, %arg7: memref<32x128xbf16, #tpu.memory_space<vmem>>, %arg8: memref<1x128xf32, #tpu.memory_space<vmem>>, %arg9: memref<16x128xbf16, #tpu.memory_space<vmem>>, %arg10: memref<1x128xf32, #tpu.memory_space<vmem>>, %arg11: memref<256x1024xbf16, #tpu.memory_space<any>>, %arg12: memref<256x1024xbf16, #tpu.memory_space<any>>, %arg13: memref<1x1024xf32, #tpu.memory_space<vmem>>, %arg14: memref<2x256xf32, #tpu.memory_space<vmem>>, %arg15: memref<2x256xf32, #tpu.memory_space<vmem>>, %arg16: memref<128x128xbf16, #tpu.memory_space<vmem>>, %arg17: memref<1x128xf32, #tpu.memory_space<vmem>>, %arg18: memref<128x1024xbf16, #tpu.memory_space<any>>, %arg19: memref<1x1024xf32, #tpu.memory_space<vmem>>, %arg20: memref<14x128xf32, #tpu.memory_space<vmem>>, %arg21: memref<14x1024xf32, #tpu.memory_space<vmem>>, %arg22: memref<256x1024xbf16, #tpu.memory_space<vmem>>, %arg23: memref<256x1024xbf16, #tpu.memory_space<vmem>>, %arg24: memref<128x1024xbf16, #tpu.memory_space<vmem>>, %arg25: memref<3x!tpu.dma_semaphore, #tpu.memory_space<semaphore_mem>>) attributes {dimension_semantics = [#tpu.dimension_semantics<arbitrary>], iteration_bounds = array<i64: 1>, scalar_prefetch = 0 : i64, scratch_operands = 4 : i64, tpu.core_type = #tpu.core_type<tc>, window_params = [{pipeline_mode = #tpu.pipeline_mode<synchronous>, transform_indices = @transform_0, window_bounds = array<i64: 128, 72>}, {pipeline_mode = #tpu.pipeline_mode<synchronous>, transform_indices = @transform_1, window_bounds = array<i64: 8, 16>}, {pipeline_mode = #tpu.pipeline_mode<synchronous>, transform_indices = @transform_2, window_bounds = array<i64: 72, 16>}, {pipeline_mode = #tpu.pipeline_mode<synchronous>, transform_indices = @transform_3, window_bounds = array<i64: 1, 16>}, {pipeline_mode = #tpu.pipeline_mode<synchronous>, transform_indices = @transform_4, window_bounds = array<i64: 144, 32>}, {pipeline_mode = #tpu.pipeline_mode<synchronous>, transform_indices = @transform_5, window_bounds = array<i64: 1, 32>}, {pipeline_mode = #tpu.pipeline_mode<synchronous>, transform_indices = @transform_6, window_bounds = array<i64: 32, 128>}, {pipeline_mode = #tpu.pipeline_mode<synchronous>, transform_indices = @transform_7, window_bounds = array<i64: 1, 128>}, {pipeline_mode = #tpu.pipeline_mode<synchronous>, transform_indices = @transform_8, window_bounds = array<i64: 16, 128>}, {pipeline_mode = #tpu.pipeline_mode<synchronous>, transform_indices = @transform_9, window_bounds = array<i64: 1, 128>}, {}, {}, {pipeline_mode = #tpu.pipeline_mode<synchronous>, transform_indices = @transform_12, window_bounds = array<i64: 1, 1024>}, {pipeline_mode = #tpu.pipeline_mode<synchronous>, transform_indices = @transform_13, window_bounds = array<i64: 2, 256>}, {pipeline_mode = #tpu.pipeline_mode<synchronous>, transform_indices = @transform_14, window_bounds = array<i64: 2, 256>}, {pipeline_mode = #tpu.pipeline_mode<synchronous>, transform_indices = @transform_15, window_bounds = array<i64: 128, 128>}, {pipeline_mode = #tpu.pipeline_mode<synchronous>, transform_indices = @transform_16, window_bounds = array<i64: 1, 128>}, {}, {pipeline_mode = #tpu.pipeline_mode<synchronous>, transform_indices = @transform_18, window_bounds = array<i64: 1, 1024>}, {pipeline_mode = #tpu.pipeline_mode<synchronous>, transform_indices = @transform_19, window_bounds = array<i64: 14, 128>}, {pipeline_mode = #tpu.pipeline_mode<synchronous>, transform_indices = @transform_20, window_bounds = array<i64: 14, 1024>}]} {
    %c0_i32 = arith.constant 0 : i32
    %0 = tpu.memref_slice %arg25[%c0_i32] : memref<3x!tpu.dma_semaphore, #tpu.memory_space<semaphore_mem>> -> memref<1x!tpu.dma_semaphore, #tpu.memory_space<semaphore_mem>>
    %1 = tpu.memref_squeeze %0 : memref<1x!tpu.dma_semaphore, #tpu.memory_space<semaphore_mem>> -> memref<!tpu.dma_semaphore, #tpu.memory_space<semaphore_mem>>
    tpu.enqueue_dma source(%arg11 : memref<256x1024xbf16, #tpu.memory_space<any>>) target(%arg22 : memref<256x1024xbf16, #tpu.memory_space<vmem>>) target_semaphore(%1 : memref<!tpu.dma_semaphore, #tpu.memory_space<semaphore_mem>>)
    %c1_i32 = arith.constant 1 : i32
    %2 = tpu.memref_slice %arg25[%c1_i32] : memref<3x!tpu.dma_semaphore, #tpu.memory_space<semaphore_mem>> -> memref<1x!tpu.dma_semaphore, #tpu.memory_space<semaphore_mem>>
    %3 = tpu.memref_squeeze %2 : memref<1x!tpu.dma_semaphore, #tpu.memory_space<semaphore_mem>> -> memref<!tpu.dma_semaphore, #tpu.memory_space<semaphore_mem>>
    tpu.enqueue_dma source(%arg12 : memref<256x1024xbf16, #tpu.memory_space<any>>) target(%arg23 : memref<256x1024xbf16, #tpu.memory_space<vmem>>) target_semaphore(%3 : memref<!tpu.dma_semaphore, #tpu.memory_space<semaphore_mem>>)
    %c2_i32 = arith.constant 2 : i32
    %4 = tpu.memref_slice %arg25[%c2_i32] : memref<3x!tpu.dma_semaphore, #tpu.memory_space<semaphore_mem>> -> memref<1x!tpu.dma_semaphore, #tpu.memory_space<semaphore_mem>>
    %5 = tpu.memref_squeeze %4 : memref<1x!tpu.dma_semaphore, #tpu.memory_space<semaphore_mem>> -> memref<!tpu.dma_semaphore, #tpu.memory_space<semaphore_mem>>
    tpu.enqueue_dma source(%arg18 : memref<128x1024xbf16, #tpu.memory_space<any>>) target(%arg24 : memref<128x1024xbf16, #tpu.memory_space<vmem>>) target_semaphore(%5 : memref<!tpu.dma_semaphore, #tpu.memory_space<semaphore_mem>>)
    %c0 = arith.constant 0 : index
    %c0_0 = arith.constant 0 : index
    %6 = vector.load %arg1[%c0, %c0_0] : memref<128x72xbf16, #tpu.memory_space<vmem>>, vector<128x72xbf16>
    %c0_1 = arith.constant 0 : index
    %c0_2 = arith.constant 0 : index
    %7 = vector.load %arg3[%c0_1, %c0_2] : memref<72x16xbf16, #tpu.memory_space<vmem>>, vector<72x16xbf16>
    %cst = arith.constant dense<0.000000e+00> : vector<128x16xf32>
    %8 = tpu.matmul %6, %7, %cst {dimension_numbers = #tpu.dot_dimension_numbers<[1], [0], [0], [1], [0, 0, 1, 1], [], []>} : vector<128x72xbf16>, vector<72x16xbf16>, vector<128x16xf32> -> vector<128x16xf32>
    %c0_3 = arith.constant 0 : index
    %c0_4 = arith.constant 0 : index
    %9 = vector.load %arg4[%c0_3, %c0_4] : memref<1x16xf32, #tpu.memory_space<vmem>>, vector<1x16xf32>
    %10 = vector.broadcast %9 : vector<1x16xf32> to vector<128x16xf32>
    %11 = arith.addf %8, %10 : vector<128x16xf32>
    %cst_5 = arith.constant 0.000000e+00 : f32
    %12 = vector.broadcast %cst_5 : f32 to vector<128x16xf32>
    %13 = arith.maximumf %11, %12 : vector<128x16xf32>
    %cst_6 = arith.constant 0.000000e+00 : f32
    %14 = vector.broadcast %cst_6 : f32 to vector<8x16xf32>
    %15 = vector.extract_strided_slice %13 {offsets = [0, 0], sizes = [8, 16], strides = [1, 1]} : vector<128x16xf32> to vector<8x16xf32>
    %16 = vector.extract_strided_slice %13 {offsets = [8, 0], sizes = [8, 16], strides = [1, 1]} : vector<128x16xf32> to vector<8x16xf32>
    %17 = vector.extract_strided_slice %13 {offsets = [32, 0], sizes = [8, 16], strides = [1, 1]} : vector<128x16xf32> to vector<8x16xf32>
    %18 = vector.extract_strided_slice %13 {offsets = [40, 0], sizes = [8, 16], strides = [1, 1]} : vector<128x16xf32> to vector<8x16xf32>
    %19 = tpu.concatenate %14, %14, %14, %14, %15, %16, %14, %17, %18 in 1 : vector<8x16xf32>, vector<8x16xf32>, vector<8x16xf32>, vector<8x16xf32>, vector<8x16xf32>, vector<8x16xf32>, vector<8x16xf32>, vector<8x16xf32>, vector<8x16xf32> -> vector<8x144xf32>
    %20 = vector.extract_strided_slice %13 {offsets = [8, 0], sizes = [8, 16], strides = [1, 1]} : vector<128x16xf32> to vector<8x16xf32>
    %21 = vector.extract_strided_slice %13 {offsets = [16, 0], sizes = [8, 16], strides = [1, 1]} : vector<128x16xf32> to vector<8x16xf32>
    %22 = vector.extract_strided_slice %13 {offsets = [24, 0], sizes = [8, 16], strides = [1, 1]} : vector<128x16xf32> to vector<8x16xf32>
    %23 = vector.extract_strided_slice %13 {offsets = [40, 0], sizes = [8, 16], strides = [1, 1]} : vector<128x16xf32> to vector<8x16xf32>
    %24 = vector.extract_strided_slice %13 {offsets = [48, 0], sizes = [8, 16], strides = [1, 1]} : vector<128x16xf32> to vector<8x16xf32>
    %25 = vector.extract_strided_slice %13 {offsets = [56, 0], sizes = [8, 16], strides = [1, 1]} : vector<128x16xf32> to vector<8x16xf32>
    %26 = tpu.concatenate %14, %14, %14, %20, %21, %22, %23, %24, %25 in 1 : vector<8x16xf32>, vector<8x16xf32>, vector<8x16xf32>, vector<8x16xf32>, vector<8x16xf32>, vector<8x16xf32>, vector<8x16xf32>, vector<8x16xf32>, vector<8x16xf32> -> vector<8x144xf32>
    %27 = vector.extract_strided_slice %13 {offsets = [32, 0], sizes = [8, 16], strides = [1, 1]} : vector<128x16xf32> to vector<8x16xf32>
    %28 = vector.extract_strided_slice %13 {offsets = [40, 0], sizes = [8, 16], strides = [1, 1]} : vector<128x16xf32> to vector<8x16xf32>
    %29 = vector.extract_strided_slice %13 {offsets = [64, 0], sizes = [8, 16], strides = [1, 1]} : vector<128x16xf32> to vector<8x16xf32>
    %30 = vector.extract_strided_slice %13 {offsets = [72, 0], sizes = [8, 16], strides = [1, 1]} : vector<128x16xf32> to vector<8x16xf32>
    %31 = vector.extract_strided_slice %13 {offsets = [96, 0], sizes = [8, 16], strides = [1, 1]} : vector<128x16xf32> to vector<8x16xf32>
    %32 = vector.extract_strided_slice %13 {offsets = [104, 0], sizes = [8, 16], strides = [1, 1]} : vector<128x16xf32> to vector<8x16xf32>
    %33 = tpu.concatenate %14, %27, %28, %14, %29, %30, %14, %31, %32 in 1 : vector<8x16xf32>, vector<8x16xf32>, vector<8x16xf32>, vector<8x16xf32>, vector<8x16xf32>, vector<8x16xf32>, vector<8x16xf32>, vector<8x16xf32>, vector<8x16xf32> -> vector<8x144xf32>
    %34 = vector.extract_strided_slice %13 {offsets = [40, 0], sizes = [8, 16], strides = [1, 1]} : vector<128x16xf32> to vector<8x16xf32>
    %35 = vector.extract_strided_slice %13 {offsets = [48, 0], sizes = [8, 16], strides = [1, 1]} : vector<128x16xf32> to vector<8x16xf32>
    %36 = vector.extract_strided_slice %13 {offsets = [56, 0], sizes = [8, 16], strides = [1, 1]} : vector<128x16xf32> to vector<8x16xf32>
    %37 = vector.extract_strided_slice %13 {offsets = [72, 0], sizes = [8, 16], strides = [1, 1]} : vector<128x16xf32> to vector<8x16xf32>
    %38 = vector.extract_strided_slice %13 {offsets = [80, 0], sizes = [8, 16], strides = [1, 1]} : vector<128x16xf32> to vector<8x16xf32>
    %39 = vector.extract_strided_slice %13 {offsets = [88, 0], sizes = [8, 16], strides = [1, 1]} : vector<128x16xf32> to vector<8x16xf32>
    %40 = vector.extract_strided_slice %13 {offsets = [104, 0], sizes = [8, 16], strides = [1, 1]} : vector<128x16xf32> to vector<8x16xf32>
    %41 = vector.extract_strided_slice %13 {offsets = [112, 0], sizes = [8, 16], strides = [1, 1]} : vector<128x16xf32> to vector<8x16xf32>
    %42 = vector.extract_strided_slice %13 {offsets = [120, 0], sizes = [8, 16], strides = [1, 1]} : vector<128x16xf32> to vector<8x16xf32>
    %43 = tpu.concatenate %34, %35, %36, %37, %38, %39, %40, %41, %42 in 1 : vector<8x16xf32>, vector<8x16xf32>, vector<8x16xf32>, vector<8x16xf32>, vector<8x16xf32>, vector<8x16xf32>, vector<8x16xf32>, vector<8x16xf32>, vector<8x16xf32> -> vector<8x144xf32>
    %44 = tpu.concatenate %19, %26, %33, %43 in 0 : vector<8x144xf32>, vector<8x144xf32>, vector<8x144xf32>, vector<8x144xf32> -> vector<32x144xf32>
    %45 = arith.truncf %44 : vector<32x144xf32> to vector<32x144xbf16>
    %c0_7 = arith.constant 0 : index
    %c0_8 = arith.constant 0 : index
    %46 = vector.load %arg5[%c0_7, %c0_8] : memref<144x32xbf16, #tpu.memory_space<vmem>>, vector<144x32xbf16>
    %cst_9 = arith.constant dense<0.000000e+00> : vector<32x32xf32>
    %47 = tpu.matmul %45, %46, %cst_9 {dimension_numbers = #tpu.dot_dimension_numbers<[1], [0], [0], [1], [0, 0, 1, 1], [], []>} : vector<32x144xbf16>, vector<144x32xbf16>, vector<32x32xf32> -> vector<32x32xf32>
    %c0_10 = arith.constant 0 : index
    %c0_11 = arith.constant 0 : index
    %48 = vector.load %arg6[%c0_10, %c0_11] : memref<1x32xf32, #tpu.memory_space<vmem>>, vector<1x32xf32>
    %49 = vector.broadcast %48 : vector<1x32xf32> to vector<32x32xf32>
    %50 = arith.addf %47, %49 : vector<32x32xf32>
    %cst_12 = arith.constant 0.000000e+00 : f32
    %51 = vector.broadcast %cst_12 : f32 to vector<32x32xf32>
    %52 = arith.maximumf %50, %51 : vector<32x32xf32>
    %53 = vector.extract_strided_slice %52 {offsets = [0, 0], sizes = [8, 32], strides = [1, 1]} : vector<32x32xf32> to vector<8x32xf32>
    %54 = vector.extract_strided_slice %52 {offsets = [8, 0], sizes = [8, 32], strides = [1, 1]} : vector<32x32xf32> to vector<8x32xf32>
    %55 = arith.addf %53, %54 : vector<8x32xf32>
    %56 = vector.extract_strided_slice %52 {offsets = [16, 0], sizes = [8, 32], strides = [1, 1]} : vector<32x32xf32> to vector<8x32xf32>
    %57 = arith.addf %55, %56 : vector<8x32xf32>
    %58 = vector.extract_strided_slice %52 {offsets = [24, 0], sizes = [8, 32], strides = [1, 1]} : vector<32x32xf32> to vector<8x32xf32>
    %59 = arith.addf %57, %58 : vector<8x32xf32>
    %cst_13 = arith.constant 2.500000e-01 : f32
    %60 = vector.broadcast %cst_13 : f32 to vector<8x32xf32>
    %61 = arith.mulf %59, %60 : vector<8x32xf32>
    %62 = arith.truncf %61 : vector<8x32xf32> to vector<8x32xbf16>
    %c0_14 = arith.constant 0 : index
    %c0_15 = arith.constant 0 : index
    %63 = vector.load %arg7[%c0_14, %c0_15] : memref<32x128xbf16, #tpu.memory_space<vmem>>, vector<32x128xbf16>
    %cst_16 = arith.constant dense<0.000000e+00> : vector<8x128xf32>
    %64 = tpu.matmul %62, %63, %cst_16 {dimension_numbers = #tpu.dot_dimension_numbers<[1], [0], [0], [1], [0, 0, 1, 1], [], []>} : vector<8x32xbf16>, vector<32x128xbf16>, vector<8x128xf32> -> vector<8x128xf32>
    %c0_17 = arith.constant 0 : index
    %c0_18 = arith.constant 0 : index
    %65 = vector.load %arg8[%c0_17, %c0_18] : memref<1x128xf32, #tpu.memory_space<vmem>>, vector<1x128xf32>
    %66 = vector.broadcast %65 : vector<1x128xf32> to vector<8x128xf32>
    %67 = arith.addf %64, %66 : vector<8x128xf32>
    %c0_19 = arith.constant 0 : index
    %c0_20 = arith.constant 0 : index
    %68 = vector.load %arg2[%c0_19, %c0_20] : memref<8x16xbf16, #tpu.memory_space<vmem>>, vector<8x16xbf16>
    %c0_21 = arith.constant 0 : index
    %c0_22 = arith.constant 0 : index
    %69 = vector.load %arg9[%c0_21, %c0_22] : memref<16x128xbf16, #tpu.memory_space<vmem>>, vector<16x128xbf16>
    %cst_23 = arith.constant dense<0.000000e+00> : vector<8x128xf32>
    %70 = tpu.matmul %68, %69, %cst_23 {dimension_numbers = #tpu.dot_dimension_numbers<[1], [0], [0], [1], [0, 0, 1, 1], [], []>} : vector<8x16xbf16>, vector<16x128xbf16>, vector<8x128xf32> -> vector<8x128xf32>
    %c0_24 = arith.constant 0 : index
    %c0_25 = arith.constant 0 : index
    %71 = vector.load %arg10[%c0_24, %c0_25] : memref<1x128xf32, #tpu.memory_space<vmem>>, vector<1x128xf32>
    %72 = vector.broadcast %71 : vector<1x128xf32> to vector<8x128xf32>
    %73 = arith.addf %70, %72 : vector<8x128xf32>
    %74 = math.tanh %73 : vector<8x128xf32>
    %c0_26 = arith.constant 0 : index
    %c0_27 = arith.constant 0 : index
    %75 = vector.load %arg13[%c0_26, %c0_27] : memref<1x1024xf32, #tpu.memory_space<vmem>>, vector<1x1024xf32>
    %c0_i32_28 = arith.constant 0 : i32
    %76 = tpu.memref_slice %arg25[%c0_i32_28] : memref<3x!tpu.dma_semaphore, #tpu.memory_space<semaphore_mem>> -> memref<1x!tpu.dma_semaphore, #tpu.memory_space<semaphore_mem>>
    %77 = tpu.memref_squeeze %76 : memref<1x!tpu.dma_semaphore, #tpu.memory_space<semaphore_mem>> -> memref<!tpu.dma_semaphore, #tpu.memory_space<semaphore_mem>>
    tpu.wait_dma2 semaphore(%77 : memref<!tpu.dma_semaphore, #tpu.memory_space<semaphore_mem>>) src(%arg11 : memref<256x1024xbf16, #tpu.memory_space<any>>) dst(%arg22 : memref<256x1024xbf16, #tpu.memory_space<vmem>>)
    %78 = arith.truncf %67 : vector<8x128xf32> to vector<8x128xbf16>
    %c0_29 = arith.constant 0 : index
    %c0_30 = arith.constant 0 : index
    %79 = vector.load %arg22[%c0_29, %c0_30] : memref<256x1024xbf16, #tpu.memory_space<vmem>>, vector<128x1024xbf16>
    %cst_31 = arith.constant dense<0.000000e+00> : vector<8x1024xf32>
    %80 = tpu.matmul %78, %79, %cst_31 {dimension_numbers = #tpu.dot_dimension_numbers<[1], [0], [0], [1], [0, 0, 1, 1], [], []>} : vector<8x128xbf16>, vector<128x1024xbf16>, vector<8x1024xf32> -> vector<8x1024xf32>
    %81 = arith.truncf %74 : vector<8x128xf32> to vector<8x128xbf16>
    %c128 = arith.constant 128 : index
    %c0_32 = arith.constant 0 : index
    %82 = vector.load %arg22[%c128, %c0_32] : memref<256x1024xbf16, #tpu.memory_space<vmem>>, vector<128x1024xbf16>
    %cst_33 = arith.constant dense<0.000000e+00> : vector<8x1024xf32>
    %83 = tpu.matmul %81, %82, %cst_33 {dimension_numbers = #tpu.dot_dimension_numbers<[1], [0], [0], [1], [0, 0, 1, 1], [], []>} : vector<8x128xbf16>, vector<128x1024xbf16>, vector<8x1024xf32> -> vector<8x1024xf32>
    %84 = arith.addf %80, %83 : vector<8x1024xf32>
    %85 = vector.broadcast %75 : vector<1x1024xf32> to vector<8x1024xf32>
    %86 = arith.addf %84, %85 : vector<8x1024xf32>
    %c1_i32_34 = arith.constant 1 : i32
    %87 = tpu.memref_slice %arg25[%c1_i32_34] : memref<3x!tpu.dma_semaphore, #tpu.memory_space<semaphore_mem>> -> memref<1x!tpu.dma_semaphore, #tpu.memory_space<semaphore_mem>>
    %88 = tpu.memref_squeeze %87 : memref<1x!tpu.dma_semaphore, #tpu.memory_space<semaphore_mem>> -> memref<!tpu.dma_semaphore, #tpu.memory_space<semaphore_mem>>
    tpu.wait_dma2 semaphore(%88 : memref<!tpu.dma_semaphore, #tpu.memory_space<semaphore_mem>>) src(%arg12 : memref<256x1024xbf16, #tpu.memory_space<any>>) dst(%arg23 : memref<256x1024xbf16, #tpu.memory_space<vmem>>)
    %c0_35 = arith.constant 0 : index
    %c0_36 = arith.constant 0 : index
    %89 = vector.load %arg14[%c0_35, %c0_36] : memref<2x256xf32, #tpu.memory_space<vmem>>, vector<2x256xf32>
    %c0_37 = arith.constant 0 : index
    %c0_38 = arith.constant 0 : index
    %90 = vector.load %arg15[%c0_37, %c0_38] : memref<2x256xf32, #tpu.memory_space<vmem>>, vector<2x256xf32>
    %91 = vector.extract_strided_slice %86 {offsets = [0, 0], sizes = [2, 1024], strides = [1, 1]} : vector<8x1024xf32> to vector<2x1024xf32>
    %92 = arith.truncf %89 : vector<2x256xf32> to vector<2x256xbf16>
    %c0_39 = arith.constant 0 : index
    %c0_40 = arith.constant 0 : index
    %93 = vector.load %arg23[%c0_39, %c0_40] : memref<256x1024xbf16, #tpu.memory_space<vmem>>, vector<256x1024xbf16>
    %cst_41 = arith.constant dense<0.000000e+00> : vector<2x1024xf32>
    %94 = tpu.matmul %92, %93, %cst_41 {dimension_numbers = #tpu.dot_dimension_numbers<[1], [0], [0], [1], [0, 0, 1, 1], [], []>} : vector<2x256xbf16>, vector<256x1024xbf16>, vector<2x1024xf32> -> vector<2x1024xf32>
    %95 = arith.addf %91, %94 : vector<2x1024xf32>
    %96 = vector.extract_strided_slice %95 {offsets = [0, 0], sizes = [2, 256], strides = [1, 1]} : vector<2x1024xf32> to vector<2x256xf32>
    %97 = arith.negf %96 : vector<2x256xf32>
    %98 = math.exp %97 : vector<2x256xf32>
    %cst_42 = arith.constant 1.000000e+00 : f32
    %99 = vector.broadcast %cst_42 : f32 to vector<2x256xf32>
    %100 = arith.addf %99, %98 : vector<2x256xf32>
    %101 = arith.divf %99, %100 : vector<2x256xf32>
    %102 = vector.extract_strided_slice %95 {offsets = [0, 256], sizes = [2, 256], strides = [1, 1]} : vector<2x1024xf32> to vector<2x256xf32>
    %103 = arith.negf %102 : vector<2x256xf32>
    %104 = math.exp %103 : vector<2x256xf32>
    %cst_43 = arith.constant 1.000000e+00 : f32
    %105 = vector.broadcast %cst_43 : f32 to vector<2x256xf32>
    %106 = arith.addf %105, %104 : vector<2x256xf32>
    %107 = arith.divf %105, %106 : vector<2x256xf32>
    %108 = vector.extract_strided_slice %95 {offsets = [0, 512], sizes = [2, 256], strides = [1, 1]} : vector<2x1024xf32> to vector<2x256xf32>
    %109 = math.tanh %108 : vector<2x256xf32>
    %110 = vector.extract_strided_slice %95 {offsets = [0, 768], sizes = [2, 256], strides = [1, 1]} : vector<2x1024xf32> to vector<2x256xf32>
    %111 = arith.negf %110 : vector<2x256xf32>
    %112 = math.exp %111 : vector<2x256xf32>
    %cst_44 = arith.constant 1.000000e+00 : f32
    %113 = vector.broadcast %cst_44 : f32 to vector<2x256xf32>
    %114 = arith.addf %113, %112 : vector<2x256xf32>
    %115 = arith.divf %113, %114 : vector<2x256xf32>
    %116 = arith.mulf %107, %90 : vector<2x256xf32>
    %117 = arith.mulf %101, %109 : vector<2x256xf32>
    %118 = arith.addf %116, %117 : vector<2x256xf32>
    %119 = math.tanh %118 : vector<2x256xf32>
    %120 = arith.mulf %115, %119 : vector<2x256xf32>
    %121 = vector.extract_strided_slice %86 {offsets = [2, 0], sizes = [2, 1024], strides = [1, 1]} : vector<8x1024xf32> to vector<2x1024xf32>
    %122 = arith.truncf %120 : vector<2x256xf32> to vector<2x256xbf16>
    %c0_45 = arith.constant 0 : index
    %c0_46 = arith.constant 0 : index
    %123 = vector.load %arg23[%c0_45, %c0_46] : memref<256x1024xbf16, #tpu.memory_space<vmem>>, vector<256x1024xbf16>
    %cst_47 = arith.constant dense<0.000000e+00> : vector<2x1024xf32>
    %124 = tpu.matmul %122, %123, %cst_47 {dimension_numbers = #tpu.dot_dimension_numbers<[1], [0], [0], [1], [0, 0, 1, 1], [], []>} : vector<2x256xbf16>, vector<256x1024xbf16>, vector<2x1024xf32> -> vector<2x1024xf32>
    %125 = arith.addf %121, %124 : vector<2x1024xf32>
    %126 = vector.extract_strided_slice %125 {offsets = [0, 0], sizes = [2, 256], strides = [1, 1]} : vector<2x1024xf32> to vector<2x256xf32>
    %127 = arith.negf %126 : vector<2x256xf32>
    %128 = math.exp %127 : vector<2x256xf32>
    %cst_48 = arith.constant 1.000000e+00 : f32
    %129 = vector.broadcast %cst_48 : f32 to vector<2x256xf32>
    %130 = arith.addf %129, %128 : vector<2x256xf32>
    %131 = arith.divf %129, %130 : vector<2x256xf32>
    %132 = vector.extract_strided_slice %125 {offsets = [0, 256], sizes = [2, 256], strides = [1, 1]} : vector<2x1024xf32> to vector<2x256xf32>
    %133 = arith.negf %132 : vector<2x256xf32>
    %134 = math.exp %133 : vector<2x256xf32>
    %cst_49 = arith.constant 1.000000e+00 : f32
    %135 = vector.broadcast %cst_49 : f32 to vector<2x256xf32>
    %136 = arith.addf %135, %134 : vector<2x256xf32>
    %137 = arith.divf %135, %136 : vector<2x256xf32>
    %138 = vector.extract_strided_slice %125 {offsets = [0, 512], sizes = [2, 256], strides = [1, 1]} : vector<2x1024xf32> to vector<2x256xf32>
    %139 = math.tanh %138 : vector<2x256xf32>
    %140 = vector.extract_strided_slice %125 {offsets = [0, 768], sizes = [2, 256], strides = [1, 1]} : vector<2x1024xf32> to vector<2x256xf32>
    %141 = arith.negf %140 : vector<2x256xf32>
    %142 = math.exp %141 : vector<2x256xf32>
    %cst_50 = arith.constant 1.000000e+00 : f32
    %143 = vector.broadcast %cst_50 : f32 to vector<2x256xf32>
    %144 = arith.addf %143, %142 : vector<2x256xf32>
    %145 = arith.divf %143, %144 : vector<2x256xf32>
    %146 = arith.mulf %137, %118 : vector<2x256xf32>
    %147 = arith.mulf %131, %139 : vector<2x256xf32>
    %148 = arith.addf %146, %147 : vector<2x256xf32>
    %149 = math.tanh %148 : vector<2x256xf32>
    %150 = arith.mulf %145, %149 : vector<2x256xf32>
    %151 = vector.extract_strided_slice %86 {offsets = [4, 0], sizes = [2, 1024], strides = [1, 1]} : vector<8x1024xf32> to vector<2x1024xf32>
    %152 = arith.truncf %150 : vector<2x256xf32> to vector<2x256xbf16>
    %c0_51 = arith.constant 0 : index
    %c0_52 = arith.constant 0 : index
    %153 = vector.load %arg23[%c0_51, %c0_52] : memref<256x1024xbf16, #tpu.memory_space<vmem>>, vector<256x1024xbf16>
    %cst_53 = arith.constant dense<0.000000e+00> : vector<2x1024xf32>
    %154 = tpu.matmul %152, %153, %cst_53 {dimension_numbers = #tpu.dot_dimension_numbers<[1], [0], [0], [1], [0, 0, 1, 1], [], []>} : vector<2x256xbf16>, vector<256x1024xbf16>, vector<2x1024xf32> -> vector<2x1024xf32>
    %155 = arith.addf %151, %154 : vector<2x1024xf32>
    %156 = vector.extract_strided_slice %155 {offsets = [0, 0], sizes = [2, 256], strides = [1, 1]} : vector<2x1024xf32> to vector<2x256xf32>
    %157 = arith.negf %156 : vector<2x256xf32>
    %158 = math.exp %157 : vector<2x256xf32>
    %cst_54 = arith.constant 1.000000e+00 : f32
    %159 = vector.broadcast %cst_54 : f32 to vector<2x256xf32>
    %160 = arith.addf %159, %158 : vector<2x256xf32>
    %161 = arith.divf %159, %160 : vector<2x256xf32>
    %162 = vector.extract_strided_slice %155 {offsets = [0, 256], sizes = [2, 256], strides = [1, 1]} : vector<2x1024xf32> to vector<2x256xf32>
    %163 = arith.negf %162 : vector<2x256xf32>
    %164 = math.exp %163 : vector<2x256xf32>
    %cst_55 = arith.constant 1.000000e+00 : f32
    %165 = vector.broadcast %cst_55 : f32 to vector<2x256xf32>
    %166 = arith.addf %165, %164 : vector<2x256xf32>
    %167 = arith.divf %165, %166 : vector<2x256xf32>
    %168 = vector.extract_strided_slice %155 {offsets = [0, 512], sizes = [2, 256], strides = [1, 1]} : vector<2x1024xf32> to vector<2x256xf32>
    %169 = math.tanh %168 : vector<2x256xf32>
    %170 = vector.extract_strided_slice %155 {offsets = [0, 768], sizes = [2, 256], strides = [1, 1]} : vector<2x1024xf32> to vector<2x256xf32>
    %171 = arith.negf %170 : vector<2x256xf32>
    %172 = math.exp %171 : vector<2x256xf32>
    %cst_56 = arith.constant 1.000000e+00 : f32
    %173 = vector.broadcast %cst_56 : f32 to vector<2x256xf32>
    %174 = arith.addf %173, %172 : vector<2x256xf32>
    %175 = arith.divf %173, %174 : vector<2x256xf32>
    %176 = arith.mulf %167, %148 : vector<2x256xf32>
    %177 = arith.mulf %161, %169 : vector<2x256xf32>
    %178 = arith.addf %176, %177 : vector<2x256xf32>
    %179 = math.tanh %178 : vector<2x256xf32>
    %180 = arith.mulf %175, %179 : vector<2x256xf32>
    %181 = vector.extract_strided_slice %86 {offsets = [6, 0], sizes = [2, 1024], strides = [1, 1]} : vector<8x1024xf32> to vector<2x1024xf32>
    %182 = arith.truncf %180 : vector<2x256xf32> to vector<2x256xbf16>
    %c0_57 = arith.constant 0 : index
    %c0_58 = arith.constant 0 : index
    %183 = vector.load %arg23[%c0_57, %c0_58] : memref<256x1024xbf16, #tpu.memory_space<vmem>>, vector<256x1024xbf16>
    %cst_59 = arith.constant dense<0.000000e+00> : vector<2x1024xf32>
    %184 = tpu.matmul %182, %183, %cst_59 {dimension_numbers = #tpu.dot_dimension_numbers<[1], [0], [0], [1], [0, 0, 1, 1], [], []>} : vector<2x256xbf16>, vector<256x1024xbf16>, vector<2x1024xf32> -> vector<2x1024xf32>
    %185 = arith.addf %181, %184 : vector<2x1024xf32>
    %186 = vector.extract_strided_slice %185 {offsets = [0, 0], sizes = [2, 256], strides = [1, 1]} : vector<2x1024xf32> to vector<2x256xf32>
    %187 = arith.negf %186 : vector<2x256xf32>
    %188 = math.exp %187 : vector<2x256xf32>
    %cst_60 = arith.constant 1.000000e+00 : f32
    %189 = vector.broadcast %cst_60 : f32 to vector<2x256xf32>
    %190 = arith.addf %189, %188 : vector<2x256xf32>
    %191 = arith.divf %189, %190 : vector<2x256xf32>
    %192 = vector.extract_strided_slice %185 {offsets = [0, 256], sizes = [2, 256], strides = [1, 1]} : vector<2x1024xf32> to vector<2x256xf32>
    %193 = arith.negf %192 : vector<2x256xf32>
    %194 = math.exp %193 : vector<2x256xf32>
    %cst_61 = arith.constant 1.000000e+00 : f32
    %195 = vector.broadcast %cst_61 : f32 to vector<2x256xf32>
    %196 = arith.addf %195, %194 : vector<2x256xf32>
    %197 = arith.divf %195, %196 : vector<2x256xf32>
    %198 = vector.extract_strided_slice %185 {offsets = [0, 512], sizes = [2, 256], strides = [1, 1]} : vector<2x1024xf32> to vector<2x256xf32>
    %199 = math.tanh %198 : vector<2x256xf32>
    %200 = vector.extract_strided_slice %185 {offsets = [0, 768], sizes = [2, 256], strides = [1, 1]} : vector<2x1024xf32> to vector<2x256xf32>
    %201 = arith.negf %200 : vector<2x256xf32>
    %202 = math.exp %201 : vector<2x256xf32>
    %cst_62 = arith.constant 1.000000e+00 : f32
    %203 = vector.broadcast %cst_62 : f32 to vector<2x256xf32>
    %204 = arith.addf %203, %202 : vector<2x256xf32>
    %205 = arith.divf %203, %204 : vector<2x256xf32>
    %206 = arith.mulf %197, %178 : vector<2x256xf32>
    %207 = arith.mulf %191, %199 : vector<2x256xf32>
    %208 = arith.addf %206, %207 : vector<2x256xf32>
    %209 = math.tanh %208 : vector<2x256xf32>
    %210 = arith.mulf %205, %209 : vector<2x256xf32>
    %211 = vector.shape_cast %75 : vector<1x1024xf32> to vector<1x1024xf32>
    %212 = vector.broadcast %211 : vector<1x1024xf32> to vector<2x1024xf32>
    %213 = arith.truncf %210 : vector<2x256xf32> to vector<2x256xbf16>
    %c0_63 = arith.constant 0 : index
    %c0_64 = arith.constant 0 : index
    %214 = vector.load %arg22[%c0_63, %c0_64] : memref<256x1024xbf16, #tpu.memory_space<vmem>>, vector<256x1024xbf16>
    %cst_65 = arith.constant dense<0.000000e+00> : vector<2x1024xf32>
    %215 = tpu.matmul %213, %214, %cst_65 {dimension_numbers = #tpu.dot_dimension_numbers<[1], [0], [0], [1], [0, 0, 1, 1], [], []>} : vector<2x256xbf16>, vector<256x1024xbf16>, vector<2x1024xf32> -> vector<2x1024xf32>
    %c0_66 = arith.constant 0 : index
    %c0_67 = arith.constant 0 : index
    %216 = vector.load %arg23[%c0_66, %c0_67] : memref<256x1024xbf16, #tpu.memory_space<vmem>>, vector<256x1024xbf16>
    %cst_68 = arith.constant dense<0.000000e+00> : vector<2x1024xf32>
    %217 = tpu.matmul %213, %216, %cst_68 {dimension_numbers = #tpu.dot_dimension_numbers<[1], [0], [0], [1], [0, 0, 1, 1], [], []>} : vector<2x256xbf16>, vector<256x1024xbf16>, vector<2x1024xf32> -> vector<2x1024xf32>
    %218 = arith.addf %215, %217 : vector<2x1024xf32>
    %219 = arith.addf %218, %212 : vector<2x1024xf32>
    %220 = vector.extract_strided_slice %219 {offsets = [0, 0], sizes = [2, 256], strides = [1, 1]} : vector<2x1024xf32> to vector<2x256xf32>
    %221 = arith.negf %220 : vector<2x256xf32>
    %222 = math.exp %221 : vector<2x256xf32>
    %cst_69 = arith.constant 1.000000e+00 : f32
    %223 = vector.broadcast %cst_69 : f32 to vector<2x256xf32>
    %224 = arith.addf %223, %222 : vector<2x256xf32>
    %225 = arith.divf %223, %224 : vector<2x256xf32>
    %226 = vector.extract_strided_slice %219 {offsets = [0, 256], sizes = [2, 256], strides = [1, 1]} : vector<2x1024xf32> to vector<2x256xf32>
    %227 = arith.negf %226 : vector<2x256xf32>
    %228 = math.exp %227 : vector<2x256xf32>
    %cst_70 = arith.constant 1.000000e+00 : f32
    %229 = vector.broadcast %cst_70 : f32 to vector<2x256xf32>
    %230 = arith.addf %229, %228 : vector<2x256xf32>
    %231 = arith.divf %229, %230 : vector<2x256xf32>
    %232 = vector.extract_strided_slice %219 {offsets = [0, 512], sizes = [2, 256], strides = [1, 1]} : vector<2x1024xf32> to vector<2x256xf32>
    %233 = math.tanh %232 : vector<2x256xf32>
    %234 = vector.extract_strided_slice %219 {offsets = [0, 768], sizes = [2, 256], strides = [1, 1]} : vector<2x1024xf32> to vector<2x256xf32>
    %235 = arith.negf %234 : vector<2x256xf32>
    %236 = math.exp %235 : vector<2x256xf32>
    %cst_71 = arith.constant 1.000000e+00 : f32
    %237 = vector.broadcast %cst_71 : f32 to vector<2x256xf32>
    %238 = arith.addf %237, %236 : vector<2x256xf32>
    %239 = arith.divf %237, %238 : vector<2x256xf32>
    %240 = arith.mulf %231, %208 : vector<2x256xf32>
    %241 = arith.mulf %225, %233 : vector<2x256xf32>
    %242 = arith.addf %240, %241 : vector<2x256xf32>
    %243 = math.tanh %242 : vector<2x256xf32>
    %244 = arith.mulf %239, %243 : vector<2x256xf32>
    %245 = arith.truncf %244 : vector<2x256xf32> to vector<2x256xbf16>
    %c0_72 = arith.constant 0 : index
    %c0_73 = arith.constant 0 : index
    %246 = vector.load %arg22[%c0_72, %c0_73] : memref<256x1024xbf16, #tpu.memory_space<vmem>>, vector<256x1024xbf16>
    %cst_74 = arith.constant dense<0.000000e+00> : vector<2x1024xf32>
    %247 = tpu.matmul %245, %246, %cst_74 {dimension_numbers = #tpu.dot_dimension_numbers<[1], [0], [0], [1], [0, 0, 1, 1], [], []>} : vector<2x256xbf16>, vector<256x1024xbf16>, vector<2x1024xf32> -> vector<2x1024xf32>
    %c0_75 = arith.constant 0 : index
    %c0_76 = arith.constant 0 : index
    %248 = vector.load %arg23[%c0_75, %c0_76] : memref<256x1024xbf16, #tpu.memory_space<vmem>>, vector<256x1024xbf16>
    %cst_77 = arith.constant dense<0.000000e+00> : vector<2x1024xf32>
    %249 = tpu.matmul %245, %248, %cst_77 {dimension_numbers = #tpu.dot_dimension_numbers<[1], [0], [0], [1], [0, 0, 1, 1], [], []>} : vector<2x256xbf16>, vector<256x1024xbf16>, vector<2x1024xf32> -> vector<2x1024xf32>
    %250 = arith.addf %247, %249 : vector<2x1024xf32>
    %251 = arith.addf %250, %212 : vector<2x1024xf32>
    %252 = vector.extract_strided_slice %251 {offsets = [0, 0], sizes = [2, 256], strides = [1, 1]} : vector<2x1024xf32> to vector<2x256xf32>
    %253 = arith.negf %252 : vector<2x256xf32>
    %254 = math.exp %253 : vector<2x256xf32>
    %cst_78 = arith.constant 1.000000e+00 : f32
    %255 = vector.broadcast %cst_78 : f32 to vector<2x256xf32>
    %256 = arith.addf %255, %254 : vector<2x256xf32>
    %257 = arith.divf %255, %256 : vector<2x256xf32>
    %258 = vector.extract_strided_slice %251 {offsets = [0, 256], sizes = [2, 256], strides = [1, 1]} : vector<2x1024xf32> to vector<2x256xf32>
    %259 = arith.negf %258 : vector<2x256xf32>
    %260 = math.exp %259 : vector<2x256xf32>
    %cst_79 = arith.constant 1.000000e+00 : f32
    %261 = vector.broadcast %cst_79 : f32 to vector<2x256xf32>
    %262 = arith.addf %261, %260 : vector<2x256xf32>
    %263 = arith.divf %261, %262 : vector<2x256xf32>
    %264 = vector.extract_strided_slice %251 {offsets = [0, 512], sizes = [2, 256], strides = [1, 1]} : vector<2x1024xf32> to vector<2x256xf32>
    %265 = math.tanh %264 : vector<2x256xf32>
    %266 = vector.extract_strided_slice %251 {offsets = [0, 768], sizes = [2, 256], strides = [1, 1]} : vector<2x1024xf32> to vector<2x256xf32>
    %267 = arith.negf %266 : vector<2x256xf32>
    %268 = math.exp %267 : vector<2x256xf32>
    %cst_80 = arith.constant 1.000000e+00 : f32
    %269 = vector.broadcast %cst_80 : f32 to vector<2x256xf32>
    %270 = arith.addf %269, %268 : vector<2x256xf32>
    %271 = arith.divf %269, %270 : vector<2x256xf32>
    %272 = arith.mulf %263, %242 : vector<2x256xf32>
    %273 = arith.mulf %257, %265 : vector<2x256xf32>
    %274 = arith.addf %272, %273 : vector<2x256xf32>
    %275 = math.tanh %274 : vector<2x256xf32>
    %276 = arith.mulf %271, %275 : vector<2x256xf32>
    %277 = arith.truncf %276 : vector<2x256xf32> to vector<2x256xbf16>
    %c0_81 = arith.constant 0 : index
    %c0_82 = arith.constant 0 : index
    %278 = vector.load %arg22[%c0_81, %c0_82] : memref<256x1024xbf16, #tpu.memory_space<vmem>>, vector<256x1024xbf16>
    %cst_83 = arith.constant dense<0.000000e+00> : vector<2x1024xf32>
    %279 = tpu.matmul %277, %278, %cst_83 {dimension_numbers = #tpu.dot_dimension_numbers<[1], [0], [0], [1], [0, 0, 1, 1], [], []>} : vector<2x256xbf16>, vector<256x1024xbf16>, vector<2x1024xf32> -> vector<2x1024xf32>
    %c0_84 = arith.constant 0 : index
    %c0_85 = arith.constant 0 : index
    %280 = vector.load %arg23[%c0_84, %c0_85] : memref<256x1024xbf16, #tpu.memory_space<vmem>>, vector<256x1024xbf16>
    %cst_86 = arith.constant dense<0.000000e+00> : vector<2x1024xf32>
    %281 = tpu.matmul %277, %280, %cst_86 {dimension_numbers = #tpu.dot_dimension_numbers<[1], [0], [0], [1], [0, 0, 1, 1], [], []>} : vector<2x256xbf16>, vector<256x1024xbf16>, vector<2x1024xf32> -> vector<2x1024xf32>
    %282 = arith.addf %279, %281 : vector<2x1024xf32>
    %283 = arith.addf %282, %212 : vector<2x1024xf32>
    %284 = vector.extract_strided_slice %283 {offsets = [0, 0], sizes = [2, 256], strides = [1, 1]} : vector<2x1024xf32> to vector<2x256xf32>
    %285 = arith.negf %284 : vector<2x256xf32>
    %286 = math.exp %285 : vector<2x256xf32>
    %cst_87 = arith.constant 1.000000e+00 : f32
    %287 = vector.broadcast %cst_87 : f32 to vector<2x256xf32>
    %288 = arith.addf %287, %286 : vector<2x256xf32>
    %289 = arith.divf %287, %288 : vector<2x256xf32>
    %290 = vector.extract_strided_slice %283 {offsets = [0, 256], sizes = [2, 256], strides = [1, 1]} : vector<2x1024xf32> to vector<2x256xf32>
    %291 = arith.negf %290 : vector<2x256xf32>
    %292 = math.exp %291 : vector<2x256xf32>
    %cst_88 = arith.constant 1.000000e+00 : f32
    %293 = vector.broadcast %cst_88 : f32 to vector<2x256xf32>
    %294 = arith.addf %293, %292 : vector<2x256xf32>
    %295 = arith.divf %293, %294 : vector<2x256xf32>
    %296 = vector.extract_strided_slice %283 {offsets = [0, 512], sizes = [2, 256], strides = [1, 1]} : vector<2x1024xf32> to vector<2x256xf32>
    %297 = math.tanh %296 : vector<2x256xf32>
    %298 = vector.extract_strided_slice %283 {offsets = [0, 768], sizes = [2, 256], strides = [1, 1]} : vector<2x1024xf32> to vector<2x256xf32>
    %299 = arith.negf %298 : vector<2x256xf32>
    %300 = math.exp %299 : vector<2x256xf32>
    %cst_89 = arith.constant 1.000000e+00 : f32
    %301 = vector.broadcast %cst_89 : f32 to vector<2x256xf32>
    %302 = arith.addf %301, %300 : vector<2x256xf32>
    %303 = arith.divf %301, %302 : vector<2x256xf32>
    %304 = arith.mulf %295, %274 : vector<2x256xf32>
    %305 = arith.mulf %289, %297 : vector<2x256xf32>
    %306 = arith.addf %304, %305 : vector<2x256xf32>
    %307 = math.tanh %306 : vector<2x256xf32>
    %308 = arith.mulf %303, %307 : vector<2x256xf32>
    %309 = tpu.concatenate %120, %150, %180, %210, %244, %276, %308 in 0 : vector<2x256xf32>, vector<2x256xf32>, vector<2x256xf32>, vector<2x256xf32>, vector<2x256xf32>, vector<2x256xf32>, vector<2x256xf32> -> vector<14x256xf32>
    %310 = vector.extract_strided_slice %309 {offsets = [0, 0], sizes = [14, 128], strides = [1, 1]} : vector<14x256xf32> to vector<14x128xf32>
    %311 = arith.truncf %310 : vector<14x128xf32> to vector<14x128xbf16>
    %312 = vector.extract_strided_slice %309 {offsets = [0, 128], sizes = [14, 128], strides = [1, 1]} : vector<14x256xf32> to vector<14x128xf32>
    %313 = arith.truncf %312 : vector<14x128xf32> to vector<14x128xbf16>
    %c0_90 = arith.constant 0 : index
    %c0_91 = arith.constant 0 : index
    %314 = vector.load %arg16[%c0_90, %c0_91] : memref<128x128xbf16, #tpu.memory_space<vmem>>, vector<128x128xbf16>
    %cst_92 = arith.constant dense<0.000000e+00> : vector<14x128xf32>
    %315 = tpu.matmul %311, %314, %cst_92 {dimension_numbers = #tpu.dot_dimension_numbers<[1], [0], [0], [1], [0, 0, 1, 1], [], []>} : vector<14x128xbf16>, vector<128x128xbf16>, vector<14x128xf32> -> vector<14x128xf32>
    %c0_93 = arith.constant 0 : index
    %c0_94 = arith.constant 0 : index
    %316 = vector.load %arg17[%c0_93, %c0_94] : memref<1x128xf32, #tpu.memory_space<vmem>>, vector<1x128xf32>
    %317 = vector.broadcast %316 : vector<1x128xf32> to vector<14x128xf32>
    %318 = arith.addf %315, %317 : vector<14x128xf32>
    %c0_95 = arith.constant 0 : index
    %c0_96 = arith.constant 0 : index
    %319 = vector.load %arg20[%c0_95, %c0_96] : memref<14x128xf32, #tpu.memory_space<vmem>>, vector<14x128xf32>
    tpu.vector_store %arg20[%c0_95, %c0_96], %318 {strides = array<i32>} : memref<14x128xf32, #tpu.memory_space<vmem>>, vector<14x128xf32>,
    %c2_i32_97 = arith.constant 2 : i32
    %320 = tpu.memref_slice %arg25[%c2_i32_97] : memref<3x!tpu.dma_semaphore, #tpu.memory_space<semaphore_mem>> -> memref<1x!tpu.dma_semaphore, #tpu.memory_space<semaphore_mem>>
    %321 = tpu.memref_squeeze %320 : memref<1x!tpu.dma_semaphore, #tpu.memory_space<semaphore_mem>> -> memref<!tpu.dma_semaphore, #tpu.memory_space<semaphore_mem>>
    tpu.wait_dma2 semaphore(%321 : memref<!tpu.dma_semaphore, #tpu.memory_space<semaphore_mem>>) src(%arg18 : memref<128x1024xbf16, #tpu.memory_space<any>>) dst(%arg24 : memref<128x1024xbf16, #tpu.memory_space<vmem>>)
    %c0_98 = arith.constant 0 : index
    %c0_99 = arith.constant 0 : index
    %322 = vector.load %arg24[%c0_98, %c0_99] : memref<128x1024xbf16, #tpu.memory_space<vmem>>, vector<128x1024xbf16>
    %cst_100 = arith.constant dense<0.000000e+00> : vector<14x1024xf32>
    %323 = tpu.matmul %313, %322, %cst_100 {dimension_numbers = #tpu.dot_dimension_numbers<[1], [0], [0], [1], [0, 0, 1, 1], [], []>} : vector<14x128xbf16>, vector<128x1024xbf16>, vector<14x1024xf32> -> vector<14x1024xf32>
    %c0_101 = arith.constant 0 : index
    %c0_102 = arith.constant 0 : index
    %324 = vector.load %arg19[%c0_101, %c0_102] : memref<1x1024xf32, #tpu.memory_space<vmem>>, vector<1x1024xf32>
    %325 = vector.broadcast %324 : vector<1x1024xf32> to vector<14x1024xf32>
    %326 = arith.addf %323, %325 : vector<14x1024xf32>
    %c0_103 = arith.constant 0 : index
    %c0_104 = arith.constant 0 : index
    %327 = vector.load %arg21[%c0_103, %c0_104] : memref<14x1024xf32, #tpu.memory_space<vmem>>, vector<14x1024xf32>
    tpu.vector_store %arg21[%c0_103, %c0_104], %326 {strides = array<i32>} : memref<14x1024xf32, #tpu.memory_space<vmem>>, vector<14x1024xf32>,
    return
  }
  func.func @transform_0(%arg0: i32) -> (i32, i32) {
    %c0_i32 = arith.constant 0 : i32
    %c0_i32_0 = arith.constant 0 : i32
    %c0_i32_1 = arith.constant 0 : i32
    return %c0_i32, %c0_i32_0 : i32, i32
  }
  func.func @transform_1(%arg0: i32) -> (i32, i32) {
    %c0_i32 = arith.constant 0 : i32
    %c0_i32_0 = arith.constant 0 : i32
    %c0_i32_1 = arith.constant 0 : i32
    return %c0_i32, %c0_i32_0 : i32, i32
  }
  func.func @transform_2(%arg0: i32) -> (i32, i32) {
    %c0_i32 = arith.constant 0 : i32
    %c0_i32_0 = arith.constant 0 : i32
    %c0_i32_1 = arith.constant 0 : i32
    return %c0_i32, %c0_i32_0 : i32, i32
  }
  func.func @transform_3(%arg0: i32) -> (i32, i32) {
    %c0_i32 = arith.constant 0 : i32
    %c0_i32_0 = arith.constant 0 : i32
    %c0_i32_1 = arith.constant 0 : i32
    return %c0_i32, %c0_i32_0 : i32, i32
  }
  func.func @transform_4(%arg0: i32) -> (i32, i32) {
    %c0_i32 = arith.constant 0 : i32
    %c0_i32_0 = arith.constant 0 : i32
    %c0_i32_1 = arith.constant 0 : i32
    return %c0_i32, %c0_i32_0 : i32, i32
  }
  func.func @transform_5(%arg0: i32) -> (i32, i32) {
    %c0_i32 = arith.constant 0 : i32
    %c0_i32_0 = arith.constant 0 : i32
    %c0_i32_1 = arith.constant 0 : i32
    return %c0_i32, %c0_i32_0 : i32, i32
  }
  func.func @transform_6(%arg0: i32) -> (i32, i32) {
    %c0_i32 = arith.constant 0 : i32
    %c0_i32_0 = arith.constant 0 : i32
    %c0_i32_1 = arith.constant 0 : i32
    return %c0_i32, %c0_i32_0 : i32, i32
  }
  func.func @transform_7(%arg0: i32) -> (i32, i32) {
    %c0_i32 = arith.constant 0 : i32
    %c0_i32_0 = arith.constant 0 : i32
    %c0_i32_1 = arith.constant 0 : i32
    return %c0_i32, %c0_i32_0 : i32, i32
  }
  func.func @transform_8(%arg0: i32) -> (i32, i32) {
    %c0_i32 = arith.constant 0 : i32
    %c0_i32_0 = arith.constant 0 : i32
    %c0_i32_1 = arith.constant 0 : i32
    return %c0_i32, %c0_i32_0 : i32, i32
  }
  func.func @transform_9(%arg0: i32) -> (i32, i32) {
    %c0_i32 = arith.constant 0 : i32
    %c0_i32_0 = arith.constant 0 : i32
    %c0_i32_1 = arith.constant 0 : i32
    return %c0_i32, %c0_i32_0 : i32, i32
  }
  func.func @transform_12(%arg0: i32) -> (i32, i32) {
    %c0_i32 = arith.constant 0 : i32
    %c0_i32_0 = arith.constant 0 : i32
    %c0_i32_1 = arith.constant 0 : i32
    return %c0_i32, %c0_i32_0 : i32, i32
  }
  func.func @transform_13(%arg0: i32) -> (i32, i32) {
    %c0_i32 = arith.constant 0 : i32
    %c0_i32_0 = arith.constant 0 : i32
    %c0_i32_1 = arith.constant 0 : i32
    return %c0_i32, %c0_i32_0 : i32, i32
  }
  func.func @transform_14(%arg0: i32) -> (i32, i32) {
    %c0_i32 = arith.constant 0 : i32
    %c0_i32_0 = arith.constant 0 : i32
    %c0_i32_1 = arith.constant 0 : i32
    return %c0_i32, %c0_i32_0 : i32, i32
  }
  func.func @transform_15(%arg0: i32) -> (i32, i32) {
    %c0_i32 = arith.constant 0 : i32
    %c0_i32_0 = arith.constant 0 : i32
    %c0_i32_1 = arith.constant 0 : i32
    return %c0_i32, %c0_i32_0 : i32, i32
  }
  func.func @transform_16(%arg0: i32) -> (i32, i32) {
    %c0_i32 = arith.constant 0 : i32
    %c0_i32_0 = arith.constant 0 : i32
    %c0_i32_1 = arith.constant 0 : i32
    return %c0_i32, %c0_i32_0 : i32, i32
  }
  func.func @transform_18(%arg0: i32) -> (i32, i32) {
    %c0_i32 = arith.constant 0 : i32
    %c0_i32_0 = arith.constant 0 : i32
    %c0_i32_1 = arith.constant 0 : i32
    return %c0_i32, %c0_i32_0 : i32, i32
  }
  func.func @transform_19(%arg0: i32) -> (i32, i32) {
    %c0_i32 = arith.constant 0 : i32
    %c0_i32_0 = arith.constant 0 : i32
    %c0_i32_1 = arith.constant 0 : i32
    return %c0_i32, %c0_i32_0 : i32, i32
  }
  func.func @transform_20(%arg0: i32) -> (i32, i32) {
    %c0_i32 = arith.constant 0 : i32
    %c0_i32_0 = arith.constant 0 : i32
    %c0_i32_1 = arith.constant 0 : i32
    return %c0_i32, %c0_i32_0 : i32, i32
  }
}

</mosaic_0001>

<llo_original>
// kernel: forward.1
$region0: #{forward.1}
  #allocation0 [shape = 'u32[]', space=smem, size = 0x4, offset = 0x4, fixed_abs, tag = 'smem constant byte address 0x4 - core index']
  #allocation1 [shape = 'u32[144,128]{1,0:T(1,128)}', space=vmem, size = 0x12000, scoped, tag = 'internal scratch']
  #allocation2 [shape = 'bf16[256,1024]{1,0:T(8,128)(2,1)}', space=vmem, size = 0x80000, scoped, tag = 'scratch operand']
  #allocation3 [shape = 'bf16[256,1024]{1,0:T(8,128)(2,1)}', space=vmem, size = 0x80000, scoped, tag = 'scratch operand']
  #allocation4 [shape = 'bf16[128,1024]{1,0:T(8,128)(2,1)}', space=vmem, size = 0x40000, scoped, tag = 'scratch operand']
  #allocation5 [shape = 's32[3]{0}', space=sflag, size = 0xc, scoped, tag = 'scratch operand']
  #allocation6 [shape = 's32[]', space=sflag, size = 0x4, offset = 0, fixed_abs, tag = 'sflag constant byte address 0x0 - dummy sync flag']
  #allocation7 [shape = 's32[]', space=sflag, size = 0x4, offset = 0, fixed_abs, tag = 'sflag constant byte address 0x0 - dummy sync flag']
  #allocation8 [shape = 's32[]', space=sflag, size = 0x4, offset = 0, fixed_abs, tag = 'sflag constant byte address 0x0 - dummy sync flag']
  %s0 = inlined_call_operand.vmem [shape: bf16[128,72], index: 0, kind: input, shape index: {}]
  %s1 = inlined_call_operand.vmem [shape: bf16[8,16], index: 1, kind: input, shape index: {}]
  %s2 = inlined_call_operand.vmem [shape: bf16[72,16], index: 2, kind: input, shape index: {}]
  %s3 = inlined_call_operand.vmem [shape: f32[1,16], index: 3, kind: input, shape index: {}]
  %s4 = inlined_call_operand.vmem [shape: bf16[144,32], index: 4, kind: input, shape index: {}]
  %s5 = inlined_call_operand.vmem [shape: f32[1,32], index: 5, kind: input, shape index: {}]
  %s6 = inlined_call_operand.vmem [shape: bf16[32,128], index: 6, kind: input, shape index: {}]
  %s7 = inlined_call_operand.vmem [shape: f32[1,128], index: 7, kind: input, shape index: {}]
  %s8 = inlined_call_operand.vmem [shape: bf16[16,128], index: 8, kind: input, shape index: {}]
  %s9 = inlined_call_operand.vmem [shape: f32[1,128], index: 9, kind: input, shape index: {}]
  %s10 = inlined_call_operand.vmem [shape: bf16[256,1024], index: 10, kind: input, shape index: {}]
  %s11 = inlined_call_operand.vmem [shape: bf16[256,1024], index: 11, kind: input, shape index: {}]
  %s12 = inlined_call_operand.vmem [shape: f32[1,1024], index: 12, kind: input, shape index: {}]
  %s13 = inlined_call_operand.vmem [shape: f32[2,256], index: 13, kind: input, shape index: {}]
  %s14 = inlined_call_operand.vmem [shape: f32[2,256], index: 14, kind: input, shape index: {}]
  %s15 = inlined_call_operand.vmem [shape: bf16[128,128], index: 15, kind: input, shape index: {}]
  %s16 = inlined_call_operand.vmem [shape: f32[1,128], index: 16, kind: input, shape index: {}]
  %s17 = inlined_call_operand.vmem [shape: bf16[128,1024], index: 17, kind: input, shape index: {}]
  %s18 = inlined_call_operand.vmem [shape: f32[1,1024], index: 18, kind: input, shape index: {}]
  %s19 = inlined_call_operand.vmem [shape: f32[14,128], index: 19, kind: output, shape index: {0}]
  %s20 = inlined_call_operand.vmem [shape: f32[14,1024], index: 20, kind: output, shape index: {1}]
  %21 = xla_tuple %s19, %s20
  %s22 = sld [smem:[#allocation0]]
  $region184: #{forward.1} parent=0
    _
  %s24 = ssub.s32 1, %s22
  %s25 = scalar_select 0, %s24, %s22
  // Predicated region
  $region2: #{forward.1} parent=0 // pred_check
    _
  $region3: #{forward.1} parent=0 // pred_check_branch
    %27 = sbr.rel (0) target = $region5
  $region4: #{forward.1} parent=0 // pred_region
    _
  $region5: #{forward.1} parent=0 // pred_fallthru
    _
  // Predicated region
  $region6: #{forward.1} parent=0 // pred_check
    _
  $region7: #{forward.1} parent=0 // pred_check_branch
    %29 = sbr.rel (0) target = $region9
  $region8: #{forward.1} parent=0 // pred_region
    _
  $region9: #{forward.1} parent=0 // pred_fallthru
    _
  // Predicated region
  $region10: #{forward.1} parent=0 // pred_check
    _
  $region11: #{forward.1} parent=0 // pred_check_branch
    %31 = sbr.rel (0) target = $region13
  $region12: #{forward.1} parent=0 // pred_region
    _
  $region13: #{forward.1} parent=0 // pred_fallthru
    _
  // Predicated region
  $region14: #{forward.1} parent=0 // pred_check
    _
  $region15: #{forward.1} parent=0 // pred_check_branch
    %33 = sbr.rel (0) target = $region17
  $region16: #{forward.1} parent=0 // pred_region
    _
  $region17: #{forward.1} parent=0 // pred_fallthru
    _
  // Predicated region
  $region18: #{forward.1} parent=0 // pred_check
    _
  $region19: #{forward.1} parent=0 // pred_check_branch
    %35 = sbr.rel (0) target = $region21
  $region20: #{forward.1} parent=0 // pred_region
    _
  $region21: #{forward.1} parent=0 // pred_fallthru
    _
  // Predicated region
  $region22: #{forward.1} parent=0 // pred_check
    _
  $region23: #{forward.1} parent=0 // pred_check_branch
    %37 = sbr.rel (0) target = $region25
  $region24: #{forward.1} parent=0 // pred_region
    _
  $region25: #{forward.1} parent=0 // pred_fallthru
    _
  // Predicated region
  $region26: #{forward.1} parent=0 // pred_check
    _
  $region27: #{forward.1} parent=0 // pred_check_branch
    %39 = sbr.rel (0) target = $region29
  $region28: #{forward.1} parent=0 // pred_region
    _
  $region29: #{forward.1} parent=0 // pred_fallthru
    _
  // Predicated region
  $region30: #{forward.1} parent=0 // pred_check
    _
  $region31: #{forward.1} parent=0 // pred_check_branch
    %41 = sbr.rel (0) target = $region33
  $region32: #{forward.1} parent=0 // pred_region
    _
  $region33: #{forward.1} parent=0 // pred_fallthru
    _
  // Predicated region
  $region34: #{forward.1} parent=0 // pred_check
    _
  $region35: #{forward.1} parent=0 // pred_check_branch
    %43 = sbr.rel (0) target = $region37
  $region36: #{forward.1} parent=0 // pred_region
    _
  $region37: #{forward.1} parent=0 // pred_fallthru
    _
  // Predicated region
  $region38: #{forward.1} parent=0 // pred_check
    _
  $region39: #{forward.1} parent=0 // pred_check_branch
    %45 = sbr.rel (0) target = $region41
  $region40: #{forward.1} parent=0 // pred_region
    _
  $region41: #{forward.1} parent=0 // pred_fallthru
    _
  // Predicated region
  $region42: #{forward.1} parent=0 // pred_check
    _
  $region43: #{forward.1} parent=0 // pred_check_branch
    %47 = sbr.rel (0) target = $region45
  $region44: #{forward.1} parent=0 // pred_region
    _
  $region45: #{forward.1} parent=0 // pred_fallthru
    _
  // Predicated region
  $region46: #{forward.1} parent=0 // pred_check
    _
  $region47: #{forward.1} parent=0 // pred_check_branch
    %49 = sbr.rel (0) target = $region49
  $region48: #{forward.1} parent=0 // pred_region
    _
  $region49: #{forward.1} parent=0 // pred_fallthru
    _
  // Predicated region
  $region50: #{forward.1} parent=0 // pred_check
    _
  $region51: #{forward.1} parent=0 // pred_check_branch
    %51 = sbr.rel (0) target = $region53
  $region52: #{forward.1} parent=0 // pred_region
    _
  $region53: #{forward.1} parent=0 // pred_fallthru
    _
  // Predicated region
  $region54: #{forward.1} parent=0 // pred_check
    _
  $region55: #{forward.1} parent=0 // pred_check_branch
    %53 = sbr.rel (0) target = $region57
  $region56: #{forward.1} parent=0 // pred_region
    _
  $region57: #{forward.1} parent=0 // pred_fallthru
    _
  // Predicated region
  $region58: #{forward.1} parent=0 // pred_check
    _
  $region59: #{forward.1} parent=0 // pred_check_branch
    %55 = sbr.rel (0) target = $region61
  $region60: #{forward.1} parent=0 // pred_region
    _
  $region61: #{forward.1} parent=0 // pred_fallthru
    _
  // Predicated region
  $region62: #{forward.1} parent=0 // pred_check
    _
  $region63: #{forward.1} parent=0 // pred_check_branch
    %57 = sbr.rel (0) target = $region65
  $region64: #{forward.1} parent=0 // pred_region
    _
  $region65: #{forward.1} parent=0 // pred_fallthru
    _
  %p60 = scmp.lt.u32.totalorder 1024, 8
  %p61 = pneg %p60
  // Predicated region
  $region66: #{forward.1} parent=0 // pred_check
    _
  $region67: #{forward.1} parent=0 // pred_check_branch
    %63 = sbr.rel (%p60) target = $region69
  $region68: #{forward.1} parent=0 // pred_region
    %s79 = sand.u32 1024, 7
    %p80 = scmp.eq.s32.totalorder %s79, 0
    // Predicated region
    $region81: #{forward.1} parent=68 // pred_check
      %p81 = pneg %p80
    $region82: #{forward.1} parent=68 // pred_check_branch
      %83 = sbr.rel (%p81) target = $region84
    $region83: #{forward.1} parent=68 // pred_region
      loop: start=0, step=1, limit=1
      $region85: #{forward.1} parent=83 // loop_pre_header
        _
      $region86: #{forward.1} parent=83 // loop_header
        %s85 = sphi 0, %s89
        %p86 = scmp.ge.s32.totalorder %s85, 1
        %s90 = sphi %s10, %s10
        %s91 = sphi [#allocation2], [#allocation2]
      $region87: #{forward.1} parent=83 // loop_header_branch
        %88 = sbr.rel (%p86) target = $region91
      $region88: #{forward.1} parent=83 // loop_body
        %v92 = vld [vmem:[%s90] sm:$0xff]
        %93 = vst [vmem:[%s91] sm:$0xff] %v92
        %v94 = vld [vmem:[%s90 + $0x8] sm:$0xff]
        %95 = vst [vmem:[%s91 + $0x8] sm:$0xff] %v94
        %v96 = vld [vmem:[%s90 + $0x10] sm:$0xff]
        %97 = vst [vmem:[%s91 + $0x10] sm:$0xff] %v96
        %v98 = vld [vmem:[%s90 + $0x18] sm:$0xff]
        %99 = vst [vmem:[%s91 + $0x18] sm:$0xff] %v98
        %v100 = vld [vmem:[%s90 + $0x20] sm:$0xff]
        %101 = vst [vmem:[%s91 + $0x20] sm:$0xff] %v100
        %v102 = vld [vmem:[%s90 + $0x28] sm:$0xff]
        %103 = vst [vmem:[%s91 + $0x28] sm:$0xff] %v102
        %v104 = vld [vmem:[%s90 + $0x30] sm:$0xff]
        %105 = vst [vmem:[%s91 + $0x30] sm:$0xff] %v104
        %v106 = vld [vmem:[%s90 + $0x38] sm:$0xff]
        %107 = vst [vmem:[%s91 + $0x38] sm:$0xff] %v106
        %v108 = vld [vmem:[%s90 + $0x40] sm:$0xff]
        %109 = vst [vmem:[%s91 + $0x40] sm:$0xff] %v108
        %v110 = vld [vmem:[%s90 + $0x48] sm:$0xff]
        %111 = vst [vmem:[%s91 + $0x48] sm:$0xff] %v110
        %v112 = vld [vmem:[%s90 + $0x50] sm:$0xff]
        %113 = vst [vmem:[%s91 + $0x50] sm:$0xff] %v112
        %v114 = vld [vmem:[%s90 + $0x58] sm:$0xff]
        %115 = vst [vmem:[%s91 + $0x58] sm:$0xff] %v114
        %v116 = vld [vmem:[%s90 + $0x60] sm:$0xff]
        %117 = vst [vmem:[%s91 + $0x60] sm:$0xff] %v116
        %v118 = vld [vmem:[%s90 + $0x68] sm:$0xff]
        %119 = vst [vmem:[%s91 + $0x68] sm:$0xff] %v118
        %v120 = vld [vmem:[%s90 + $0x70] sm:$0xff]
        %121 = vst [vmem:[%s91 + $0x70] sm:$0xff] %v120
        %v122 = vld [vmem:[%s90 + $0x78] sm:$0xff]
        %123 = vst [vmem:[%s91 + $0x78] sm:$0xff] %v122
        %v124 = vld [vmem:[%s90 + $0x80] sm:$0xff]
        %125 = vst [vmem:[%s91 + $0x80] sm:$0xff] %v124
        %v126 = vld [vmem:[%s90 + $0x88] sm:$0xff]
        %127 = vst [vmem:[%s91 + $0x88] sm:$0xff] %v126
        %v128 = vld [vmem:[%s90 + $0x90] sm:$0xff]
        %129 = vst [vmem:[%s91 + $0x90] sm:$0xff] %v128
        %v130 = vld [vmem:[%s90 + $0x98] sm:$0xff]
        %131 = vst [vmem:[%s91 + $0x98] sm:$0xff] %v130
        %v132 = vld [vmem:[%s90 + $0xa0] sm:$0xff]
        %133 = vst [vmem:[%s91 + $0xa0] sm:$0xff] %v132
        %v134 = vld [vmem:[%s90 + $0xa8] sm:$0xff]
        %135 = vst [vmem:[%s91 + $0xa8] sm:$0xff] %v134
        %v136 = vld [vmem:[%s90 + $0xb0] sm:$0xff]
        %137 = vst [vmem:[%s91 + $0xb0] sm:$0xff] %v136
        %v138 = vld [vmem:[%s90 + $0xb8] sm:$0xff]
        %139 = vst [vmem:[%s91 + $0xb8] sm:$0xff] %v138
        %v140 = vld [vmem:[%s90 + $0xc0] sm:$0xff]
        %141 = vst [vmem:[%s91 + $0xc0] sm:$0xff] %v140
        %v142 = vld [vmem:[%s90 + $0xc8] sm:$0xff]
        %143 = vst [vmem:[%s91 + $0xc8] sm:$0xff] %v142
        %v144 = vld [vmem:[%s90 + $0xd0] sm:$0xff]
        %145 = vst [vmem:[%s91 + $0xd0] sm:$0xff] %v144
        %v146 = vld [vmem:[%s90 + $0xd8] sm:$0xff]
        %147 = vst [vmem:[%s91 + $0xd8] sm:$0xff] %v146
        %v148 = vld [vmem:[%s90 + $0xe0] sm:$0xff]
        %149 = vst [vmem:[%s91 + $0xe0] sm:$0xff] %v148
        %v150 = vld [vmem:[%s90 + $0xe8] sm:$0xff]
        %151 = vst [vmem:[%s91 + $0xe8] sm:$0xff] %v150
        %v152 = vld [vmem:[%s90 + $0xf0] sm:$0xff]
        %153 = vst [vmem:[%s91 + $0xf0] sm:$0xff] %v152
        %v154 = vld [vmem:[%s90 + $0xf8] sm:$0xff]
        %155 = vst [vmem:[%s91 + $0xf8] sm:$0xff] %v154
        %v156 = vld [vmem:[%s90 + $0x100] sm:$0xff]
        %157 = vst [vmem:[%s91 + $0x100] sm:$0xff] %v156
        %v158 = vld [vmem:[%s90 + $0x108] sm:$0xff]
        %159 = vst [vmem:[%s91 + $0x108] sm:$0xff] %v158
        %v160 = vld [vmem:[%s90 + $0x110] sm:$0xff]
        %161 = vst [vmem:[%s91 + $0x110] sm:$0xff] %v160
        %v162 = vld [vmem:[%s90 + $0x118] sm:$0xff]
        %163 = vst [vmem:[%s91 + $0x118] sm:$0xff] %v162
        %v164 = vld [vmem:[%s90 + $0x120] sm:$0xff]
        %165 = vst [vmem:[%s91 + $0x120] sm:$0xff] %v164
        %v166 = vld [vmem:[%s90 + $0x128] sm:$0xff]
        %167 = vst [vmem:[%s91 + $0x128] sm:$0xff] %v166
        %v168 = vld [vmem:[%s90 + $0x130] sm:$0xff]
        %169 = vst [vmem:[%s91 + $0x130] sm:$0xff] %v168
        %v170 = vld [vmem:[%s90 + $0x138] sm:$0xff]
        %171 = vst [vmem:[%s91 + $0x138] sm:$0xff] %v170
        %v172 = vld [vmem:[%s90 + $0x140] sm:$0xff]
        %173 = vst [vmem:[%s91 + $0x140] sm:$0xff] %v172
        %v174 = vld [vmem:[%s90 + $0x148] sm:$0xff]
        %175 = vst [vmem:[%s91 + $0x148] sm:$0xff] %v174
        %v176 = vld [vmem:[%s90 + $0x150] sm:$0xff]
        %177 = vst [vmem:[%s91 + $0x150] sm:$0xff] %v176
        %v178 = vld [vmem:[%s90 + $0x158] sm:$0xff]
        %179 = vst [vmem:[%s91 + $0x158] sm:$0xff] %v178
        %v180 = vld [vmem:[%s90 + $0x160] sm:$0xff]
        %181 = vst [vmem:[%s91 + $0x160] sm:$0xff] %v180
        %v182 = vld [vmem:[%s90 + $0x168] sm:$0xff]
        %183 = vst [vmem:[%s91 + $0x168] sm:$0xff] %v182
        %v184 = vld [vmem:[%s90 + $0x170] sm:$0xff]
        %185 = vst [vmem:[%s91 + $0x170] sm:$0xff] %v184
        %v186 = vld [vmem:[%s90 + $0x178] sm:$0xff]
        %187 = vst [vmem:[%s91 + $0x178] sm:$0xff] %v186
        %v188 = vld [vmem:[%s90 + $0x180] sm:$0xff]
        %189 = vst [vmem:[%s91 + $0x180] sm:$0xff] %v188
        %v190 = vld [vmem:[%s90 + $0x188] sm:$0xff]
        %191 = vst [vmem:[%s91 + $0x188] sm:$0xff] %v190
        %v192 = vld [vmem:[%s90 + $0x190] sm:$0xff]
        %193 = vst [vmem:[%s91 + $0x190] sm:$0xff] %v192
        %v194 = vld [vmem:[%s90 + $0x198] sm:$0xff]
        %195 = vst [vmem:[%s91 + $0x198] sm:$0xff] %v194
        %v196 = vld [vmem:[%s90 + $0x1a0] sm:$0xff]
        %197 = vst [vmem:[%s91 + $0x1a0] sm:$0xff] %v196
        %v198 = vld [vmem:[%s90 + $0x1a8] sm:$0xff]
        %199 = vst [vmem:[%s91 + $0x1a8] sm:$0xff] %v198
        %v200 = vld [vmem:[%s90 + $0x1b0] sm:$0xff]
        %201 = vst [vmem:[%s91 + $0x1b0] sm:$0xff] %v200
        %v202 = vld [vmem:[%s90 + $0x1b8] sm:$0xff]
        %203 = vst [vmem:[%s91 + $0x1b8] sm:$0xff] %v202
        %v204 = vld [vmem:[%s90 + $0x1c0] sm:$0xff]
        %205 = vst [vmem:[%s91 + $0x1c0] sm:$0xff] %v204
        %v206 = vld [vmem:[%s90 + $0x1c8] sm:$0xff]
        %207 = vst [vmem:[%s91 + $0x1c8] sm:$0xff] %v206
        %v208 = vld [vmem:[%s90 + $0x1d0] sm:$0xff]
        %209 = vst [vmem:[%s91 + $0x1d0] sm:$0xff] %v208
        %v210 = vld [vmem:[%s90 + $0x1d8] sm:$0xff]
        %211 = vst [vmem:[%s91 + $0x1d8] sm:$0xff] %v210
        %v212 = vld [vmem:[%s90 + $0x1e0] sm:$0xff]
        %213 = vst [vmem:[%s91 + $0x1e0] sm:$0xff] %v212
        %v214 = vld [vmem:[%s90 + $0x1e8] sm:$0xff]
        %215 = vst [vmem:[%s91 + $0x1e8] sm:$0xff] %v214
        %v216 = vld [vmem:[%s90 + $0x1f0] sm:$0xff]
        %217 = vst [vmem:[%s91 + $0x1f0] sm:$0xff] %v216
        %v218 = vld [vmem:[%s90 + $0x1f8] sm:$0xff]
        %219 = vst [vmem:[%s91 + $0x1f8] sm:$0xff] %v218
        %v220 = vld [vmem:[%s90 + $0x200] sm:$0xff]
        %221 = vst [vmem:[%s91 + $0x200] sm:$0xff] %v220
        %v222 = vld [vmem:[%s90 + $0x208] sm:$0xff]
        %223 = vst [vmem:[%s91 + $0x208] sm:$0xff] %v222
        %v224 = vld [vmem:[%s90 + $0x210] sm:$0xff]
        %225 = vst [vmem:[%s91 + $0x210] sm:$0xff] %v224
        %v226 = vld [vmem:[%s90 + $0x218] sm:$0xff]
        %227 = vst [vmem:[%s91 + $0x218] sm:$0xff] %v226
        %v228 = vld [vmem:[%s90 + $0x220] sm:$0xff]
        %229 = vst [vmem:[%s91 + $0x220] sm:$0xff] %v228
        %v230 = vld [vmem:[%s90 + $0x228] sm:$0xff]
        %231 = vst [vmem:[%s91 + $0x228] sm:$0xff] %v230
        %v232 = vld [vmem:[%s90 + $0x230] sm:$0xff]
        %233 = vst [vmem:[%s91 + $0x230] sm:$0xff] %v232
        %v234 = vld [vmem:[%s90 + $0x238] sm:$0xff]
        %235 = vst [vmem:[%s91 + $0x238] sm:$0xff] %v234
        %v236 = vld [vmem:[%s90 + $0x240] sm:$0xff]
        %237 = vst [vmem:[%s91 + $0x240] sm:$0xff] %v236
        %v238 = vld [vmem:[%s90 + $0x248] sm:$0xff]
        %239 = vst [vmem:[%s91 + $0x248] sm:$0xff] %v238
        %v240 = vld [vmem:[%s90 + $0x250] sm:$0xff]
        %241 = vst [vmem:[%s91 + $0x250] sm:$0xff] %v240
        %v242 = vld [vmem:[%s90 + $0x258] sm:$0xff]
        %243 = vst [vmem:[%s91 + $0x258] sm:$0xff] %v242
        %v244 = vld [vmem:[%s90 + $0x260] sm:$0xff]
        %245 = vst [vmem:[%s91 + $0x260] sm:$0xff] %v244
        %v246 = vld [vmem:[%s90 + $0x268] sm:$0xff]
        %247 = vst [vmem:[%s91 + $0x268] sm:$0xff] %v246
        %v248 = vld [vmem:[%s90 + $0x270] sm:$0xff]
        %249 = vst [vmem:[%s91 + $0x270] sm:$0xff] %v248
        %v250 = vld [vmem:[%s90 + $0x278] sm:$0xff]
        %251 = vst [vmem:[%s91 + $0x278] sm:$0xff] %v250
        %v252 = vld [vmem:[%s90 + $0x280] sm:$0xff]
        %253 = vst [vmem:[%s91 + $0x280] sm:$0xff] %v252
        %v254 = vld [vmem:[%s90 + $0x288] sm:$0xff]
        %255 = vst [vmem:[%s91 + $0x288] sm:$0xff] %v254
        %v256 = vld [vmem:[%s90 + $0x290] sm:$0xff]
        %257 = vst [vmem:[%s91 + $0x290] sm:$0xff] %v256
        %v258 = vld [vmem:[%s90 + $0x298] sm:$0xff]
        %259 = vst [vmem:[%s91 + $0x298] sm:$0xff] %v258
        %v260 = vld [vmem:[%s90 + $0x2a0] sm:$0xff]
        %261 = vst [vmem:[%s91 + $0x2a0] sm:$0xff] %v260
        %v262 = vld [vmem:[%s90 + $0x2a8] sm:$0xff]
        %263 = vst [vmem:[%s91 + $0x2a8] sm:$0xff] %v262
        %v264 = vld [vmem:[%s90 + $0x2b0] sm:$0xff]
        %265 = vst [vmem:[%s91 + $0x2b0] sm:$0xff] %v264
        %v266 = vld [vmem:[%s90 + $0x2b8] sm:$0xff]
        %267 = vst [vmem:[%s91 + $0x2b8] sm:$0xff] %v266
        %v268 = vld [vmem:[%s90 + $0x2c0] sm:$0xff]
        %269 = vst [vmem:[%s91 + $0x2c0] sm:$0xff] %v268
        %v270 = vld [vmem:[%s90 + $0x2c8] sm:$0xff]
        %271 = vst [vmem:[%s91 + $0x2c8] sm:$0xff] %v270
        %v272 = vld [vmem:[%s90 + $0x2d0] sm:$0xff]
        %273 = vst [vmem:[%s91 + $0x2d0] sm:$0xff] %v272
        %v274 = vld [vmem:[%s90 + $0x2d8] sm:$0xff]
        %275 = vst [vmem:[%s91 + $0x2d8] sm:$0xff] %v274
        %v276 = vld [vmem:[%s90 + $0x2e0] sm:$0xff]
        %277 = vst [vmem:[%s91 + $0x2e0] sm:$0xff] %v276
        %v278 = vld [vmem:[%s90 + $0x2e8] sm:$0xff]
        %279 = vst [vmem:[%s91 + $0x2e8] sm:$0xff] %v278
        %v280 = vld [vmem:[%s90 + $0x2f0] sm:$0xff]
        %281 = vst [vmem:[%s91 + $0x2f0] sm:$0xff] %v280
        %v282 = vld [vmem:[%s90 + $0x2f8] sm:$0xff]
        %283 = vst [vmem:[%s91 + $0x2f8] sm:$0xff] %v282
        %v284 = vld [vmem:[%s90 + $0x300] sm:$0xff]
        %285 = vst [vmem:[%s91 + $0x300] sm:$0xff] %v284
        %v286 = vld [vmem:[%s90 + $0x308] sm:$0xff]
        %287 = vst [vmem:[%s91 + $0x308] sm:$0xff] %v286
        %v288 = vld [vmem:[%s90 + $0x310] sm:$0xff]
        %289 = vst [vmem:[%s91 + $0x310] sm:$0xff] %v288
        %v290 = vld [vmem:[%s90 + $0x318] sm:$0xff]
        %291 = vst [vmem:[%s91 + $0x318] sm:$0xff] %v290
        %v292 = vld [vmem:[%s90 + $0x320] sm:$0xff]
        %293 = vst [vmem:[%s91 + $0x320] sm:$0xff] %v292
        %v294 = vld [vmem:[%s90 + $0x328] sm:$0xff]
        %295 = vst [vmem:[%s91 + $0x328] sm:$0xff] %v294
        %v296 = vld [vmem:[%s90 + $0x330] sm:$0xff]
        %297 = vst [vmem:[%s91 + $0x330] sm:$0xff] %v296
        %v298 = vld [vmem:[%s90 + $0x338] sm:$0xff]
        %299 = vst [vmem:[%s91 + $0x338] sm:$0xff] %v298
        %v300 = vld [vmem:[%s90 + $0x340] sm:$0xff]
        %301 = vst [vmem:[%s91 + $0x340] sm:$0xff] %v300
        %v302 = vld [vmem:[%s90 + $0x348] sm:$0xff]
        %303 = vst [vmem:[%s91 + $0x348] sm:$0xff] %v302
        %v304 = vld [vmem:[%s90 + $0x350] sm:$0xff]
        %305 = vst [vmem:[%s91 + $0x350] sm:$0xff] %v304
        %v306 = vld [vmem:[%s90 + $0x358] sm:$0xff]
        %307 = vst [vmem:[%s91 + $0x358] sm:$0xff] %v306
        %v308 = vld [vmem:[%s90 + $0x360] sm:$0xff]
        %309 = vst [vmem:[%s91 + $0x360] sm:$0xff] %v308
        %v310 = vld [vmem:[%s90 + $0x368] sm:$0xff]
        %311 = vst [vmem:[%s91 + $0x368] sm:$0xff] %v310
        %v312 = vld [vmem:[%s90 + $0x370] sm:$0xff]
        %313 = vst [vmem:[%s91 + $0x370] sm:$0xff] %v312
        %v314 = vld [vmem:[%s90 + $0x378] sm:$0xff]
        %315 = vst [vmem:[%s91 + $0x378] sm:$0xff] %v314
        %v316 = vld [vmem:[%s90 + $0x380] sm:$0xff]
        %317 = vst [vmem:[%s91 + $0x380] sm:$0xff] %v316
        %v318 = vld [vmem:[%s90 + $0x388] sm:$0xff]
        %319 = vst [vmem:[%s91 + $0x388] sm:$0xff] %v318
        %v320 = vld [vmem:[%s90 + $0x390] sm:$0xff]
        %321 = vst [vmem:[%s91 + $0x390] sm:$0xff] %v320
        %v322 = vld [vmem:[%s90 + $0x398] sm:$0xff]
        %323 = vst [vmem:[%s91 + $0x398] sm:$0xff] %v322
        %v324 = vld [vmem:[%s90 + $0x3a0] sm:$0xff]
        %325 = vst [vmem:[%s91 + $0x3a0] sm:$0xff] %v324
        %v326 = vld [vmem:[%s90 + $0x3a8] sm:$0xff]
        %327 = vst [vmem:[%s91 + $0x3a8] sm:$0xff] %v326
        %v328 = vld [vmem:[%s90 + $0x3b0] sm:$0xff]
        %329 = vst [vmem:[%s91 + $0x3b0] sm:$0xff] %v328
        %v330 = vld [vmem:[%s90 + $0x3b8] sm:$0xff]
        %331 = vst [vmem:[%s91 + $0x3b8] sm:$0xff] %v330
        %v332 = vld [vmem:[%s90 + $0x3c0] sm:$0xff]
        %333 = vst [vmem:[%s91 + $0x3c0] sm:$0xff] %v332
        %v334 = vld [vmem:[%s90 + $0x3c8] sm:$0xff]
        %335 = vst [vmem:[%s91 + $0x3c8] sm:$0xff] %v334
        %v336 = vld [vmem:[%s90 + $0x3d0] sm:$0xff]
        %337 = vst [vmem:[%s91 + $0x3d0] sm:$0xff] %v336
        %v338 = vld [vmem:[%s90 + $0x3d8] sm:$0xff]
        %339 = vst [vmem:[%s91 + $0x3d8] sm:$0xff] %v338
        %v340 = vld [vmem:[%s90 + $0x3e0] sm:$0xff]
        %341 = vst [vmem:[%s91 + $0x3e0] sm:$0xff] %v340
        %v342 = vld [vmem:[%s90 + $0x3e8] sm:$0xff]
        %343 = vst [vmem:[%s91 + $0x3e8] sm:$0xff] %v342
        %v344 = vld [vmem:[%s90 + $0x3f0] sm:$0xff]
        %345 = vst [vmem:[%s91 + $0x3f0] sm:$0xff] %v344
        %v346 = vld [vmem:[%s90 + $0x3f8] sm:$0xff]
        %347 = vst [vmem:[%s91 + $0x3f8] sm:$0xff] %v346
      $region89: #{forward.1} parent=83 // loop_footer
        %s89 = sadd.s32 1, %s85
      $region90: #{forward.1} parent=83 // loop_footer_branch
        %84 = sbr.rel target = $region86
      $region91: #{forward.1} parent=83 // loop_exit
        _
    $region84: #{forward.1} parent=68 // pred_fallthru
      _
    %p348 = pneg %p80
    // Predicated region
    $region92: #{forward.1} parent=68 // pred_check
      _
    $region93: #{forward.1} parent=68 // pred_check_branch
      %350 = sbr.rel (%p80) target = $region95
    $region94: #{forward.1} parent=68 // pred_region
      %s351 = sand.u32 1024, 7
    $region95: #{forward.1} parent=68 // pred_fallthru
      _
  $region69: #{forward.1} parent=0 // pred_fallthru
    _
  // Predicated region
  $region70: #{forward.1} parent=0 // pred_check
    %p64 = pneg %p60
  $region71: #{forward.1} parent=0 // pred_check_branch
    %66 = sbr.rel (%p64) target = $region73
  $region72: #{forward.1} parent=0 // pred_region
    %s67 = sshll.u32 1, 1024
    %s68 = ssub.s32 %s67, 1
    loop: start=0, step=1, limit=1
    $region74: #{forward.1} parent=72 // loop_pre_header
      _
    $region75: #{forward.1} parent=72 // loop_header
      %s70 = sphi 0, %s74
      %p71 = scmp.ge.s32.totalorder %s70, 1
      %s75 = sphi %s10, %s10
      %s76 = sphi [#allocation2], [#allocation2]
    $region76: #{forward.1} parent=72 // loop_header_branch
      %73 = sbr.rel (%p71) target = $region80
    $region77: #{forward.1} parent=72 // loop_body
      %v77 = vld [vmem:[%s75] sm:%s68]
      %78 = vst [vmem:[%s76] sm:%s68] %v77
    $region78: #{forward.1} parent=72 // loop_footer
      %s74 = sadd.s32 1, %s70
    $region79: #{forward.1} parent=72 // loop_footer_branch
      %69 = sbr.rel target = $region75
    $region80: #{forward.1} parent=72 // loop_exit
      _
  $region73: #{forward.1} parent=0 // pred_fallthru
    _
  // Predicated region
  $region96: #{forward.1} parent=0 // pred_check
    _
  $region97: #{forward.1} parent=0 // pred_check_branch
    %354 = sbr.rel (0) target = $region99
  $region98: #{forward.1} parent=0 // pred_region
    %355 = vsyncadd [#allocation5], 16384
  $region99: #{forward.1} parent=0 // pred_fallthru
    _
  %s356 = scalar_lea.sflag [#allocation5], 1
  %p358 = scmp.lt.u32.totalorder 1024, 8
  %p359 = pneg %p358
  // Predicated region
  $region100: #{forward.1} parent=0 // pred_check
    _
  $region101: #{forward.1} parent=0 // pred_check_branch
    %361 = sbr.rel (%p358) target = $region103
  $region102: #{forward.1} parent=0 // pred_region
    %s377 = sand.u32 1024, 7
    %p378 = scmp.eq.s32.totalorder %s377, 0
    // Predicated region
    $region115: #{forward.1} parent=102 // pred_check
      %p379 = pneg %p378
    $region116: #{forward.1} parent=102 // pred_check_branch
      %381 = sbr.rel (%p379) target = $region118
    $region117: #{forward.1} parent=102 // pred_region
      loop: start=0, step=1, limit=1
      $region119: #{forward.1} parent=117 // loop_pre_header
        _
      $region120: #{forward.1} parent=117 // loop_header
        %s383 = sphi 0, %s387
        %p384 = scmp.ge.s32.totalorder %s383, 1
        %s388 = sphi %s11, %s11
        %s389 = sphi [#allocation3], [#allocation3]
      $region121: #{forward.1} parent=117 // loop_header_branch
        %386 = sbr.rel (%p384) target = $region125
      $region122: #{forward.1} parent=117 // loop_body
        %v390 = vld [vmem:[%s388] sm:$0xff]
        %391 = vst [vmem:[%s389] sm:$0xff] %v390
        %v392 = vld [vmem:[%s388 + $0x8] sm:$0xff]
        %393 = vst [vmem:[%s389 + $0x8] sm:$0xff] %v392
        %v394 = vld [vmem:[%s388 + $0x10] sm:$0xff]
        %395 = vst [vmem:[%s389 + $0x10] sm:$0xff] %v394
        %v396 = vld [vmem:[%s388 + $0x18] sm:$0xff]
        %397 = vst [vmem:[%s389 + $0x18] sm:$0xff] %v396
        %v398 = vld [vmem:[%s388 + $0x20] sm:$0xff]
        %399 = vst [vmem:[%s389 + $0x20] sm:$0xff] %v398
        %v400 = vld [vmem:[%s388 + $0x28] sm:$0xff]
        %401 = vst [vmem:[%s389 + $0x28] sm:$0xff] %v400
        %v402 = vld [vmem:[%s388 + $0x30] sm:$0xff]
        %403 = vst [vmem:[%s389 + $0x30] sm:$0xff] %v402
        %v404 = vld [vmem:[%s388 + $0x38] sm:$0xff]
        %405 = vst [vmem:[%s389 + $0x38] sm:$0xff] %v404
        %v406 = vld [vmem:[%s388 + $0x40] sm:$0xff]
        %407 = vst [vmem:[%s389 + $0x40] sm:$0xff] %v406
        %v408 = vld [vmem:[%s388 + $0x48] sm:$0xff]
        %409 = vst [vmem:[%s389 + $0x48] sm:$0xff] %v408
        %v410 = vld [vmem:[%s388 + $0x50] sm:$0xff]
        %411 = vst [vmem:[%s389 + $0x50] sm:$0xff] %v410
        %v412 = vld [vmem:[%s388 + $0x58] sm:$0xff]
        %413 = vst [vmem:[%s389 + $0x58] sm:$0xff] %v412
        %v414 = vld [vmem:[%s388 + $0x60] sm:$0xff]
        %415 = vst [vmem:[%s389 + $0x60] sm:$0xff] %v414
        %v416 = vld [vmem:[%s388 + $0x68] sm:$0xff]
        %417 = vst [vmem:[%s389 + $0x68] sm:$0xff] %v416
        %v418 = vld [vmem:[%s388 + $0x70] sm:$0xff]
        %419 = vst [vmem:[%s389 + $0x70] sm:$0xff] %v418
        %v420 = vld [vmem:[%s388 + $0x78] sm:$0xff]
        %421 = vst [vmem:[%s389 + $0x78] sm:$0xff] %v420
        %v422 = vld [vmem:[%s388 + $0x80] sm:$0xff]
        %423 = vst [vmem:[%s389 + $0x80] sm:$0xff] %v422
        %v424 = vld [vmem:[%s388 + $0x88] sm:$0xff]
        %425 = vst [vmem:[%s389 + $0x88] sm:$0xff] %v424
        %v426 = vld [vmem:[%s388 + $0x90] sm:$0xff]
        %427 = vst [vmem:[%s389 + $0x90] sm:$0xff] %v426
        %v428 = vld [vmem:[%s388 + $0x98] sm:$0xff]
        %429 = vst [vmem:[%s389 + $0x98] sm:$0xff] %v428
        %v430 = vld [vmem:[%s388 + $0xa0] sm:$0xff]
        %431 = vst [vmem:[%s389 + $0xa0] sm:$0xff] %v430
        %v432 = vld [vmem:[%s388 + $0xa8] sm:$0xff]
        %433 = vst [vmem:[%s389 + $0xa8] sm:$0xff] %v432
        %v434 = vld [vmem:[%s388 + $0xb0] sm:$0xff]
        %435 = vst [vmem:[%s389 + $0xb0] sm:$0xff] %v434
        %v436 = vld [vmem:[%s388 + $0xb8] sm:$0xff]
        %437 = vst [vmem:[%s389 + $0xb8] sm:$0xff] %v436
        %v438 = vld [vmem:[%s388 + $0xc0] sm:$0xff]
        %439 = vst [vmem:[%s389 + $0xc0] sm:$0xff] %v438
        %v440 = vld [vmem:[%s388 + $0xc8] sm:$0xff]
        %441 = vst [vmem:[%s389 + $0xc8] sm:$0xff] %v440
        %v442 = vld [vmem:[%s388 + $0xd0] sm:$0xff]
        %443 = vst [vmem:[%s389 + $0xd0] sm:$0xff] %v442
        %v444 = vld [vmem:[%s388 + $0xd8] sm:$0xff]
        %445 = vst [vmem:[%s389 + $0xd8] sm:$0xff] %v444
        %v446 = vld [vmem:[%s388 + $0xe0] sm:$0xff]
        %447 = vst [vmem:[%s389 + $0xe0] sm:$0xff] %v446
        %v448 = vld [vmem:[%s388 + $0xe8] sm:$0xff]
        %449 = vst [vmem:[%s389 + $0xe8] sm:$0xff] %v448
        %v450 = vld [vmem:[%s388 + $0xf0] sm:$0xff]
        %451 = vst [vmem:[%s389 + $0xf0] sm:$0xff] %v450
        %v452 = vld [vmem:[%s388 + $0xf8] sm:$0xff]
        %453 = vst [vmem:[%s389 + $0xf8] sm:$0xff] %v452
        %v454 = vld [vmem:[%s388 + $0x100] sm:$0xff]
        %455 = vst [vmem:[%s389 + $0x100] sm:$0xff] %v454
        %v456 = vld [vmem:[%s388 + $0x108] sm:$0xff]
        %457 = vst [vmem:[%s389 + $0x108] sm:$0xff] %v456
        %v458 = vld [vmem:[%s388 + $0x110] sm:$0xff]
        %459 = vst [vmem:[%s389 + $0x110] sm:$0xff] %v458
        %v460 = vld [vmem:[%s388 + $0x118] sm:$0xff]
        %461 = vst [vmem:[%s389 + $0x118] sm:$0xff] %v460
        %v462 = vld [vmem:[%s388 + $0x120] sm:$0xff]
        %463 = vst [vmem:[%s389 + $0x120] sm:$0xff] %v462
        %v464 = vld [vmem:[%s388 + $0x128] sm:$0xff]
        %465 = vst [vmem:[%s389 + $0x128] sm:$0xff] %v464
        %v466 = vld [vmem:[%s388 + $0x130] sm:$0xff]
        %467 = vst [vmem:[%s389 + $0x130] sm:$0xff] %v466
        %v468 = vld [vmem:[%s388 + $0x138] sm:$0xff]
        %469 = vst [vmem:[%s389 + $0x138] sm:$0xff] %v468
        %v470 = vld [vmem:[%s388 + $0x140] sm:$0xff]
        %471 = vst [vmem:[%s389 + $0x140] sm:$0xff] %v470
        %v472 = vld [vmem:[%s388 + $0x148] sm:$0xff]
        %473 = vst [vmem:[%s389 + $0x148] sm:$0xff] %v472
        %v474 = vld [vmem:[%s388 + $0x150] sm:$0xff]
        %475 = vst [vmem:[%s389 + $0x150] sm:$0xff] %v474
        %v476 = vld [vmem:[%s388 + $0x158] sm:$0xff]
        %477 = vst [vmem:[%s389 + $0x158] sm:$0xff] %v476
        %v478 = vld [vmem:[%s388 + $0x160] sm:$0xff]
        %479 = vst [vmem:[%s389 + $0x160] sm:$0xff] %v478
        %v480 = vld [vmem:[%s388 + $0x168] sm:$0xff]
        %481 = vst [vmem:[%s389 + $0x168] sm:$0xff] %v480
        %v482 = vld [vmem:[%s388 + $0x170] sm:$0xff]
        %483 = vst [vmem:[%s389 + $0x170] sm:$0xff] %v482
        %v484 = vld [vmem:[%s388 + $0x178] sm:$0xff]
        %485 = vst [vmem:[%s389 + $0x178] sm:$0xff] %v484
        %v486 = vld [vmem:[%s388 + $0x180] sm:$0xff]
        %487 = vst [vmem:[%s389 + $0x180] sm:$0xff] %v486
        %v488 = vld [vmem:[%s388 + $0x188] sm:$0xff]
        %489 = vst [vmem:[%s389 + $0x188] sm:$0xff] %v488
        %v490 = vld [vmem:[%s388 + $0x190] sm:$0xff]
        %491 = vst [vmem:[%s389 + $0x190] sm:$0xff] %v490
        %v492 = vld [vmem:[%s388 + $0x198] sm:$0xff]
        %493 = vst [vmem:[%s389 + $0x198] sm:$0xff] %v492
        %v494 = vld [vmem:[%s388 + $0x1a0] sm:$0xff]
        %495 = vst [vmem:[%s389 + $0x1a0] sm:$0xff] %v494
        %v496 = vld [vmem:[%s388 + $0x1a8] sm:$0xff]
        %497 = vst [vmem:[%s389 + $0x1a8] sm:$0xff] %v496
        %v498 = vld [vmem:[%s388 + $0x1b0] sm:$0xff]
        %499 = vst [vmem:[%s389 + $0x1b0] sm:$0xff] %v498
        %v500 = vld [vmem:[%s388 + $0x1b8] sm:$0xff]
        %501 = vst [vmem:[%s389 + $0x1b8] sm:$0xff] %v500
        %v502 = vld [vmem:[%s388 + $0x1c0] sm:$0xff]
        %503 = vst [vmem:[%s389 + $0x1c0] sm:$0xff] %v502
        %v504 = vld [vmem:[%s388 + $0x1c8] sm:$0xff]
        %505 = vst [vmem:[%s389 + $0x1c8] sm:$0xff] %v504
        %v506 = vld [vmem:[%s388 + $0x1d0] sm:$0xff]
        %507 = vst [vmem:[%s389 + $0x1d0] sm:$0xff] %v506
        %v508 = vld [vmem:[%s388 + $0x1d8] sm:$0xff]
        %509 = vst [vmem:[%s389 + $0x1d8] sm:$0xff] %v508
        %v510 = vld [vmem:[%s388 + $0x1e0] sm:$0xff]
        %511 = vst [vmem:[%s389 + $0x1e0] sm:$0xff] %v510
        %v512 = vld [vmem:[%s388 + $0x1e8] sm:$0xff]
        %513 = vst [vmem:[%s389 + $0x1e8] sm:$0xff] %v512
        %v514 = vld [vmem:[%s388 + $0x1f0] sm:$0xff]
        %515 = vst [vmem:[%s389 + $0x1f0] sm:$0xff] %v514
        %v516 = vld [vmem:[%s388 + $0x1f8] sm:$0xff]
        %517 = vst [vmem:[%s389 + $0x1f8] sm:$0xff] %v516
        %v518 = vld [vmem:[%s388 + $0x200] sm:$0xff]
        %519 = vst [vmem:[%s389 + $0x200] sm:$0xff] %v518
        %v520 = vld [vmem:[%s388 + $0x208] sm:$0xff]
        %521 = vst [vmem:[%s389 + $0x208] sm:$0xff] %v520
        %v522 = vld [vmem:[%s388 + $0x210] sm:$0xff]
        %523 = vst [vmem:[%s389 + $0x210] sm:$0xff] %v522
        %v524 = vld [vmem:[%s388 + $0x218] sm:$0xff]
        %525 = vst [vmem:[%s389 + $0x218] sm:$0xff] %v524
        %v526 = vld [vmem:[%s388 + $0x220] sm:$0xff]
        %527 = vst [vmem:[%s389 + $0x220] sm:$0xff] %v526
        %v528 = vld [vmem:[%s388 + $0x228] sm:$0xff]
        %529 = vst [vmem:[%s389 + $0x228] sm:$0xff] %v528
        %v530 = vld [vmem:[%s388 + $0x230] sm:$0xff]
        %531 = vst [vmem:[%s389 + $0x230] sm:$0xff] %v530
        %v532 = vld [vmem:[%s388 + $0x238] sm:$0xff]
        %533 = vst [vmem:[%s389 + $0x238] sm:$0xff] %v532
        %v534 = vld [vmem:[%s388 + $0x240] sm:$0xff]
        %535 = vst [vmem:[%s389 + $0x240] sm:$0xff] %v534
        %v536 = vld [vmem:[%s388 + $0x248] sm:$0xff]
        %537 = vst [vmem:[%s389 + $0x248] sm:$0xff] %v536
        %v538 = vld [vmem:[%s388 + $0x250] sm:$0xff]
        %539 = vst [vmem:[%s389 + $0x250] sm:$0xff] %v538
        %v540 = vld [vmem:[%s388 + $0x258] sm:$0xff]
        %541 = vst [vmem:[%s389 + $0x258] sm:$0xff] %v540
        %v542 = vld [vmem:[%s388 + $0x260] sm:$0xff]
        %543 = vst [vmem:[%s389 + $0x260] sm:$0xff] %v542
        %v544 = vld [vmem:[%s388 + $0x268] sm:$0xff]
        %545 = vst [vmem:[%s389 + $0x268] sm:$0xff] %v544
        %v546 = vld [vmem:[%s388 + $0x270] sm:$0xff]
        %547 = vst [vmem:[%s389 + $0x270] sm:$0xff] %v546
        %v548 = vld [vmem:[%s388 + $0x278] sm:$0xff]
        %549 = vst [vmem:[%s389 + $0x278] sm:$0xff] %v548
        %v550 = vld [vmem:[%s388 + $0x280] sm:$0xff]
        %551 = vst [vmem:[%s389 + $0x280] sm:$0xff] %v550
        %v552 = vld [vmem:[%s388 + $0x288] sm:$0xff]
        %553 = vst [vmem:[%s389 + $0x288] sm:$0xff] %v552
        %v554 = vld [vmem:[%s388 + $0x290] sm:$0xff]
        %555 = vst [vmem:[%s389 + $0x290] sm:$0xff] %v554
        %v556 = vld [vmem:[%s388 + $0x298] sm:$0xff]
        %557 = vst [vmem:[%s389 + $0x298] sm:$0xff] %v556
        %v558 = vld [vmem:[%s388 + $0x2a0] sm:$0xff]
        %559 = vst [vmem:[%s389 + $0x2a0] sm:$0xff] %v558
        %v560 = vld [vmem:[%s388 + $0x2a8] sm:$0xff]
        %561 = vst [vmem:[%s389 + $0x2a8] sm:$0xff] %v560
        %v562 = vld [vmem:[%s388 + $0x2b0] sm:$0xff]
        %563 = vst [vmem:[%s389 + $0x2b0] sm:$0xff] %v562
        %v564 = vld [vmem:[%s388 + $0x2b8] sm:$0xff]
        %565 = vst [vmem:[%s389 + $0x2b8] sm:$0xff] %v564
        %v566 = vld [vmem:[%s388 + $0x2c0] sm:$0xff]
        %567 = vst [vmem:[%s389 + $0x2c0] sm:$0xff] %v566
        %v568 = vld [vmem:[%s388 + $0x2c8] sm:$0xff]
        %569 = vst [vmem:[%s389 + $0x2c8] sm:$0xff] %v568
        %v570 = vld [vmem:[%s388 + $0x2d0] sm:$0xff]
        %571 = vst [vmem:[%s389 + $0x2d0] sm:$0xff] %v570
        %v572 = vld [vmem:[%s388 + $0x2d8] sm:$0xff]
        %573 = vst [vmem:[%s389 + $0x2d8] sm:$0xff] %v572
        %v574 = vld [vmem:[%s388 + $0x2e0] sm:$0xff]
        %575 = vst [vmem:[%s389 + $0x2e0] sm:$0xff] %v574
        %v576 = vld [vmem:[%s388 + $0x2e8] sm:$0xff]
        %577 = vst [vmem:[%s389 + $0x2e8] sm:$0xff] %v576
        %v578 = vld [vmem:[%s388 + $0x2f0] sm:$0xff]
        %579 = vst [vmem:[%s389 + $0x2f0] sm:$0xff] %v578
        %v580 = vld [vmem:[%s388 + $0x2f8] sm:$0xff]
        %581 = vst [vmem:[%s389 + $0x2f8] sm:$0xff] %v580
        %v582 = vld [vmem:[%s388 + $0x300] sm:$0xff]
        %583 = vst [vmem:[%s389 + $0x300] sm:$0xff] %v582
        %v584 = vld [vmem:[%s388 + $0x308] sm:$0xff]
        %585 = vst [vmem:[%s389 + $0x308] sm:$0xff] %v584
        %v586 = vld [vmem:[%s388 + $0x310] sm:$0xff]
        %587 = vst [vmem:[%s389 + $0x310] sm:$0xff] %v586
        %v588 = vld [vmem:[%s388 + $0x318] sm:$0xff]
        %589 = vst [vmem:[%s389 + $0x318] sm:$0xff] %v588
        %v590 = vld [vmem:[%s388 + $0x320] sm:$0xff]
        %591 = vst [vmem:[%s389 + $0x320] sm:$0xff] %v590
        %v592 = vld [vmem:[%s388 + $0x328] sm:$0xff]
        %593 = vst [vmem:[%s389 + $0x328] sm:$0xff] %v592
        %v594 = vld [vmem:[%s388 + $0x330] sm:$0xff]
        %595 = vst [vmem:[%s389 + $0x330] sm:$0xff] %v594
        %v596 = vld [vmem:[%s388 + $0x338] sm:$0xff]
        %597 = vst [vmem:[%s389 + $0x338] sm:$0xff] %v596
        %v598 = vld [vmem:[%s388 + $0x340] sm:$0xff]
        %599 = vst [vmem:[%s389 + $0x340] sm:$0xff] %v598
        %v600 = vld [vmem:[%s388 + $0x348] sm:$0xff]
        %601 = vst [vmem:[%s389 + $0x348] sm:$0xff] %v600
        %v602 = vld [vmem:[%s388 + $0x350] sm:$0xff]
        %603 = vst [vmem:[%s389 + $0x350] sm:$0xff] %v602
        %v604 = vld [vmem:[%s388 + $0x358] sm:$0xff]
        %605 = vst [vmem:[%s389 + $0x358] sm:$0xff] %v604
        %v606 = vld [vmem:[%s388 + $0x360] sm:$0xff]
        %607 = vst [vmem:[%s389 + $0x360] sm:$0xff] %v606
        %v608 = vld [vmem:[%s388 + $0x368] sm:$0xff]
        %609 = vst [vmem:[%s389 + $0x368] sm:$0xff] %v608
        %v610 = vld [vmem:[%s388 + $0x370] sm:$0xff]
        %611 = vst [vmem:[%s389 + $0x370] sm:$0xff] %v610
        %v612 = vld [vmem:[%s388 + $0x378] sm:$0xff]
        %613 = vst [vmem:[%s389 + $0x378] sm:$0xff] %v612
        %v614 = vld [vmem:[%s388 + $0x380] sm:$0xff]
        %615 = vst [vmem:[%s389 + $0x380] sm:$0xff] %v614
        %v616 = vld [vmem:[%s388 + $0x388] sm:$0xff]
        %617 = vst [vmem:[%s389 + $0x388] sm:$0xff] %v616
        %v618 = vld [vmem:[%s388 + $0x390] sm:$0xff]
        %619 = vst [vmem:[%s389 + $0x390] sm:$0xff] %v618
        %v620 = vld [vmem:[%s388 + $0x398] sm:$0xff]
        %621 = vst [vmem:[%s389 + $0x398] sm:$0xff] %v620
        %v622 = vld [vmem:[%s388 + $0x3a0] sm:$0xff]
        %623 = vst [vmem:[%s389 + $0x3a0] sm:$0xff] %v622
        %v624 = vld [vmem:[%s388 + $0x3a8] sm:$0xff]
        %625 = vst [vmem:[%s389 + $0x3a8] sm:$0xff] %v624
        %v626 = vld [vmem:[%s388 + $0x3b0] sm:$0xff]
        %627 = vst [vmem:[%s389 + $0x3b0] sm:$0xff] %v626
        %v628 = vld [vmem:[%s388 + $0x3b8] sm:$0xff]
        %629 = vst [vmem:[%s389 + $0x3b8] sm:$0xff] %v628
        %v630 = vld [vmem:[%s388 + $0x3c0] sm:$0xff]
        %631 = vst [vmem:[%s389 + $0x3c0] sm:$0xff] %v630
        %v632 = vld [vmem:[%s388 + $0x3c8] sm:$0xff]
        %633 = vst [vmem:[%s389 + $0x3c8] sm:$0xff] %v632
        %v634 = vld [vmem:[%s388 + $0x3d0] sm:$0xff]
        %635 = vst [vmem:[%s389 + $0x3d0] sm:$0xff] %v634
        %v636 = vld [vmem:[%s388 + $0x3d8] sm:$0xff]
        %637 = vst [vmem:[%s389 + $0x3d8] sm:$0xff] %v636
        %v638 = vld [vmem:[%s388 + $0x3e0] sm:$0xff]
        %639 = vst [vmem:[%s389 + $0x3e0] sm:$0xff] %v638
        %v640 = vld [vmem:[%s388 + $0x3e8] sm:$0xff]
        %641 = vst [vmem:[%s389 + $0x3e8] sm:$0xff] %v640
        %v642 = vld [vmem:[%s388 + $0x3f0] sm:$0xff]
        %643 = vst [vmem:[%s389 + $0x3f0] sm:$0xff] %v642
        %v644 = vld [vmem:[%s388 + $0x3f8] sm:$0xff]
        %645 = vst [vmem:[%s389 + $0x3f8] sm:$0xff] %v644
      $region123: #{forward.1} parent=117 // loop_footer
        %s387 = sadd.s32 1, %s383
      $region124: #{forward.1} parent=117 // loop_footer_branch
        %382 = sbr.rel target = $region120
      $region125: #{forward.1} parent=117 // loop_exit
        _
    $region118: #{forward.1} parent=102 // pred_fallthru
      _
    %p646 = pneg %p378
    // Predicated region
    $region126: #{forward.1} parent=102 // pred_check
      _
    $region127: #{forward.1} parent=102 // pred_check_branch
      %648 = sbr.rel (%p378) target = $region129
    $region128: #{forward.1} parent=102 // pred_region
      %s649 = sand.u32 1024, 7
    $region129: #{forward.1} parent=102 // pred_fallthru
      _
  $region103: #{forward.1} parent=0 // pred_fallthru
    _
  // Predicated region
  $region104: #{forward.1} parent=0 // pred_check
    %p362 = pneg %p358
  $region105: #{forward.1} parent=0 // pred_check_branch
    %364 = sbr.rel (%p362) target = $region107
  $region106: #{forward.1} parent=0 // pred_region
    %s365 = sshll.u32 1, 1024
    %s366 = ssub.s32 %s365, 1
    loop: start=0, step=1, limit=1
    $region108: #{forward.1} parent=106 // loop_pre_header
      _
    $region109: #{forward.1} parent=106 // loop_header
      %s368 = sphi 0, %s372
      %p369 = scmp.ge.s32.totalorder %s368, 1
      %s373 = sphi %s11, %s11
      %s374 = sphi [#allocation3], [#allocation3]
    $region110: #{forward.1} parent=106 // loop_header_branch
      %371 = sbr.rel (%p369) target = $region114
    $region111: #{forward.1} parent=106 // loop_body
      %v375 = vld [vmem:[%s373] sm:%s366]
      %376 = vst [vmem:[%s374] sm:%s366] %v375
    $region112: #{forward.1} parent=106 // loop_footer
      %s372 = sadd.s32 1, %s368
    $region113: #{forward.1} parent=106 // loop_footer_branch
      %367 = sbr.rel target = $region109
    $region114: #{forward.1} parent=106 // loop_exit
      _
  $region107: #{forward.1} parent=0 // pred_fallthru
    _
  // Predicated region
  $region130: #{forward.1} parent=0 // pred_check
    _
  $region131: #{forward.1} parent=0 // pred_check_branch
    %652 = sbr.rel (0) target = $region133
  $region132: #{forward.1} parent=0 // pred_region
    %653 = vsyncadd %s356, 16384
  $region133: #{forward.1} parent=0 // pred_fallthru
    _
  %s654 = scalar_lea.sflag [#allocation5], 2
  %p656 = scmp.lt.u32.totalorder 512, 8
  %p657 = pneg %p656
  // Predicated region
  $region134: #{forward.1} parent=0 // pred_check
    _
  $region135: #{forward.1} parent=0 // pred_check_branch
    %659 = sbr.rel (%p656) target = $region137
  $region136: #{forward.1} parent=0 // pred_region
    %s675 = sand.u32 512, 7
    %p676 = scmp.eq.s32.totalorder %s675, 0
    // Predicated region
    $region149: #{forward.1} parent=136 // pred_check
      %p677 = pneg %p676
    $region150: #{forward.1} parent=136 // pred_check_branch
      %679 = sbr.rel (%p677) target = $region152
    $region151: #{forward.1} parent=136 // pred_region
      loop: start=0, step=1, limit=1
      $region153: #{forward.1} parent=151 // loop_pre_header
        _
      $region154: #{forward.1} parent=151 // loop_header
        %s681 = sphi 0, %s685
        %p682 = scmp.ge.s32.totalorder %s681, 1
        %s686 = sphi %s17, %s17
        %s687 = sphi [#allocation4], [#allocation4]
      $region155: #{forward.1} parent=151 // loop_header_branch
        %684 = sbr.rel (%p682) target = $region159
      $region156: #{forward.1} parent=151 // loop_body
        %v688 = vld [vmem:[%s686] sm:$0xff]
        %689 = vst [vmem:[%s687] sm:$0xff] %v688
        %v690 = vld [vmem:[%s686 + $0x8] sm:$0xff]
        %691 = vst [vmem:[%s687 + $0x8] sm:$0xff] %v690
        %v692 = vld [vmem:[%s686 + $0x10] sm:$0xff]
        %693 = vst [vmem:[%s687 + $0x10] sm:$0xff] %v692
        %v694 = vld [vmem:[%s686 + $0x18] sm:$0xff]
        %695 = vst [vmem:[%s687 + $0x18] sm:$0xff] %v694
        %v696 = vld [vmem:[%s686 + $0x20] sm:$0xff]
        %697 = vst [vmem:[%s687 + $0x20] sm:$0xff] %v696
        %v698 = vld [vmem:[%s686 + $0x28] sm:$0xff]
        %699 = vst [vmem:[%s687 + $0x28] sm:$0xff] %v698
        %v700 = vld [vmem:[%s686 + $0x30] sm:$0xff]
        %701 = vst [vmem:[%s687 + $0x30] sm:$0xff] %v700
        %v702 = vld [vmem:[%s686 + $0x38] sm:$0xff]
        %703 = vst [vmem:[%s687 + $0x38] sm:$0xff] %v702
        %v704 = vld [vmem:[%s686 + $0x40] sm:$0xff]
        %705 = vst [vmem:[%s687 + $0x40] sm:$0xff] %v704
        %v706 = vld [vmem:[%s686 + $0x48] sm:$0xff]
        %707 = vst [vmem:[%s687 + $0x48] sm:$0xff] %v706
        %v708 = vld [vmem:[%s686 + $0x50] sm:$0xff]
        %709 = vst [vmem:[%s687 + $0x50] sm:$0xff] %v708
        %v710 = vld [vmem:[%s686 + $0x58] sm:$0xff]
        %711 = vst [vmem:[%s687 + $0x58] sm:$0xff] %v710
        %v712 = vld [vmem:[%s686 + $0x60] sm:$0xff]
        %713 = vst [vmem:[%s687 + $0x60] sm:$0xff] %v712
        %v714 = vld [vmem:[%s686 + $0x68] sm:$0xff]
        %715 = vst [vmem:[%s687 + $0x68] sm:$0xff] %v714
        %v716 = vld [vmem:[%s686 + $0x70] sm:$0xff]
        %717 = vst [vmem:[%s687 + $0x70] sm:$0xff] %v716
        %v718 = vld [vmem:[%s686 + $0x78] sm:$0xff]
        %719 = vst [vmem:[%s687 + $0x78] sm:$0xff] %v718
        %v720 = vld [vmem:[%s686 + $0x80] sm:$0xff]
        %721 = vst [vmem:[%s687 + $0x80] sm:$0xff] %v720
        %v722 = vld [vmem:[%s686 + $0x88] sm:$0xff]
        %723 = vst [vmem:[%s687 + $0x88] sm:$0xff] %v722
        %v724 = vld [vmem:[%s686 + $0x90] sm:$0xff]
        %725 = vst [vmem:[%s687 + $0x90] sm:$0xff] %v724
        %v726 = vld [vmem:[%s686 + $0x98] sm:$0xff]
        %727 = vst [vmem:[%s687 + $0x98] sm:$0xff] %v726
        %v728 = vld [vmem:[%s686 + $0xa0] sm:$0xff]
        %729 = vst [vmem:[%s687 + $0xa0] sm:$0xff] %v728
        %v730 = vld [vmem:[%s686 + $0xa8] sm:$0xff]
        %731 = vst [vmem:[%s687 + $0xa8] sm:$0xff] %v730
        %v732 = vld [vmem:[%s686 + $0xb0] sm:$0xff]
        %733 = vst [vmem:[%s687 + $0xb0] sm:$0xff] %v732
        %v734 = vld [vmem:[%s686 + $0xb8] sm:$0xff]
        %735 = vst [vmem:[%s687 + $0xb8] sm:$0xff] %v734
        %v736 = vld [vmem:[%s686 + $0xc0] sm:$0xff]
        %737 = vst [vmem:[%s687 + $0xc0] sm:$0xff] %v736
        %v738 = vld [vmem:[%s686 + $0xc8] sm:$0xff]
        %739 = vst [vmem:[%s687 + $0xc8] sm:$0xff] %v738
        %v740 = vld [vmem:[%s686 + $0xd0] sm:$0xff]
        %741 = vst [vmem:[%s687 + $0xd0] sm:$0xff] %v740
        %v742 = vld [vmem:[%s686 + $0xd8] sm:$0xff]
        %743 = vst [vmem:[%s687 + $0xd8] sm:$0xff] %v742
        %v744 = vld [vmem:[%s686 + $0xe0] sm:$0xff]
        %745 = vst [vmem:[%s687 + $0xe0] sm:$0xff] %v744
        %v746 = vld [vmem:[%s686 + $0xe8] sm:$0xff]
        %747 = vst [vmem:[%s687 + $0xe8] sm:$0xff] %v746
        %v748 = vld [vmem:[%s686 + $0xf0] sm:$0xff]
        %749 = vst [vmem:[%s687 + $0xf0] sm:$0xff] %v748
        %v750 = vld [vmem:[%s686 + $0xf8] sm:$0xff]
        %751 = vst [vmem:[%s687 + $0xf8] sm:$0xff] %v750
        %v752 = vld [vmem:[%s686 + $0x100] sm:$0xff]
        %753 = vst [vmem:[%s687 + $0x100] sm:$0xff] %v752
        %v754 = vld [vmem:[%s686 + $0x108] sm:$0xff]
        %755 = vst [vmem:[%s687 + $0x108] sm:$0xff] %v754
        %v756 = vld [vmem:[%s686 + $0x110] sm:$0xff]
        %757 = vst [vmem:[%s687 + $0x110] sm:$0xff] %v756
        %v758 = vld [vmem:[%s686 + $0x118] sm:$0xff]
        %759 = vst [vmem:[%s687 + $0x118] sm:$0xff] %v758
        %v760 = vld [vmem:[%s686 + $0x120] sm:$0xff]
        %761 = vst [vmem:[%s687 + $0x120] sm:$0xff] %v760
        %v762 = vld [vmem:[%s686 + $0x128] sm:$0xff]
        %763 = vst [vmem:[%s687 + $0x128] sm:$0xff] %v762
        %v764 = vld [vmem:[%s686 + $0x130] sm:$0xff]
        %765 = vst [vmem:[%s687 + $0x130] sm:$0xff] %v764
        %v766 = vld [vmem:[%s686 + $0x138] sm:$0xff]
        %767 = vst [vmem:[%s687 + $0x138] sm:$0xff] %v766
        %v768 = vld [vmem:[%s686 + $0x140] sm:$0xff]
        %769 = vst [vmem:[%s687 + $0x140] sm:$0xff] %v768
        %v770 = vld [vmem:[%s686 + $0x148] sm:$0xff]
        %771 = vst [vmem:[%s687 + $0x148] sm:$0xff] %v770
        %v772 = vld [vmem:[%s686 + $0x150] sm:$0xff]
        %773 = vst [vmem:[%s687 + $0x150] sm:$0xff] %v772
        %v774 = vld [vmem:[%s686 + $0x158] sm:$0xff]
        %775 = vst [vmem:[%s687 + $0x158] sm:$0xff] %v774
        %v776 = vld [vmem:[%s686 + $0x160] sm:$0xff]
        %777 = vst [vmem:[%s687 + $0x160] sm:$0xff] %v776
        %v778 = vld [vmem:[%s686 + $0x168] sm:$0xff]
        %779 = vst [vmem:[%s687 + $0x168] sm:$0xff] %v778
        %v780 = vld [vmem:[%s686 + $0x170] sm:$0xff]
        %781 = vst [vmem:[%s687 + $0x170] sm:$0xff] %v780
        %v782 = vld [vmem:[%s686 + $0x178] sm:$0xff]
        %783 = vst [vmem:[%s687 + $0x178] sm:$0xff] %v782
        %v784 = vld [vmem:[%s686 + $0x180] sm:$0xff]
        %785 = vst [vmem:[%s687 + $0x180] sm:$0xff] %v784
        %v786 = vld [vmem:[%s686 + $0x188] sm:$0xff]
        %787 = vst [vmem:[%s687 + $0x188] sm:$0xff] %v786
        %v788 = vld [vmem:[%s686 + $0x190] sm:$0xff]
        %789 = vst [vmem:[%s687 + $0x190] sm:$0xff] %v788
        %v790 = vld [vmem:[%s686 + $0x198] sm:$0xff]
        %791 = vst [vmem:[%s687 + $0x198] sm:$0xff] %v790
        %v792 = vld [vmem:[%s686 + $0x1a0] sm:$0xff]
        %793 = vst [vmem:[%s687 + $0x1a0] sm:$0xff] %v792
        %v794 = vld [vmem:[%s686 + $0x1a8] sm:$0xff]
        %795 = vst [vmem:[%s687 + $0x1a8] sm:$0xff] %v794
        %v796 = vld [vmem:[%s686 + $0x1b0] sm:$0xff]
        %797 = vst [vmem:[%s687 + $0x1b0] sm:$0xff] %v796
        %v798 = vld [vmem:[%s686 + $0x1b8] sm:$0xff]
        %799 = vst [vmem:[%s687 + $0x1b8] sm:$0xff] %v798
        %v800 = vld [vmem:[%s686 + $0x1c0] sm:$0xff]
        %801 = vst [vmem:[%s687 + $0x1c0] sm:$0xff] %v800
        %v802 = vld [vmem:[%s686 + $0x1c8] sm:$0xff]
        %803 = vst [vmem:[%s687 + $0x1c8] sm:$0xff] %v802
        %v804 = vld [vmem:[%s686 + $0x1d0] sm:$0xff]
        %805 = vst [vmem:[%s687 + $0x1d0] sm:$0xff] %v804
        %v806 = vld [vmem:[%s686 + $0x1d8] sm:$0xff]
        %807 = vst [vmem:[%s687 + $0x1d8] sm:$0xff] %v806
        %v808 = vld [vmem:[%s686 + $0x1e0] sm:$0xff]
        %809 = vst [vmem:[%s687 + $0x1e0] sm:$0xff] %v808
        %v810 = vld [vmem:[%s686 + $0x1e8] sm:$0xff]
        %811 = vst [vmem:[%s687 + $0x1e8] sm:$0xff] %v810
        %v812 = vld [vmem:[%s686 + $0x1f0] sm:$0xff]
        %813 = vst [vmem:[%s687 + $0x1f0] sm:$0xff] %v812
        %v814 = vld [vmem:[%s686 + $0x1f8] sm:$0xff]
        %815 = vst [vmem:[%s687 + $0x1f8] sm:$0xff] %v814
      $region157: #{forward.1} parent=151 // loop_footer
        %s685 = sadd.s32 1, %s681
      $region158: #{forward.1} parent=151 // loop_footer_branch
        %680 = sbr.rel target = $region154
      $region159: #{forward.1} parent=151 // loop_exit
        _
    $region152: #{forward.1} parent=136 // pred_fallthru
      _
    %p816 = pneg %p676
    // Predicated region
    $region160: #{forward.1} parent=136 // pred_check
      _
    $region161: #{forward.1} parent=136 // pred_check_branch
      %818 = sbr.rel (%p676) target = $region163
    $region162: #{forward.1} parent=136 // pred_region
      %s819 = sand.u32 512, 7
    $region163: #{forward.1} parent=136 // pred_fallthru
      _
  $region137: #{forward.1} parent=0 // pred_fallthru
    _
  // Predicated region
  $region138: #{forward.1} parent=0 // pred_check
    %p660 = pneg %p656
  $region139: #{forward.1} parent=0 // pred_check_branch
    %662 = sbr.rel (%p660) target = $region141
  $region140: #{forward.1} parent=0 // pred_region
    %s663 = sshll.u32 1, 512
    %s664 = ssub.s32 %s663, 1
    loop: start=0, step=1, limit=1
    $region142: #{forward.1} parent=140 // loop_pre_header
      _
    $region143: #{forward.1} parent=140 // loop_header
      %s666 = sphi 0, %s670
      %p667 = scmp.ge.s32.totalorder %s666, 1
      %s671 = sphi %s17, %s17
      %s672 = sphi [#allocation4], [#allocation4]
    $region144: #{forward.1} parent=140 // loop_header_branch
      %669 = sbr.rel (%p667) target = $region148
    $region145: #{forward.1} parent=140 // loop_body
      %v673 = vld [vmem:[%s671] sm:%s664]
      %674 = vst [vmem:[%s672] sm:%s664] %v673
    $region146: #{forward.1} parent=140 // loop_footer
      %s670 = sadd.s32 1, %s666
    $region147: #{forward.1} parent=140 // loop_footer_branch
      %665 = sbr.rel target = $region143
    $region148: #{forward.1} parent=140 // loop_exit
      _
  $region141: #{forward.1} parent=0 // pred_fallthru
    _
  // Predicated region
  $region164: #{forward.1} parent=0 // pred_check
    _
  $region165: #{forward.1} parent=0 // pred_check_branch
    %822 = sbr.rel (0) target = $region167
  $region166: #{forward.1} parent=0 // pred_region
    %823 = vsyncadd %s654, 8192
  $region167: #{forward.1} parent=0 // pred_fallthru
    _
  %v824 = vld [vmem:[%s0] sm:$0xf]
  %v825 = vld [vmem:[%s0 + $0x4] sm:$0xf]
  %v826 = vld [vmem:[%s0 + $0x8] sm:$0xf]
  %v827 = vld [vmem:[%s0 + $0xc] sm:$0xf]
  %v828 = vld [vmem:[%s0 + $0x10] sm:$0xf]
  %v829 = vld [vmem:[%s0 + $0x14] sm:$0xf]
  %v830 = vld [vmem:[%s0 + $0x18] sm:$0xf]
  %v831 = vld [vmem:[%s0 + $0x1c] sm:$0xf]
  %v832 = vld [vmem:[%s0 + $0x20] sm:$0xf]
  %v833 = vld [vmem:[%s0 + $0x24] sm:$0xf]
  %v834 = vld [vmem:[%s0 + $0x28] sm:$0xf]
  %v835 = vld [vmem:[%s0 + $0x2c] sm:$0xf]
  %v836 = vld [vmem:[%s0 + $0x30] sm:$0xf]
  %v837 = vld [vmem:[%s0 + $0x34] sm:$0xf]
  %v838 = vld [vmem:[%s0 + $0x38] sm:$0xf]
  %v839 = vld [vmem:[%s0 + $0x3c] sm:$0xf]
  %v840 = vld [vmem:[%s2] sm:$0xf]
  %v841 = vld [vmem:[%s2 + $0x4] sm:$0xf]
  %v842 = vld [vmem:[%s2 + $0x8] sm:$0xf]
  %v843 = vld [vmem:[%s2 + $0xc] sm:$0xf]
  %v844 = vld [vmem:[%s2 + $0x10] sm:$0xf]
  %v845 = vld [vmem:[%s2 + $0x14] sm:$0xf]
  %v846 = vld [vmem:[%s2 + $0x18] sm:$0xf]
  %v847 = vld [vmem:[%s2 + $0x1c] sm:$0xf]
  %v848 = vld [vmem:[%s2 + $0x20] sm:$0xf]
  %v849 = vld [vmem:[%s3] sm:$0x1]
  %v851 = vlaneseq
  %v852 = vshrl.u32 %v851, 7
  %v853 = vsub.s32 0, %v852
  %v854 = vrot.slane %v849, %v853
  %v872 = vunpack.c.l.b16 %v824
  %v873 = vunpack.c.l.b16 %v825
  %v874 = vunpack.c.l.b16 %v826
  %v875 = vunpack.c.l.b16 %v827
  %v876 = vunpack.c.l.b16 %v828
  %v877 = vunpack.c.l.b16 %v829
  %v878 = vunpack.c.l.b16 %v830
  %v879 = vunpack.c.l.b16 %v831
  %v880 = vunpack.c.l.b16 %v832
  %v881 = vunpack.c.l.b16 %v833
  %v882 = vunpack.c.l.b16 %v834
  %v883 = vunpack.c.l.b16 %v835
  %v884 = vunpack.c.l.b16 %v836
  %v885 = vunpack.c.l.b16 %v837
  %v886 = vunpack.c.l.b16 %v838
  %v887 = vunpack.c.l.b16 %v839
  %v888 = vpack.c.b16 %v873, %v872
  %v889 = vpack.c.b16 %v875, %v874
  %v890 = vpack.c.b16 %v877, %v876
  %v891 = vpack.c.b16 %v879, %v878
  %v892 = vpack.c.b16 %v881, %v880
  %v893 = vpack.c.b16 %v883, %v882
  %v894 = vpack.c.b16 %v885, %v884
  %v895 = vpack.c.b16 %v887, %v886
  %v905 = vunpack.c.l.b16 %v840
  %v906 = vunpack.c.l.b16 %v841
  %v907 = vunpack.c.l.b16 %v842
  %v908 = vunpack.c.l.b16 %v843
  %v909 = vunpack.c.l.b16 %v844
  %v910 = vunpack.c.l.b16 %v845
  %v911 = vunpack.c.l.b16 %v846
  %v912 = vunpack.c.l.b16 %v847
  %v913 = vunpack.c.l.b16 %v848
  %v914 = vpack.c.b16 %v906, %v905
  %v915 = vpack.c.b16 %v908, %v907
  %v916 = vpack.c.b16 %v910, %v909
  %v917 = vpack.c.b16 %v912, %v911
  %v918 = vpack.c.b16 %v913, %v913
  %vm923 = vcmask 588800
  %v925 = vsel %vm923, %v888, 0
  %v928 = vsel %vm923, %v889, 0
  %v931 = vsel %vm923, %v890, 0
  %v934 = vsel %vm923, %v891, 0
  %v937 = vsel %vm923, %v892, 0
  %v940 = vsel %vm923, %v893, 0
  %v943 = vsel %vm923, %v894, 0
  %v946 = vsel %vm923, %v895, 0
  %vm948 = vcmask 1043456
  %v950 = vsel %vm948, %v918, 0
  %952 = vmatprep.subr.bf16.mxu0 0
  %953 = vmatpush1.bf16.msra.mxu0 0
  %954 = vmatprep.subr.bf16.mxu0 0
  %955 = vmatpush1.bf16.msra.mxu0 0
  %956 = vmatprep.subr.bf16.mxu0 0
  %957 = vmatpush1.bf16.msra.mxu0 0
  %958 = vmatprep.subr.bf16.mxu0 0
  %959 = vmatpush1.bf16.msra.mxu0 %v950
  %960 = vmatprep.subr.bf16.mxu0 0
  %961 = vmatpush1.bf16.msra.mxu0 %v917
  %962 = vmatprep.subr.bf16.mxu0 0
  %963 = vmatpush1.bf16.msra.mxu0 %v916
  %964 = vmatprep.subr.bf16.mxu0 0
  %965 = vmatpush1.bf16.msra.mxu0 %v915
  %966 = vmatprep.subr.bf16.mxu0 0
  %967 = vmatpush1.bf16.msra.mxu0 %v914
  %968 = vmatprep.subr.bf16.mxu0 0
  %969 = vmatpush2.bf16.msra.mxu0 0
  %970 = vmatprep.subr.bf16.mxu0 0
  %971 = vmatpush2.bf16.msra.mxu0 0
  %972 = vmatprep.subr.bf16.mxu0 0
  %973 = vmatpush2.bf16.msra.mxu0 0
  %974 = vmatprep.subr.bf16.mxu0 0
  %975 = vmatpush2.bf16.msra.mxu0 0
  %976 = vmatprep.subr.bf16.mxu0 0
  %977 = vmatpush2.bf16.msra.mxu0 0
  %978 = vmatprep.subr.bf16.mxu0 0
  %979 = vmatpush2.bf16.msra.mxu0 0
  %980 = vmatprep.subr.bf16.mxu0 0
  %981 = vmatpush2.bf16.msra.mxu0 0
  %982 = vmatprep.subr.bf16.mxu0 0
  %983 = vmatpush2.bf16.msra.mxu0 0
  %984 = vmatprep.mubr.bf16.mxu0 0
  %985 = vmatmul.mubr.bf16.gmra.mxu0 %v925
  %v986 = vpop.f32.mrf.mxu0
  %v987 = vadd.f32 %v854, %v986
  %v988 = vpop.f32.mrf.mxu0
  %v989 = vpop.f32.mrf.mxu0
  %v990 = vadd.f32 %v854, %v989
  %v991 = vpop.f32.mrf.mxu0
  %992 = vmatprep.mubr.bf16.mxu0 0
  %993 = vmatmul.mubr.bf16.gmra.mxu0 %v928
  %v994 = vpop.f32.mrf.mxu0
  %v995 = vadd.f32 %v854, %v994
  %v996 = vpop.f32.mrf.mxu0
  %v997 = vpop.f32.mrf.mxu0
  %v998 = vadd.f32 %v854, %v997
  %v999 = vpop.f32.mrf.mxu0
  %1000 = vmatprep.mubr.bf16.mxu0 0
  %1001 = vmatmul.mubr.bf16.gmra.mxu0 %v931
  %v1002 = vpop.f32.mrf.mxu0
  %v1003 = vadd.f32 %v854, %v1002
  %v1004 = vpop.f32.mrf.mxu0
  %v1005 = vpop.f32.mrf.mxu0
  %v1006 = vadd.f32 %v854, %v1005
  %v1007 = vpop.f32.mrf.mxu0
  %1008 = vmatprep.mubr.bf16.mxu0 0
  %1009 = vmatmul.mubr.bf16.gmra.mxu0 %v934
  %v1010 = vpop.f32.mrf.mxu0
  %v1011 = vadd.f32 %v854, %v1010
  %v1012 = vpop.f32.mrf.mxu0
  %v1013 = vpop.f32.mrf.mxu0
  %v1014 = vadd.f32 %v854, %v1013
  %v1015 = vpop.f32.mrf.mxu0
  %1016 = vmatprep.mubr.bf16.mxu0 0
  %1017 = vmatmul.mubr.bf16.gmra.mxu0 %v937
  %v1018 = vpop.f32.mrf.mxu0
  %v1019 = vadd.f32 %v854, %v1018
  %v1020 = vpop.f32.mrf.mxu0
  %v1021 = vpop.f32.mrf.mxu0
  %v1022 = vadd.f32 %v854, %v1021
  %v1023 = vpop.f32.mrf.mxu0
  %1024 = vmatprep.mubr.bf16.mxu0 0
  %1025 = vmatmul.mubr.bf16.gmra.mxu0 %v940
  %v1026 = vpop.f32.mrf.mxu0
  %v1027 = vadd.f32 %v854, %v1026
  %v1028 = vpop.f32.mrf.mxu0
  %v1029 = vpop.f32.mrf.mxu0
  %v1030 = vadd.f32 %v854, %v1029
  %v1031 = vpop.f32.mrf.mxu0
  %1032 = vmatprep.mubr.bf16.mxu0 0
  %1033 = vmatmul.mubr.bf16.gmra.mxu0 %v943
  %v1034 = vpop.f32.mrf.mxu0
  %v1035 = vadd.f32 %v854, %v1034
  %v1036 = vpop.f32.mrf.mxu0
  %v1037 = vpop.f32.mrf.mxu0
  %v1038 = vadd.f32 %v854, %v1037
  %v1039 = vpop.f32.mrf.mxu0
  %1040 = vmatprep.mubr.bf16.mxu0 0
  %1041 = vmatmul.mubr.bf16.gmra.mxu0 %v946
  %v1042 = vpop.f32.mrf.mxu0
  %v1043 = vadd.f32 %v854, %v1042
  %v1044 = vpop.f32.mrf.mxu0
  %v1045 = vpop.f32.mrf.mxu0
  %v1046 = vadd.f32 %v854, %v1045
  %v1047 = vpop.f32.mrf.mxu0
  %1048 = vdwg.mxu0
  %v1049 = vmax.f32 %v987, 0.0
  %v1050 = vmax.f32 %v990, 0.0
  %v1051 = vmax.f32 %v995, 0.0
  %v1052 = vmax.f32 %v998, 0.0
  %v1053 = vmax.f32 %v1003, 0.0
  %v1054 = vmax.f32 %v1006, 0.0
  %v1055 = vmax.f32 %v1011, 0.0
  %v1056 = vmax.f32 %v1014, 0.0
  %v1057 = vmax.f32 %v1019, 0.0
  %v1058 = vmax.f32 %v1022, 0.0
  %v1059 = vmax.f32 %v1027, 0.0
  %v1060 = vmax.f32 %v1030, 0.0
  %v1061 = vmax.f32 %v1035, 0.0
  %v1062 = vmax.f32 %v1038, 0.0
  %v1063 = vmax.f32 %v1043, 0.0
  %v1064 = vmax.f32 %v1046, 0.0
  %1066 = vrot.lane.b32.xlu0 %v1049, 64
  %v1067 = vpop.permute.xlu0 %1066
  %1070 = vrot.lane.b32.xlu0 %v1050, 80
  %v1071 = vpop.permute.xlu0 %1070
  %1074 = vrot.lane.b32.xlu0 %v1053, 112
  %v1075 = vpop.permute.xlu0 %1074
  %vm1077 = vcmask 523264
  %v1078 = vsel %vm1077, 0.0, %v1067
  %vm1079 = vcmask 654336
  %v1080 = vsel %vm1079, %v1078, %v1071
  %vm1081 = vcmask 785408
  %v1082 = vsel %vm1081, %v1080, 0.0
  %vm1083 = vcmask 916480
  %v1084 = vsel %vm1083, %v1082, %v1075
  %1085 = vrot.lane.b32.xlu0 %v1050, 48
  %v1086 = vpop.permute.xlu0 %1085
  %1089 = vrot.lane.b32.xlu0 %v1051, 64
  %v1090 = vpop.permute.xlu0 %1089
  %1093 = vrot.lane.b32.xlu0 %v1052, 80
  %v1094 = vpop.permute.xlu0 %1093
  %1097 = vrot.lane.b32.xlu0 %v1054, 96
  %v1098 = vpop.permute.xlu0 %1097
  %1101 = vrot.lane.b32.xlu0 %v1055, 112
  %v1102 = vpop.permute.xlu0 %1101
  %vm1104 = vcmask 392192
  %v1105 = vsel %vm1104, 0.0, %v1086
  %v1106 = vsel %vm1077, %v1105, %v1090
  %v1107 = vsel %vm1079, %v1106, %v1094
  %v1108 = vsel %vm1081, %v1107, %v1098
  %v1109 = vsel %vm1083, %v1108, %v1102
  %1110 = vrot.lane.b32.xlu0 %v1053, 16
  %v1111 = vpop.permute.xlu0 %1110
  %1113 = vrot.lane.b32.xlu0 %v1054, 32
  %v1114 = vpop.permute.xlu0 %1113
  %1117 = vrot.lane.b32.xlu0 %v1057, 64
  %v1118 = vpop.permute.xlu0 %1117
  %1121 = vrot.lane.b32.xlu0 %v1058, 80
  %v1122 = vpop.permute.xlu0 %1121
  %1125 = vrot.lane.b32.xlu0 %v1061, 112
  %v1126 = vpop.permute.xlu0 %1125
  %vm1128 = vcmask 130048
  %v1129 = vsel %vm1128, 0.0, %v1111
  %vm1130 = vcmask 261120
  %v1131 = vsel %vm1130, %v1129, %v1114
  %v1132 = vsel %vm1104, %v1131, 0.0
  %v1133 = vsel %vm1077, %v1132, %v1118
  %v1134 = vsel %vm1079, %v1133, %v1122
  %v1135 = vsel %vm1081, %v1134, 0.0
  %v1136 = vsel %vm1083, %v1135, %v1126
  %1137 = vrot.lane.b32.xlu0 %v1055, 16
  %v1138 = vpop.permute.xlu0 %1137
  %1141 = vrot.lane.b32.xlu0 %v1056, 32
  %v1142 = vpop.permute.xlu0 %1141
  %1144 = vrot.lane.b32.xlu0 %v1058, 48
  %v1145 = vpop.permute.xlu0 %1144
  %1148 = vrot.lane.b32.xlu0 %v1059, 64
  %v1149 = vpop.permute.xlu0 %1148
  %1152 = vrot.lane.b32.xlu0 %v1060, 80
  %v1153 = vpop.permute.xlu0 %1152
  %1156 = vrot.lane.b32.xlu0 %v1062, 96
  %v1157 = vpop.permute.xlu0 %1156
  %1160 = vrot.lane.b32.xlu0 %v1063, 112
  %v1161 = vpop.permute.xlu0 %1160
  %v1163 = vsel %vm1128, %v1054, %v1138
  %v1164 = vsel %vm1130, %v1163, %v1142
  %v1165 = vsel %vm1104, %v1164, %v1145
  %v1166 = vsel %vm1077, %v1165, %v1149
  %v1167 = vsel %vm1079, %v1166, %v1153
  %v1168 = vsel %vm1081, %v1167, %v1157
  %v1169 = vsel %vm1083, %v1168, %v1161
  %v1170 = vpack.c.bf16 %v1109, %v1084
  %v1171 = vpack.c.bf16 %v1056, %v1054
  %v1172 = vpack.c.bf16 %v1169, %v1136
  %v1173 = vpack.c.bf16 %v1064, %v1062
  %v1174 = vld [vmem:[%s4] sm:$0xf]
  %v1175 = vld [vmem:[%s4 + $0x4] sm:$0xf]
  %v1176 = vld [vmem:[%s4 + $0x8] sm:$0xf]
  %v1177 = vld [vmem:[%s4 + $0xc] sm:$0xf]
  %v1178 = vld [vmem:[%s4 + $0x10] sm:$0xf]
  %v1179 = vld [vmem:[%s4 + $0x14] sm:$0xf]
  %v1180 = vld [vmem:[%s4 + $0x18] sm:$0xf]
  %v1181 = vld [vmem:[%s4 + $0x1c] sm:$0xf]
  %v1182 = vld [vmem:[%s4 + $0x20] sm:$0xf]
  %v1183 = vld [vmem:[%s4 + $0x24] sm:$0xf]
  %v1184 = vld [vmem:[%s4 + $0x28] sm:$0xf]
  %v1185 = vld [vmem:[%s4 + $0x2c] sm:$0xf]
  %v1186 = vld [vmem:[%s4 + $0x30] sm:$0xf]
  %v1187 = vld [vmem:[%s4 + $0x34] sm:$0xf]
  %v1188 = vld [vmem:[%s4 + $0x38] sm:$0xf]
  %v1189 = vld [vmem:[%s4 + $0x3c] sm:$0xf]
  %v1190 = vld [vmem:[%s4 + $0x40] sm:$0xf]
  %v1191 = vld [vmem:[%s4 + $0x44] sm:$0xf]
  %v1192 = vld [vmem:[%s5] sm:$0x1]
  %v1194 = vlaneseq
  %v1195 = vshrl.u32 %v1194, 7
  %v1196 = vsub.s32 0, %v1195
  %v1197 = vrot.slane %v1192, %v1196
  %v1217 = vunpack.c.l.b16 %v1174
  %v1218 = vunpack.c.l.b16 %v1175
  %v1219 = vunpack.c.l.b16 %v1176
  %v1220 = vunpack.c.l.b16 %v1177
  %v1221 = vunpack.c.l.b16 %v1178
  %v1222 = vunpack.c.l.b16 %v1179
  %v1223 = vunpack.c.l.b16 %v1180
  %v1224 = vunpack.c.l.b16 %v1181
  %v1225 = vunpack.c.l.b16 %v1182
  %v1226 = vunpack.c.l.b16 %v1183
  %v1227 = vunpack.c.l.b16 %v1184
  %v1228 = vunpack.c.l.b16 %v1185
  %v1229 = vunpack.c.l.b16 %v1186
  %v1230 = vunpack.c.l.b16 %v1187
  %v1231 = vunpack.c.l.b16 %v1188
  %v1232 = vunpack.c.l.b16 %v1189
  %v1233 = vunpack.c.l.b16 %v1190
  %v1234 = vunpack.c.l.b16 %v1191
  %v1235 = vpack.c.b16 %v1218, %v1217
  %v1236 = vpack.c.b16 %v1220, %v1219
  %v1237 = vpack.c.b16 %v1222, %v1221
  %v1238 = vpack.c.b16 %v1224, %v1223
  %v1239 = vpack.c.b16 %v1226, %v1225
  %v1240 = vpack.c.b16 %v1228, %v1227
  %v1241 = vpack.c.b16 %v1230, %v1229
  %v1242 = vpack.c.b16 %v1232, %v1231
  %v1243 = vpack.c.b16 %v1234, %v1233
  %v1254 = vsel %vm1128, %v1171, 0
  %v1257 = vsel %vm1128, %v1173, 0
  %1259 = vmatprep.subr.bf16.mxu0 0
  %1260 = vmatpush1.bf16.msra.mxu0 %v1242
  %1261 = vmatprep.subr.bf16.mxu0 0
  %1262 = vmatpush1.bf16.msra.mxu0 %v1241
  %1263 = vmatprep.subr.bf16.mxu0 0
  %1264 = vmatpush1.bf16.msra.mxu0 %v1240
  %1265 = vmatprep.subr.bf16.mxu0 0
  %1266 = vmatpush1.bf16.msra.mxu0 %v1239
  %1267 = vmatprep.subr.bf16.mxu0 0
  %1268 = vmatpush1.bf16.msra.mxu0 %v1238
  %1269 = vmatprep.subr.bf16.mxu0 0
  %1270 = vmatpush1.bf16.msra.mxu0 %v1237
  %1271 = vmatprep.subr.bf16.mxu0 0
  %1272 = vmatpush1.bf16.msra.mxu0 %v1236
  %1273 = vmatprep.subr.bf16.mxu0 0
  %1274 = vmatpush1.bf16.msra.mxu0 %v1235
  %1275 = vmatprep.subr.bf16.mxu0 0
  %1276 = vmatpush2.bf16.msra.mxu0 0
  %1277 = vmatprep.subr.bf16.mxu0 0
  %1278 = vmatpush2.bf16.msra.mxu0 0
  %1279 = vmatprep.subr.bf16.mxu0 0
  %1280 = vmatpush2.bf16.msra.mxu0 0
  %1281 = vmatprep.subr.bf16.mxu0 0
  %1282 = vmatpush2.bf16.msra.mxu0 0
  %1283 = vmatprep.subr.bf16.mxu0 0
  %1284 = vmatpush2.bf16.msra.mxu0 0
  %1285 = vmatprep.subr.bf16.mxu0 0
  %1286 = vmatpush2.bf16.msra.mxu0 0
  %1287 = vmatprep.subr.bf16.mxu0 0
  %1288 = vmatpush2.bf16.msra.mxu0 0
  %1289 = vmatprep.subr.bf16.mxu0 0
  %1290 = vmatpush2.bf16.msra.mxu0 %v1243
  %1291 = vmatprep.mubr.bf16.mxu0 %v1254
  %1292 = vmatmul.mubr.bf16.gmra.mxu0 %v1170
  %v1293 = vpop.f32.mrf.mxu0
  %v1294 = vadd.f32 %v1197, %v1293
  %v1295 = vpop.f32.mrf.mxu0
  %v1296 = vpop.f32.mrf.mxu0
  %v1297 = vadd.f32 %v1197, %v1296
  %v1298 = vpop.f32.mrf.mxu0
  %1299 = vmatprep.mubr.bf16.mxu0 %v1257
  %1300 = vmatmul.mubr.bf16.gmra.mxu0 %v1172
  %v1301 = vpop.f32.mrf.mxu0
  %v1302 = vadd.f32 %v1197, %v1301
  %v1303 = vpop.f32.mrf.mxu0
  %v1304 = vpop.f32.mrf.mxu0
  %v1305 = vadd.f32 %v1197, %v1304
  %v1306 = vpop.f32.mrf.mxu0
  %1307 = vdwg.mxu0
  %v1308 = vmax.f32 %v1294, 0.0
  %v1309 = vmax.f32 %v1297, 0.0
  %v1310 = vmax.f32 %v1302, 0.0
  %v1311 = vmax.f32 %v1305, 0.0
  %v1312 = vadd.f32 %v1308, %v1309
  %v1313 = vadd.f32 %v1312, %v1310
  %v1314 = vadd.f32 %v1313, %v1311
  %v1315 = vmul.f32 %v1314, 0.25
  %v1316 = vpack.c.bf16 %v1315, %v1315
  %v1317 = vld [vmem:[%s6] sm:$0xf]
  %v1318 = vld [vmem:[%s6 + $0x4] sm:$0xf]
  %v1319 = vld [vmem:[%s6 + $0x8] sm:$0xf]
  %v1320 = vld [vmem:[%s6 + $0xc] sm:$0xf]
  %v1321 = vld [vmem:[%s7] sm:$0x1]
  %v1323 = vlaneseq
  %v1324 = vshrl.u32 %v1323, 7
  %v1325 = vsub.s32 0, %v1324
  %v1326 = vrot.slane %v1321, %v1325
  %v1332 = vunpack.c.l.b16 %v1317
  %v1333 = vunpack.c.l.b16 %v1318
  %v1334 = vunpack.c.l.b16 %v1319
  %v1335 = vunpack.c.l.b16 %v1320
  %v1336 = vpack.c.b16 %v1333, %v1332
  %v1337 = vpack.c.b16 %v1335, %v1334
  %v1341 = vsel %vm1130, %v1316, 0
  %1343 = vmatprep.subr.bf16.mxu0 0
  %1344 = vmatpush1.bf16.msra.mxu0 0
  %1345 = vmatprep.subr.bf16.mxu0 0
  %1346 = vmatpush1.bf16.msra.mxu0 0
  %1347 = vmatprep.subr.bf16.mxu0 0
  %1348 = vmatpush1.bf16.msra.mxu0 0
  %1349 = vmatprep.subr.bf16.mxu0 0
  %1350 = vmatpush1.bf16.msra.mxu0 0
  %1351 = vmatprep.subr.bf16.mxu0 0
  %1352 = vmatpush1.bf16.msra.mxu0 0
  %1353 = vmatprep.subr.bf16.mxu0 0
  %1354 = vmatpush1.bf16.msra.mxu0 0
  %1355 = vmatprep.subr.bf16.mxu0 0
  %1356 = vmatpush1.bf16.msra.mxu0 %v1337
  %1357 = vmatprep.subr.bf16.mxu0 0
  %1358 = vmatpush1.bf16.msra.mxu0 %v1336
  %1359 = vmatprep.subr.bf16.mxu0 0
  %1360 = vmatpush2.bf16.msra.mxu0 0
  %1361 = vmatprep.subr.bf16.mxu0 0
  %1362 = vmatpush2.bf16.msra.mxu0 0
  %1363 = vmatprep.subr.bf16.mxu0 0
  %1364 = vmatpush2.bf16.msra.mxu0 0
  %1365 = vmatprep.subr.bf16.mxu0 0
  %1366 = vmatpush2.bf16.msra.mxu0 0
  %1367 = vmatprep.subr.bf16.mxu0 0
  %1368 = vmatpush2.bf16.msra.mxu0 0
  %1369 = vmatprep.subr.bf16.mxu0 0
  %1370 = vmatpush2.bf16.msra.mxu0 0
  %1371 = vmatprep.subr.bf16.mxu0 0
  %1372 = vmatpush2.bf16.msra.mxu0 0
  %1373 = vmatprep.subr.bf16.mxu0 0
  %1374 = vmatpush2.bf16.msra.mxu0 0
  %1375 = vmatprep.mubr.bf16.mxu0 0
  %1376 = vmatmul.mubr.bf16.gmra.mxu0 %v1341
  %v1377 = vpop.f32.mrf.mxu0
  %v1378 = vadd.f32 %v1326, %v1377
  %v1379 = vpop.f32.mrf.mxu0
  %v1380 = vpop.f32.mrf.mxu0
  %v1381 = vpop.f32.mrf.mxu0
  %1382 = vdwg.mxu0
  %v1383 = vld [vmem:[%s1] sm:$0xf]
  %v1384 = vld [vmem:[%s8] sm:$0xf]
  %v1385 = vld [vmem:[%s8 + $0x4] sm:$0xf]
  %v1386 = vld [vmem:[%s9] sm:$0x1]
  %v1388 = vlaneseq
  %v1389 = vshrl.u32 %v1388, 7
  %v1390 = vsub.s32 0, %v1389
  %v1391 = vrot.slane %v1386, %v1390
  %v1395 = vunpack.c.l.b16 %v1384
  %v1396 = vunpack.c.l.b16 %v1385
  %v1397 = vpack.c.b16 %v1396, %v1395
  %v1400 = vsel %vm1128, %v1383, 0
  %1402 = vmatprep.subr.bf16.mxu0 0
  %1403 = vmatpush1.bf16.msra.mxu0 0
  %1404 = vmatprep.subr.bf16.mxu0 0
  %1405 = vmatpush1.bf16.msra.mxu0 0
  %1406 = vmatprep.subr.bf16.mxu0 0
  %1407 = vmatpush1.bf16.msra.mxu0 0
  %1408 = vmatprep.subr.bf16.mxu0 0
  %1409 = vmatpush1.bf16.msra.mxu0 0
  %1410 = vmatprep.subr.bf16.mxu0 0
  %1411 = vmatpush1.bf16.msra.mxu0 0
  %1412 = vmatprep.subr.bf16.mxu0 0
  %1413 = vmatpush1.bf16.msra.mxu0 0
  %1414 = vmatprep.subr.bf16.mxu0 0
  %1415 = vmatpush1.bf16.msra.mxu0 0
  %1416 = vmatprep.subr.bf16.mxu0 0
  %1417 = vmatpush1.bf16.msra.mxu0 %v1397
  %1418 = vmatprep.subr.bf16.mxu0 0
  %1419 = vmatpush2.bf16.msra.mxu0 0
  %1420 = vmatprep.subr.bf16.mxu0 0
  %1421 = vmatpush2.bf16.msra.mxu0 0
  %1422 = vmatprep.subr.bf16.mxu0 0
  %1423 = vmatpush2.bf16.msra.mxu0 0
  %1424 = vmatprep.subr.bf16.mxu0 0
  %1425 = vmatpush2.bf16.msra.mxu0 0
  %1426 = vmatprep.subr.bf16.mxu0 0
  %1427 = vmatpush2.bf16.msra.mxu0 0
  %1428 = vmatprep.subr.bf16.mxu0 0
  %1429 = vmatpush2.bf16.msra.mxu0 0
  %1430 = vmatprep.subr.bf16.mxu0 0
  %1431 = vmatpush2.bf16.msra.mxu0 0
  %1432 = vmatprep.subr.bf16.mxu0 0
  %1433 = vmatpush2.bf16.msra.mxu0 0
  %1434 = vmatprep.mubr.bf16.mxu0 0
  %1435 = vmatmul.mubr.bf16.gmra.mxu0 %v1400
  %v1436 = vpop.f32.mrf.mxu0
  %v1437 = vadd.f32 %v1391, %v1436
  %v1438 = vpop.f32.mrf.mxu0
  %v1439 = vpop.f32.mrf.mxu0
  %v1440 = vpop.f32.mrf.mxu0
  %1441 = vdwg.mxu0
  %v1442 = vtanh.pop %v1437
  %v1443 = vld [vmem:[%s12] sm:$0xff]
  %s1444 = smul.u32 4, 32
  %s1445 = smul.u32 %s1444, 8
  %s1446 = sshll.u32 %s1445, 4
  %1447 = dma.done [#allocation5], %s1446
  %v1448 = vpack.c.bf16 %v1378, %v1378
  %v1449 = vld [vmem:[#allocation2] sm:$0xff]
  %v1450 = vld [vmem:[#allocation2 + $0x8] sm:$0xff]
  %v1451 = vld [vmem:[#allocation2 + $0x10] sm:$0xff]
  %v1452 = vld [vmem:[#allocation2 + $0x18] sm:$0xff]
  %v1453 = vld [vmem:[#allocation2 + $0x20] sm:$0xff]
  %v1454 = vld [vmem:[#allocation2 + $0x28] sm:$0xff]
  %v1455 = vld [vmem:[#allocation2 + $0x30] sm:$0xff]
  %v1456 = vld [vmem:[#allocation2 + $0x38] sm:$0xff]
  %v1457 = vld [vmem:[#allocation2 + $0x40] sm:$0xff]
  %v1458 = vld [vmem:[#allocation2 + $0x48] sm:$0xff]
  %v1459 = vld [vmem:[#allocation2 + $0x50] sm:$0xff]
  %v1460 = vld [vmem:[#allocation2 + $0x58] sm:$0xff]
  %v1461 = vld [vmem:[#allocation2 + $0x60] sm:$0xff]
  %v1462 = vld [vmem:[#allocation2 + $0x68] sm:$0xff]
  %v1463 = vld [vmem:[#allocation2 + $0x70] sm:$0xff]
  %v1464 = vld [vmem:[#allocation2 + $0x78] sm:$0xff]
  %v1465 = vld [vmem:[#allocation2 + $0x80] sm:$0xff]
  %v1466 = vld [vmem:[#allocation2 + $0x88] sm:$0xff]
  %v1467 = vld [vmem:[#allocation2 + $0x90] sm:$0xff]
  %v1468 = vld [vmem:[#allocation2 + $0x98] sm:$0xff]
  %v1469 = vld [vmem:[#allocation2 + $0xa0] sm:$0xff]
  %v1470 = vld [vmem:[#allocation2 + $0xa8] sm:$0xff]
  %v1471 = vld [vmem:[#allocation2 + $0xb0] sm:$0xff]
  %v1472 = vld [vmem:[#allocation2 + $0xb8] sm:$0xff]
  %v1473 = vld [vmem:[#allocation2 + $0xc0] sm:$0xff]
  %v1474 = vld [vmem:[#allocation2 + $0xc8] sm:$0xff]
  %v1475 = vld [vmem:[#allocation2 + $0xd0] sm:$0xff]
  %v1476 = vld [vmem:[#allocation2 + $0xd8] sm:$0xff]
  %v1477 = vld [vmem:[#allocation2 + $0xe0] sm:$0xff]
  %v1478 = vld [vmem:[#allocation2 + $0xe8] sm:$0xff]
  %v1479 = vld [vmem:[#allocation2 + $0xf0] sm:$0xff]
  %v1480 = vld [vmem:[#allocation2 + $0xf8] sm:$0xff]
  %v1481 = vld [vmem:[#allocation2 + $0x100] sm:$0xff]
  %v1482 = vld [vmem:[#allocation2 + $0x108] sm:$0xff]
  %v1483 = vld [vmem:[#allocation2 + $0x110] sm:$0xff]
  %v1484 = vld [vmem:[#allocation2 + $0x118] sm:$0xff]
  %v1485 = vld [vmem:[#allocation2 + $0x120] sm:$0xff]
  %v1486 = vld [vmem:[#allocation2 + $0x128] sm:$0xff]
  %v1487 = vld [vmem:[#allocation2 + $0x130] sm:$0xff]
  %v1488 = vld [vmem:[#allocation2 + $0x138] sm:$0xff]
  %v1489 = vld [vmem:[#allocation2 + $0x140] sm:$0xff]
  %v1490 = vld [vmem:[#allocation2 + $0x148] sm:$0xff]
  %v1491 = vld [vmem:[#allocation2 + $0x150] sm:$0xff]
  %v1492 = vld [vmem:[#allocation2 + $0x158] sm:$0xff]
  %v1493 = vld [vmem:[#allocation2 + $0x160] sm:$0xff]
  %v1494 = vld [vmem:[#allocation2 + $0x168] sm:$0xff]
  %v1495 = vld [vmem:[#allocation2 + $0x170] sm:$0xff]
  %v1496 = vld [vmem:[#allocation2 + $0x178] sm:$0xff]
  %v1497 = vld [vmem:[#allocation2 + $0x180] sm:$0xff]
  %v1498 = vld [vmem:[#allocation2 + $0x188] sm:$0xff]
  %v1499 = vld [vmem:[#allocation2 + $0x190] sm:$0xff]
  %v1500 = vld [vmem:[#allocation2 + $0x198] sm:$0xff]
  %v1501 = vld [vmem:[#allocation2 + $0x1a0] sm:$0xff]
  %v1502 = vld [vmem:[#allocation2 + $0x1a8] sm:$0xff]
  %v1503 = vld [vmem:[#allocation2 + $0x1b0] sm:$0xff]
  %v1504 = vld [vmem:[#allocation2 + $0x1b8] sm:$0xff]
  %v1505 = vld [vmem:[#allocation2 + $0x1c0] sm:$0xff]
  %v1506 = vld [vmem:[#allocation2 + $0x1c8] sm:$0xff]
  %v1507 = vld [vmem:[#allocation2 + $0x1d0] sm:$0xff]
  %v1508 = vld [vmem:[#allocation2 + $0x1d8] sm:$0xff]
  %v1509 = vld [vmem:[#allocation2 + $0x1e0] sm:$0xff]
  %v1510 = vld [vmem:[#allocation2 + $0x1e8] sm:$0xff]
  %v1511 = vld [vmem:[#allocation2 + $0x1f0] sm:$0xff]
  %v1512 = vld [vmem:[#allocation2 + $0x1f8] sm:$0xff]
  %v1513 = vpack.c.bf16 %v1442, %v1442
  %v1514 = vld [vmem:[#allocation2 + $0x200] sm:$0xff]
  %v1515 = vld [vmem:[#allocation2 + $0x208] sm:$0xff]
  %v1516 = vld [vmem:[#allocation2 + $0x210] sm:$0xff]
  %v1517 = vld [vmem:[#allocation2 + $0x218] sm:$0xff]
  %v1518 = vld [vmem:[#allocation2 + $0x220] sm:$0xff]
  %v1519 = vld [vmem:[#allocation2 + $0x228] sm:$0xff]
  %v1520 = vld [vmem:[#allocation2 + $0x230] sm:$0xff]
  %v1521 = vld [vmem:[#allocation2 + $0x238] sm:$0xff]
  %v1522 = vld [vmem:[#allocation2 + $0x240] sm:$0xff]
  %v1523 = vld [vmem:[#allocation2 + $0x248] sm:$0xff]
  %v1524 = vld [vmem:[#allocation2 + $0x250] sm:$0xff]
  %v1525 = vld [vmem:[#allocation2 + $0x258] sm:$0xff]
  %v1526 = vld [vmem:[#allocation2 + $0x260] sm:$0xff]
  %v1527 = vld [vmem:[#allocation2 + $0x268] sm:$0xff]
  %v1528 = vld [vmem:[#allocation2 + $0x270] sm:$0xff]
  %v1529 = vld [vmem:[#allocation2 + $0x278] sm:$0xff]
  %v1530 = vld [vmem:[#allocation2 + $0x280] sm:$0xff]
  %v1531 = vld [vmem:[#allocation2 + $0x288] sm:$0xff]
  %v1532 = vld [vmem:[#allocation2 + $0x290] sm:$0xff]
  %v1533 = vld [vmem:[#allocation2 + $0x298] sm:$0xff]
  %v1534 = vld [vmem:[#allocation2 + $0x2a0] sm:$0xff]
  %v1535 = vld [vmem:[#allocation2 + $0x2a8] sm:$0xff]
  %v1536 = vld [vmem:[#allocation2 + $0x2b0] sm:$0xff]
  %v1537 = vld [vmem:[#allocation2 + $0x2b8] sm:$0xff]
  %v1538 = vld [vmem:[#allocation2 + $0x2c0] sm:$0xff]
  %v1539 = vld [vmem:[#allocation2 + $0x2c8] sm:$0xff]
  %v1540 = vld [vmem:[#allocation2 + $0x2d0] sm:$0xff]
  %v1541 = vld [vmem:[#allocation2 + $0x2d8] sm:$0xff]
  %v1542 = vld [vmem:[#allocation2 + $0x2e0] sm:$0xff]
  %v1543 = vld [vmem:[#allocation2 + $0x2e8] sm:$0xff]
  %v1544 = vld [vmem:[#allocation2 + $0x2f0] sm:$0xff]
  %v1545 = vld [vmem:[#allocation2 + $0x2f8] sm:$0xff]
  %v1546 = vld [vmem:[#allocation2 + $0x300] sm:$0xff]
  %v1547 = vld [vmem:[#allocation2 + $0x308] sm:$0xff]
  %v1548 = vld [vmem:[#allocation2 + $0x310] sm:$0xff]
  %v1549 = vld [vmem:[#allocation2 + $0x318] sm:$0xff]
  %v1550 = vld [vmem:[#allocation2 + $0x320] sm:$0xff]
  %v1551 = vld [vmem:[#allocation2 + $0x328] sm:$0xff]
  %v1552 = vld [vmem:[#allocation2 + $0x330] sm:$0xff]
  %v1553 = vld [vmem:[#allocation2 + $0x338] sm:$0xff]
  %v1554 = vld [vmem:[#allocation2 + $0x340] sm:$0xff]
  %v1555 = vld [vmem:[#allocation2 + $0x348] sm:$0xff]
  %v1556 = vld [vmem:[#allocation2 + $0x350] sm:$0xff]
  %v1557 = vld [vmem:[#allocation2 + $0x358] sm:$0xff]
  %v1558 = vld [vmem:[#allocation2 + $0x360] sm:$0xff]
  %v1559 = vld [vmem:[#allocation2 + $0x368] sm:$0xff]
  %v1560 = vld [vmem:[#allocation2 + $0x370] sm:$0xff]
  %v1561 = vld [vmem:[#allocation2 + $0x378] sm:$0xff]
  %v1562 = vld [vmem:[#allocation2 + $0x380] sm:$0xff]
  %v1563 = vld [vmem:[#allocation2 + $0x388] sm:$0xff]
  %v1564 = vld [vmem:[#allocation2 + $0x390] sm:$0xff]
  %v1565 = vld [vmem:[#allocation2 + $0x398] sm:$0xff]
  %v1566 = vld [vmem:[#allocation2 + $0x3a0] sm:$0xff]
  %v1567 = vld [vmem:[#allocation2 + $0x3a8] sm:$0xff]
  %v1568 = vld [vmem:[#allocation2 + $0x3b0] sm:$0xff]
  %v1569 = vld [vmem:[#allocation2 + $0x3b8] sm:$0xff]
  %v1570 = vld [vmem:[#allocation2 + $0x3c0] sm:$0xff]
  %v1571 = vld [vmem:[#allocation2 + $0x3c8] sm:$0xff]
  %v1572 = vld [vmem:[#allocation2 + $0x3d0] sm:$0xff]
  %v1573 = vld [vmem:[#allocation2 + $0x3d8] sm:$0xff]
  %v1574 = vld [vmem:[#allocation2 + $0x3e0] sm:$0xff]
  %v1575 = vld [vmem:[#allocation2 + $0x3e8] sm:$0xff]
  %v1576 = vld [vmem:[#allocation2 + $0x3f0] sm:$0xff]
  %v1577 = vld [vmem:[#allocation2 + $0x3f8] sm:$0xff]
  %v1642 = vunpack.c.l.b16 %v1514
  %v1643 = vunpack.c.h.b16 %v1514
  %v1644 = vunpack.c.l.b16 %v1515
  %v1645 = vunpack.c.h.b16 %v1515
  %v1646 = vunpack.c.l.b16 %v1516
  %v1647 = vunpack.c.h.b16 %v1516
  %v1648 = vunpack.c.l.b16 %v1517
  %v1649 = vunpack.c.h.b16 %v1517
  %v1650 = vunpack.c.l.b16 %v1518
  %v1651 = vunpack.c.h.b16 %v1518
  %v1652 = vunpack.c.l.b16 %v1519
  %v1653 = vunpack.c.h.b16 %v1519
  %v1654 = vunpack.c.l.b16 %v1520
  %v1655 = vunpack.c.h.b16 %v1520
  %v1656 = vunpack.c.l.b16 %v1521
  %v1657 = vunpack.c.h.b16 %v1521
  %v1658 = vunpack.c.l.b16 %v1522
  %v1659 = vunpack.c.h.b16 %v1522
  %v1660 = vunpack.c.l.b16 %v1523
  %v1661 = vunpack.c.h.b16 %v1523
  %v1662 = vunpack.c.l.b16 %v1524
  %v1663 = vunpack.c.h.b16 %v1524
  %v1664 = vunpack.c.l.b16 %v1525
  %v1665 = vunpack.c.h.b16 %v1525
  %v1666 = vunpack.c.l.b16 %v1526
  %v1667 = vunpack.c.h.b16 %v1526
  %v1668 = vunpack.c.l.b16 %v1527
  %v1669 = vunpack.c.h.b16 %v1527
  %v1670 = vunpack.c.l.b16 %v1528
  %v1671 = vunpack.c.h.b16 %v1528
  %v1672 = vunpack.c.l.b16 %v1529
  %v1673 = vunpack.c.h.b16 %v1529
  %v1674 = vunpack.c.l.b16 %v1530
  %v1675 = vunpack.c.h.b16 %v1530
  %v1676 = vunpack.c.l.b16 %v1531
  %v1677 = vunpack.c.h.b16 %v1531
  %v1678 = vunpack.c.l.b16 %v1532
  %v1679 = vunpack.c.h.b16 %v1532
  %v1680 = vunpack.c.l.b16 %v1533
  %v1681 = vunpack.c.h.b16 %v1533
  %v1682 = vunpack.c.l.b16 %v1534
  %v1683 = vunpack.c.h.b16 %v1534
  %v1684 = vunpack.c.l.b16 %v1535
  %v1685 = vunpack.c.h.b16 %v1535
  %v1686 = vunpack.c.l.b16 %v1536
  %v1687 = vunpack.c.h.b16 %v1536
  %v1688 = vunpack.c.l.b16 %v1537
  %v1689 = vunpack.c.h.b16 %v1537
  %v1690 = vunpack.c.l.b16 %v1538
  %v1691 = vunpack.c.h.b16 %v1538
  %v1692 = vunpack.c.l.b16 %v1539
  %v1693 = vunpack.c.h.b16 %v1539
  %v1694 = vunpack.c.l.b16 %v1540
  %v1695 = vunpack.c.h.b16 %v1540
  %v1696 = vunpack.c.l.b16 %v1541
  %v1697 = vunpack.c.h.b16 %v1541
  %v1698 = vunpack.c.l.b16 %v1542
  %v1699 = vunpack.c.h.b16 %v1542
  %v1700 = vunpack.c.l.b16 %v1543
  %v1701 = vunpack.c.h.b16 %v1543
  %v1702 = vunpack.c.l.b16 %v1544
  %v1703 = vunpack.c.h.b16 %v1544
  %v1704 = vunpack.c.l.b16 %v1545
  %v1705 = vunpack.c.h.b16 %v1545
  %v1706 = vunpack.c.l.b16 %v1546
  %v1707 = vunpack.c.h.b16 %v1546
  %v1708 = vunpack.c.l.b16 %v1547
  %v1709 = vunpack.c.h.b16 %v1547
  %v1710 = vunpack.c.l.b16 %v1548
  %v1711 = vunpack.c.h.b16 %v1548
  %v1712 = vunpack.c.l.b16 %v1549
  %v1713 = vunpack.c.h.b16 %v1549
  %v1714 = vunpack.c.l.b16 %v1550
  %v1715 = vunpack.c.h.b16 %v1550
  %v1716 = vunpack.c.l.b16 %v1551
  %v1717 = vunpack.c.h.b16 %v1551
  %v1718 = vunpack.c.l.b16 %v1552
  %v1719 = vunpack.c.h.b16 %v1552
  %v1720 = vunpack.c.l.b16 %v1553
  %v1721 = vunpack.c.h.b16 %v1553
  %v1722 = vunpack.c.l.b16 %v1554
  %v1723 = vunpack.c.h.b16 %v1554
  %v1724 = vunpack.c.l.b16 %v1555
  %v1725 = vunpack.c.h.b16 %v1555
  %v1726 = vunpack.c.l.b16 %v1556
  %v1727 = vunpack.c.h.b16 %v1556
  %v1728 = vunpack.c.l.b16 %v1557
  %v1729 = vunpack.c.h.b16 %v1557
  %v1730 = vunpack.c.l.b16 %v1558
  %v1731 = vunpack.c.h.b16 %v1558
  %v1732 = vunpack.c.l.b16 %v1559
  %v1733 = vunpack.c.h.b16 %v1559
  %v1734 = vunpack.c.l.b16 %v1560
  %v1735 = vunpack.c.h.b16 %v1560
  %v1736 = vunpack.c.l.b16 %v1561
  %v1737 = vunpack.c.h.b16 %v1561
  %v1738 = vunpack.c.l.b16 %v1562
  %v1739 = vunpack.c.h.b16 %v1562
  %v1740 = vunpack.c.l.b16 %v1563
  %v1741 = vunpack.c.h.b16 %v1563
  %v1742 = vunpack.c.l.b16 %v1564
  %v1743 = vunpack.c.h.b16 %v1564
  %v1744 = vunpack.c.l.b16 %v1565
  %v1745 = vunpack.c.h.b16 %v1565
  %v1746 = vunpack.c.l.b16 %v1566
  %v1747 = vunpack.c.h.b16 %v1566
  %v1748 = vunpack.c.l.b16 %v1567
  %v1749 = vunpack.c.h.b16 %v1567
  %v1750 = vunpack.c.l.b16 %v1568
  %v1751 = vunpack.c.h.b16 %v1568
  %v1752 = vunpack.c.l.b16 %v1569
  %v1753 = vunpack.c.h.b16 %v1569
  %v1754 = vunpack.c.l.b16 %v1570
  %v1755 = vunpack.c.h.b16 %v1570
  %v1756 = vunpack.c.l.b16 %v1571
  %v1757 = vunpack.c.h.b16 %v1571
  %v1758 = vunpack.c.l.b16 %v1572
  %v1759 = vunpack.c.h.b16 %v1572
  %v1760 = vunpack.c.l.b16 %v1573
  %v1761 = vunpack.c.h.b16 %v1573
  %v1762 = vunpack.c.l.b16 %v1574
  %v1763 = vunpack.c.h.b16 %v1574
  %v1764 = vunpack.c.l.b16 %v1575
  %v1765 = vunpack.c.h.b16 %v1575
  %v1766 = vunpack.c.l.b16 %v1576
  %v1767 = vunpack.c.h.b16 %v1576
  %v1768 = vunpack.c.l.b16 %v1577
  %v1769 = vunpack.c.h.b16 %v1577
  %v1770 = vpack.c.b16 %v1650, %v1642
  %v1771 = vpack.c.b16 %v1651, %v1643
  %v1772 = vpack.c.b16 %v1652, %v1644
  %v1773 = vpack.c.b16 %v1653, %v1645
  %v1774 = vpack.c.b16 %v1654, %v1646
  %v1775 = vpack.c.b16 %v1655, %v1647
  %v1776 = vpack.c.b16 %v1656, %v1648
  %v1777 = vpack.c.b16 %v1657, %v1649
  %v1778 = vpack.c.b16 %v1666, %v1658
  %v1779 = vpack.c.b16 %v1667, %v1659
  %v1780 = vpack.c.b16 %v1668, %v1660
  %v1781 = vpack.c.b16 %v1669, %v1661
  %v1782 = vpack.c.b16 %v1670, %v1662
  %v1783 = vpack.c.b16 %v1671, %v1663
  %v1784 = vpack.c.b16 %v1672, %v1664
  %v1785 = vpack.c.b16 %v1673, %v1665
  %v1786 = vpack.c.b16 %v1682, %v1674
  %v1787 = vpack.c.b16 %v1683, %v1675
  %v1788 = vpack.c.b16 %v1684, %v1676
  %v1789 = vpack.c.b16 %v1685, %v1677
  %v1790 = vpack.c.b16 %v1686, %v1678
  %v1791 = vpack.c.b16 %v1687, %v1679
  %v1792 = vpack.c.b16 %v1688, %v1680
  %v1793 = vpack.c.b16 %v1689, %v1681
  %v1794 = vpack.c.b16 %v1698, %v1690
  %v1795 = vpack.c.b16 %v1699, %v1691
  %v1796 = vpack.c.b16 %v1700, %v1692
  %v1797 = vpack.c.b16 %v1701, %v1693
  %v1798 = vpack.c.b16 %v1702, %v1694
  %v1799 = vpack.c.b16 %v1703, %v1695
  %v1800 = vpack.c.b16 %v1704, %v1696
  %v1801 = vpack.c.b16 %v1705, %v1697
  %v1802 = vpack.c.b16 %v1714, %v1706
  %v1803 = vpack.c.b16 %v1715, %v1707
  %v1804 = vpack.c.b16 %v1716, %v1708
  %v1805 = vpack.c.b16 %v1717, %v1709
  %v1806 = vpack.c.b16 %v1718, %v1710
  %v1807 = vpack.c.b16 %v1719, %v1711
  %v1808 = vpack.c.b16 %v1720, %v1712
  %v1809 = vpack.c.b16 %v1721, %v1713
  %v1810 = vpack.c.b16 %v1730, %v1722
  %v1811 = vpack.c.b16 %v1731, %v1723
  %v1812 = vpack.c.b16 %v1732, %v1724
  %v1813 = vpack.c.b16 %v1733, %v1725
  %v1814 = vpack.c.b16 %v1734, %v1726
  %v1815 = vpack.c.b16 %v1735, %v1727
  %v1816 = vpack.c.b16 %v1736, %v1728
  %v1817 = vpack.c.b16 %v1737, %v1729
  %v1818 = vpack.c.b16 %v1746, %v1738
  %v1819 = vpack.c.b16 %v1747, %v1739
  %v1820 = vpack.c.b16 %v1748, %v1740
  %v1821 = vpack.c.b16 %v1749, %v1741
  %v1822 = vpack.c.b16 %v1750, %v1742
  %v1823 = vpack.c.b16 %v1751, %v1743
  %v1824 = vpack.c.b16 %v1752, %v1744
  %v1825 = vpack.c.b16 %v1753, %v1745
  %v1826 = vpack.c.b16 %v1762, %v1754
  %v1827 = vpack.c.b16 %v1763, %v1755
  %v1828 = vpack.c.b16 %v1764, %v1756
  %v1829 = vpack.c.b16 %v1765, %v1757
  %v1830 = vpack.c.b16 %v1766, %v1758
  %v1831 = vpack.c.b16 %v1767, %v1759
  %v1832 = vpack.c.b16 %v1768, %v1760
  %v1833 = vpack.c.b16 %v1769, %v1761
  %1898 = vmatprep.subr.bf16.mxu0 %v1827
  %1899 = vmatpush1.bf16.msra.mxu0 %v1826
  %1900 = vmatprep.subr.bf16.mxu0 %v1819
  %1901 = vmatpush1.bf16.msra.mxu0 %v1818
  %1902 = vmatprep.subr.bf16.mxu0 %v1811
  %1903 = vmatpush1.bf16.msra.mxu0 %v1810
  %1904 = vmatprep.subr.bf16.mxu0 %v1803
  %1905 = vmatpush1.bf16.msra.mxu0 %v1802
  %1906 = vmatprep.subr.bf16.mxu0 %v1795
  %1907 = vmatpush1.bf16.msra.mxu0 %v1794
  %1908 = vmatprep.subr.bf16.mxu0 %v1787
  %1909 = vmatpush1.bf16.msra.mxu0 %v1786
  %1910 = vmatprep.subr.bf16.mxu0 %v1779
  %1911 = vmatpush1.bf16.msra.mxu0 %v1778
  %1912 = vmatprep.subr.bf16.mxu0 %v1771
  %1913 = vmatpush1.bf16.msra.mxu0 %v1770
  %1914 = vmatprep.subr.bf16.mxu0 0
  %1915 = vmatpush2.bf16.msra.mxu0 0
  %1916 = vmatprep.subr.bf16.mxu0 0
  %1917 = vmatpush2.bf16.msra.mxu0 0
  %1918 = vmatprep.subr.bf16.mxu0 0
  %1919 = vmatpush2.bf16.msra.mxu0 0
  %1920 = vmatprep.subr.bf16.mxu0 0
  %1921 = vmatpush2.bf16.msra.mxu0 0
  %1922 = vmatprep.subr.bf16.mxu0 0
  %1923 = vmatpush2.bf16.msra.mxu0 0
  %1924 = vmatprep.subr.bf16.mxu0 0
  %1925 = vmatpush2.bf16.msra.mxu0 0
  %1926 = vmatprep.subr.bf16.mxu0 0
  %1927 = vmatpush2.bf16.msra.mxu0 0
  %1928 = vmatprep.subr.bf16.mxu0 0
  %1929 = vmatpush2.bf16.msra.mxu0 0
  %1930 = vmatprep.mubr.bf16.mxu0 0
  %1931 = vmatmul.mubr.bf16.gmra.mxu0 %v1513
  %v1932 = vpop.f32.mrf.mxu0
  %v1933 = vadd.f32 0.0, %v1932
  %v1934 = vpop.f32.mrf.mxu0
  %v1935 = vadd.f32 0.0, %v1934
  %v1936 = vpop.f32.mrf.mxu0
  %v1937 = vpop.f32.mrf.mxu0
  %1938 = vdwg.mxu0
  %1939 = vmatprep.subr.bf16.mxu0 %v1829
  %1940 = vmatpush1.bf16.msra.mxu0 %v1828
  %1941 = vmatprep.subr.bf16.mxu0 %v1821
  %1942 = vmatpush1.bf16.msra.mxu0 %v1820
  %1943 = vmatprep.subr.bf16.mxu0 %v1813
  %1944 = vmatpush1.bf16.msra.mxu0 %v1812
  %1945 = vmatprep.subr.bf16.mxu0 %v1805
  %1946 = vmatpush1.bf16.msra.mxu0 %v1804
  %1947 = vmatprep.subr.bf16.mxu0 %v1797
  %1948 = vmatpush1.bf16.msra.mxu0 %v1796
  %1949 = vmatprep.subr.bf16.mxu0 %v1789
  %1950 = vmatpush1.bf16.msra.mxu0 %v1788
  %1951 = vmatprep.subr.bf16.mxu0 %v1781
  %1952 = vmatpush1.bf16.msra.mxu0 %v1780
  %1953 = vmatprep.subr.bf16.mxu0 %v1773
  %1954 = vmatpush1.bf16.msra.mxu0 %v1772
  %1955 = vmatprep.subr.bf16.mxu0 0
  %1956 = vmatpush2.bf16.msra.mxu0 0
  %1957 = vmatprep.subr.bf16.mxu0 0
  %1958 = vmatpush2.bf16.msra.mxu0 0
  %1959 = vmatprep.subr.bf16.mxu0 0
  %1960 = vmatpush2.bf16.msra.mxu0 0
  %1961 = vmatprep.subr.bf16.mxu0 0
  %1962 = vmatpush2.bf16.msra.mxu0 0
  %1963 = vmatprep.subr.bf16.mxu0 0
  %1964 = vmatpush2.bf16.msra.mxu0 0
  %1965 = vmatprep.subr.bf16.mxu0 0
  %1966 = vmatpush2.bf16.msra.mxu0 0
  %1967 = vmatprep.subr.bf16.mxu0 0
  %1968 = vmatpush2.bf16.msra.mxu0 0
  %1969 = vmatprep.subr.bf16.mxu0 0
  %1970 = vmatpush2.bf16.msra.mxu0 0
  %1971 = vmatprep.mubr.bf16.mxu0 0
  %1972 = vmatmul.mubr.bf16.gmra.mxu0 %v1513
  %v1973 = vpop.f32.mrf.mxu0
  %v1974 = vadd.f32 0.0, %v1973
  %v1975 = vpop.f32.mrf.mxu0
  %v1976 = vadd.f32 0.0, %v1975
  %v1977 = vpop.f32.mrf.mxu0
  %v1978 = vpop.f32.mrf.mxu0
  %1979 = vdwg.mxu0
  %1980 = vmatprep.subr.bf16.mxu0 %v1831
  %1981 = vmatpush1.bf16.msra.mxu0 %v1830
  %1982 = vmatprep.subr.bf16.mxu0 %v1823
  %1983 = vmatpush1.bf16.msra.mxu0 %v1822
  %1984 = vmatprep.subr.bf16.mxu0 %v1815
  %1985 = vmatpush1.bf16.msra.mxu0 %v1814
  %1986 = vmatprep.subr.bf16.mxu0 %v1807
  %1987 = vmatpush1.bf16.msra.mxu0 %v1806
  %1988 = vmatprep.subr.bf16.mxu0 %v1799
  %1989 = vmatpush1.bf16.msra.mxu0 %v1798
  %1990 = vmatprep.subr.bf16.mxu0 %v1791
  %1991 = vmatpush1.bf16.msra.mxu0 %v1790
  %1992 = vmatprep.subr.bf16.mxu0 %v1783
  %1993 = vmatpush1.bf16.msra.mxu0 %v1782
  %1994 = vmatprep.subr.bf16.mxu0 %v1775
  %1995 = vmatpush1.bf16.msra.mxu0 %v1774
  %1996 = vmatprep.subr.bf16.mxu0 0
  %1997 = vmatpush2.bf16.msra.mxu0 0
  %1998 = vmatprep.subr.bf16.mxu0 0
  %1999 = vmatpush2.bf16.msra.mxu0 0
  %2000 = vmatprep.subr.bf16.mxu0 0
  %2001 = vmatpush2.bf16.msra.mxu0 0
  %2002 = vmatprep.subr.bf16.mxu0 0
  %2003 = vmatpush2.bf16.msra.mxu0 0
  %2004 = vmatprep.subr.bf16.mxu0 0
  %2005 = vmatpush2.bf16.msra.mxu0 0
  %2006 = vmatprep.subr.bf16.mxu0 0
  %2007 = vmatpush2.bf16.msra.mxu0 0
  %2008 = vmatprep.subr.bf16.mxu0 0
  %2009 = vmatpush2.bf16.msra.mxu0 0
  %2010 = vmatprep.subr.bf16.mxu0 0
  %2011 = vmatpush2.bf16.msra.mxu0 0
  %2012 = vmatprep.mubr.bf16.mxu0 0
  %2013 = vmatmul.mubr.bf16.gmra.mxu0 %v1513
  %v2014 = vpop.f32.mrf.mxu0
  %v2015 = vadd.f32 0.0, %v2014
  %v2016 = vpop.f32.mrf.mxu0
  %v2017 = vadd.f32 0.0, %v2016
  %v2018 = vpop.f32.mrf.mxu0
  %v2019 = vpop.f32.mrf.mxu0
  %2020 = vdwg.mxu0
  %2021 = vmatprep.subr.bf16.mxu0 %v1833
  %2022 = vmatpush1.bf16.msra.mxu0 %v1832
  %2023 = vmatprep.subr.bf16.mxu0 %v1825
  %2024 = vmatpush1.bf16.msra.mxu0 %v1824
  %2025 = vmatprep.subr.bf16.mxu0 %v1817
  %2026 = vmatpush1.bf16.msra.mxu0 %v1816
  %2027 = vmatprep.subr.bf16.mxu0 %v1809
  %2028 = vmatpush1.bf16.msra.mxu0 %v1808
  %2029 = vmatprep.subr.bf16.mxu0 %v1801
  %2030 = vmatpush1.bf16.msra.mxu0 %v1800
  %2031 = vmatprep.subr.bf16.mxu0 %v1793
  %2032 = vmatpush1.bf16.msra.mxu0 %v1792
  %2033 = vmatprep.subr.bf16.mxu0 %v1785
  %2034 = vmatpush1.bf16.msra.mxu0 %v1784
  %2035 = vmatprep.subr.bf16.mxu0 %v1777
  %2036 = vmatpush1.bf16.msra.mxu0 %v1776
  %2037 = vmatprep.subr.bf16.mxu0 0
  %2038 = vmatpush2.bf16.msra.mxu0 0
  %2039 = vmatprep.subr.bf16.mxu0 0
  %2040 = vmatpush2.bf16.msra.mxu0 0
  %2041 = vmatprep.subr.bf16.mxu0 0
  %2042 = vmatpush2.bf16.msra.mxu0 0
  %2043 = vmatprep.subr.bf16.mxu0 0
  %2044 = vmatpush2.bf16.msra.mxu0 0
  %2045 = vmatprep.subr.bf16.mxu0 0
  %2046 = vmatpush2.bf16.msra.mxu0 0
  %2047 = vmatprep.subr.bf16.mxu0 0
  %2048 = vmatpush2.bf16.msra.mxu0 0
  %2049 = vmatprep.subr.bf16.mxu0 0
  %2050 = vmatpush2.bf16.msra.mxu0 0
  %2051 = vmatprep.subr.bf16.mxu0 0
  %2052 = vmatpush2.bf16.msra.mxu0 0
  %2053 = vmatprep.mubr.bf16.mxu0 0
  %2054 = vmatmul.mubr.bf16.gmra.mxu0 %v1513
  %v2055 = vpop.f32.mrf.mxu0
  %v2056 = vadd.f32 0.0, %v2055
  %v2057 = vpop.f32.mrf.mxu0
  %v2058 = vadd.f32 0.0, %v2057
  %v2059 = vpop.f32.mrf.mxu0
  %v2060 = vpop.f32.mrf.mxu0
  %2061 = vdwg.mxu0
  %v2126 = vunpack.c.l.b16 %v1449
  %v2127 = vunpack.c.h.b16 %v1449
  %v2128 = vunpack.c.l.b16 %v1450
  %v2129 = vunpack.c.h.b16 %v1450
  %v2130 = vunpack.c.l.b16 %v1451
  %v2131 = vunpack.c.h.b16 %v1451
  %v2132 = vunpack.c.l.b16 %v1452
  %v2133 = vunpack.c.h.b16 %v1452
  %v2134 = vunpack.c.l.b16 %v1453
  %v2135 = vunpack.c.h.b16 %v1453
  %v2136 = vunpack.c.l.b16 %v1454
  %v2137 = vunpack.c.h.b16 %v1454
  %v2138 = vunpack.c.l.b16 %v1455
  %v2139 = vunpack.c.h.b16 %v1455
  %v2140 = vunpack.c.l.b16 %v1456
  %v2141 = vunpack.c.h.b16 %v1456
  %v2142 = vunpack.c.l.b16 %v1457
  %v2143 = vunpack.c.h.b16 %v1457
  %v2144 = vunpack.c.l.b16 %v1458
  %v2145 = vunpack.c.h.b16 %v1458
  %v2146 = vunpack.c.l.b16 %v1459
  %v2147 = vunpack.c.h.b16 %v1459
  %v2148 = vunpack.c.l.b16 %v1460
  %v2149 = vunpack.c.h.b16 %v1460
  %v2150 = vunpack.c.l.b16 %v1461
  %v2151 = vunpack.c.h.b16 %v1461
  %v2152 = vunpack.c.l.b16 %v1462
  %v2153 = vunpack.c.h.b16 %v1462
  %v2154 = vunpack.c.l.b16 %v1463
  %v2155 = vunpack.c.h.b16 %v1463
  %v2156 = vunpack.c.l.b16 %v1464
  %v2157 = vunpack.c.h.b16 %v1464
  %v2158 = vunpack.c.l.b16 %v1465
  %v2159 = vunpack.c.h.b16 %v1465
  %v2160 = vunpack.c.l.b16 %v1466
  %v2161 = vunpack.c.h.b16 %v1466
  %v2162 = vunpack.c.l.b16 %v1467
  %v2163 = vunpack.c.h.b16 %v1467
  %v2164 = vunpack.c.l.b16 %v1468
  %v2165 = vunpack.c.h.b16 %v1468
  %v2166 = vunpack.c.l.b16 %v1469
  %v2167 = vunpack.c.h.b16 %v1469
  %v2168 = vunpack.c.l.b16 %v1470
  %v2169 = vunpack.c.h.b16 %v1470
  %v2170 = vunpack.c.l.b16 %v1471
  %v2171 = vunpack.c.h.b16 %v1471
  %v2172 = vunpack.c.l.b16 %v1472
  %v2173 = vunpack.c.h.b16 %v1472
  %v2174 = vunpack.c.l.b16 %v1473
  %v2175 = vunpack.c.h.b16 %v1473
  %v2176 = vunpack.c.l.b16 %v1474
  %v2177 = vunpack.c.h.b16 %v1474
  %v2178 = vunpack.c.l.b16 %v1475
  %v2179 = vunpack.c.h.b16 %v1475
  %v2180 = vunpack.c.l.b16 %v1476
  %v2181 = vunpack.c.h.b16 %v1476
  %v2182 = vunpack.c.l.b16 %v1477
  %v2183 = vunpack.c.h.b16 %v1477
  %v2184 = vunpack.c.l.b16 %v1478
  %v2185 = vunpack.c.h.b16 %v1478
  %v2186 = vunpack.c.l.b16 %v1479
  %v2187 = vunpack.c.h.b16 %v1479
  %v2188 = vunpack.c.l.b16 %v1480
  %v2189 = vunpack.c.h.b16 %v1480
  %v2190 = vunpack.c.l.b16 %v1481
  %v2191 = vunpack.c.h.b16 %v1481
  %v2192 = vunpack.c.l.b16 %v1482
  %v2193 = vunpack.c.h.b16 %v1482
  %v2194 = vunpack.c.l.b16 %v1483
  %v2195 = vunpack.c.h.b16 %v1483
  %v2196 = vunpack.c.l.b16 %v1484
  %v2197 = vunpack.c.h.b16 %v1484
  %v2198 = vunpack.c.l.b16 %v1485
  %v2199 = vunpack.c.h.b16 %v1485
  %v2200 = vunpack.c.l.b16 %v1486
  %v2201 = vunpack.c.h.b16 %v1486
  %v2202 = vunpack.c.l.b16 %v1487
  %v2203 = vunpack.c.h.b16 %v1487
  %v2204 = vunpack.c.l.b16 %v1488
  %v2205 = vunpack.c.h.b16 %v1488
  %v2206 = vunpack.c.l.b16 %v1489
  %v2207 = vunpack.c.h.b16 %v1489
  %v2208 = vunpack.c.l.b16 %v1490
  %v2209 = vunpack.c.h.b16 %v1490
  %v2210 = vunpack.c.l.b16 %v1491
  %v2211 = vunpack.c.h.b16 %v1491
  %v2212 = vunpack.c.l.b16 %v1492
  %v2213 = vunpack.c.h.b16 %v1492
  %v2214 = vunpack.c.l.b16 %v1493
  %v2215 = vunpack.c.h.b16 %v1493
  %v2216 = vunpack.c.l.b16 %v1494
  %v2217 = vunpack.c.h.b16 %v1494
  %v2218 = vunpack.c.l.b16 %v1495
  %v2219 = vunpack.c.h.b16 %v1495
  %v2220 = vunpack.c.l.b16 %v1496
  %v2221 = vunpack.c.h.b16 %v1496
  %v2222 = vunpack.c.l.b16 %v1497
  %v2223 = vunpack.c.h.b16 %v1497
  %v2224 = vunpack.c.l.b16 %v1498
  %v2225 = vunpack.c.h.b16 %v1498
  %v2226 = vunpack.c.l.b16 %v1499
  %v2227 = vunpack.c.h.b16 %v1499
  %v2228 = vunpack.c.l.b16 %v1500
  %v2229 = vunpack.c.h.b16 %v1500
  %v2230 = vunpack.c.l.b16 %v1501
  %v2231 = vunpack.c.h.b16 %v1501
  %v2232 = vunpack.c.l.b16 %v1502
  %v2233 = vunpack.c.h.b16 %v1502
  %v2234 = vunpack.c.l.b16 %v1503
  %v2235 = vunpack.c.h.b16 %v1503
  %v2236 = vunpack.c.l.b16 %v1504
  %v2237 = vunpack.c.h.b16 %v1504
  %v2238 = vunpack.c.l.b16 %v1505
  %v2239 = vunpack.c.h.b16 %v1505
  %v2240 = vunpack.c.l.b16 %v1506
  %v2241 = vunpack.c.h.b16 %v1506
  %v2242 = vunpack.c.l.b16 %v1507
  %v2243 = vunpack.c.h.b16 %v1507
  %v2244 = vunpack.c.l.b16 %v1508
  %v2245 = vunpack.c.h.b16 %v1508
  %v2246 = vunpack.c.l.b16 %v1509
  %v2247 = vunpack.c.h.b16 %v1509
  %v2248 = vunpack.c.l.b16 %v1510
  %v2249 = vunpack.c.h.b16 %v1510
  %v2250 = vunpack.c.l.b16 %v1511
  %v2251 = vunpack.c.h.b16 %v1511
  %v2252 = vunpack.c.l.b16 %v1512
  %v2253 = vunpack.c.h.b16 %v1512
  %v2254 = vpack.c.b16 %v2134, %v2126
  %v2255 = vpack.c.b16 %v2135, %v2127
  %v2256 = vpack.c.b16 %v2136, %v2128
  %v2257 = vpack.c.b16 %v2137, %v2129
  %v2258 = vpack.c.b16 %v2138, %v2130
  %v2259 = vpack.c.b16 %v2139, %v2131
  %v2260 = vpack.c.b16 %v2140, %v2132
  %v2261 = vpack.c.b16 %v2141, %v2133
  %v2262 = vpack.c.b16 %v2150, %v2142
  %v2263 = vpack.c.b16 %v2151, %v2143
  %v2264 = vpack.c.b16 %v2152, %v2144
  %v2265 = vpack.c.b16 %v2153, %v2145
  %v2266 = vpack.c.b16 %v2154, %v2146
  %v2267 = vpack.c.b16 %v2155, %v2147
  %v2268 = vpack.c.b16 %v2156, %v2148
  %v2269 = vpack.c.b16 %v2157, %v2149
  %v2270 = vpack.c.b16 %v2166, %v2158
  %v2271 = vpack.c.b16 %v2167, %v2159
  %v2272 = vpack.c.b16 %v2168, %v2160
  %v2273 = vpack.c.b16 %v2169, %v2161
  %v2274 = vpack.c.b16 %v2170, %v2162
  %v2275 = vpack.c.b16 %v2171, %v2163
  %v2276 = vpack.c.b16 %v2172, %v2164
  %v2277 = vpack.c.b16 %v2173, %v2165
  %v2278 = vpack.c.b16 %v2182, %v2174
  %v2279 = vpack.c.b16 %v2183, %v2175
  %v2280 = vpack.c.b16 %v2184, %v2176
  %v2281 = vpack.c.b16 %v2185, %v2177
  %v2282 = vpack.c.b16 %v2186, %v2178
  %v2283 = vpack.c.b16 %v2187, %v2179
  %v2284 = vpack.c.b16 %v2188, %v2180
  %v2285 = vpack.c.b16 %v2189, %v2181
  %v2286 = vpack.c.b16 %v2198, %v2190
  %v2287 = vpack.c.b16 %v2199, %v2191
  %v2288 = vpack.c.b16 %v2200, %v2192
  %v2289 = vpack.c.b16 %v2201, %v2193
  %v2290 = vpack.c.b16 %v2202, %v2194
  %v2291 = vpack.c.b16 %v2203, %v2195
  %v2292 = vpack.c.b16 %v2204, %v2196
  %v2293 = vpack.c.b16 %v2205, %v2197
  %v2294 = vpack.c.b16 %v2214, %v2206
  %v2295 = vpack.c.b16 %v2215, %v2207
  %v2296 = vpack.c.b16 %v2216, %v2208
  %v2297 = vpack.c.b16 %v2217, %v2209
  %v2298 = vpack.c.b16 %v2218, %v2210
  %v2299 = vpack.c.b16 %v2219, %v2211
  %v2300 = vpack.c.b16 %v2220, %v2212
  %v2301 = vpack.c.b16 %v2221, %v2213
  %v2302 = vpack.c.b16 %v2230, %v2222
  %v2303 = vpack.c.b16 %v2231, %v2223
  %v2304 = vpack.c.b16 %v2232, %v2224
  %v2305 = vpack.c.b16 %v2233, %v2225
  %v2306 = vpack.c.b16 %v2234, %v2226
  %v2307 = vpack.c.b16 %v2235, %v2227
  %v2308 = vpack.c.b16 %v2236, %v2228
  %v2309 = vpack.c.b16 %v2237, %v2229
  %v2310 = vpack.c.b16 %v2246, %v2238
  %v2311 = vpack.c.b16 %v2247, %v2239
  %v2312 = vpack.c.b16 %v2248, %v2240
  %v2313 = vpack.c.b16 %v2249, %v2241
  %v2314 = vpack.c.b16 %v2250, %v2242
  %v2315 = vpack.c.b16 %v2251, %v2243
  %v2316 = vpack.c.b16 %v2252, %v2244
  %v2317 = vpack.c.b16 %v2253, %v2245
  %2382 = vmatprep.subr.bf16.mxu0 %v2311
  %2383 = vmatpush1.bf16.msra.mxu0 %v2310
  %2384 = vmatprep.subr.bf16.mxu0 %v2303
  %2385 = vmatpush1.bf16.msra.mxu0 %v2302
  %2386 = vmatprep.subr.bf16.mxu0 %v2295
  %2387 = vmatpush1.bf16.msra.mxu0 %v2294
  %2388 = vmatprep.subr.bf16.mxu0 %v2287
  %2389 = vmatpush1.bf16.msra.mxu0 %v2286
  %2390 = vmatprep.subr.bf16.mxu0 %v2279
  %2391 = vmatpush1.bf16.msra.mxu0 %v2278
  %2392 = vmatprep.subr.bf16.mxu0 %v2271
  %2393 = vmatpush1.bf16.msra.mxu0 %v2270
  %2394 = vmatprep.subr.bf16.mxu0 %v2263
  %2395 = vmatpush1.bf16.msra.mxu0 %v2262
  %2396 = vmatprep.subr.bf16.mxu0 %v2255
  %2397 = vmatpush1.bf16.msra.mxu0 %v2254
  %2398 = vmatprep.subr.bf16.mxu0 0
  %2399 = vmatpush2.bf16.msra.mxu0 0
  %2400 = vmatprep.subr.bf16.mxu0 0
  %2401 = vmatpush2.bf16.msra.mxu0 0
  %2402 = vmatprep.subr.bf16.mxu0 0
  %2403 = vmatpush2.bf16.msra.mxu0 0
  %2404 = vmatprep.subr.bf16.mxu0 0
  %2405 = vmatpush2.bf16.msra.mxu0 0
  %2406 = vmatprep.subr.bf16.mxu0 0
  %2407 = vmatpush2.bf16.msra.mxu0 0
  %2408 = vmatprep.subr.bf16.mxu0 0
  %2409 = vmatpush2.bf16.msra.mxu0 0
  %2410 = vmatprep.subr.bf16.mxu0 0
  %2411 = vmatpush2.bf16.msra.mxu0 0
  %2412 = vmatprep.subr.bf16.mxu0 0
  %2413 = vmatpush2.bf16.msra.mxu0 0
  %2414 = vmatprep.mubr.bf16.mxu0 0
  %2415 = vmatmul.mubr.bf16.gmra.mxu0 %v1448
  %v2416 = vpop.f32.mrf.mxu0
  %v2417 = vadd.f32 %v1933, %v2416
  %v2418 = vpop.f32.mrf.mxu0
  %v2419 = vadd.f32 %v1935, %v2418
  %v2420 = vpop.f32.mrf.mxu0
  %v2421 = vpop.f32.mrf.mxu0
  %2422 = vdwg.mxu0
  %2423 = vmatprep.subr.bf16.mxu0 %v2313
  %2424 = vmatpush1.bf16.msra.mxu0 %v2312
  %2425 = vmatprep.subr.bf16.mxu0 %v2305
  %2426 = vmatpush1.bf16.msra.mxu0 %v2304
  %2427 = vmatprep.subr.bf16.mxu0 %v2297
  %2428 = vmatpush1.bf16.msra.mxu0 %v2296
  %2429 = vmatprep.subr.bf16.mxu0 %v2289
  %2430 = vmatpush1.bf16.msra.mxu0 %v2288
  %2431 = vmatprep.subr.bf16.mxu0 %v2281
  %2432 = vmatpush1.bf16.msra.mxu0 %v2280
  %2433 = vmatprep.subr.bf16.mxu0 %v2273
  %2434 = vmatpush1.bf16.msra.mxu0 %v2272
  %2435 = vmatprep.subr.bf16.mxu0 %v2265
  %2436 = vmatpush1.bf16.msra.mxu0 %v2264
  %2437 = vmatprep.subr.bf16.mxu0 %v2257
  %2438 = vmatpush1.bf16.msra.mxu0 %v2256
  %2439 = vmatprep.subr.bf16.mxu0 0
  %2440 = vmatpush2.bf16.msra.mxu0 0
  %2441 = vmatprep.subr.bf16.mxu0 0
  %2442 = vmatpush2.bf16.msra.mxu0 0
  %2443 = vmatprep.subr.bf16.mxu0 0
  %2444 = vmatpush2.bf16.msra.mxu0 0
  %2445 = vmatprep.subr.bf16.mxu0 0
  %2446 = vmatpush2.bf16.msra.mxu0 0
  %2447 = vmatprep.subr.bf16.mxu0 0
  %2448 = vmatpush2.bf16.msra.mxu0 0
  %2449 = vmatprep.subr.bf16.mxu0 0
  %2450 = vmatpush2.bf16.msra.mxu0 0
  %2451 = vmatprep.subr.bf16.mxu0 0
  %2452 = vmatpush2.bf16.msra.mxu0 0
  %2453 = vmatprep.subr.bf16.mxu0 0
  %2454 = vmatpush2.bf16.msra.mxu0 0
  %2455 = vmatprep.mubr.bf16.mxu0 0
  %2456 = vmatmul.mubr.bf16.gmra.mxu0 %v1448
  %v2457 = vpop.f32.mrf.mxu0
  %v2458 = vadd.f32 %v1974, %v2457
  %v2459 = vpop.f32.mrf.mxu0
  %v2460 = vadd.f32 %v1976, %v2459
  %v2461 = vpop.f32.mrf.mxu0
  %v2462 = vpop.f32.mrf.mxu0
  %2463 = vdwg.mxu0
  %2464 = vmatprep.subr.bf16.mxu0 %v2315
  %2465 = vmatpush1.bf16.msra.mxu0 %v2314
  %2466 = vmatprep.subr.bf16.mxu0 %v2307
  %2467 = vmatpush1.bf16.msra.mxu0 %v2306
  %2468 = vmatprep.subr.bf16.mxu0 %v2299
  %2469 = vmatpush1.bf16.msra.mxu0 %v2298
  %2470 = vmatprep.subr.bf16.mxu0 %v2291
  %2471 = vmatpush1.bf16.msra.mxu0 %v2290
  %2472 = vmatprep.subr.bf16.mxu0 %v2283
  %2473 = vmatpush1.bf16.msra.mxu0 %v2282
  %2474 = vmatprep.subr.bf16.mxu0 %v2275
  %2475 = vmatpush1.bf16.msra.mxu0 %v2274
  %2476 = vmatprep.subr.bf16.mxu0 %v2267
  %2477 = vmatpush1.bf16.msra.mxu0 %v2266
  %2478 = vmatprep.subr.bf16.mxu0 %v2259
  %2479 = vmatpush1.bf16.msra.mxu0 %v2258
  %2480 = vmatprep.subr.bf16.mxu0 0
  %2481 = vmatpush2.bf16.msra.mxu0 0
  %2482 = vmatprep.subr.bf16.mxu0 0
  %2483 = vmatpush2.bf16.msra.mxu0 0
  %2484 = vmatprep.subr.bf16.mxu0 0
  %2485 = vmatpush2.bf16.msra.mxu0 0
  %2486 = vmatprep.subr.bf16.mxu0 0
  %2487 = vmatpush2.bf16.msra.mxu0 0
  %2488 = vmatprep.subr.bf16.mxu0 0
  %2489 = vmatpush2.bf16.msra.mxu0 0
  %2490 = vmatprep.subr.bf16.mxu0 0
  %2491 = vmatpush2.bf16.msra.mxu0 0
  %2492 = vmatprep.subr.bf16.mxu0 0
  %2493 = vmatpush2.bf16.msra.mxu0 0
  %2494 = vmatprep.subr.bf16.mxu0 0
  %2495 = vmatpush2.bf16.msra.mxu0 0
  %2496 = vmatprep.mubr.bf16.mxu0 0
  %2497 = vmatmul.mubr.bf16.gmra.mxu0 %v1448
  %v2498 = vpop.f32.mrf.mxu0
  %v2499 = vadd.f32 %v2015, %v2498
  %v2500 = vpop.f32.mrf.mxu0
  %v2501 = vadd.f32 %v2017, %v2500
  %v2502 = vpop.f32.mrf.mxu0
  %v2503 = vpop.f32.mrf.mxu0
  %2504 = vdwg.mxu0
  %2505 = vmatprep.subr.bf16.mxu0 %v2317
  %2506 = vmatpush1.bf16.msra.mxu0 %v2316
  %2507 = vmatprep.subr.bf16.mxu0 %v2309
  %2508 = vmatpush1.bf16.msra.mxu0 %v2308
  %2509 = vmatprep.subr.bf16.mxu0 %v2301
  %2510 = vmatpush1.bf16.msra.mxu0 %v2300
  %2511 = vmatprep.subr.bf16.mxu0 %v2293
  %2512 = vmatpush1.bf16.msra.mxu0 %v2292
  %2513 = vmatprep.subr.bf16.mxu0 %v2285
  %2514 = vmatpush1.bf16.msra.mxu0 %v2284
  %2515 = vmatprep.subr.bf16.mxu0 %v2277
  %2516 = vmatpush1.bf16.msra.mxu0 %v2276
  %2517 = vmatprep.subr.bf16.mxu0 %v2269
  %2518 = vmatpush1.bf16.msra.mxu0 %v2268
  %2519 = vmatprep.subr.bf16.mxu0 %v2261
  %2520 = vmatpush1.bf16.msra.mxu0 %v2260
  %2521 = vmatprep.subr.bf16.mxu0 0
  %2522 = vmatpush2.bf16.msra.mxu0 0
  %2523 = vmatprep.subr.bf16.mxu0 0
  %2524 = vmatpush2.bf16.msra.mxu0 0
  %2525 = vmatprep.subr.bf16.mxu0 0
  %2526 = vmatpush2.bf16.msra.mxu0 0
  %2527 = vmatprep.subr.bf16.mxu0 0
  %2528 = vmatpush2.bf16.msra.mxu0 0
  %2529 = vmatprep.subr.bf16.mxu0 0
  %2530 = vmatpush2.bf16.msra.mxu0 0
  %2531 = vmatprep.subr.bf16.mxu0 0
  %2532 = vmatpush2.bf16.msra.mxu0 0
  %2533 = vmatprep.subr.bf16.mxu0 0
  %2534 = vmatpush2.bf16.msra.mxu0 0
  %2535 = vmatprep.subr.bf16.mxu0 0
  %2536 = vmatpush2.bf16.msra.mxu0 0
  %2537 = vmatprep.mubr.bf16.mxu0 0
  %2538 = vmatmul.mubr.bf16.gmra.mxu0 %v1448
  %v2539 = vpop.f32.mrf.mxu0
  %v2540 = vadd.f32 %v2056, %v2539
  %v2541 = vpop.f32.mrf.mxu0
  %v2542 = vadd.f32 %v2058, %v2541
  %v2543 = vpop.f32.mrf.mxu0
  %v2544 = vpop.f32.mrf.mxu0
  %2545 = vdwg.mxu0
  %v2547 = vlaneseq
  %v2548 = vshrl.u32 %v2547, 7
  %v2549 = vsub.s32 0, %v2548
  %v2550 = vrot.slane %v1443, %v2549
  %v2551 = vlaneseq
  %v2552 = vshrl.u32 %v2551, 7
  %v2553 = vsub.s32 1, %v2552
  %v2554 = vrot.slane %v1443, %v2553
  %v2555 = vlaneseq
  %v2556 = vshrl.u32 %v2555, 7
  %v2557 = vsub.s32 2, %v2556
  %v2558 = vrot.slane %v1443, %v2557
  %v2559 = vlaneseq
  %v2560 = vshrl.u32 %v2559, 7
  %v2561 = vsub.s32 3, %v2560
  %v2562 = vrot.slane %v1443, %v2561
  %v2563 = vlaneseq
  %v2564 = vshrl.u32 %v2563, 7
  %v2565 = vsub.s32 4, %v2564
  %v2566 = vrot.slane %v1443, %v2565
  %v2567 = vlaneseq
  %v2568 = vshrl.u32 %v2567, 7
  %v2569 = vsub.s32 5, %v2568
  %v2570 = vrot.slane %v1443, %v2569
  %v2571 = vlaneseq
  %v2572 = vshrl.u32 %v2571, 7
  %v2573 = vsub.s32 6, %v2572
  %v2574 = vrot.slane %v1443, %v2573
  %v2575 = vlaneseq
  %v2576 = vshrl.u32 %v2575, 7
  %v2577 = vsub.s32 7, %v2576
  %v2578 = vrot.slane %v1443, %v2577
  %v2587 = vadd.f32 %v2417, %v2550
  %v2588 = vadd.f32 %v2419, %v2554
  %v2589 = vadd.f32 %v2458, %v2558
  %v2590 = vadd.f32 %v2460, %v2562
  %v2591 = vadd.f32 %v2499, %v2566
  %v2592 = vadd.f32 %v2501, %v2570
  %v2593 = vadd.f32 %v2540, %v2574
  %v2594 = vadd.f32 %v2542, %v2578
  %s2595 = sshll.u32 %s1445, 4
  %2596 = dma.done %s356, %s2595
  %v2597 = vld [vmem:[%s13] sm:$0xf]
  %v2598 = vld [vmem:[%s14] sm:$0xf]
  %v2601 = vunpack.c.l.s4 1983009808
  %v2602 = vunpack.c.0.s8 %v2601
  %v2603 = vlaneseq
  %v2604 = vshrl.u32 %v2603, 7
  %v2605 = vsub.s32 %v2602, %v2604
  %v2606 = vrot.slane %v2597, %v2605
  %v2607 = vcombine.high %v2606, %v2606
  %v2610 = vpack.c.bf16 %v2606, %v2606
  %v2611 = vpack.c.bf16 %v2607, %v2607
  %v2612 = vld [vmem:[#allocation3] sm:$0xff]
  %v2613 = vld [vmem:[#allocation3 + $0x8] sm:$0xff]
  %v2614 = vld [vmem:[#allocation3 + $0x10] sm:$0xff]
  %v2615 = vld [vmem:[#allocation3 + $0x18] sm:$0xff]
  %v2616 = vld [vmem:[#allocation3 + $0x20] sm:$0xff]
  %v2617 = vld [vmem:[#allocation3 + $0x28] sm:$0xff]
  %v2618 = vld [vmem:[#allocation3 + $0x30] sm:$0xff]
  %v2619 = vld [vmem:[#allocation3 + $0x38] sm:$0xff]
  %v2620 = vld [vmem:[#allocation3 + $0x40] sm:$0xff]
  %v2621 = vld [vmem:[#allocation3 + $0x48] sm:$0xff]
  %v2622 = vld [vmem:[#allocation3 + $0x50] sm:$0xff]
  %v2623 = vld [vmem:[#allocation3 + $0x58] sm:$0xff]
  %v2624 = vld [vmem:[#allocation3 + $0x60] sm:$0xff]
  %v2625 = vld [vmem:[#allocation3 + $0x68] sm:$0xff]
  %v2626 = vld [vmem:[#allocation3 + $0x70] sm:$0xff]
  %v2627 = vld [vmem:[#allocation3 + $0x78] sm:$0xff]
  %v2628 = vld [vmem:[#allocation3 + $0x80] sm:$0xff]
  %v2629 = vld [vmem:[#allocation3 + $0x88] sm:$0xff]
  %v2630 = vld [vmem:[#allocation3 + $0x90] sm:$0xff]
  %v2631 = vld [vmem:[#allocation3 + $0x98] sm:$0xff]
  %v2632 = vld [vmem:[#allocation3 + $0xa0] sm:$0xff]
  %v2633 = vld [vmem:[#allocation3 + $0xa8] sm:$0xff]
  %v2634 = vld [vmem:[#allocation3 + $0xb0] sm:$0xff]
  %v2635 = vld [vmem:[#allocation3 + $0xb8] sm:$0xff]
  %v2636 = vld [vmem:[#allocation3 + $0xc0] sm:$0xff]
  %v2637 = vld [vmem:[#allocation3 + $0xc8] sm:$0xff]
  %v2638 = vld [vmem:[#allocation3 + $0xd0] sm:$0xff]
  %v2639 = vld [vmem:[#allocation3 + $0xd8] sm:$0xff]
  %v2640 = vld [vmem:[#allocation3 + $0xe0] sm:$0xff]
  %v2641 = vld [vmem:[#allocation3 + $0xe8] sm:$0xff]
  %v2642 = vld [vmem:[#allocation3 + $0xf0] sm:$0xff]
  %v2643 = vld [vmem:[#allocation3 + $0xf8] sm:$0xff]
  %v2644 = vld [vmem:[#allocation3 + $0x100] sm:$0xff]
  %v2645 = vld [vmem:[#allocation3 + $0x108] sm:$0xff]
  %v2646 = vld [vmem:[#allocation3 + $0x110] sm:$0xff]
  %v2647 = vld [vmem:[#allocation3 + $0x118] sm:$0xff]
  %v2648 = vld [vmem:[#allocation3 + $0x120] sm:$0xff]
  %v2649 = vld [vmem:[#allocation3 + $0x128] sm:$0xff]
  %v2650 = vld [vmem:[#allocation3 + $0x130] sm:$0xff]
  %v2651 = vld [vmem:[#allocation3 + $0x138] sm:$0xff]
  %v2652 = vld [vmem:[#allocation3 + $0x140] sm:$0xff]
  %v2653 = vld [vmem:[#allocation3 + $0x148] sm:$0xff]
  %v2654 = vld [vmem:[#allocation3 + $0x150] sm:$0xff]
  %v2655 = vld [vmem:[#allocation3 + $0x158] sm:$0xff]
  %v2656 = vld [vmem:[#allocation3 + $0x160] sm:$0xff]
  %v2657 = vld [vmem:[#allocation3 + $0x168] sm:$0xff]
  %v2658 = vld [vmem:[#allocation3 + $0x170] sm:$0xff]
  %v2659 = vld [vmem:[#allocation3 + $0x178] sm:$0xff]
  %v2660 = vld [vmem:[#allocation3 + $0x180] sm:$0xff]
  %v2661 = vld [vmem:[#allocation3 + $0x188] sm:$0xff]
  %v2662 = vld [vmem:[#allocation3 + $0x190] sm:$0xff]
  %v2663 = vld [vmem:[#allocation3 + $0x198] sm:$0xff]
  %v2664 = vld [vmem:[#allocation3 + $0x1a0] sm:$0xff]
  %v2665 = vld [vmem:[#allocation3 + $0x1a8] sm:$0xff]
  %v2666 = vld [vmem:[#allocation3 + $0x1b0] sm:$0xff]
  %v2667 = vld [vmem:[#allocation3 + $0x1b8] sm:$0xff]
  %v2668 = vld [vmem:[#allocation3 + $0x1c0] sm:$0xff]
  %v2669 = vld [vmem:[#allocation3 + $0x1c8] sm:$0xff]
  %v2670 = vld [vmem:[#allocation3 + $0x1d0] sm:$0xff]
  %v2671 = vld [vmem:[#allocation3 + $0x1d8] sm:$0xff]
  %v2672 = vld [vmem:[#allocation3 + $0x1e0] sm:$0xff]
  %v2673 = vld [vmem:[#allocation3 + $0x1e8] sm:$0xff]
  %v2674 = vld [vmem:[#allocation3 + $0x1f0] sm:$0xff]
  %v2675 = vld [vmem:[#allocation3 + $0x1f8] sm:$0xff]
  %v2676 = vld [vmem:[#allocation3 + $0x200] sm:$0xff]
  %v2677 = vld [vmem:[#allocation3 + $0x208] sm:$0xff]
  %v2678 = vld [vmem:[#allocation3 + $0x210] sm:$0xff]
  %v2679 = vld [vmem:[#allocation3 + $0x218] sm:$0xff]
  %v2680 = vld [vmem:[#allocation3 + $0x220] sm:$0xff]
  %v2681 = vld [vmem:[#allocation3 + $0x228] sm:$0xff]
  %v2682 = vld [vmem:[#allocation3 + $0x230] sm:$0xff]
  %v2683 = vld [vmem:[#allocation3 + $0x238] sm:$0xff]
  %v2684 = vld [vmem:[#allocation3 + $0x240] sm:$0xff]
  %v2685 = vld [vmem:[#allocation3 + $0x248] sm:$0xff]
  %v2686 = vld [vmem:[#allocation3 + $0x250] sm:$0xff]
  %v2687 = vld [vmem:[#allocation3 + $0x258] sm:$0xff]
  %v2688 = vld [vmem:[#allocation3 + $0x260] sm:$0xff]
  %v2689 = vld [vmem:[#allocation3 + $0x268] sm:$0xff]
  %v2690 = vld [vmem:[#allocation3 + $0x270] sm:$0xff]
  %v2691 = vld [vmem:[#allocation3 + $0x278] sm:$0xff]
  %v2692 = vld [vmem:[#allocation3 + $0x280] sm:$0xff]
  %v2693 = vld [vmem:[#allocation3 + $0x288] sm:$0xff]
  %v2694 = vld [vmem:[#allocation3 + $0x290] sm:$0xff]
  %v2695 = vld [vmem:[#allocation3 + $0x298] sm:$0xff]
  %v2696 = vld [vmem:[#allocation3 + $0x2a0] sm:$0xff]
  %v2697 = vld [vmem:[#allocation3 + $0x2a8] sm:$0xff]
  %v2698 = vld [vmem:[#allocation3 + $0x2b0] sm:$0xff]
  %v2699 = vld [vmem:[#allocation3 + $0x2b8] sm:$0xff]
  %v2700 = vld [vmem:[#allocation3 + $0x2c0] sm:$0xff]
  %v2701 = vld [vmem:[#allocation3 + $0x2c8] sm:$0xff]
  %v2702 = vld [vmem:[#allocation3 + $0x2d0] sm:$0xff]
  %v2703 = vld [vmem:[#allocation3 + $0x2d8] sm:$0xff]
  %v2704 = vld [vmem:[#allocation3 + $0x2e0] sm:$0xff]
  %v2705 = vld [vmem:[#allocation3 + $0x2e8] sm:$0xff]
  %v2706 = vld [vmem:[#allocation3 + $0x2f0] sm:$0xff]
  %v2707 = vld [vmem:[#allocation3 + $0x2f8] sm:$0xff]
  %v2708 = vld [vmem:[#allocation3 + $0x300] sm:$0xff]
  %v2709 = vld [vmem:[#allocation3 + $0x308] sm:$0xff]
  %v2710 = vld [vmem:[#allocation3 + $0x310] sm:$0xff]
  %v2711 = vld [vmem:[#allocation3 + $0x318] sm:$0xff]
  %v2712 = vld [vmem:[#allocation3 + $0x320] sm:$0xff]
  %v2713 = vld [vmem:[#allocation3 + $0x328] sm:$0xff]
  %v2714 = vld [vmem:[#allocation3 + $0x330] sm:$0xff]
  %v2715 = vld [vmem:[#allocation3 + $0x338] sm:$0xff]
  %v2716 = vld [vmem:[#allocation3 + $0x340] sm:$0xff]
  %v2717 = vld [vmem:[#allocation3 + $0x348] sm:$0xff]
  %v2718 = vld [vmem:[#allocation3 + $0x350] sm:$0xff]
  %v2719 = vld [vmem:[#allocation3 + $0x358] sm:$0xff]
  %v2720 = vld [vmem:[#allocation3 + $0x360] sm:$0xff]
  %v2721 = vld [vmem:[#allocation3 + $0x368] sm:$0xff]
  %v2722 = vld [vmem:[#allocation3 + $0x370] sm:$0xff]
  %v2723 = vld [vmem:[#allocation3 + $0x378] sm:$0xff]
  %v2724 = vld [vmem:[#allocation3 + $0x380] sm:$0xff]
  %v2725 = vld [vmem:[#allocation3 + $0x388] sm:$0xff]
  %v2726 = vld [vmem:[#allocation3 + $0x390] sm:$0xff]
  %v2727 = vld [vmem:[#allocation3 + $0x398] sm:$0xff]
  %v2728 = vld [vmem:[#allocation3 + $0x3a0] sm:$0xff]
  %v2729 = vld [vmem:[#allocation3 + $0x3a8] sm:$0xff]
  %v2730 = vld [vmem:[#allocation3 + $0x3b0] sm:$0xff]
  %v2731 = vld [vmem:[#allocation3 + $0x3b8] sm:$0xff]
  %v2732 = vld [vmem:[#allocation3 + $0x3c0] sm:$0xff]
  %v2733 = vld [vmem:[#allocation3 + $0x3c8] sm:$0xff]
  %v2734 = vld [vmem:[#allocation3 + $0x3d0] sm:$0xff]
  %v2735 = vld [vmem:[#allocation3 + $0x3d8] sm:$0xff]
  %v2736 = vld [vmem:[#allocation3 + $0x3e0] sm:$0xff]
  %v2737 = vld [vmem:[#allocation3 + $0x3e8] sm:$0xff]
  %v2738 = vld [vmem:[#allocation3 + $0x3f0] sm:$0xff]
  %v2739 = vld [vmem:[#allocation3 + $0x3f8] sm:$0xff]
  %v2868 = vunpack.c.l.b16 %v2612
  %v2869 = vunpack.c.h.b16 %v2612
  %v2870 = vunpack.c.l.b16 %v2613
  %v2871 = vunpack.c.h.b16 %v2613
  %v2872 = vunpack.c.l.b16 %v2614
  %v2873 = vunpack.c.h.b16 %v2614
  %v2874 = vunpack.c.l.b16 %v2615
  %v2875 = vunpack.c.h.b16 %v2615
  %v2876 = vunpack.c.l.b16 %v2616
  %v2877 = vunpack.c.h.b16 %v2616
  %v2878 = vunpack.c.l.b16 %v2617
  %v2879 = vunpack.c.h.b16 %v2617
  %v2880 = vunpack.c.l.b16 %v2618
  %v2881 = vunpack.c.h.b16 %v2618
  %v2882 = vunpack.c.l.b16 %v2619
  %v2883 = vunpack.c.h.b16 %v2619
  %v2884 = vunpack.c.l.b16 %v2620
  %v2885 = vunpack.c.h.b16 %v2620
  %v2886 = vunpack.c.l.b16 %v2621
  %v2887 = vunpack.c.h.b16 %v2621
  %v2888 = vunpack.c.l.b16 %v2622
  %v2889 = vunpack.c.h.b16 %v2622
  %v2890 = vunpack.c.l.b16 %v2623
  %v2891 = vunpack.c.h.b16 %v2623
  %v2892 = vunpack.c.l.b16 %v2624
  %v2893 = vunpack.c.h.b16 %v2624
  %v2894 = vunpack.c.l.b16 %v2625
  %v2895 = vunpack.c.h.b16 %v2625
  %v2896 = vunpack.c.l.b16 %v2626
  %v2897 = vunpack.c.h.b16 %v2626
  %v2898 = vunpack.c.l.b16 %v2627
  %v2899 = vunpack.c.h.b16 %v2627
  %v2900 = vunpack.c.l.b16 %v2628
  %v2901 = vunpack.c.h.b16 %v2628
  %v2902 = vunpack.c.l.b16 %v2629
  %v2903 = vunpack.c.h.b16 %v2629
  %v2904 = vunpack.c.l.b16 %v2630
  %v2905 = vunpack.c.h.b16 %v2630
  %v2906 = vunpack.c.l.b16 %v2631
  %v2907 = vunpack.c.h.b16 %v2631
  %v2908 = vunpack.c.l.b16 %v2632
  %v2909 = vunpack.c.h.b16 %v2632
  %v2910 = vunpack.c.l.b16 %v2633
  %v2911 = vunpack.c.h.b16 %v2633
  %v2912 = vunpack.c.l.b16 %v2634
  %v2913 = vunpack.c.h.b16 %v2634
  %v2914 = vunpack.c.l.b16 %v2635
  %v2915 = vunpack.c.h.b16 %v2635
  %v2916 = vunpack.c.l.b16 %v2636
  %v2917 = vunpack.c.h.b16 %v2636
  %v2918 = vunpack.c.l.b16 %v2637
  %v2919 = vunpack.c.h.b16 %v2637
  %v2920 = vunpack.c.l.b16 %v2638
  %v2921 = vunpack.c.h.b16 %v2638
  %v2922 = vunpack.c.l.b16 %v2639
  %v2923 = vunpack.c.h.b16 %v2639
  %v2924 = vunpack.c.l.b16 %v2640
  %v2925 = vunpack.c.h.b16 %v2640
  %v2926 = vunpack.c.l.b16 %v2641
  %v2927 = vunpack.c.h.b16 %v2641
  %v2928 = vunpack.c.l.b16 %v2642
  %v2929 = vunpack.c.h.b16 %v2642
  %v2930 = vunpack.c.l.b16 %v2643
  %v2931 = vunpack.c.h.b16 %v2643
  %v2932 = vunpack.c.l.b16 %v2644
  %v2933 = vunpack.c.h.b16 %v2644
  %v2934 = vunpack.c.l.b16 %v2645
  %v2935 = vunpack.c.h.b16 %v2645
  %v2936 = vunpack.c.l.b16 %v2646
  %v2937 = vunpack.c.h.b16 %v2646
  %v2938 = vunpack.c.l.b16 %v2647
  %v2939 = vunpack.c.h.b16 %v2647
  %v2940 = vunpack.c.l.b16 %v2648
  %v2941 = vunpack.c.h.b16 %v2648
  %v2942 = vunpack.c.l.b16 %v2649
  %v2943 = vunpack.c.h.b16 %v2649
  %v2944 = vunpack.c.l.b16 %v2650
  %v2945 = vunpack.c.h.b16 %v2650
  %v2946 = vunpack.c.l.b16 %v2651
  %v2947 = vunpack.c.h.b16 %v2651
  %v2948 = vunpack.c.l.b16 %v2652
  %v2949 = vunpack.c.h.b16 %v2652
  %v2950 = vunpack.c.l.b16 %v2653
  %v2951 = vunpack.c.h.b16 %v2653
  %v2952 = vunpack.c.l.b16 %v2654
  %v2953 = vunpack.c.h.b16 %v2654
  %v2954 = vunpack.c.l.b16 %v2655
  %v2955 = vunpack.c.h.b16 %v2655
  %v2956 = vunpack.c.l.b16 %v2656
  %v2957 = vunpack.c.h.b16 %v2656
  %v2958 = vunpack.c.l.b16 %v2657
  %v2959 = vunpack.c.h.b16 %v2657
  %v2960 = vunpack.c.l.b16 %v2658
  %v2961 = vunpack.c.h.b16 %v2658
  %v2962 = vunpack.c.l.b16 %v2659
  %v2963 = vunpack.c.h.b16 %v2659
  %v2964 = vunpack.c.l.b16 %v2660
  %v2965 = vunpack.c.h.b16 %v2660
  %v2966 = vunpack.c.l.b16 %v2661
  %v2967 = vunpack.c.h.b16 %v2661
  %v2968 = vunpack.c.l.b16 %v2662
  %v2969 = vunpack.c.h.b16 %v2662
  %v2970 = vunpack.c.l.b16 %v2663
  %v2971 = vunpack.c.h.b16 %v2663
  %v2972 = vunpack.c.l.b16 %v2664
  %v2973 = vunpack.c.h.b16 %v2664
  %v2974 = vunpack.c.l.b16 %v2665
  %v2975 = vunpack.c.h.b16 %v2665
  %v2976 = vunpack.c.l.b16 %v2666
  %v2977 = vunpack.c.h.b16 %v2666
  %v2978 = vunpack.c.l.b16 %v2667
  %v2979 = vunpack.c.h.b16 %v2667
  %v2980 = vunpack.c.l.b16 %v2668
  %v2981 = vunpack.c.h.b16 %v2668
  %v2982 = vunpack.c.l.b16 %v2669
  %v2983 = vunpack.c.h.b16 %v2669
  %v2984 = vunpack.c.l.b16 %v2670
  %v2985 = vunpack.c.h.b16 %v2670
  %v2986 = vunpack.c.l.b16 %v2671
  %v2987 = vunpack.c.h.b16 %v2671
  %v2988 = vunpack.c.l.b16 %v2672
  %v2989 = vunpack.c.h.b16 %v2672
  %v2990 = vunpack.c.l.b16 %v2673
  %v2991 = vunpack.c.h.b16 %v2673
  %v2992 = vunpack.c.l.b16 %v2674
  %v2993 = vunpack.c.h.b16 %v2674
  %v2994 = vunpack.c.l.b16 %v2675
  %v2995 = vunpack.c.h.b16 %v2675
  %v2996 = vunpack.c.l.b16 %v2676
  %v2997 = vunpack.c.h.b16 %v2676
  %v2998 = vunpack.c.l.b16 %v2677
  %v2999 = vunpack.c.h.b16 %v2677
  %v3000 = vunpack.c.l.b16 %v2678
  %v3001 = vunpack.c.h.b16 %v2678
  %v3002 = vunpack.c.l.b16 %v2679
  %v3003 = vunpack.c.h.b16 %v2679
  %v3004 = vunpack.c.l.b16 %v2680
  %v3005 = vunpack.c.h.b16 %v2680
  %v3006 = vunpack.c.l.b16 %v2681
  %v3007 = vunpack.c.h.b16 %v2681
  %v3008 = vunpack.c.l.b16 %v2682
  %v3009 = vunpack.c.h.b16 %v2682
  %v3010 = vunpack.c.l.b16 %v2683
  %v3011 = vunpack.c.h.b16 %v2683
  %v3012 = vunpack.c.l.b16 %v2684
  %v3013 = vunpack.c.h.b16 %v2684
  %v3014 = vunpack.c.l.b16 %v2685
  %v3015 = vunpack.c.h.b16 %v2685
  %v3016 = vunpack.c.l.b16 %v2686
  %v3017 = vunpack.c.h.b16 %v2686
  %v3018 = vunpack.c.l.b16 %v2687
  %v3019 = vunpack.c.h.b16 %v2687
  %v3020 = vunpack.c.l.b16 %v2688
  %v3021 = vunpack.c.h.b16 %v2688
  %v3022 = vunpack.c.l.b16 %v2689
  %v3023 = vunpack.c.h.b16 %v2689
  %v3024 = vunpack.c.l.b16 %v2690
  %v3025 = vunpack.c.h.b16 %v2690
  %v3026 = vunpack.c.l.b16 %v2691
  %v3027 = vunpack.c.h.b16 %v2691
  %v3028 = vunpack.c.l.b16 %v2692
  %v3029 = vunpack.c.h.b16 %v2692
  %v3030 = vunpack.c.l.b16 %v2693
  %v3031 = vunpack.c.h.b16 %v2693
  %v3032 = vunpack.c.l.b16 %v2694
  %v3033 = vunpack.c.h.b16 %v2694
  %v3034 = vunpack.c.l.b16 %v2695
  %v3035 = vunpack.c.h.b16 %v2695
  %v3036 = vunpack.c.l.b16 %v2696
  %v3037 = vunpack.c.h.b16 %v2696
  %v3038 = vunpack.c.l.b16 %v2697
  %v3039 = vunpack.c.h.b16 %v2697
  %v3040 = vunpack.c.l.b16 %v2698
  %v3041 = vunpack.c.h.b16 %v2698
  %v3042 = vunpack.c.l.b16 %v2699
  %v3043 = vunpack.c.h.b16 %v2699
  %v3044 = vunpack.c.l.b16 %v2700
  %v3045 = vunpack.c.h.b16 %v2700
  %v3046 = vunpack.c.l.b16 %v2701
  %v3047 = vunpack.c.h.b16 %v2701
  %v3048 = vunpack.c.l.b16 %v2702
  %v3049 = vunpack.c.h.b16 %v2702
  %v3050 = vunpack.c.l.b16 %v2703
  %v3051 = vunpack.c.h.b16 %v2703
  %v3052 = vunpack.c.l.b16 %v2704
  %v3053 = vunpack.c.h.b16 %v2704
  %v3054 = vunpack.c.l.b16 %v2705
  %v3055 = vunpack.c.h.b16 %v2705
  %v3056 = vunpack.c.l.b16 %v2706
  %v3057 = vunpack.c.h.b16 %v2706
  %v3058 = vunpack.c.l.b16 %v2707
  %v3059 = vunpack.c.h.b16 %v2707
  %v3060 = vunpack.c.l.b16 %v2708
  %v3061 = vunpack.c.h.b16 %v2708
  %v3062 = vunpack.c.l.b16 %v2709
  %v3063 = vunpack.c.h.b16 %v2709
  %v3064 = vunpack.c.l.b16 %v2710
  %v3065 = vunpack.c.h.b16 %v2710
  %v3066 = vunpack.c.l.b16 %v2711
  %v3067 = vunpack.c.h.b16 %v2711
  %v3068 = vunpack.c.l.b16 %v2712
  %v3069 = vunpack.c.h.b16 %v2712
  %v3070 = vunpack.c.l.b16 %v2713
  %v3071 = vunpack.c.h.b16 %v2713
  %v3072 = vunpack.c.l.b16 %v2714
  %v3073 = vunpack.c.h.b16 %v2714
  %v3074 = vunpack.c.l.b16 %v2715
  %v3075 = vunpack.c.h.b16 %v2715
  %v3076 = vunpack.c.l.b16 %v2716
  %v3077 = vunpack.c.h.b16 %v2716
  %v3078 = vunpack.c.l.b16 %v2717
  %v3079 = vunpack.c.h.b16 %v2717
  %v3080 = vunpack.c.l.b16 %v2718
  %v3081 = vunpack.c.h.b16 %v2718
  %v3082 = vunpack.c.l.b16 %v2719
  %v3083 = vunpack.c.h.b16 %v2719
  %v3084 = vunpack.c.l.b16 %v2720
  %v3085 = vunpack.c.h.b16 %v2720
  %v3086 = vunpack.c.l.b16 %v2721
  %v3087 = vunpack.c.h.b16 %v2721
  %v3088 = vunpack.c.l.b16 %v2722
  %v3089 = vunpack.c.h.b16 %v2722
  %v3090 = vunpack.c.l.b16 %v2723
  %v3091 = vunpack.c.h.b16 %v2723
  %v3092 = vunpack.c.l.b16 %v2724
  %v3093 = vunpack.c.h.b16 %v2724
  %v3094 = vunpack.c.l.b16 %v2725
  %v3095 = vunpack.c.h.b16 %v2725
  %v3096 = vunpack.c.l.b16 %v2726
  %v3097 = vunpack.c.h.b16 %v2726
  %v3098 = vunpack.c.l.b16 %v2727
  %v3099 = vunpack.c.h.b16 %v2727
  %v3100 = vunpack.c.l.b16 %v2728
  %v3101 = vunpack.c.h.b16 %v2728
  %v3102 = vunpack.c.l.b16 %v2729
  %v3103 = vunpack.c.h.b16 %v2729
  %v3104 = vunpack.c.l.b16 %v2730
  %v3105 = vunpack.c.h.b16 %v2730
  %v3106 = vunpack.c.l.b16 %v2731
  %v3107 = vunpack.c.h.b16 %v2731
  %v3108 = vunpack.c.l.b16 %v2732
  %v3109 = vunpack.c.h.b16 %v2732
  %v3110 = vunpack.c.l.b16 %v2733
  %v3111 = vunpack.c.h.b16 %v2733
  %v3112 = vunpack.c.l.b16 %v2734
  %v3113 = vunpack.c.h.b16 %v2734
  %v3114 = vunpack.c.l.b16 %v2735
  %v3115 = vunpack.c.h.b16 %v2735
  %v3116 = vunpack.c.l.b16 %v2736
  %v3117 = vunpack.c.h.b16 %v2736
  %v3118 = vunpack.c.l.b16 %v2737
  %v3119 = vunpack.c.h.b16 %v2737
  %v3120 = vunpack.c.l.b16 %v2738
  %v3121 = vunpack.c.h.b16 %v2738
  %v3122 = vunpack.c.l.b16 %v2739
  %v3123 = vunpack.c.h.b16 %v2739
  %v3124 = vpack.c.b16 %v2876, %v2868
  %v3125 = vpack.c.b16 %v2877, %v2869
  %v3126 = vpack.c.b16 %v2878, %v2870
  %v3127 = vpack.c.b16 %v2879, %v2871
  %v3128 = vpack.c.b16 %v2880, %v2872
  %v3129 = vpack.c.b16 %v2881, %v2873
  %v3130 = vpack.c.b16 %v2882, %v2874
  %v3131 = vpack.c.b16 %v2883, %v2875
  %v3132 = vpack.c.b16 %v2892, %v2884
  %v3133 = vpack.c.b16 %v2893, %v2885
  %v3134 = vpack.c.b16 %v2894, %v2886
  %v3135 = vpack.c.b16 %v2895, %v2887
  %v3136 = vpack.c.b16 %v2896, %v2888
  %v3137 = vpack.c.b16 %v2897, %v2889
  %v3138 = vpack.c.b16 %v2898, %v2890
  %v3139 = vpack.c.b16 %v2899, %v2891
  %v3140 = vpack.c.b16 %v2908, %v2900
  %v3141 = vpack.c.b16 %v2909, %v2901
  %v3142 = vpack.c.b16 %v2910, %v2902
  %v3143 = vpack.c.b16 %v2911, %v2903
  %v3144 = vpack.c.b16 %v2912, %v2904
  %v3145 = vpack.c.b16 %v2913, %v2905
  %v3146 = vpack.c.b16 %v2914, %v2906
  %v3147 = vpack.c.b16 %v2915, %v2907
  %v3148 = vpack.c.b16 %v2924, %v2916
  %v3149 = vpack.c.b16 %v2925, %v2917
  %v3150 = vpack.c.b16 %v2926, %v2918
  %v3151 = vpack.c.b16 %v2927, %v2919
  %v3152 = vpack.c.b16 %v2928, %v2920
  %v3153 = vpack.c.b16 %v2929, %v2921
  %v3154 = vpack.c.b16 %v2930, %v2922
  %v3155 = vpack.c.b16 %v2931, %v2923
  %v3156 = vpack.c.b16 %v2940, %v2932
  %v3157 = vpack.c.b16 %v2941, %v2933
  %v3158 = vpack.c.b16 %v2942, %v2934
  %v3159 = vpack.c.b16 %v2943, %v2935
  %v3160 = vpack.c.b16 %v2944, %v2936
  %v3161 = vpack.c.b16 %v2945, %v2937
  %v3162 = vpack.c.b16 %v2946, %v2938
  %v3163 = vpack.c.b16 %v2947, %v2939
  %v3164 = vpack.c.b16 %v2956, %v2948
  %v3165 = vpack.c.b16 %v2957, %v2949
  %v3166 = vpack.c.b16 %v2958, %v2950
  %v3167 = vpack.c.b16 %v2959, %v2951
  %v3168 = vpack.c.b16 %v2960, %v2952
  %v3169 = vpack.c.b16 %v2961, %v2953
  %v3170 = vpack.c.b16 %v2962, %v2954
  %v3171 = vpack.c.b16 %v2963, %v2955
  %v3172 = vpack.c.b16 %v2972, %v2964
  %v3173 = vpack.c.b16 %v2973, %v2965
  %v3174 = vpack.c.b16 %v2974, %v2966
  %v3175 = vpack.c.b16 %v2975, %v2967
  %v3176 = vpack.c.b16 %v2976, %v2968
  %v3177 = vpack.c.b16 %v2977, %v2969
  %v3178 = vpack.c.b16 %v2978, %v2970
  %v3179 = vpack.c.b16 %v2979, %v2971
  %v3180 = vpack.c.b16 %v2988, %v2980
  %v3181 = vpack.c.b16 %v2989, %v2981
  %v3182 = vpack.c.b16 %v2990, %v2982
  %v3183 = vpack.c.b16 %v2991, %v2983
  %v3184 = vpack.c.b16 %v2992, %v2984
  %v3185 = vpack.c.b16 %v2993, %v2985
  %v3186 = vpack.c.b16 %v2994, %v2986
  %v3187 = vpack.c.b16 %v2995, %v2987
  %v3188 = vpack.c.b16 %v3004, %v2996
  %v3189 = vpack.c.b16 %v3005, %v2997
  %v3190 = vpack.c.b16 %v3006, %v2998
  %v3191 = vpack.c.b16 %v3007, %v2999
  %v3192 = vpack.c.b16 %v3008, %v3000
  %v3193 = vpack.c.b16 %v3009, %v3001
  %v3194 = vpack.c.b16 %v3010, %v3002
  %v3195 = vpack.c.b16 %v3011, %v3003
  %v3196 = vpack.c.b16 %v3020, %v3012
  %v3197 = vpack.c.b16 %v3021, %v3013
  %v3198 = vpack.c.b16 %v3022, %v3014
  %v3199 = vpack.c.b16 %v3023, %v3015
  %v3200 = vpack.c.b16 %v3024, %v3016
  %v3201 = vpack.c.b16 %v3025, %v3017
  %v3202 = vpack.c.b16 %v3026, %v3018
  %v3203 = vpack.c.b16 %v3027, %v3019
  %v3204 = vpack.c.b16 %v3036, %v3028
  %v3205 = vpack.c.b16 %v3037, %v3029
  %v3206 = vpack.c.b16 %v3038, %v3030
  %v3207 = vpack.c.b16 %v3039, %v3031
  %v3208 = vpack.c.b16 %v3040, %v3032
  %v3209 = vpack.c.b16 %v3041, %v3033
  %v3210 = vpack.c.b16 %v3042, %v3034
  %v3211 = vpack.c.b16 %v3043, %v3035
  %v3212 = vpack.c.b16 %v3052, %v3044
  %v3213 = vpack.c.b16 %v3053, %v3045
  %v3214 = vpack.c.b16 %v3054, %v3046
  %v3215 = vpack.c.b16 %v3055, %v3047
  %v3216 = vpack.c.b16 %v3056, %v3048
  %v3217 = vpack.c.b16 %v3057, %v3049
  %v3218 = vpack.c.b16 %v3058, %v3050
  %v3219 = vpack.c.b16 %v3059, %v3051
  %v3220 = vpack.c.b16 %v3068, %v3060
  %v3221 = vpack.c.b16 %v3069, %v3061
  %v3222 = vpack.c.b16 %v3070, %v3062
  %v3223 = vpack.c.b16 %v3071, %v3063
  %v3224 = vpack.c.b16 %v3072, %v3064
  %v3225 = vpack.c.b16 %v3073, %v3065
  %v3226 = vpack.c.b16 %v3074, %v3066
  %v3227 = vpack.c.b16 %v3075, %v3067
  %v3228 = vpack.c.b16 %v3084, %v3076
  %v3229 = vpack.c.b16 %v3085, %v3077
  %v3230 = vpack.c.b16 %v3086, %v3078
  %v3231 = vpack.c.b16 %v3087, %v3079
  %v3232 = vpack.c.b16 %v3088, %v3080
  %v3233 = vpack.c.b16 %v3089, %v3081
  %v3234 = vpack.c.b16 %v3090, %v3082
  %v3235 = vpack.c.b16 %v3091, %v3083
  %v3236 = vpack.c.b16 %v3100, %v3092
  %v3237 = vpack.c.b16 %v3101, %v3093
  %v3238 = vpack.c.b16 %v3102, %v3094
  %v3239 = vpack.c.b16 %v3103, %v3095
  %v3240 = vpack.c.b16 %v3104, %v3096
  %v3241 = vpack.c.b16 %v3105, %v3097
  %v3242 = vpack.c.b16 %v3106, %v3098
  %v3243 = vpack.c.b16 %v3107, %v3099
  %v3244 = vpack.c.b16 %v3116, %v3108
  %v3245 = vpack.c.b16 %v3117, %v3109
  %v3246 = vpack.c.b16 %v3118, %v3110
  %v3247 = vpack.c.b16 %v3119, %v3111
  %v3248 = vpack.c.b16 %v3120, %v3112
  %v3249 = vpack.c.b16 %v3121, %v3113
  %v3250 = vpack.c.b16 %v3122, %v3114
  %v3251 = vpack.c.b16 %v3123, %v3115
  %3380 = vmatprep.subr.bf16.mxu0 %v3181
  %3381 = vmatpush1.bf16.msra.mxu0 %v3180
  %3382 = vmatprep.subr.bf16.mxu0 %v3173
  %3383 = vmatpush1.bf16.msra.mxu0 %v3172
  %3384 = vmatprep.subr.bf16.mxu0 %v3165
  %3385 = vmatpush1.bf16.msra.mxu0 %v3164
  %3386 = vmatprep.subr.bf16.mxu0 %v3157
  %3387 = vmatpush1.bf16.msra.mxu0 %v3156
  %3388 = vmatprep.subr.bf16.mxu0 %v3149
  %3389 = vmatpush1.bf16.msra.mxu0 %v3148
  %3390 = vmatprep.subr.bf16.mxu0 %v3141
  %3391 = vmatpush1.bf16.msra.mxu0 %v3140
  %3392 = vmatprep.subr.bf16.mxu0 %v3133
  %3393 = vmatpush1.bf16.msra.mxu0 %v3132
  %3394 = vmatprep.subr.bf16.mxu0 %v3125
  %3395 = vmatpush1.bf16.msra.mxu0 %v3124
  %3396 = vmatprep.subr.bf16.mxu0 %v3245
  %3397 = vmatpush2.bf16.msra.mxu0 %v3244
  %3398 = vmatprep.subr.bf16.mxu0 %v3237
  %3399 = vmatpush2.bf16.msra.mxu0 %v3236
  %3400 = vmatprep.subr.bf16.mxu0 %v3229
  %3401 = vmatpush2.bf16.msra.mxu0 %v3228
  %3402 = vmatprep.subr.bf16.mxu0 %v3221
  %3403 = vmatpush2.bf16.msra.mxu0 %v3220
  %3404 = vmatprep.subr.bf16.mxu0 %v3213
  %3405 = vmatpush2.bf16.msra.mxu0 %v3212
  %3406 = vmatprep.subr.bf16.mxu0 %v3205
  %3407 = vmatpush2.bf16.msra.mxu0 %v3204
  %3408 = vmatprep.subr.bf16.mxu0 %v3197
  %3409 = vmatpush2.bf16.msra.mxu0 %v3196
  %3410 = vmatprep.subr.bf16.mxu0 %v3189
  %3411 = vmatpush2.bf16.msra.mxu0 %v3188
  %3412 = vmatprep.mubr.bf16.mxu0 %v2611
  %3413 = vmatmul.mubr.bf16.gmra.mxu0 %v2610
  %v3414 = vpop.f32.mrf.mxu0
  %v3415 = vadd.f32 0.0, %v3414
  %v3416 = vpop.f32.mrf.mxu0
  %v3417 = vadd.f32 0.0, %v3416
  %v3418 = vpop.f32.mrf.mxu0
  %v3419 = vpop.f32.mrf.mxu0
  %3420 = vdwg.mxu0
  %3421 = vmatprep.subr.bf16.mxu0 %v3183
  %3422 = vmatpush1.bf16.msra.mxu0 %v3182
  %3423 = vmatprep.subr.bf16.mxu0 %v3175
  %3424 = vmatpush1.bf16.msra.mxu0 %v3174
  %3425 = vmatprep.subr.bf16.mxu0 %v3167
  %3426 = vmatpush1.bf16.msra.mxu0 %v3166
  %3427 = vmatprep.subr.bf16.mxu0 %v3159
  %3428 = vmatpush1.bf16.msra.mxu0 %v3158
  %3429 = vmatprep.subr.bf16.mxu0 %v3151
  %3430 = vmatpush1.bf16.msra.mxu0 %v3150
  %3431 = vmatprep.subr.bf16.mxu0 %v3143
  %3432 = vmatpush1.bf16.msra.mxu0 %v3142
  %3433 = vmatprep.subr.bf16.mxu0 %v3135
  %3434 = vmatpush1.bf16.msra.mxu0 %v3134
  %3435 = vmatprep.subr.bf16.mxu0 %v3127
  %3436 = vmatpush1.bf16.msra.mxu0 %v3126
  %3437 = vmatprep.subr.bf16.mxu0 %v3247
  %3438 = vmatpush2.bf16.msra.mxu0 %v3246
  %3439 = vmatprep.subr.bf16.mxu0 %v3239
  %3440 = vmatpush2.bf16.msra.mxu0 %v3238
  %3441 = vmatprep.subr.bf16.mxu0 %v3231
  %3442 = vmatpush2.bf16.msra.mxu0 %v3230
  %3443 = vmatprep.subr.bf16.mxu0 %v3223
  %3444 = vmatpush2.bf16.msra.mxu0 %v3222
  %3445 = vmatprep.subr.bf16.mxu0 %v3215
  %3446 = vmatpush2.bf16.msra.mxu0 %v3214
  %3447 = vmatprep.subr.bf16.mxu0 %v3207
  %3448 = vmatpush2.bf16.msra.mxu0 %v3206
  %3449 = vmatprep.subr.bf16.mxu0 %v3199
  %3450 = vmatpush2.bf16.msra.mxu0 %v3198
  %3451 = vmatprep.subr.bf16.mxu0 %v3191
  %3452 = vmatpush2.bf16.msra.mxu0 %v3190
  %3453 = vmatprep.mubr.bf16.mxu0 %v2611
  %3454 = vmatmul.mubr.bf16.gmra.mxu0 %v2610
  %v3455 = vpop.f32.mrf.mxu0
  %v3456 = vadd.f32 0.0, %v3455
  %v3457 = vpop.f32.mrf.mxu0
  %v3458 = vadd.f32 0.0, %v3457
  %v3459 = vpop.f32.mrf.mxu0
  %v3460 = vpop.f32.mrf.mxu0
  %3461 = vdwg.mxu0
  %3462 = vmatprep.subr.bf16.mxu0 %v3185
  %3463 = vmatpush1.bf16.msra.mxu0 %v3184
  %3464 = vmatprep.subr.bf16.mxu0 %v3177
  %3465 = vmatpush1.bf16.msra.mxu0 %v3176
  %3466 = vmatprep.subr.bf16.mxu0 %v3169
  %3467 = vmatpush1.bf16.msra.mxu0 %v3168
  %3468 = vmatprep.subr.bf16.mxu0 %v3161
  %3469 = vmatpush1.bf16.msra.mxu0 %v3160
  %3470 = vmatprep.subr.bf16.mxu0 %v3153
  %3471 = vmatpush1.bf16.msra.mxu0 %v3152
  %3472 = vmatprep.subr.bf16.mxu0 %v3145
  %3473 = vmatpush1.bf16.msra.mxu0 %v3144
  %3474 = vmatprep.subr.bf16.mxu0 %v3137
  %3475 = vmatpush1.bf16.msra.mxu0 %v3136
  %3476 = vmatprep.subr.bf16.mxu0 %v3129
  %3477 = vmatpush1.bf16.msra.mxu0 %v3128
  %3478 = vmatprep.subr.bf16.mxu0 %v3249
  %3479 = vmatpush2.bf16.msra.mxu0 %v3248
  %3480 = vmatprep.subr.bf16.mxu0 %v3241
  %3481 = vmatpush2.bf16.msra.mxu0 %v3240
  %3482 = vmatprep.subr.bf16.mxu0 %v3233
  %3483 = vmatpush2.bf16.msra.mxu0 %v3232
  %3484 = vmatprep.subr.bf16.mxu0 %v3225
  %3485 = vmatpush2.bf16.msra.mxu0 %v3224
  %3486 = vmatprep.subr.bf16.mxu0 %v3217
  %3487 = vmatpush2.bf16.msra.mxu0 %v3216
  %3488 = vmatprep.subr.bf16.mxu0 %v3209
  %3489 = vmatpush2.bf16.msra.mxu0 %v3208
  %3490 = vmatprep.subr.bf16.mxu0 %v3201
  %3491 = vmatpush2.bf16.msra.mxu0 %v3200
  %3492 = vmatprep.subr.bf16.mxu0 %v3193
  %3493 = vmatpush2.bf16.msra.mxu0 %v3192
  %3494 = vmatprep.mubr.bf16.mxu0 %v2611
  %3495 = vmatmul.mubr.bf16.gmra.mxu0 %v2610
  %v3496 = vpop.f32.mrf.mxu0
  %v3497 = vadd.f32 0.0, %v3496
  %v3498 = vpop.f32.mrf.mxu0
  %v3499 = vadd.f32 0.0, %v3498
  %v3500 = vpop.f32.mrf.mxu0
  %v3501 = vpop.f32.mrf.mxu0
  %3502 = vdwg.mxu0
  %3503 = vmatprep.subr.bf16.mxu0 %v3187
  %3504 = vmatpush1.bf16.msra.mxu0 %v3186
  %3505 = vmatprep.subr.bf16.mxu0 %v3179
  %3506 = vmatpush1.bf16.msra.mxu0 %v3178
  %3507 = vmatprep.subr.bf16.mxu0 %v3171
  %3508 = vmatpush1.bf16.msra.mxu0 %v3170
  %3509 = vmatprep.subr.bf16.mxu0 %v3163
  %3510 = vmatpush1.bf16.msra.mxu0 %v3162
  %3511 = vmatprep.subr.bf16.mxu0 %v3155
  %3512 = vmatpush1.bf16.msra.mxu0 %v3154
  %3513 = vmatprep.subr.bf16.mxu0 %v3147
  %3514 = vmatpush1.bf16.msra.mxu0 %v3146
  %3515 = vmatprep.subr.bf16.mxu0 %v3139
  %3516 = vmatpush1.bf16.msra.mxu0 %v3138
  %3517 = vmatprep.subr.bf16.mxu0 %v3131
  %3518 = vmatpush1.bf16.msra.mxu0 %v3130
  %3519 = vmatprep.subr.bf16.mxu0 %v3251
  %3520 = vmatpush2.bf16.msra.mxu0 %v3250
  %3521 = vmatprep.subr.bf16.mxu0 %v3243
  %3522 = vmatpush2.bf16.msra.mxu0 %v3242
  %3523 = vmatprep.subr.bf16.mxu0 %v3235
  %3524 = vmatpush2.bf16.msra.mxu0 %v3234
  %3525 = vmatprep.subr.bf16.mxu0 %v3227
  %3526 = vmatpush2.bf16.msra.mxu0 %v3226
  %3527 = vmatprep.subr.bf16.mxu0 %v3219
  %3528 = vmatpush2.bf16.msra.mxu0 %v3218
  %3529 = vmatprep.subr.bf16.mxu0 %v3211
  %3530 = vmatpush2.bf16.msra.mxu0 %v3210
  %3531 = vmatprep.subr.bf16.mxu0 %v3203
  %3532 = vmatpush2.bf16.msra.mxu0 %v3202
  %3533 = vmatprep.subr.bf16.mxu0 %v3195
  %3534 = vmatpush2.bf16.msra.mxu0 %v3194
  %3535 = vmatprep.mubr.bf16.mxu0 %v2611
  %3536 = vmatmul.mubr.bf16.gmra.mxu0 %v2610
  %v3537 = vpop.f32.mrf.mxu0
  %v3538 = vadd.f32 0.0, %v3537
  %v3539 = vpop.f32.mrf.mxu0
  %v3540 = vadd.f32 0.0, %v3539
  %v3541 = vpop.f32.mrf.mxu0
  %v3542 = vpop.f32.mrf.mxu0
  %3543 = vdwg.mxu0
  %v3544 = vadd.f32 %v2587, %v3415
  %v3545 = vadd.f32 %v2588, %v3417
  %v3546 = vadd.f32 %v2589, %v3456
  %v3547 = vadd.f32 %v2590, %v3458
  %v3548 = vadd.f32 %v2591, %v3497
  %v3549 = vadd.f32 %v2592, %v3499
  %v3550 = vadd.f32 %v2593, %v3538
  %v3551 = vadd.f32 %v2594, %v3540
  %v3552 = vxor.u32 %v3544, 2147483648
  %v3553 = vxor.u32 %v3545, 2147483648
  %v3554 = vmul.f32 %v3552, 1.442695
  %v3555 = vpow.pop %v3554
  %v3556 = vmul.f32 %v3553, 1.442695
  %v3557 = vpow.pop %v3556
  %v3558 = vadd.f32 %v3555, 1.0
  %v3559 = vadd.f32 %v3557, 1.0
  %v3560 = vrcp.pop %v3558
  %v3561 = vmul.f32 1.0, %v3560
  %v3562 = vrcp.pop %v3559
  %v3563 = vmul.f32 1.0, %v3562
  %v3564 = vxor.u32 %v3546, 2147483648
  %v3565 = vxor.u32 %v3547, 2147483648
  %v3566 = vmul.f32 %v3564, 1.442695
  %v3567 = vpow.pop %v3566
  %v3568 = vmul.f32 %v3565, 1.442695
  %v3569 = vpow.pop %v3568
  %v3570 = vadd.f32 %v3567, 1.0
  %v3571 = vadd.f32 %v3569, 1.0
  %v3572 = vrcp.pop %v3570
  %v3573 = vmul.f32 1.0, %v3572
  %v3574 = vrcp.pop %v3571
  %v3575 = vmul.f32 1.0, %v3574
  %v3576 = vtanh.pop %v3548
  %v3577 = vtanh.pop %v3549
  %v3578 = vxor.u32 %v3550, 2147483648
  %v3579 = vxor.u32 %v3551, 2147483648
  %v3580 = vmul.f32 %v3578, 1.442695
  %v3581 = vpow.pop %v3580
  %v3582 = vmul.f32 %v3579, 1.442695
  %v3583 = vpow.pop %v3582
  %v3584 = vadd.f32 %v3581, 1.0
  %v3585 = vadd.f32 %v3583, 1.0
  %v3586 = vrcp.pop %v3584
  %v3587 = vmul.f32 1.0, %v3586
  %v3588 = vrcp.pop %v3585
  %v3589 = vmul.f32 1.0, %v3588
  %v3592 = vunpack.c.l.s4 1983009808
  %v3593 = vunpack.c.0.s8 %v3592
  %v3594 = vlaneseq
  %v3595 = vshrl.u32 %v3594, 7
  %v3596 = vsub.s32 %v3593, %v3595
  %v3597 = vrot.slane %v2598, %v3596
  %v3598 = vcombine.high %v3597, %v3597
  %v3601 = vmul.f32 %v3573, %v3597
  %v3602 = vmul.f32 %v3575, %v3598
  %v3603 = vmul.f32 %v3561, %v3576
  %v3604 = vmul.f32 %v3563, %v3577
  %v3605 = vadd.f32 %v3601, %v3603
  %v3606 = vadd.f32 %v3602, %v3604
  %v3607 = vtanh.pop %v3605
  %v3608 = vtanh.pop %v3606
  %v3609 = vmul.f32 %v3587, %v3607
  %v3610 = vmul.f32 %v3589, %v3608
  %v3611 = vpack.c.bf16 %v3609, %v3609
  %v3612 = vpack.c.bf16 %v3610, %v3610
  %3613 = vmatprep.subr.bf16.mxu0 %v3181
  %3614 = vmatpush1.bf16.msra.mxu0 %v3180
  %3615 = vmatprep.subr.bf16.mxu0 %v3173
  %3616 = vmatpush1.bf16.msra.mxu0 %v3172
  %3617 = vmatprep.subr.bf16.mxu0 %v3165
  %3618 = vmatpush1.bf16.msra.mxu0 %v3164
  %3619 = vmatprep.subr.bf16.mxu0 %v3157
  %3620 = vmatpush1.bf16.msra.mxu0 %v3156
  %3621 = vmatprep.subr.bf16.mxu0 %v3149
  %3622 = vmatpush1.bf16.msra.mxu0 %v3148
  %3623 = vmatprep.subr.bf16.mxu0 %v3141
  %3624 = vmatpush1.bf16.msra.mxu0 %v3140
  %3625 = vmatprep.subr.bf16.mxu0 %v3133
  %3626 = vmatpush1.bf16.msra.mxu0 %v3132
  %3627 = vmatprep.subr.bf16.mxu0 %v3125
  %3628 = vmatpush1.bf16.msra.mxu0 %v3124
  %3629 = vmatprep.subr.bf16.mxu0 %v3245
  %3630 = vmatpush2.bf16.msra.mxu0 %v3244
  %3631 = vmatprep.subr.bf16.mxu0 %v3237
  %3632 = vmatpush2.bf16.msra.mxu0 %v3236
  %3633 = vmatprep.subr.bf16.mxu0 %v3229
  %3634 = vmatpush2.bf16.msra.mxu0 %v3228
  %3635 = vmatprep.subr.bf16.mxu0 %v3221
  %3636 = vmatpush2.bf16.msra.mxu0 %v3220
  %3637 = vmatprep.subr.bf16.mxu0 %v3213
  %3638 = vmatpush2.bf16.msra.mxu0 %v3212
  %3639 = vmatprep.subr.bf16.mxu0 %v3205
  %3640 = vmatpush2.bf16.msra.mxu0 %v3204
  %3641 = vmatprep.subr.bf16.mxu0 %v3197
  %3642 = vmatpush2.bf16.msra.mxu0 %v3196
  %3643 = vmatprep.subr.bf16.mxu0 %v3189
  %3644 = vmatpush2.bf16.msra.mxu0 %v3188
  %3645 = vmatprep.mubr.bf16.mxu0 %v3612
  %3646 = vmatmul.mubr.bf16.gmra.mxu0 %v3611
  %v3647 = vpop.f32.mrf.mxu0
  %v3648 = vadd.f32 0.0, %v3647
  %v3649 = vpop.f32.mrf.mxu0
  %v3650 = vadd.f32 0.0, %v3649
  %v3651 = vpop.f32.mrf.mxu0
  %v3652 = vpop.f32.mrf.mxu0
  %3653 = vdwg.mxu0
  %3654 = vmatprep.subr.bf16.mxu0 %v3183
  %3655 = vmatpush1.bf16.msra.mxu0 %v3182
  %3656 = vmatprep.subr.bf16.mxu0 %v3175
  %3657 = vmatpush1.bf16.msra.mxu0 %v3174
  %3658 = vmatprep.subr.bf16.mxu0 %v3167
  %3659 = vmatpush1.bf16.msra.mxu0 %v3166
  %3660 = vmatprep.subr.bf16.mxu0 %v3159
  %3661 = vmatpush1.bf16.msra.mxu0 %v3158
  %3662 = vmatprep.subr.bf16.mxu0 %v3151
  %3663 = vmatpush1.bf16.msra.mxu0 %v3150
  %3664 = vmatprep.subr.bf16.mxu0 %v3143
  %3665 = vmatpush1.bf16.msra.mxu0 %v3142
  %3666 = vmatprep.subr.bf16.mxu0 %v3135
  %3667 = vmatpush1.bf16.msra.mxu0 %v3134
  %3668 = vmatprep.subr.bf16.mxu0 %v3127
  %3669 = vmatpush1.bf16.msra.mxu0 %v3126
  %3670 = vmatprep.subr.bf16.mxu0 %v3247
  %3671 = vmatpush2.bf16.msra.mxu0 %v3246
  %3672 = vmatprep.subr.bf16.mxu0 %v3239
  %3673 = vmatpush2.bf16.msra.mxu0 %v3238
  %3674 = vmatprep.subr.bf16.mxu0 %v3231
  %3675 = vmatpush2.bf16.msra.mxu0 %v3230
  %3676 = vmatprep.subr.bf16.mxu0 %v3223
  %3677 = vmatpush2.bf16.msra.mxu0 %v3222
  %3678 = vmatprep.subr.bf16.mxu0 %v3215
  %3679 = vmatpush2.bf16.msra.mxu0 %v3214
  %3680 = vmatprep.subr.bf16.mxu0 %v3207
  %3681 = vmatpush2.bf16.msra.mxu0 %v3206
  %3682 = vmatprep.subr.bf16.mxu0 %v3199
  %3683 = vmatpush2.bf16.msra.mxu0 %v3198
  %3684 = vmatprep.subr.bf16.mxu0 %v3191
  %3685 = vmatpush2.bf16.msra.mxu0 %v3190
  %3686 = vmatprep.mubr.bf16.mxu0 %v3612
  %3687 = vmatmul.mubr.bf16.gmra.mxu0 %v3611
  %v3688 = vpop.f32.mrf.mxu0
  %v3689 = vadd.f32 0.0, %v3688
  %v3690 = vpop.f32.mrf.mxu0
  %v3691 = vadd.f32 0.0, %v3690
  %v3692 = vpop.f32.mrf.mxu0
  %v3693 = vpop.f32.mrf.mxu0
  %3694 = vdwg.mxu0
  %3695 = vmatprep.subr.bf16.mxu0 %v3185
  %3696 = vmatpush1.bf16.msra.mxu0 %v3184
  %3697 = vmatprep.subr.bf16.mxu0 %v3177
  %3698 = vmatpush1.bf16.msra.mxu0 %v3176
  %3699 = vmatprep.subr.bf16.mxu0 %v3169
  %3700 = vmatpush1.bf16.msra.mxu0 %v3168
  %3701 = vmatprep.subr.bf16.mxu0 %v3161
  %3702 = vmatpush1.bf16.msra.mxu0 %v3160
  %3703 = vmatprep.subr.bf16.mxu0 %v3153
  %3704 = vmatpush1.bf16.msra.mxu0 %v3152
  %3705 = vmatprep.subr.bf16.mxu0 %v3145
  %3706 = vmatpush1.bf16.msra.mxu0 %v3144
  %3707 = vmatprep.subr.bf16.mxu0 %v3137
  %3708 = vmatpush1.bf16.msra.mxu0 %v3136
  %3709 = vmatprep.subr.bf16.mxu0 %v3129
  %3710 = vmatpush1.bf16.msra.mxu0 %v3128
  %3711 = vmatprep.subr.bf16.mxu0 %v3249
  %3712 = vmatpush2.bf16.msra.mxu0 %v3248
  %3713 = vmatprep.subr.bf16.mxu0 %v3241
  %3714 = vmatpush2.bf16.msra.mxu0 %v3240
  %3715 = vmatprep.subr.bf16.mxu0 %v3233
  %3716 = vmatpush2.bf16.msra.mxu0 %v3232
  %3717 = vmatprep.subr.bf16.mxu0 %v3225
  %3718 = vmatpush2.bf16.msra.mxu0 %v3224
  %3719 = vmatprep.subr.bf16.mxu0 %v3217
  %3720 = vmatpush2.bf16.msra.mxu0 %v3216
  %3721 = vmatprep.subr.bf16.mxu0 %v3209
  %3722 = vmatpush2.bf16.msra.mxu0 %v3208
  %3723 = vmatprep.subr.bf16.mxu0 %v3201
  %3724 = vmatpush2.bf16.msra.mxu0 %v3200
  %3725 = vmatprep.subr.bf16.mxu0 %v3193
  %3726 = vmatpush2.bf16.msra.mxu0 %v3192
  %3727 = vmatprep.mubr.bf16.mxu0 %v3612
  %3728 = vmatmul.mubr.bf16.gmra.mxu0 %v3611
  %v3729 = vpop.f32.mrf.mxu0
  %v3730 = vadd.f32 0.0, %v3729
  %v3731 = vpop.f32.mrf.mxu0
  %v3732 = vadd.f32 0.0, %v3731
  %v3733 = vpop.f32.mrf.mxu0
  %v3734 = vpop.f32.mrf.mxu0
  %3735 = vdwg.mxu0
  %3736 = vmatprep.subr.bf16.mxu0 %v3187
  %3737 = vmatpush1.bf16.msra.mxu0 %v3186
  %3738 = vmatprep.subr.bf16.mxu0 %v3179
  %3739 = vmatpush1.bf16.msra.mxu0 %v3178
  %3740 = vmatprep.subr.bf16.mxu0 %v3171
  %3741 = vmatpush1.bf16.msra.mxu0 %v3170
  %3742 = vmatprep.subr.bf16.mxu0 %v3163
  %3743 = vmatpush1.bf16.msra.mxu0 %v3162
  %3744 = vmatprep.subr.bf16.mxu0 %v3155
  %3745 = vmatpush1.bf16.msra.mxu0 %v3154
  %3746 = vmatprep.subr.bf16.mxu0 %v3147
  %3747 = vmatpush1.bf16.msra.mxu0 %v3146
  %3748 = vmatprep.subr.bf16.mxu0 %v3139
  %3749 = vmatpush1.bf16.msra.mxu0 %v3138
  %3750 = vmatprep.subr.bf16.mxu0 %v3131
  %3751 = vmatpush1.bf16.msra.mxu0 %v3130
  %3752 = vmatprep.subr.bf16.mxu0 %v3251
  %3753 = vmatpush2.bf16.msra.mxu0 %v3250
  %3754 = vmatprep.subr.bf16.mxu0 %v3243
  %3755 = vmatpush2.bf16.msra.mxu0 %v3242
  %3756 = vmatprep.subr.bf16.mxu0 %v3235
  %3757 = vmatpush2.bf16.msra.mxu0 %v3234
  %3758 = vmatprep.subr.bf16.mxu0 %v3227
  %3759 = vmatpush2.bf16.msra.mxu0 %v3226
  %3760 = vmatprep.subr.bf16.mxu0 %v3219
  %3761 = vmatpush2.bf16.msra.mxu0 %v3218
  %3762 = vmatprep.subr.bf16.mxu0 %v3211
  %3763 = vmatpush2.bf16.msra.mxu0 %v3210
  %3764 = vmatprep.subr.bf16.mxu0 %v3203
  %3765 = vmatpush2.bf16.msra.mxu0 %v3202
  %3766 = vmatprep.subr.bf16.mxu0 %v3195
  %3767 = vmatpush2.bf16.msra.mxu0 %v3194
  %3768 = vmatprep.mubr.bf16.mxu0 %v3612
  %3769 = vmatmul.mubr.bf16.gmra.mxu0 %v3611
  %v3770 = vpop.f32.mrf.mxu0
  %v3771 = vadd.f32 0.0, %v3770
  %v3772 = vpop.f32.mrf.mxu0
  %v3773 = vadd.f32 0.0, %v3772
  %v3774 = vpop.f32.mrf.mxu0
  %v3775 = vpop.f32.mrf.mxu0
  %3776 = vdwg.mxu0
  %v3785 = vrot.slane %v3648, 6
  %v3786 = vrot.slane %v3650, 6
  %v3787 = vrot.slane %v3689, 6
  %v3788 = vrot.slane %v3691, 6
  %v3789 = vrot.slane %v3730, 6
  %v3790 = vrot.slane %v3732, 6
  %v3791 = vrot.slane %v3771, 6
  %v3792 = vrot.slane %v3773, 6
  %v3801 = vadd.f32 %v2587, %v3785
  %v3802 = vadd.f32 %v2588, %v3786
  %v3803 = vadd.f32 %v2589, %v3787
  %v3804 = vadd.f32 %v2590, %v3788
  %v3805 = vadd.f32 %v2591, %v3789
  %v3806 = vadd.f32 %v2592, %v3790
  %v3807 = vadd.f32 %v2593, %v3791
  %v3808 = vadd.f32 %v2594, %v3792
  %v3809 = vxor.u32 %v3801, 2147483648
  %v3810 = vxor.u32 %v3802, 2147483648
  %v3811 = vmul.f32 %v3809, 1.442695
  %v3812 = vpow.pop %v3811
  %v3813 = vmul.f32 %v3810, 1.442695
  %v3814 = vpow.pop %v3813
  %v3815 = vadd.f32 %v3812, 1.0
  %v3816 = vadd.f32 %v3814, 1.0
  %v3817 = vrcp.pop %v3815
  %v3818 = vmul.f32 1.0, %v3817
  %v3819 = vrcp.pop %v3816
  %v3820 = vmul.f32 1.0, %v3819
  %v3821 = vxor.u32 %v3803, 2147483648
  %v3822 = vxor.u32 %v3804, 2147483648
  %v3823 = vmul.f32 %v3821, 1.442695
  %v3824 = vpow.pop %v3823
  %v3825 = vmul.f32 %v3822, 1.442695
  %v3826 = vpow.pop %v3825
  %v3827 = vadd.f32 %v3824, 1.0
  %v3828 = vadd.f32 %v3826, 1.0
  %v3829 = vrcp.pop %v3827
  %v3830 = vmul.f32 1.0, %v3829
  %v3831 = vrcp.pop %v3828
  %v3832 = vmul.f32 1.0, %v3831
  %v3833 = vtanh.pop %v3805
  %v3834 = vtanh.pop %v3806
  %v3835 = vxor.u32 %v3807, 2147483648
  %v3836 = vxor.u32 %v3808, 2147483648
  %v3837 = vmul.f32 %v3835, 1.442695
  %v3838 = vpow.pop %v3837
  %v3839 = vmul.f32 %v3836, 1.442695
  %v3840 = vpow.pop %v3839
  %v3841 = vadd.f32 %v3838, 1.0
  %v3842 = vadd.f32 %v3840, 1.0
  %v3843 = vrcp.pop %v3841
  %v3844 = vmul.f32 1.0, %v3843
  %v3845 = vrcp.pop %v3842
  %v3846 = vmul.f32 1.0, %v3845
  %v3849 = vrot.slane %v3605, 6
  %v3850 = vrot.slane %v3606, 6
  %v3853 = vmul.f32 %v3830, %v3849
  %v3854 = vmul.f32 %v3832, %v3850
  %v3855 = vmul.f32 %v3818, %v3833
  %v3856 = vmul.f32 %v3820, %v3834
  %v3857 = vadd.f32 %v3853, %v3855
  %v3858 = vadd.f32 %v3854, %v3856
  %v3859 = vtanh.pop %v3857
  %v3860 = vtanh.pop %v3858
  %v3861 = vmul.f32 %v3844, %v3859
  %v3862 = vmul.f32 %v3846, %v3860
  %v3863 = vpack.c.bf16 %v3861, %v3861
  %v3864 = vpack.c.bf16 %v3862, %v3862
  %v3867 = vrot.slane %v3863, 1
  %v3868 = vrot.slane %v3864, 1
  %3871 = vmatprep.subr.bf16.mxu0 %v3181
  %3872 = vmatpush1.bf16.msra.mxu0 %v3180
  %3873 = vmatprep.subr.bf16.mxu0 %v3173
  %3874 = vmatpush1.bf16.msra.mxu0 %v3172
  %3875 = vmatprep.subr.bf16.mxu0 %v3165
  %3876 = vmatpush1.bf16.msra.mxu0 %v3164
  %3877 = vmatprep.subr.bf16.mxu0 %v3157
  %3878 = vmatpush1.bf16.msra.mxu0 %v3156
  %3879 = vmatprep.subr.bf16.mxu0 %v3149
  %3880 = vmatpush1.bf16.msra.mxu0 %v3148
  %3881 = vmatprep.subr.bf16.mxu0 %v3141
  %3882 = vmatpush1.bf16.msra.mxu0 %v3140
  %3883 = vmatprep.subr.bf16.mxu0 %v3133
  %3884 = vmatpush1.bf16.msra.mxu0 %v3132
  %3885 = vmatprep.subr.bf16.mxu0 %v3125
  %3886 = vmatpush1.bf16.msra.mxu0 %v3124
  %3887 = vmatprep.subr.bf16.mxu0 %v3245
  %3888 = vmatpush2.bf16.msra.mxu0 %v3244
  %3889 = vmatprep.subr.bf16.mxu0 %v3237
  %3890 = vmatpush2.bf16.msra.mxu0 %v3236
  %3891 = vmatprep.subr.bf16.mxu0 %v3229
  %3892 = vmatpush2.bf16.msra.mxu0 %v3228
  %3893 = vmatprep.subr.bf16.mxu0 %v3221
  %3894 = vmatpush2.bf16.msra.mxu0 %v3220
  %3895 = vmatprep.subr.bf16.mxu0 %v3213
  %3896 = vmatpush2.bf16.msra.mxu0 %v3212
  %3897 = vmatprep.subr.bf16.mxu0 %v3205
  %3898 = vmatpush2.bf16.msra.mxu0 %v3204
  %3899 = vmatprep.subr.bf16.mxu0 %v3197
  %3900 = vmatpush2.bf16.msra.mxu0 %v3196
  %3901 = vmatprep.subr.bf16.mxu0 %v3189
  %3902 = vmatpush2.bf16.msra.mxu0 %v3188
  %3903 = vmatprep.mubr.bf16.mxu0 %v3868
  %3904 = vmatmul.mubr.bf16.gmra.mxu0 %v3867
  %v3905 = vpop.f32.mrf.mxu0
  %v3906 = vadd.f32 0.0, %v3905
  %v3907 = vpop.f32.mrf.mxu0
  %v3908 = vadd.f32 0.0, %v3907
  %v3909 = vpop.f32.mrf.mxu0
  %v3910 = vpop.f32.mrf.mxu0
  %3911 = vdwg.mxu0
  %3912 = vmatprep.subr.bf16.mxu0 %v3183
  %3913 = vmatpush1.bf16.msra.mxu0 %v3182
  %3914 = vmatprep.subr.bf16.mxu0 %v3175
  %3915 = vmatpush1.bf16.msra.mxu0 %v3174
  %3916 = vmatprep.subr.bf16.mxu0 %v3167
  %3917 = vmatpush1.bf16.msra.mxu0 %v3166
  %3918 = vmatprep.subr.bf16.mxu0 %v3159
  %3919 = vmatpush1.bf16.msra.mxu0 %v3158
  %3920 = vmatprep.subr.bf16.mxu0 %v3151
  %3921 = vmatpush1.bf16.msra.mxu0 %v3150
  %3922 = vmatprep.subr.bf16.mxu0 %v3143
  %3923 = vmatpush1.bf16.msra.mxu0 %v3142
  %3924 = vmatprep.subr.bf16.mxu0 %v3135
  %3925 = vmatpush1.bf16.msra.mxu0 %v3134
  %3926 = vmatprep.subr.bf16.mxu0 %v3127
  %3927 = vmatpush1.bf16.msra.mxu0 %v3126
  %3928 = vmatprep.subr.bf16.mxu0 %v3247
  %3929 = vmatpush2.bf16.msra.mxu0 %v3246
  %3930 = vmatprep.subr.bf16.mxu0 %v3239
  %3931 = vmatpush2.bf16.msra.mxu0 %v3238
  %3932 = vmatprep.subr.bf16.mxu0 %v3231
  %3933 = vmatpush2.bf16.msra.mxu0 %v3230
  %3934 = vmatprep.subr.bf16.mxu0 %v3223
  %3935 = vmatpush2.bf16.msra.mxu0 %v3222
  %3936 = vmatprep.subr.bf16.mxu0 %v3215
  %3937 = vmatpush2.bf16.msra.mxu0 %v3214
  %3938 = vmatprep.subr.bf16.mxu0 %v3207
  %3939 = vmatpush2.bf16.msra.mxu0 %v3206
  %3940 = vmatprep.subr.bf16.mxu0 %v3199
  %3941 = vmatpush2.bf16.msra.mxu0 %v3198
  %3942 = vmatprep.subr.bf16.mxu0 %v3191
  %3943 = vmatpush2.bf16.msra.mxu0 %v3190
  %3944 = vmatprep.mubr.bf16.mxu0 %v3868
  %3945 = vmatmul.mubr.bf16.gmra.mxu0 %v3867
  %v3946 = vpop.f32.mrf.mxu0
  %v3947 = vadd.f32 0.0, %v3946
  %v3948 = vpop.f32.mrf.mxu0
  %v3949 = vadd.f32 0.0, %v3948
  %v3950 = vpop.f32.mrf.mxu0
  %v3951 = vpop.f32.mrf.mxu0
  %3952 = vdwg.mxu0
  %3953 = vmatprep.subr.bf16.mxu0 %v3185
  %3954 = vmatpush1.bf16.msra.mxu0 %v3184
  %3955 = vmatprep.subr.bf16.mxu0 %v3177
  %3956 = vmatpush1.bf16.msra.mxu0 %v3176
  %3957 = vmatprep.subr.bf16.mxu0 %v3169
  %3958 = vmatpush1.bf16.msra.mxu0 %v3168
  %3959 = vmatprep.subr.bf16.mxu0 %v3161
  %3960 = vmatpush1.bf16.msra.mxu0 %v3160
  %3961 = vmatprep.subr.bf16.mxu0 %v3153
  %3962 = vmatpush1.bf16.msra.mxu0 %v3152
  %3963 = vmatprep.subr.bf16.mxu0 %v3145
  %3964 = vmatpush1.bf16.msra.mxu0 %v3144
  %3965 = vmatprep.subr.bf16.mxu0 %v3137
  %3966 = vmatpush1.bf16.msra.mxu0 %v3136
  %3967 = vmatprep.subr.bf16.mxu0 %v3129
  %3968 = vmatpush1.bf16.msra.mxu0 %v3128
  %3969 = vmatprep.subr.bf16.mxu0 %v3249
  %3970 = vmatpush2.bf16.msra.mxu0 %v3248
  %3971 = vmatprep.subr.bf16.mxu0 %v3241
  %3972 = vmatpush2.bf16.msra.mxu0 %v3240
  %3973 = vmatprep.subr.bf16.mxu0 %v3233
  %3974 = vmatpush2.bf16.msra.mxu0 %v3232
  %3975 = vmatprep.subr.bf16.mxu0 %v3225
  %3976 = vmatpush2.bf16.msra.mxu0 %v3224
  %3977 = vmatprep.subr.bf16.mxu0 %v3217
  %3978 = vmatpush2.bf16.msra.mxu0 %v3216
  %3979 = vmatprep.subr.bf16.mxu0 %v3209
  %3980 = vmatpush2.bf16.msra.mxu0 %v3208
  %3981 = vmatprep.subr.bf16.mxu0 %v3201
  %3982 = vmatpush2.bf16.msra.mxu0 %v3200
  %3983 = vmatprep.subr.bf16.mxu0 %v3193
  %3984 = vmatpush2.bf16.msra.mxu0 %v3192
  %3985 = vmatprep.mubr.bf16.mxu0 %v3868
  %3986 = vmatmul.mubr.bf16.gmra.mxu0 %v3867
  %v3987 = vpop.f32.mrf.mxu0
  %v3988 = vadd.f32 0.0, %v3987
  %v3989 = vpop.f32.mrf.mxu0
  %v3990 = vadd.f32 0.0, %v3989
  %v3991 = vpop.f32.mrf.mxu0
  %v3992 = vpop.f32.mrf.mxu0
  %3993 = vdwg.mxu0
  %3994 = vmatprep.subr.bf16.mxu0 %v3187
  %3995 = vmatpush1.bf16.msra.mxu0 %v3186
  %3996 = vmatprep.subr.bf16.mxu0 %v3179
  %3997 = vmatpush1.bf16.msra.mxu0 %v3178
  %3998 = vmatprep.subr.bf16.mxu0 %v3171
  %3999 = vmatpush1.bf16.msra.mxu0 %v3170
  %4000 = vmatprep.subr.bf16.mxu0 %v3163
  %4001 = vmatpush1.bf16.msra.mxu0 %v3162
  %4002 = vmatprep.subr.bf16.mxu0 %v3155
  %4003 = vmatpush1.bf16.msra.mxu0 %v3154
  %4004 = vmatprep.subr.bf16.mxu0 %v3147
  %4005 = vmatpush1.bf16.msra.mxu0 %v3146
  %4006 = vmatprep.subr.bf16.mxu0 %v3139
  %4007 = vmatpush1.bf16.msra.mxu0 %v3138
  %4008 = vmatprep.subr.bf16.mxu0 %v3131
  %4009 = vmatpush1.bf16.msra.mxu0 %v3130
  %4010 = vmatprep.subr.bf16.mxu0 %v3251
  %4011 = vmatpush2.bf16.msra.mxu0 %v3250
  %4012 = vmatprep.subr.bf16.mxu0 %v3243
  %4013 = vmatpush2.bf16.msra.mxu0 %v3242
  %4014 = vmatprep.subr.bf16.mxu0 %v3235
  %4015 = vmatpush2.bf16.msra.mxu0 %v3234
  %4016 = vmatprep.subr.bf16.mxu0 %v3227
  %4017 = vmatpush2.bf16.msra.mxu0 %v3226
  %4018 = vmatprep.subr.bf16.mxu0 %v3219
  %4019 = vmatpush2.bf16.msra.mxu0 %v3218
  %4020 = vmatprep.subr.bf16.mxu0 %v3211
  %4021 = vmatpush2.bf16.msra.mxu0 %v3210
  %4022 = vmatprep.subr.bf16.mxu0 %v3203
  %4023 = vmatpush2.bf16.msra.mxu0 %v3202
  %4024 = vmatprep.subr.bf16.mxu0 %v3195
  %4025 = vmatpush2.bf16.msra.mxu0 %v3194
  %4026 = vmatprep.mubr.bf16.mxu0 %v3868
  %4027 = vmatmul.mubr.bf16.gmra.mxu0 %v3867
  %v4028 = vpop.f32.mrf.mxu0
  %v4029 = vadd.f32 0.0, %v4028
  %v4030 = vpop.f32.mrf.mxu0
  %v4031 = vadd.f32 0.0, %v4030
  %v4032 = vpop.f32.mrf.mxu0
  %v4033 = vpop.f32.mrf.mxu0
  %4034 = vdwg.mxu0
  %v4043 = vrot.slane %v3906, 4
  %v4044 = vrot.slane %v3908, 4
  %v4045 = vrot.slane %v3947, 4
  %v4046 = vrot.slane %v3949, 4
  %v4047 = vrot.slane %v3988, 4
  %v4048 = vrot.slane %v3990, 4
  %v4049 = vrot.slane %v4029, 4
  %v4050 = vrot.slane %v4031, 4
  %v4059 = vadd.f32 %v2587, %v4043
  %v4060 = vadd.f32 %v2588, %v4044
  %v4061 = vadd.f32 %v2589, %v4045
  %v4062 = vadd.f32 %v2590, %v4046
  %v4063 = vadd.f32 %v2591, %v4047
  %v4064 = vadd.f32 %v2592, %v4048
  %v4065 = vadd.f32 %v2593, %v4049
  %v4066 = vadd.f32 %v2594, %v4050
  %v4067 = vxor.u32 %v4059, 2147483648
  %v4068 = vxor.u32 %v4060, 2147483648
  %v4069 = vmul.f32 %v4067, 1.442695
  %v4070 = vpow.pop %v4069
  %v4071 = vmul.f32 %v4068, 1.442695
  %v4072 = vpow.pop %v4071
  %v4073 = vadd.f32 %v4070, 1.0
  %v4074 = vadd.f32 %v4072, 1.0
  %v4075 = vrcp.pop %v4073
  %v4076 = vmul.f32 1.0, %v4075
  %v4077 = vrcp.pop %v4074
  %v4078 = vmul.f32 1.0, %v4077
  %v4079 = vxor.u32 %v4061, 2147483648
  %v4080 = vxor.u32 %v4062, 2147483648
  %v4081 = vmul.f32 %v4079, 1.442695
  %v4082 = vpow.pop %v4081
  %v4083 = vmul.f32 %v4080, 1.442695
  %v4084 = vpow.pop %v4083
  %v4085 = vadd.f32 %v4082, 1.0
  %v4086 = vadd.f32 %v4084, 1.0
  %v4087 = vrcp.pop %v4085
  %v4088 = vmul.f32 1.0, %v4087
  %v4089 = vrcp.pop %v4086
  %v4090 = vmul.f32 1.0, %v4089
  %v4091 = vtanh.pop %v4063
  %v4092 = vtanh.pop %v4064
  %v4093 = vxor.u32 %v4065, 2147483648
  %v4094 = vxor.u32 %v4066, 2147483648
  %v4095 = vmul.f32 %v4093, 1.442695
  %v4096 = vpow.pop %v4095
  %v4097 = vmul.f32 %v4094, 1.442695
  %v4098 = vpow.pop %v4097
  %v4099 = vadd.f32 %v4096, 1.0
  %v4100 = vadd.f32 %v4098, 1.0
  %v4101 = vrcp.pop %v4099
  %v4102 = vmul.f32 1.0, %v4101
  %v4103 = vrcp.pop %v4100
  %v4104 = vmul.f32 1.0, %v4103
  %v4107 = vrot.slane %v3857, 6
  %v4108 = vrot.slane %v3858, 6
  %v4111 = vmul.f32 %v4088, %v4107
  %v4112 = vmul.f32 %v4090, %v4108
  %v4113 = vmul.f32 %v4076, %v4091
  %v4114 = vmul.f32 %v4078, %v4092
  %v4115 = vadd.f32 %v4111, %v4113
  %v4116 = vadd.f32 %v4112, %v4114
  %v4117 = vtanh.pop %v4115
  %v4118 = vtanh.pop %v4116
  %v4119 = vmul.f32 %v4102, %v4117
  %v4120 = vmul.f32 %v4104, %v4118
  %v4121 = vpack.c.bf16 %v4119, %v4119
  %v4122 = vpack.c.bf16 %v4120, %v4120
  %v4125 = vrot.slane %v4121, 2
  %v4126 = vrot.slane %v4122, 2
  %4129 = vmatprep.subr.bf16.mxu0 %v3181
  %4130 = vmatpush1.bf16.msra.mxu0 %v3180
  %4131 = vmatprep.subr.bf16.mxu0 %v3173
  %4132 = vmatpush1.bf16.msra.mxu0 %v3172
  %4133 = vmatprep.subr.bf16.mxu0 %v3165
  %4134 = vmatpush1.bf16.msra.mxu0 %v3164
  %4135 = vmatprep.subr.bf16.mxu0 %v3157
  %4136 = vmatpush1.bf16.msra.mxu0 %v3156
  %4137 = vmatprep.subr.bf16.mxu0 %v3149
  %4138 = vmatpush1.bf16.msra.mxu0 %v3148
  %4139 = vmatprep.subr.bf16.mxu0 %v3141
  %4140 = vmatpush1.bf16.msra.mxu0 %v3140
  %4141 = vmatprep.subr.bf16.mxu0 %v3133
  %4142 = vmatpush1.bf16.msra.mxu0 %v3132
  %4143 = vmatprep.subr.bf16.mxu0 %v3125
  %4144 = vmatpush1.bf16.msra.mxu0 %v3124
  %4145 = vmatprep.subr.bf16.mxu0 %v3245
  %4146 = vmatpush2.bf16.msra.mxu0 %v3244
  %4147 = vmatprep.subr.bf16.mxu0 %v3237
  %4148 = vmatpush2.bf16.msra.mxu0 %v3236
  %4149 = vmatprep.subr.bf16.mxu0 %v3229
  %4150 = vmatpush2.bf16.msra.mxu0 %v3228
  %4151 = vmatprep.subr.bf16.mxu0 %v3221
  %4152 = vmatpush2.bf16.msra.mxu0 %v3220
  %4153 = vmatprep.subr.bf16.mxu0 %v3213
  %4154 = vmatpush2.bf16.msra.mxu0 %v3212
  %4155 = vmatprep.subr.bf16.mxu0 %v3205
  %4156 = vmatpush2.bf16.msra.mxu0 %v3204
  %4157 = vmatprep.subr.bf16.mxu0 %v3197
  %4158 = vmatpush2.bf16.msra.mxu0 %v3196
  %4159 = vmatprep.subr.bf16.mxu0 %v3189
  %4160 = vmatpush2.bf16.msra.mxu0 %v3188
  %4161 = vmatprep.mubr.bf16.mxu0 %v4126
  %4162 = vmatmul.mubr.bf16.gmra.mxu0 %v4125
  %v4163 = vpop.f32.mrf.mxu0
  %v4164 = vadd.f32 0.0, %v4163
  %v4165 = vpop.f32.mrf.mxu0
  %v4166 = vadd.f32 0.0, %v4165
  %v4167 = vpop.f32.mrf.mxu0
  %v4168 = vpop.f32.mrf.mxu0
  %4169 = vdwg.mxu0
  %4170 = vmatprep.subr.bf16.mxu0 %v3183
  %4171 = vmatpush1.bf16.msra.mxu0 %v3182
  %4172 = vmatprep.subr.bf16.mxu0 %v3175
  %4173 = vmatpush1.bf16.msra.mxu0 %v3174
  %4174 = vmatprep.subr.bf16.mxu0 %v3167
  %4175 = vmatpush1.bf16.msra.mxu0 %v3166
  %4176 = vmatprep.subr.bf16.mxu0 %v3159
  %4177 = vmatpush1.bf16.msra.mxu0 %v3158
  %4178 = vmatprep.subr.bf16.mxu0 %v3151
  %4179 = vmatpush1.bf16.msra.mxu0 %v3150
  %4180 = vmatprep.subr.bf16.mxu0 %v3143
  %4181 = vmatpush1.bf16.msra.mxu0 %v3142
  %4182 = vmatprep.subr.bf16.mxu0 %v3135
  %4183 = vmatpush1.bf16.msra.mxu0 %v3134
  %4184 = vmatprep.subr.bf16.mxu0 %v3127
  %4185 = vmatpush1.bf16.msra.mxu0 %v3126
  %4186 = vmatprep.subr.bf16.mxu0 %v3247
  %4187 = vmatpush2.bf16.msra.mxu0 %v3246
  %4188 = vmatprep.subr.bf16.mxu0 %v3239
  %4189 = vmatpush2.bf16.msra.mxu0 %v3238
  %4190 = vmatprep.subr.bf16.mxu0 %v3231
  %4191 = vmatpush2.bf16.msra.mxu0 %v3230
  %4192 = vmatprep.subr.bf16.mxu0 %v3223
  %4193 = vmatpush2.bf16.msra.mxu0 %v3222
  %4194 = vmatprep.subr.bf16.mxu0 %v3215
  %4195 = vmatpush2.bf16.msra.mxu0 %v3214
  %4196 = vmatprep.subr.bf16.mxu0 %v3207
  %4197 = vmatpush2.bf16.msra.mxu0 %v3206
  %4198 = vmatprep.subr.bf16.mxu0 %v3199
  %4199 = vmatpush2.bf16.msra.mxu0 %v3198
  %4200 = vmatprep.subr.bf16.mxu0 %v3191
  %4201 = vmatpush2.bf16.msra.mxu0 %v3190
  %4202 = vmatprep.mubr.bf16.mxu0 %v4126
  %4203 = vmatmul.mubr.bf16.gmra.mxu0 %v4125
  %v4204 = vpop.f32.mrf.mxu0
  %v4205 = vadd.f32 0.0, %v4204
  %v4206 = vpop.f32.mrf.mxu0
  %v4207 = vadd.f32 0.0, %v4206
  %v4208 = vpop.f32.mrf.mxu0
  %v4209 = vpop.f32.mrf.mxu0
  %4210 = vdwg.mxu0
  %4211 = vmatprep.subr.bf16.mxu0 %v3185
  %4212 = vmatpush1.bf16.msra.mxu0 %v3184
  %4213 = vmatprep.subr.bf16.mxu0 %v3177
  %4214 = vmatpush1.bf16.msra.mxu0 %v3176
  %4215 = vmatprep.subr.bf16.mxu0 %v3169
  %4216 = vmatpush1.bf16.msra.mxu0 %v3168
  %4217 = vmatprep.subr.bf16.mxu0 %v3161
  %4218 = vmatpush1.bf16.msra.mxu0 %v3160
  %4219 = vmatprep.subr.bf16.mxu0 %v3153
  %4220 = vmatpush1.bf16.msra.mxu0 %v3152
  %4221 = vmatprep.subr.bf16.mxu0 %v3145
  %4222 = vmatpush1.bf16.msra.mxu0 %v3144
  %4223 = vmatprep.subr.bf16.mxu0 %v3137
  %4224 = vmatpush1.bf16.msra.mxu0 %v3136
  %4225 = vmatprep.subr.bf16.mxu0 %v3129
  %4226 = vmatpush1.bf16.msra.mxu0 %v3128
  %4227 = vmatprep.subr.bf16.mxu0 %v3249
  %4228 = vmatpush2.bf16.msra.mxu0 %v3248
  %4229 = vmatprep.subr.bf16.mxu0 %v3241
  %4230 = vmatpush2.bf16.msra.mxu0 %v3240
  %4231 = vmatprep.subr.bf16.mxu0 %v3233
  %4232 = vmatpush2.bf16.msra.mxu0 %v3232
  %4233 = vmatprep.subr.bf16.mxu0 %v3225
  %4234 = vmatpush2.bf16.msra.mxu0 %v3224
  %4235 = vmatprep.subr.bf16.mxu0 %v3217
  %4236 = vmatpush2.bf16.msra.mxu0 %v3216
  %4237 = vmatprep.subr.bf16.mxu0 %v3209
  %4238 = vmatpush2.bf16.msra.mxu0 %v3208
  %4239 = vmatprep.subr.bf16.mxu0 %v3201
  %4240 = vmatpush2.bf16.msra.mxu0 %v3200
  %4241 = vmatprep.subr.bf16.mxu0 %v3193
  %4242 = vmatpush2.bf16.msra.mxu0 %v3192
  %4243 = vmatprep.mubr.bf16.mxu0 %v4126
  %4244 = vmatmul.mubr.bf16.gmra.mxu0 %v4125
  %v4245 = vpop.f32.mrf.mxu0
  %v4246 = vadd.f32 0.0, %v4245
  %v4247 = vpop.f32.mrf.mxu0
  %v4248 = vadd.f32 0.0, %v4247
  %v4249 = vpop.f32.mrf.mxu0
  %v4250 = vpop.f32.mrf.mxu0
  %4251 = vdwg.mxu0
  %4252 = vmatprep.subr.bf16.mxu0 %v3187
  %4253 = vmatpush1.bf16.msra.mxu0 %v3186
  %4254 = vmatprep.subr.bf16.mxu0 %v3179
  %4255 = vmatpush1.bf16.msra.mxu0 %v3178
  %4256 = vmatprep.subr.bf16.mxu0 %v3171
  %4257 = vmatpush1.bf16.msra.mxu0 %v3170
  %4258 = vmatprep.subr.bf16.mxu0 %v3163
  %4259 = vmatpush1.bf16.msra.mxu0 %v3162
  %4260 = vmatprep.subr.bf16.mxu0 %v3155
  %4261 = vmatpush1.bf16.msra.mxu0 %v3154
  %4262 = vmatprep.subr.bf16.mxu0 %v3147
  %4263 = vmatpush1.bf16.msra.mxu0 %v3146
  %4264 = vmatprep.subr.bf16.mxu0 %v3139
  %4265 = vmatpush1.bf16.msra.mxu0 %v3138
  %4266 = vmatprep.subr.bf16.mxu0 %v3131
  %4267 = vmatpush1.bf16.msra.mxu0 %v3130
  %4268 = vmatprep.subr.bf16.mxu0 %v3251
  %4269 = vmatpush2.bf16.msra.mxu0 %v3250
  %4270 = vmatprep.subr.bf16.mxu0 %v3243
  %4271 = vmatpush2.bf16.msra.mxu0 %v3242
  %4272 = vmatprep.subr.bf16.mxu0 %v3235
  %4273 = vmatpush2.bf16.msra.mxu0 %v3234
  %4274 = vmatprep.subr.bf16.mxu0 %v3227
  %4275 = vmatpush2.bf16.msra.mxu0 %v3226
  %4276 = vmatprep.subr.bf16.mxu0 %v3219
  %4277 = vmatpush2.bf16.msra.mxu0 %v3218
  %4278 = vmatprep.subr.bf16.mxu0 %v3211
  %4279 = vmatpush2.bf16.msra.mxu0 %v3210
  %4280 = vmatprep.subr.bf16.mxu0 %v3203
  %4281 = vmatpush2.bf16.msra.mxu0 %v3202
  %4282 = vmatprep.subr.bf16.mxu0 %v3195
  %4283 = vmatpush2.bf16.msra.mxu0 %v3194
  %4284 = vmatprep.mubr.bf16.mxu0 %v4126
  %4285 = vmatmul.mubr.bf16.gmra.mxu0 %v4125
  %v4286 = vpop.f32.mrf.mxu0
  %v4287 = vadd.f32 0.0, %v4286
  %v4288 = vpop.f32.mrf.mxu0
  %v4289 = vadd.f32 0.0, %v4288
  %v4290 = vpop.f32.mrf.mxu0
  %v4291 = vpop.f32.mrf.mxu0
  %4292 = vdwg.mxu0
  %v4301 = vrot.slane %v4164, 2
  %v4302 = vrot.slane %v4166, 2
  %v4303 = vrot.slane %v4205, 2
  %v4304 = vrot.slane %v4207, 2
  %v4305 = vrot.slane %v4246, 2
  %v4306 = vrot.slane %v4248, 2
  %v4307 = vrot.slane %v4287, 2
  %v4308 = vrot.slane %v4289, 2
  %v4317 = vadd.f32 %v2587, %v4301
  %v4318 = vadd.f32 %v2588, %v4302
  %v4319 = vadd.f32 %v2589, %v4303
  %v4320 = vadd.f32 %v2590, %v4304
  %v4321 = vadd.f32 %v2591, %v4305
  %v4322 = vadd.f32 %v2592, %v4306
  %v4323 = vadd.f32 %v2593, %v4307
  %v4324 = vadd.f32 %v2594, %v4308
  %v4325 = vxor.u32 %v4317, 2147483648
  %v4326 = vxor.u32 %v4318, 2147483648
  %v4327 = vmul.f32 %v4325, 1.442695
  %v4328 = vpow.pop %v4327
  %v4329 = vmul.f32 %v4326, 1.442695
  %v4330 = vpow.pop %v4329
  %v4331 = vadd.f32 %v4328, 1.0
  %v4332 = vadd.f32 %v4330, 1.0
  %v4333 = vrcp.pop %v4331
  %v4334 = vmul.f32 1.0, %v4333
  %v4335 = vrcp.pop %v4332
  %v4336 = vmul.f32 1.0, %v4335
  %v4337 = vxor.u32 %v4319, 2147483648
  %v4338 = vxor.u32 %v4320, 2147483648
  %v4339 = vmul.f32 %v4337, 1.442695
  %v4340 = vpow.pop %v4339
  %v4341 = vmul.f32 %v4338, 1.442695
  %v4342 = vpow.pop %v4341
  %v4343 = vadd.f32 %v4340, 1.0
  %v4344 = vadd.f32 %v4342, 1.0
  %v4345 = vrcp.pop %v4343
  %v4346 = vmul.f32 1.0, %v4345
  %v4347 = vrcp.pop %v4344
  %v4348 = vmul.f32 1.0, %v4347
  %v4349 = vtanh.pop %v4321
  %v4350 = vtanh.pop %v4322
  %v4351 = vxor.u32 %v4323, 2147483648
  %v4352 = vxor.u32 %v4324, 2147483648
  %v4353 = vmul.f32 %v4351, 1.442695
  %v4354 = vpow.pop %v4353
  %v4355 = vmul.f32 %v4352, 1.442695
  %v4356 = vpow.pop %v4355
  %v4357 = vadd.f32 %v4354, 1.0
  %v4358 = vadd.f32 %v4356, 1.0
  %v4359 = vrcp.pop %v4357
  %v4360 = vmul.f32 1.0, %v4359
  %v4361 = vrcp.pop %v4358
  %v4362 = vmul.f32 1.0, %v4361
  %v4365 = vrot.slane %v4115, 6
  %v4366 = vrot.slane %v4116, 6
  %v4369 = vmul.f32 %v4346, %v4365
  %v4370 = vmul.f32 %v4348, %v4366
  %v4371 = vmul.f32 %v4334, %v4349
  %v4372 = vmul.f32 %v4336, %v4350
  %v4373 = vadd.f32 %v4369, %v4371
  %v4374 = vadd.f32 %v4370, %v4372
  %v4375 = vtanh.pop %v4373
  %v4376 = vtanh.pop %v4374
  %v4377 = vmul.f32 %v4360, %v4375
  %v4378 = vmul.f32 %v4362, %v4376
  %v4379 = vpack.c.bf16 %v4377, %v4377
  %v4380 = vpack.c.bf16 %v4378, %v4378
  %v4381 = vld [vmem:[#allocation2] sm:$0xff]
  %v4382 = vld [vmem:[#allocation2 + $0x8] sm:$0xff]
  %v4383 = vld [vmem:[#allocation2 + $0x10] sm:$0xff]
  %v4384 = vld [vmem:[#allocation2 + $0x18] sm:$0xff]
  %v4385 = vld [vmem:[#allocation2 + $0x20] sm:$0xff]
  %v4386 = vld [vmem:[#allocation2 + $0x28] sm:$0xff]
  %v4387 = vld [vmem:[#allocation2 + $0x30] sm:$0xff]
  %v4388 = vld [vmem:[#allocation2 + $0x38] sm:$0xff]
  %v4389 = vld [vmem:[#allocation2 + $0x40] sm:$0xff]
  %v4390 = vld [vmem:[#allocation2 + $0x48] sm:$0xff]
  %v4391 = vld [vmem:[#allocation2 + $0x50] sm:$0xff]
  %v4392 = vld [vmem:[#allocation2 + $0x58] sm:$0xff]
  %v4393 = vld [vmem:[#allocation2 + $0x60] sm:$0xff]
  %v4394 = vld [vmem:[#allocation2 + $0x68] sm:$0xff]
  %v4395 = vld [vmem:[#allocation2 + $0x70] sm:$0xff]
  %v4396 = vld [vmem:[#allocation2 + $0x78] sm:$0xff]
  %v4397 = vld [vmem:[#allocation2 + $0x80] sm:$0xff]
  %v4398 = vld [vmem:[#allocation2 + $0x88] sm:$0xff]
  %v4399 = vld [vmem:[#allocation2 + $0x90] sm:$0xff]
  %v4400 = vld [vmem:[#allocation2 + $0x98] sm:$0xff]
  %v4401 = vld [vmem:[#allocation2 + $0xa0] sm:$0xff]
  %v4402 = vld [vmem:[#allocation2 + $0xa8] sm:$0xff]
  %v4403 = vld [vmem:[#allocation2 + $0xb0] sm:$0xff]
  %v4404 = vld [vmem:[#allocation2 + $0xb8] sm:$0xff]
  %v4405 = vld [vmem:[#allocation2 + $0xc0] sm:$0xff]
  %v4406 = vld [vmem:[#allocation2 + $0xc8] sm:$0xff]
  %v4407 = vld [vmem:[#allocation2 + $0xd0] sm:$0xff]
  %v4408 = vld [vmem:[#allocation2 + $0xd8] sm:$0xff]
  %v4409 = vld [vmem:[#allocation2 + $0xe0] sm:$0xff]
  %v4410 = vld [vmem:[#allocation2 + $0xe8] sm:$0xff]
  %v4411 = vld [vmem:[#allocation2 + $0xf0] sm:$0xff]
  %v4412 = vld [vmem:[#allocation2 + $0xf8] sm:$0xff]
  %v4413 = vld [vmem:[#allocation2 + $0x100] sm:$0xff]
  %v4414 = vld [vmem:[#allocation2 + $0x108] sm:$0xff]
  %v4415 = vld [vmem:[#allocation2 + $0x110] sm:$0xff]
  %v4416 = vld [vmem:[#allocation2 + $0x118] sm:$0xff]
  %v4417 = vld [vmem:[#allocation2 + $0x120] sm:$0xff]
  %v4418 = vld [vmem:[#allocation2 + $0x128] sm:$0xff]
  %v4419 = vld [vmem:[#allocation2 + $0x130] sm:$0xff]
  %v4420 = vld [vmem:[#allocation2 + $0x138] sm:$0xff]
  %v4421 = vld [vmem:[#allocation2 + $0x140] sm:$0xff]
  %v4422 = vld [vmem:[#allocation2 + $0x148] sm:$0xff]
  %v4423 = vld [vmem:[#allocation2 + $0x150] sm:$0xff]
  %v4424 = vld [vmem:[#allocation2 + $0x158] sm:$0xff]
  %v4425 = vld [vmem:[#allocation2 + $0x160] sm:$0xff]
  %v4426 = vld [vmem:[#allocation2 + $0x168] sm:$0xff]
  %v4427 = vld [vmem:[#allocation2 + $0x170] sm:$0xff]
  %v4428 = vld [vmem:[#allocation2 + $0x178] sm:$0xff]
  %v4429 = vld [vmem:[#allocation2 + $0x180] sm:$0xff]
  %v4430 = vld [vmem:[#allocation2 + $0x188] sm:$0xff]
  %v4431 = vld [vmem:[#allocation2 + $0x190] sm:$0xff]
  %v4432 = vld [vmem:[#allocation2 + $0x198] sm:$0xff]
  %v4433 = vld [vmem:[#allocation2 + $0x1a0] sm:$0xff]
  %v4434 = vld [vmem:[#allocation2 + $0x1a8] sm:$0xff]
  %v4435 = vld [vmem:[#allocation2 + $0x1b0] sm:$0xff]
  %v4436 = vld [vmem:[#allocation2 + $0x1b8] sm:$0xff]
  %v4437 = vld [vmem:[#allocation2 + $0x1c0] sm:$0xff]
  %v4438 = vld [vmem:[#allocation2 + $0x1c8] sm:$0xff]
  %v4439 = vld [vmem:[#allocation2 + $0x1d0] sm:$0xff]
  %v4440 = vld [vmem:[#allocation2 + $0x1d8] sm:$0xff]
  %v4441 = vld [vmem:[#allocation2 + $0x1e0] sm:$0xff]
  %v4442 = vld [vmem:[#allocation2 + $0x1e8] sm:$0xff]
  %v4443 = vld [vmem:[#allocation2 + $0x1f0] sm:$0xff]
  %v4444 = vld [vmem:[#allocation2 + $0x1f8] sm:$0xff]
  %v4445 = vld [vmem:[#allocation2 + $0x200] sm:$0xff]
  %v4446 = vld [vmem:[#allocation2 + $0x208] sm:$0xff]
  %v4447 = vld [vmem:[#allocation2 + $0x210] sm:$0xff]
  %v4448 = vld [vmem:[#allocation2 + $0x218] sm:$0xff]
  %v4449 = vld [vmem:[#allocation2 + $0x220] sm:$0xff]
  %v4450 = vld [vmem:[#allocation2 + $0x228] sm:$0xff]
  %v4451 = vld [vmem:[#allocation2 + $0x230] sm:$0xff]
  %v4452 = vld [vmem:[#allocation2 + $0x238] sm:$0xff]
  %v4453 = vld [vmem:[#allocation2 + $0x240] sm:$0xff]
  %v4454 = vld [vmem:[#allocation2 + $0x248] sm:$0xff]
  %v4455 = vld [vmem:[#allocation2 + $0x250] sm:$0xff]
  %v4456 = vld [vmem:[#allocation2 + $0x258] sm:$0xff]
  %v4457 = vld [vmem:[#allocation2 + $0x260] sm:$0xff]
  %v4458 = vld [vmem:[#allocation2 + $0x268] sm:$0xff]
  %v4459 = vld [vmem:[#allocation2 + $0x270] sm:$0xff]
  %v4460 = vld [vmem:[#allocation2 + $0x278] sm:$0xff]
  %v4461 = vld [vmem:[#allocation2 + $0x280] sm:$0xff]
  %v4462 = vld [vmem:[#allocation2 + $0x288] sm:$0xff]
  %v4463 = vld [vmem:[#allocation2 + $0x290] sm:$0xff]
  %v4464 = vld [vmem:[#allocation2 + $0x298] sm:$0xff]
  %v4465 = vld [vmem:[#allocation2 + $0x2a0] sm:$0xff]
  %v4466 = vld [vmem:[#allocation2 + $0x2a8] sm:$0xff]
  %v4467 = vld [vmem:[#allocation2 + $0x2b0] sm:$0xff]
  %v4468 = vld [vmem:[#allocation2 + $0x2b8] sm:$0xff]
  %v4469 = vld [vmem:[#allocation2 + $0x2c0] sm:$0xff]
  %v4470 = vld [vmem:[#allocation2 + $0x2c8] sm:$0xff]
  %v4471 = vld [vmem:[#allocation2 + $0x2d0] sm:$0xff]
  %v4472 = vld [vmem:[#allocation2 + $0x2d8] sm:$0xff]
  %v4473 = vld [vmem:[#allocation2 + $0x2e0] sm:$0xff]
  %v4474 = vld [vmem:[#allocation2 + $0x2e8] sm:$0xff]
  %v4475 = vld [vmem:[#allocation2 + $0x2f0] sm:$0xff]
  %v4476 = vld [vmem:[#allocation2 + $0x2f8] sm:$0xff]
  %v4477 = vld [vmem:[#allocation2 + $0x300] sm:$0xff]
  %v4478 = vld [vmem:[#allocation2 + $0x308] sm:$0xff]
  %v4479 = vld [vmem:[#allocation2 + $0x310] sm:$0xff]
  %v4480 = vld [vmem:[#allocation2 + $0x318] sm:$0xff]
  %v4481 = vld [vmem:[#allocation2 + $0x320] sm:$0xff]
  %v4482 = vld [vmem:[#allocation2 + $0x328] sm:$0xff]
  %v4483 = vld [vmem:[#allocation2 + $0x330] sm:$0xff]
  %v4484 = vld [vmem:[#allocation2 + $0x338] sm:$0xff]
  %v4485 = vld [vmem:[#allocation2 + $0x340] sm:$0xff]
  %v4486 = vld [vmem:[#allocation2 + $0x348] sm:$0xff]
  %v4487 = vld [vmem:[#allocation2 + $0x350] sm:$0xff]
  %v4488 = vld [vmem:[#allocation2 + $0x358] sm:$0xff]
  %v4489 = vld [vmem:[#allocation2 + $0x360] sm:$0xff]
  %v4490 = vld [vmem:[#allocation2 + $0x368] sm:$0xff]
  %v4491 = vld [vmem:[#allocation2 + $0x370] sm:$0xff]
  %v4492 = vld [vmem:[#allocation2 + $0x378] sm:$0xff]
  %v4493 = vld [vmem:[#allocation2 + $0x380] sm:$0xff]
  %v4494 = vld [vmem:[#allocation2 + $0x388] sm:$0xff]
  %v4495 = vld [vmem:[#allocation2 + $0x390] sm:$0xff]
  %v4496 = vld [vmem:[#allocation2 + $0x398] sm:$0xff]
  %v4497 = vld [vmem:[#allocation2 + $0x3a0] sm:$0xff]
  %v4498 = vld [vmem:[#allocation2 + $0x3a8] sm:$0xff]
  %v4499 = vld [vmem:[#allocation2 + $0x3b0] sm:$0xff]
  %v4500 = vld [vmem:[#allocation2 + $0x3b8] sm:$0xff]
  %v4501 = vld [vmem:[#allocation2 + $0x3c0] sm:$0xff]
  %v4502 = vld [vmem:[#allocation2 + $0x3c8] sm:$0xff]
  %v4503 = vld [vmem:[#allocation2 + $0x3d0] sm:$0xff]
  %v4504 = vld [vmem:[#allocation2 + $0x3d8] sm:$0xff]
  %v4505 = vld [vmem:[#allocation2 + $0x3e0] sm:$0xff]
  %v4506 = vld [vmem:[#allocation2 + $0x3e8] sm:$0xff]
  %v4507 = vld [vmem:[#allocation2 + $0x3f0] sm:$0xff]
  %v4508 = vld [vmem:[#allocation2 + $0x3f8] sm:$0xff]
  %v4511 = vrot.slane %v4379, 3
  %v4512 = vrot.slane %v4380, 3
  %4515 = vmatprep.subr.bf16.mxu0 %v3181
  %4516 = vmatpush1.bf16.msra.mxu0 %v3180
  %4517 = vmatprep.subr.bf16.mxu0 %v3173
  %4518 = vmatpush1.bf16.msra.mxu0 %v3172
  %4519 = vmatprep.subr.bf16.mxu0 %v3165
  %4520 = vmatpush1.bf16.msra.mxu0 %v3164
  %4521 = vmatprep.subr.bf16.mxu0 %v3157
  %4522 = vmatpush1.bf16.msra.mxu0 %v3156
  %4523 = vmatprep.subr.bf16.mxu0 %v3149
  %4524 = vmatpush1.bf16.msra.mxu0 %v3148
  %4525 = vmatprep.subr.bf16.mxu0 %v3141
  %4526 = vmatpush1.bf16.msra.mxu0 %v3140
  %4527 = vmatprep.subr.bf16.mxu0 %v3133
  %4528 = vmatpush1.bf16.msra.mxu0 %v3132
  %4529 = vmatprep.subr.bf16.mxu0 %v3125
  %4530 = vmatpush1.bf16.msra.mxu0 %v3124
  %4531 = vmatprep.subr.bf16.mxu0 %v3245
  %4532 = vmatpush2.bf16.msra.mxu0 %v3244
  %4533 = vmatprep.subr.bf16.mxu0 %v3237
  %4534 = vmatpush2.bf16.msra.mxu0 %v3236
  %4535 = vmatprep.subr.bf16.mxu0 %v3229
  %4536 = vmatpush2.bf16.msra.mxu0 %v3228
  %4537 = vmatprep.subr.bf16.mxu0 %v3221
  %4538 = vmatpush2.bf16.msra.mxu0 %v3220
  %4539 = vmatprep.subr.bf16.mxu0 %v3213
  %4540 = vmatpush2.bf16.msra.mxu0 %v3212
  %4541 = vmatprep.subr.bf16.mxu0 %v3205
  %4542 = vmatpush2.bf16.msra.mxu0 %v3204
  %4543 = vmatprep.subr.bf16.mxu0 %v3197
  %4544 = vmatpush2.bf16.msra.mxu0 %v3196
  %4545 = vmatprep.subr.bf16.mxu0 %v3189
  %4546 = vmatpush2.bf16.msra.mxu0 %v3188
  %4547 = vmatprep.mubr.bf16.mxu0 %v4512
  %4548 = vmatmul.mubr.bf16.gmra.mxu0 %v4511
  %v4549 = vpop.f32.mrf.mxu0
  %v4550 = vadd.f32 0.0, %v4549
  %v4551 = vpop.f32.mrf.mxu0
  %v4552 = vadd.f32 0.0, %v4551
  %v4553 = vpop.f32.mrf.mxu0
  %v4554 = vpop.f32.mrf.mxu0
  %4555 = vdwg.mxu0
  %4556 = vmatprep.subr.bf16.mxu0 %v3183
  %4557 = vmatpush1.bf16.msra.mxu0 %v3182
  %4558 = vmatprep.subr.bf16.mxu0 %v3175
  %4559 = vmatpush1.bf16.msra.mxu0 %v3174
  %4560 = vmatprep.subr.bf16.mxu0 %v3167
  %4561 = vmatpush1.bf16.msra.mxu0 %v3166
  %4562 = vmatprep.subr.bf16.mxu0 %v3159
  %4563 = vmatpush1.bf16.msra.mxu0 %v3158
  %4564 = vmatprep.subr.bf16.mxu0 %v3151
  %4565 = vmatpush1.bf16.msra.mxu0 %v3150
  %4566 = vmatprep.subr.bf16.mxu0 %v3143
  %4567 = vmatpush1.bf16.msra.mxu0 %v3142
  %4568 = vmatprep.subr.bf16.mxu0 %v3135
  %4569 = vmatpush1.bf16.msra.mxu0 %v3134
  %4570 = vmatprep.subr.bf16.mxu0 %v3127
  %4571 = vmatpush1.bf16.msra.mxu0 %v3126
  %4572 = vmatprep.subr.bf16.mxu0 %v3247
  %4573 = vmatpush2.bf16.msra.mxu0 %v3246
  %4574 = vmatprep.subr.bf16.mxu0 %v3239
  %4575 = vmatpush2.bf16.msra.mxu0 %v3238
  %4576 = vmatprep.subr.bf16.mxu0 %v3231
  %4577 = vmatpush2.bf16.msra.mxu0 %v3230
  %4578 = vmatprep.subr.bf16.mxu0 %v3223
  %4579 = vmatpush2.bf16.msra.mxu0 %v3222
  %4580 = vmatprep.subr.bf16.mxu0 %v3215
  %4581 = vmatpush2.bf16.msra.mxu0 %v3214
  %4582 = vmatprep.subr.bf16.mxu0 %v3207
  %4583 = vmatpush2.bf16.msra.mxu0 %v3206
  %4584 = vmatprep.subr.bf16.mxu0 %v3199
  %4585 = vmatpush2.bf16.msra.mxu0 %v3198
  %4586 = vmatprep.subr.bf16.mxu0 %v3191
  %4587 = vmatpush2.bf16.msra.mxu0 %v3190
  %4588 = vmatprep.mubr.bf16.mxu0 %v4512
  %4589 = vmatmul.mubr.bf16.gmra.mxu0 %v4511
  %v4590 = vpop.f32.mrf.mxu0
  %v4591 = vadd.f32 0.0, %v4590
  %v4592 = vpop.f32.mrf.mxu0
  %v4593 = vadd.f32 0.0, %v4592
  %v4594 = vpop.f32.mrf.mxu0
  %v4595 = vpop.f32.mrf.mxu0
  %4596 = vdwg.mxu0
  %4597 = vmatprep.subr.bf16.mxu0 %v3185
  %4598 = vmatpush1.bf16.msra.mxu0 %v3184
  %4599 = vmatprep.subr.bf16.mxu0 %v3177
  %4600 = vmatpush1.bf16.msra.mxu0 %v3176
  %4601 = vmatprep.subr.bf16.mxu0 %v3169
  %4602 = vmatpush1.bf16.msra.mxu0 %v3168
  %4603 = vmatprep.subr.bf16.mxu0 %v3161
  %4604 = vmatpush1.bf16.msra.mxu0 %v3160
  %4605 = vmatprep.subr.bf16.mxu0 %v3153
  %4606 = vmatpush1.bf16.msra.mxu0 %v3152
  %4607 = vmatprep.subr.bf16.mxu0 %v3145
  %4608 = vmatpush1.bf16.msra.mxu0 %v3144
  %4609 = vmatprep.subr.bf16.mxu0 %v3137
  %4610 = vmatpush1.bf16.msra.mxu0 %v3136
  %4611 = vmatprep.subr.bf16.mxu0 %v3129
  %4612 = vmatpush1.bf16.msra.mxu0 %v3128
  %4613 = vmatprep.subr.bf16.mxu0 %v3249
  %4614 = vmatpush2.bf16.msra.mxu0 %v3248
  %4615 = vmatprep.subr.bf16.mxu0 %v3241
  %4616 = vmatpush2.bf16.msra.mxu0 %v3240
  %4617 = vmatprep.subr.bf16.mxu0 %v3233
  %4618 = vmatpush2.bf16.msra.mxu0 %v3232
  %4619 = vmatprep.subr.bf16.mxu0 %v3225
  %4620 = vmatpush2.bf16.msra.mxu0 %v3224
  %4621 = vmatprep.subr.bf16.mxu0 %v3217
  %4622 = vmatpush2.bf16.msra.mxu0 %v3216
  %4623 = vmatprep.subr.bf16.mxu0 %v3209
  %4624 = vmatpush2.bf16.msra.mxu0 %v3208
  %4625 = vmatprep.subr.bf16.mxu0 %v3201
  %4626 = vmatpush2.bf16.msra.mxu0 %v3200
  %4627 = vmatprep.subr.bf16.mxu0 %v3193
  %4628 = vmatpush2.bf16.msra.mxu0 %v3192
  %4629 = vmatprep.mubr.bf16.mxu0 %v4512
  %4630 = vmatmul.mubr.bf16.gmra.mxu0 %v4511
  %v4631 = vpop.f32.mrf.mxu0
  %v4632 = vadd.f32 0.0, %v4631
  %v4633 = vpop.f32.mrf.mxu0
  %v4634 = vadd.f32 0.0, %v4633
  %v4635 = vpop.f32.mrf.mxu0
  %v4636 = vpop.f32.mrf.mxu0
  %4637 = vdwg.mxu0
  %4638 = vmatprep.subr.bf16.mxu0 %v3187
  %4639 = vmatpush1.bf16.msra.mxu0 %v3186
  %4640 = vmatprep.subr.bf16.mxu0 %v3179
  %4641 = vmatpush1.bf16.msra.mxu0 %v3178
  %4642 = vmatprep.subr.bf16.mxu0 %v3171
  %4643 = vmatpush1.bf16.msra.mxu0 %v3170
  %4644 = vmatprep.subr.bf16.mxu0 %v3163
  %4645 = vmatpush1.bf16.msra.mxu0 %v3162
  %4646 = vmatprep.subr.bf16.mxu0 %v3155
  %4647 = vmatpush1.bf16.msra.mxu0 %v3154
  %4648 = vmatprep.subr.bf16.mxu0 %v3147
  %4649 = vmatpush1.bf16.msra.mxu0 %v3146
  %4650 = vmatprep.subr.bf16.mxu0 %v3139
  %4651 = vmatpush1.bf16.msra.mxu0 %v3138
  %4652 = vmatprep.subr.bf16.mxu0 %v3131
  %4653 = vmatpush1.bf16.msra.mxu0 %v3130
  %4654 = vmatprep.subr.bf16.mxu0 %v3251
  %4655 = vmatpush2.bf16.msra.mxu0 %v3250
  %4656 = vmatprep.subr.bf16.mxu0 %v3243
  %4657 = vmatpush2.bf16.msra.mxu0 %v3242
  %4658 = vmatprep.subr.bf16.mxu0 %v3235
  %4659 = vmatpush2.bf16.msra.mxu0 %v3234
  %4660 = vmatprep.subr.bf16.mxu0 %v3227
  %4661 = vmatpush2.bf16.msra.mxu0 %v3226
  %4662 = vmatprep.subr.bf16.mxu0 %v3219
  %4663 = vmatpush2.bf16.msra.mxu0 %v3218
  %4664 = vmatprep.subr.bf16.mxu0 %v3211
  %4665 = vmatpush2.bf16.msra.mxu0 %v3210
  %4666 = vmatprep.subr.bf16.mxu0 %v3203
  %4667 = vmatpush2.bf16.msra.mxu0 %v3202
  %4668 = vmatprep.subr.bf16.mxu0 %v3195
  %4669 = vmatpush2.bf16.msra.mxu0 %v3194
  %4670 = vmatprep.mubr.bf16.mxu0 %v4512
  %4671 = vmatmul.mubr.bf16.gmra.mxu0 %v4511
  %v4672 = vpop.f32.mrf.mxu0
  %v4673 = vadd.f32 0.0, %v4672
  %v4674 = vpop.f32.mrf.mxu0
  %v4675 = vadd.f32 0.0, %v4674
  %v4676 = vpop.f32.mrf.mxu0
  %v4677 = vpop.f32.mrf.mxu0
  %4678 = vdwg.mxu0
  %v4807 = vunpack.c.l.b16 %v4381
  %v4808 = vunpack.c.h.b16 %v4381
  %v4809 = vunpack.c.l.b16 %v4382
  %v4810 = vunpack.c.h.b16 %v4382
  %v4811 = vunpack.c.l.b16 %v4383
  %v4812 = vunpack.c.h.b16 %v4383
  %v4813 = vunpack.c.l.b16 %v4384
  %v4814 = vunpack.c.h.b16 %v4384
  %v4815 = vunpack.c.l.b16 %v4385
  %v4816 = vunpack.c.h.b16 %v4385
  %v4817 = vunpack.c.l.b16 %v4386
  %v4818 = vunpack.c.h.b16 %v4386
  %v4819 = vunpack.c.l.b16 %v4387
  %v4820 = vunpack.c.h.b16 %v4387
  %v4821 = vunpack.c.l.b16 %v4388
  %v4822 = vunpack.c.h.b16 %v4388
  %v4823 = vunpack.c.l.b16 %v4389
  %v4824 = vunpack.c.h.b16 %v4389
  %v4825 = vunpack.c.l.b16 %v4390
  %v4826 = vunpack.c.h.b16 %v4390
  %v4827 = vunpack.c.l.b16 %v4391
  %v4828 = vunpack.c.h.b16 %v4391
  %v4829 = vunpack.c.l.b16 %v4392
  %v4830 = vunpack.c.h.b16 %v4392
  %v4831 = vunpack.c.l.b16 %v4393
  %v4832 = vunpack.c.h.b16 %v4393
  %v4833 = vunpack.c.l.b16 %v4394
  %v4834 = vunpack.c.h.b16 %v4394
  %v4835 = vunpack.c.l.b16 %v4395
  %v4836 = vunpack.c.h.b16 %v4395
  %v4837 = vunpack.c.l.b16 %v4396
  %v4838 = vunpack.c.h.b16 %v4396
  %v4839 = vunpack.c.l.b16 %v4397
  %v4840 = vunpack.c.h.b16 %v4397
  %v4841 = vunpack.c.l.b16 %v4398
  %v4842 = vunpack.c.h.b16 %v4398
  %v4843 = vunpack.c.l.b16 %v4399
  %v4844 = vunpack.c.h.b16 %v4399
  %v4845 = vunpack.c.l.b16 %v4400
  %v4846 = vunpack.c.h.b16 %v4400
  %v4847 = vunpack.c.l.b16 %v4401
  %v4848 = vunpack.c.h.b16 %v4401
  %v4849 = vunpack.c.l.b16 %v4402
  %v4850 = vunpack.c.h.b16 %v4402
  %v4851 = vunpack.c.l.b16 %v4403
  %v4852 = vunpack.c.h.b16 %v4403
  %v4853 = vunpack.c.l.b16 %v4404
  %v4854 = vunpack.c.h.b16 %v4404
  %v4855 = vunpack.c.l.b16 %v4405
  %v4856 = vunpack.c.h.b16 %v4405
  %v4857 = vunpack.c.l.b16 %v4406
  %v4858 = vunpack.c.h.b16 %v4406
  %v4859 = vunpack.c.l.b16 %v4407
  %v4860 = vunpack.c.h.b16 %v4407
  %v4861 = vunpack.c.l.b16 %v4408
  %v4862 = vunpack.c.h.b16 %v4408
  %v4863 = vunpack.c.l.b16 %v4409
  %v4864 = vunpack.c.h.b16 %v4409
  %v4865 = vunpack.c.l.b16 %v4410
  %v4866 = vunpack.c.h.b16 %v4410
  %v4867 = vunpack.c.l.b16 %v4411
  %v4868 = vunpack.c.h.b16 %v4411
  %v4869 = vunpack.c.l.b16 %v4412
  %v4870 = vunpack.c.h.b16 %v4412
  %v4871 = vunpack.c.l.b16 %v4413
  %v4872 = vunpack.c.h.b16 %v4413
  %v4873 = vunpack.c.l.b16 %v4414
  %v4874 = vunpack.c.h.b16 %v4414
  %v4875 = vunpack.c.l.b16 %v4415
  %v4876 = vunpack.c.h.b16 %v4415
  %v4877 = vunpack.c.l.b16 %v4416
  %v4878 = vunpack.c.h.b16 %v4416
  %v4879 = vunpack.c.l.b16 %v4417
  %v4880 = vunpack.c.h.b16 %v4417
  %v4881 = vunpack.c.l.b16 %v4418
  %v4882 = vunpack.c.h.b16 %v4418
  %v4883 = vunpack.c.l.b16 %v4419
  %v4884 = vunpack.c.h.b16 %v4419
  %v4885 = vunpack.c.l.b16 %v4420
  %v4886 = vunpack.c.h.b16 %v4420
  %v4887 = vunpack.c.l.b16 %v4421
  %v4888 = vunpack.c.h.b16 %v4421
  %v4889 = vunpack.c.l.b16 %v4422
  %v4890 = vunpack.c.h.b16 %v4422
  %v4891 = vunpack.c.l.b16 %v4423
  %v4892 = vunpack.c.h.b16 %v4423
  %v4893 = vunpack.c.l.b16 %v4424
  %v4894 = vunpack.c.h.b16 %v4424
  %v4895 = vunpack.c.l.b16 %v4425
  %v4896 = vunpack.c.h.b16 %v4425
  %v4897 = vunpack.c.l.b16 %v4426
  %v4898 = vunpack.c.h.b16 %v4426
  %v4899 = vunpack.c.l.b16 %v4427
  %v4900 = vunpack.c.h.b16 %v4427
  %v4901 = vunpack.c.l.b16 %v4428
  %v4902 = vunpack.c.h.b16 %v4428
  %v4903 = vunpack.c.l.b16 %v4429
  %v4904 = vunpack.c.h.b16 %v4429
  %v4905 = vunpack.c.l.b16 %v4430
  %v4906 = vunpack.c.h.b16 %v4430
  %v4907 = vunpack.c.l.b16 %v4431
  %v4908 = vunpack.c.h.b16 %v4431
  %v4909 = vunpack.c.l.b16 %v4432
  %v4910 = vunpack.c.h.b16 %v4432
  %v4911 = vunpack.c.l.b16 %v4433
  %v4912 = vunpack.c.h.b16 %v4433
  %v4913 = vunpack.c.l.b16 %v4434
  %v4914 = vunpack.c.h.b16 %v4434
  %v4915 = vunpack.c.l.b16 %v4435
  %v4916 = vunpack.c.h.b16 %v4435
  %v4917 = vunpack.c.l.b16 %v4436
  %v4918 = vunpack.c.h.b16 %v4436
  %v4919 = vunpack.c.l.b16 %v4437
  %v4920 = vunpack.c.h.b16 %v4437
  %v4921 = vunpack.c.l.b16 %v4438
  %v4922 = vunpack.c.h.b16 %v4438
  %v4923 = vunpack.c.l.b16 %v4439
  %v4924 = vunpack.c.h.b16 %v4439
  %v4925 = vunpack.c.l.b16 %v4440
  %v4926 = vunpack.c.h.b16 %v4440
  %v4927 = vunpack.c.l.b16 %v4441
  %v4928 = vunpack.c.h.b16 %v4441
  %v4929 = vunpack.c.l.b16 %v4442
  %v4930 = vunpack.c.h.b16 %v4442
  %v4931 = vunpack.c.l.b16 %v4443
  %v4932 = vunpack.c.h.b16 %v4443
  %v4933 = vunpack.c.l.b16 %v4444
  %v4934 = vunpack.c.h.b16 %v4444
  %v4935 = vunpack.c.l.b16 %v4445
  %v4936 = vunpack.c.h.b16 %v4445
  %v4937 = vunpack.c.l.b16 %v4446
  %v4938 = vunpack.c.h.b16 %v4446
  %v4939 = vunpack.c.l.b16 %v4447
  %v4940 = vunpack.c.h.b16 %v4447
  %v4941 = vunpack.c.l.b16 %v4448
  %v4942 = vunpack.c.h.b16 %v4448
  %v4943 = vunpack.c.l.b16 %v4449
  %v4944 = vunpack.c.h.b16 %v4449
  %v4945 = vunpack.c.l.b16 %v4450
  %v4946 = vunpack.c.h.b16 %v4450
  %v4947 = vunpack.c.l.b16 %v4451
  %v4948 = vunpack.c.h.b16 %v4451
  %v4949 = vunpack.c.l.b16 %v4452
  %v4950 = vunpack.c.h.b16 %v4452
  %v4951 = vunpack.c.l.b16 %v4453
  %v4952 = vunpack.c.h.b16 %v4453
  %v4953 = vunpack.c.l.b16 %v4454
  %v4954 = vunpack.c.h.b16 %v4454
  %v4955 = vunpack.c.l.b16 %v4455
  %v4956 = vunpack.c.h.b16 %v4455
  %v4957 = vunpack.c.l.b16 %v4456
  %v4958 = vunpack.c.h.b16 %v4456
  %v4959 = vunpack.c.l.b16 %v4457
  %v4960 = vunpack.c.h.b16 %v4457
  %v4961 = vunpack.c.l.b16 %v4458
  %v4962 = vunpack.c.h.b16 %v4458
  %v4963 = vunpack.c.l.b16 %v4459
  %v4964 = vunpack.c.h.b16 %v4459
  %v4965 = vunpack.c.l.b16 %v4460
  %v4966 = vunpack.c.h.b16 %v4460
  %v4967 = vunpack.c.l.b16 %v4461
  %v4968 = vunpack.c.h.b16 %v4461
  %v4969 = vunpack.c.l.b16 %v4462
  %v4970 = vunpack.c.h.b16 %v4462
  %v4971 = vunpack.c.l.b16 %v4463
  %v4972 = vunpack.c.h.b16 %v4463
  %v4973 = vunpack.c.l.b16 %v4464
  %v4974 = vunpack.c.h.b16 %v4464
  %v4975 = vunpack.c.l.b16 %v4465
  %v4976 = vunpack.c.h.b16 %v4465
  %v4977 = vunpack.c.l.b16 %v4466
  %v4978 = vunpack.c.h.b16 %v4466
  %v4979 = vunpack.c.l.b16 %v4467
  %v4980 = vunpack.c.h.b16 %v4467
  %v4981 = vunpack.c.l.b16 %v4468
  %v4982 = vunpack.c.h.b16 %v4468
  %v4983 = vunpack.c.l.b16 %v4469
  %v4984 = vunpack.c.h.b16 %v4469
  %v4985 = vunpack.c.l.b16 %v4470
  %v4986 = vunpack.c.h.b16 %v4470
  %v4987 = vunpack.c.l.b16 %v4471
  %v4988 = vunpack.c.h.b16 %v4471
  %v4989 = vunpack.c.l.b16 %v4472
  %v4990 = vunpack.c.h.b16 %v4472
  %v4991 = vunpack.c.l.b16 %v4473
  %v4992 = vunpack.c.h.b16 %v4473
  %v4993 = vunpack.c.l.b16 %v4474
  %v4994 = vunpack.c.h.b16 %v4474
  %v4995 = vunpack.c.l.b16 %v4475
  %v4996 = vunpack.c.h.b16 %v4475
  %v4997 = vunpack.c.l.b16 %v4476
  %v4998 = vunpack.c.h.b16 %v4476
  %v4999 = vunpack.c.l.b16 %v4477
  %v5000 = vunpack.c.h.b16 %v4477
  %v5001 = vunpack.c.l.b16 %v4478
  %v5002 = vunpack.c.h.b16 %v4478
  %v5003 = vunpack.c.l.b16 %v4479
  %v5004 = vunpack.c.h.b16 %v4479
  %v5005 = vunpack.c.l.b16 %v4480
  %v5006 = vunpack.c.h.b16 %v4480
  %v5007 = vunpack.c.l.b16 %v4481
  %v5008 = vunpack.c.h.b16 %v4481
  %v5009 = vunpack.c.l.b16 %v4482
  %v5010 = vunpack.c.h.b16 %v4482
  %v5011 = vunpack.c.l.b16 %v4483
  %v5012 = vunpack.c.h.b16 %v4483
  %v5013 = vunpack.c.l.b16 %v4484
  %v5014 = vunpack.c.h.b16 %v4484
  %v5015 = vunpack.c.l.b16 %v4485
  %v5016 = vunpack.c.h.b16 %v4485
  %v5017 = vunpack.c.l.b16 %v4486
  %v5018 = vunpack.c.h.b16 %v4486
  %v5019 = vunpack.c.l.b16 %v4487
  %v5020 = vunpack.c.h.b16 %v4487
  %v5021 = vunpack.c.l.b16 %v4488
  %v5022 = vunpack.c.h.b16 %v4488
  %v5023 = vunpack.c.l.b16 %v4489
  %v5024 = vunpack.c.h.b16 %v4489
  %v5025 = vunpack.c.l.b16 %v4490
  %v5026 = vunpack.c.h.b16 %v4490
  %v5027 = vunpack.c.l.b16 %v4491
  %v5028 = vunpack.c.h.b16 %v4491
  %v5029 = vunpack.c.l.b16 %v4492
  %v5030 = vunpack.c.h.b16 %v4492
  %v5031 = vunpack.c.l.b16 %v4493
  %v5032 = vunpack.c.h.b16 %v4493
  %v5033 = vunpack.c.l.b16 %v4494
  %v5034 = vunpack.c.h.b16 %v4494
  %v5035 = vunpack.c.l.b16 %v4495
  %v5036 = vunpack.c.h.b16 %v4495
  %v5037 = vunpack.c.l.b16 %v4496
  %v5038 = vunpack.c.h.b16 %v4496
  %v5039 = vunpack.c.l.b16 %v4497
  %v5040 = vunpack.c.h.b16 %v4497
  %v5041 = vunpack.c.l.b16 %v4498
  %v5042 = vunpack.c.h.b16 %v4498
  %v5043 = vunpack.c.l.b16 %v4499
  %v5044 = vunpack.c.h.b16 %v4499
  %v5045 = vunpack.c.l.b16 %v4500
  %v5046 = vunpack.c.h.b16 %v4500
  %v5047 = vunpack.c.l.b16 %v4501
  %v5048 = vunpack.c.h.b16 %v4501
  %v5049 = vunpack.c.l.b16 %v4502
  %v5050 = vunpack.c.h.b16 %v4502
  %v5051 = vunpack.c.l.b16 %v4503
  %v5052 = vunpack.c.h.b16 %v4503
  %v5053 = vunpack.c.l.b16 %v4504
  %v5054 = vunpack.c.h.b16 %v4504
  %v5055 = vunpack.c.l.b16 %v4505
  %v5056 = vunpack.c.h.b16 %v4505
  %v5057 = vunpack.c.l.b16 %v4506
  %v5058 = vunpack.c.h.b16 %v4506
  %v5059 = vunpack.c.l.b16 %v4507
  %v5060 = vunpack.c.h.b16 %v4507
  %v5061 = vunpack.c.l.b16 %v4508
  %v5062 = vunpack.c.h.b16 %v4508
  %v5063 = vpack.c.b16 %v4815, %v4807
  %v5064 = vpack.c.b16 %v4816, %v4808
  %v5065 = vpack.c.b16 %v4817, %v4809
  %v5066 = vpack.c.b16 %v4818, %v4810
  %v5067 = vpack.c.b16 %v4819, %v4811
  %v5068 = vpack.c.b16 %v4820, %v4812
  %v5069 = vpack.c.b16 %v4821, %v4813
  %v5070 = vpack.c.b16 %v4822, %v4814
  %v5071 = vpack.c.b16 %v4831, %v4823
  %v5072 = vpack.c.b16 %v4832, %v4824
  %v5073 = vpack.c.b16 %v4833, %v4825
  %v5074 = vpack.c.b16 %v4834, %v4826
  %v5075 = vpack.c.b16 %v4835, %v4827
  %v5076 = vpack.c.b16 %v4836, %v4828
  %v5077 = vpack.c.b16 %v4837, %v4829
  %v5078 = vpack.c.b16 %v4838, %v4830
  %v5079 = vpack.c.b16 %v4847, %v4839
  %v5080 = vpack.c.b16 %v4848, %v4840
  %v5081 = vpack.c.b16 %v4849, %v4841
  %v5082 = vpack.c.b16 %v4850, %v4842
  %v5083 = vpack.c.b16 %v4851, %v4843
  %v5084 = vpack.c.b16 %v4852, %v4844
  %v5085 = vpack.c.b16 %v4853, %v4845
  %v5086 = vpack.c.b16 %v4854, %v4846
  %v5087 = vpack.c.b16 %v4863, %v4855
  %v5088 = vpack.c.b16 %v4864, %v4856
  %v5089 = vpack.c.b16 %v4865, %v4857
  %v5090 = vpack.c.b16 %v4866, %v4858
  %v5091 = vpack.c.b16 %v4867, %v4859
  %v5092 = vpack.c.b16 %v4868, %v4860
  %v5093 = vpack.c.b16 %v4869, %v4861
  %v5094 = vpack.c.b16 %v4870, %v4862
  %v5095 = vpack.c.b16 %v4879, %v4871
  %v5096 = vpack.c.b16 %v4880, %v4872
  %v5097 = vpack.c.b16 %v4881, %v4873
  %v5098 = vpack.c.b16 %v4882, %v4874
  %v5099 = vpack.c.b16 %v4883, %v4875
  %v5100 = vpack.c.b16 %v4884, %v4876
  %v5101 = vpack.c.b16 %v4885, %v4877
  %v5102 = vpack.c.b16 %v4886, %v4878
  %v5103 = vpack.c.b16 %v4895, %v4887
  %v5104 = vpack.c.b16 %v4896, %v4888
  %v5105 = vpack.c.b16 %v4897, %v4889
  %v5106 = vpack.c.b16 %v4898, %v4890
  %v5107 = vpack.c.b16 %v4899, %v4891
  %v5108 = vpack.c.b16 %v4900, %v4892
  %v5109 = vpack.c.b16 %v4901, %v4893
  %v5110 = vpack.c.b16 %v4902, %v4894
  %v5111 = vpack.c.b16 %v4911, %v4903
  %v5112 = vpack.c.b16 %v4912, %v4904
  %v5113 = vpack.c.b16 %v4913, %v4905
  %v5114 = vpack.c.b16 %v4914, %v4906
  %v5115 = vpack.c.b16 %v4915, %v4907
  %v5116 = vpack.c.b16 %v4916, %v4908
  %v5117 = vpack.c.b16 %v4917, %v4909
  %v5118 = vpack.c.b16 %v4918, %v4910
  %v5119 = vpack.c.b16 %v4927, %v4919
  %v5120 = vpack.c.b16 %v4928, %v4920
  %v5121 = vpack.c.b16 %v4929, %v4921
  %v5122 = vpack.c.b16 %v4930, %v4922
  %v5123 = vpack.c.b16 %v4931, %v4923
  %v5124 = vpack.c.b16 %v4932, %v4924
  %v5125 = vpack.c.b16 %v4933, %v4925
  %v5126 = vpack.c.b16 %v4934, %v4926
  %v5127 = vpack.c.b16 %v4943, %v4935
  %v5128 = vpack.c.b16 %v4944, %v4936
  %v5129 = vpack.c.b16 %v4945, %v4937
  %v5130 = vpack.c.b16 %v4946, %v4938
  %v5131 = vpack.c.b16 %v4947, %v4939
  %v5132 = vpack.c.b16 %v4948, %v4940
  %v5133 = vpack.c.b16 %v4949, %v4941
  %v5134 = vpack.c.b16 %v4950, %v4942
  %v5135 = vpack.c.b16 %v4959, %v4951
  %v5136 = vpack.c.b16 %v4960, %v4952
  %v5137 = vpack.c.b16 %v4961, %v4953
  %v5138 = vpack.c.b16 %v4962, %v4954
  %v5139 = vpack.c.b16 %v4963, %v4955
  %v5140 = vpack.c.b16 %v4964, %v4956
  %v5141 = vpack.c.b16 %v4965, %v4957
  %v5142 = vpack.c.b16 %v4966, %v4958
  %v5143 = vpack.c.b16 %v4975, %v4967
  %v5144 = vpack.c.b16 %v4976, %v4968
  %v5145 = vpack.c.b16 %v4977, %v4969
  %v5146 = vpack.c.b16 %v4978, %v4970
  %v5147 = vpack.c.b16 %v4979, %v4971
  %v5148 = vpack.c.b16 %v4980, %v4972
  %v5149 = vpack.c.b16 %v4981, %v4973
  %v5150 = vpack.c.b16 %v4982, %v4974
  %v5151 = vpack.c.b16 %v4991, %v4983
  %v5152 = vpack.c.b16 %v4992, %v4984
  %v5153 = vpack.c.b16 %v4993, %v4985
  %v5154 = vpack.c.b16 %v4994, %v4986
  %v5155 = vpack.c.b16 %v4995, %v4987
  %v5156 = vpack.c.b16 %v4996, %v4988
  %v5157 = vpack.c.b16 %v4997, %v4989
  %v5158 = vpack.c.b16 %v4998, %v4990
  %v5159 = vpack.c.b16 %v5007, %v4999
  %v5160 = vpack.c.b16 %v5008, %v5000
  %v5161 = vpack.c.b16 %v5009, %v5001
  %v5162 = vpack.c.b16 %v5010, %v5002
  %v5163 = vpack.c.b16 %v5011, %v5003
  %v5164 = vpack.c.b16 %v5012, %v5004
  %v5165 = vpack.c.b16 %v5013, %v5005
  %v5166 = vpack.c.b16 %v5014, %v5006
  %v5167 = vpack.c.b16 %v5023, %v5015
  %v5168 = vpack.c.b16 %v5024, %v5016
  %v5169 = vpack.c.b16 %v5025, %v5017
  %v5170 = vpack.c.b16 %v5026, %v5018
  %v5171 = vpack.c.b16 %v5027, %v5019
  %v5172 = vpack.c.b16 %v5028, %v5020
  %v5173 = vpack.c.b16 %v5029, %v5021
  %v5174 = vpack.c.b16 %v5030, %v5022
  %v5175 = vpack.c.b16 %v5039, %v5031
  %v5176 = vpack.c.b16 %v5040, %v5032
  %v5177 = vpack.c.b16 %v5041, %v5033
  %v5178 = vpack.c.b16 %v5042, %v5034
  %v5179 = vpack.c.b16 %v5043, %v5035
  %v5180 = vpack.c.b16 %v5044, %v5036
  %v5181 = vpack.c.b16 %v5045, %v5037
  %v5182 = vpack.c.b16 %v5046, %v5038
  %v5183 = vpack.c.b16 %v5055, %v5047
  %v5184 = vpack.c.b16 %v5056, %v5048
  %v5185 = vpack.c.b16 %v5057, %v5049
  %v5186 = vpack.c.b16 %v5058, %v5050
  %v5187 = vpack.c.b16 %v5059, %v5051
  %v5188 = vpack.c.b16 %v5060, %v5052
  %v5189 = vpack.c.b16 %v5061, %v5053
  %v5190 = vpack.c.b16 %v5062, %v5054
  %5319 = vmatprep.subr.bf16.mxu0 %v5120
  %5320 = vmatpush1.bf16.msra.mxu0 %v5119
  %5321 = vmatprep.subr.bf16.mxu0 %v5112
  %5322 = vmatpush1.bf16.msra.mxu0 %v5111
  %5323 = vmatprep.subr.bf16.mxu0 %v5104
  %5324 = vmatpush1.bf16.msra.mxu0 %v5103
  %5325 = vmatprep.subr.bf16.mxu0 %v5096
  %5326 = vmatpush1.bf16.msra.mxu0 %v5095
  %5327 = vmatprep.subr.bf16.mxu0 %v5088
  %5328 = vmatpush1.bf16.msra.mxu0 %v5087
  %5329 = vmatprep.subr.bf16.mxu0 %v5080
  %5330 = vmatpush1.bf16.msra.mxu0 %v5079
  %5331 = vmatprep.subr.bf16.mxu0 %v5072
  %5332 = vmatpush1.bf16.msra.mxu0 %v5071
  %5333 = vmatprep.subr.bf16.mxu0 %v5064
  %5334 = vmatpush1.bf16.msra.mxu0 %v5063
  %5335 = vmatprep.subr.bf16.mxu0 %v5184
  %5336 = vmatpush2.bf16.msra.mxu0 %v5183
  %5337 = vmatprep.subr.bf16.mxu0 %v5176
  %5338 = vmatpush2.bf16.msra.mxu0 %v5175
  %5339 = vmatprep.subr.bf16.mxu0 %v5168
  %5340 = vmatpush2.bf16.msra.mxu0 %v5167
  %5341 = vmatprep.subr.bf16.mxu0 %v5160
  %5342 = vmatpush2.bf16.msra.mxu0 %v5159
  %5343 = vmatprep.subr.bf16.mxu0 %v5152
  %5344 = vmatpush2.bf16.msra.mxu0 %v5151
  %5345 = vmatprep.subr.bf16.mxu0 %v5144
  %5346 = vmatpush2.bf16.msra.mxu0 %v5143
  %5347 = vmatprep.subr.bf16.mxu0 %v5136
  %5348 = vmatpush2.bf16.msra.mxu0 %v5135
  %5349 = vmatprep.subr.bf16.mxu0 %v5128
  %5350 = vmatpush2.bf16.msra.mxu0 %v5127
  %5351 = vmatprep.mubr.bf16.mxu0 %v4512
  %5352 = vmatmul.mubr.bf16.gmra.mxu0 %v4511
  %v5353 = vpop.f32.mrf.mxu0
  %v5354 = vadd.f32 %v4550, %v5353
  %v5355 = vpop.f32.mrf.mxu0
  %v5356 = vadd.f32 %v4552, %v5355
  %v5357 = vpop.f32.mrf.mxu0
  %v5358 = vpop.f32.mrf.mxu0
  %5359 = vdwg.mxu0
  %5360 = vmatprep.subr.bf16.mxu0 %v5122
  %5361 = vmatpush1.bf16.msra.mxu0 %v5121
  %5362 = vmatprep.subr.bf16.mxu0 %v5114
  %5363 = vmatpush1.bf16.msra.mxu0 %v5113
  %5364 = vmatprep.subr.bf16.mxu0 %v5106
  %5365 = vmatpush1.bf16.msra.mxu0 %v5105
  %5366 = vmatprep.subr.bf16.mxu0 %v5098
  %5367 = vmatpush1.bf16.msra.mxu0 %v5097
  %5368 = vmatprep.subr.bf16.mxu0 %v5090
  %5369 = vmatpush1.bf16.msra.mxu0 %v5089
  %5370 = vmatprep.subr.bf16.mxu0 %v5082
  %5371 = vmatpush1.bf16.msra.mxu0 %v5081
  %5372 = vmatprep.subr.bf16.mxu0 %v5074
  %5373 = vmatpush1.bf16.msra.mxu0 %v5073
  %5374 = vmatprep.subr.bf16.mxu0 %v5066
  %5375 = vmatpush1.bf16.msra.mxu0 %v5065
  %5376 = vmatprep.subr.bf16.mxu0 %v5186
  %5377 = vmatpush2.bf16.msra.mxu0 %v5185
  %5378 = vmatprep.subr.bf16.mxu0 %v5178
  %5379 = vmatpush2.bf16.msra.mxu0 %v5177
  %5380 = vmatprep.subr.bf16.mxu0 %v5170
  %5381 = vmatpush2.bf16.msra.mxu0 %v5169
  %5382 = vmatprep.subr.bf16.mxu0 %v5162
  %5383 = vmatpush2.bf16.msra.mxu0 %v5161
  %5384 = vmatprep.subr.bf16.mxu0 %v5154
  %5385 = vmatpush2.bf16.msra.mxu0 %v5153
  %5386 = vmatprep.subr.bf16.mxu0 %v5146
  %5387 = vmatpush2.bf16.msra.mxu0 %v5145
  %5388 = vmatprep.subr.bf16.mxu0 %v5138
  %5389 = vmatpush2.bf16.msra.mxu0 %v5137
  %5390 = vmatprep.subr.bf16.mxu0 %v5130
  %5391 = vmatpush2.bf16.msra.mxu0 %v5129
  %5392 = vmatprep.mubr.bf16.mxu0 %v4512
  %5393 = vmatmul.mubr.bf16.gmra.mxu0 %v4511
  %v5394 = vpop.f32.mrf.mxu0
  %v5395 = vadd.f32 %v4591, %v5394
  %v5396 = vpop.f32.mrf.mxu0
  %v5397 = vadd.f32 %v4593, %v5396
  %v5398 = vpop.f32.mrf.mxu0
  %v5399 = vpop.f32.mrf.mxu0
  %5400 = vdwg.mxu0
  %5401 = vmatprep.subr.bf16.mxu0 %v5124
  %5402 = vmatpush1.bf16.msra.mxu0 %v5123
  %5403 = vmatprep.subr.bf16.mxu0 %v5116
  %5404 = vmatpush1.bf16.msra.mxu0 %v5115
  %5405 = vmatprep.subr.bf16.mxu0 %v5108
  %5406 = vmatpush1.bf16.msra.mxu0 %v5107
  %5407 = vmatprep.subr.bf16.mxu0 %v5100
  %5408 = vmatpush1.bf16.msra.mxu0 %v5099
  %5409 = vmatprep.subr.bf16.mxu0 %v5092
  %5410 = vmatpush1.bf16.msra.mxu0 %v5091
  %5411 = vmatprep.subr.bf16.mxu0 %v5084
  %5412 = vmatpush1.bf16.msra.mxu0 %v5083
  %5413 = vmatprep.subr.bf16.mxu0 %v5076
  %5414 = vmatpush1.bf16.msra.mxu0 %v5075
  %5415 = vmatprep.subr.bf16.mxu0 %v5068
  %5416 = vmatpush1.bf16.msra.mxu0 %v5067
  %5417 = vmatprep.subr.bf16.mxu0 %v5188
  %5418 = vmatpush2.bf16.msra.mxu0 %v5187
  %5419 = vmatprep.subr.bf16.mxu0 %v5180
  %5420 = vmatpush2.bf16.msra.mxu0 %v5179
  %5421 = vmatprep.subr.bf16.mxu0 %v5172
  %5422 = vmatpush2.bf16.msra.mxu0 %v5171
  %5423 = vmatprep.subr.bf16.mxu0 %v5164
  %5424 = vmatpush2.bf16.msra.mxu0 %v5163
  %5425 = vmatprep.subr.bf16.mxu0 %v5156
  %5426 = vmatpush2.bf16.msra.mxu0 %v5155
  %5427 = vmatprep.subr.bf16.mxu0 %v5148
  %5428 = vmatpush2.bf16.msra.mxu0 %v5147
  %5429 = vmatprep.subr.bf16.mxu0 %v5140
  %5430 = vmatpush2.bf16.msra.mxu0 %v5139
  %5431 = vmatprep.subr.bf16.mxu0 %v5132
  %5432 = vmatpush2.bf16.msra.mxu0 %v5131
  %5433 = vmatprep.mubr.bf16.mxu0 %v4512
  %5434 = vmatmul.mubr.bf16.gmra.mxu0 %v4511
  %v5435 = vpop.f32.mrf.mxu0
  %v5436 = vadd.f32 %v4632, %v5435
  %v5437 = vpop.f32.mrf.mxu0
  %v5438 = vadd.f32 %v4634, %v5437
  %v5439 = vpop.f32.mrf.mxu0
  %v5440 = vpop.f32.mrf.mxu0
  %5441 = vdwg.mxu0
  %5442 = vmatprep.subr.bf16.mxu0 %v5126
  %5443 = vmatpush1.bf16.msra.mxu0 %v5125
  %5444 = vmatprep.subr.bf16.mxu0 %v5118
  %5445 = vmatpush1.bf16.msra.mxu0 %v5117
  %5446 = vmatprep.subr.bf16.mxu0 %v5110
  %5447 = vmatpush1.bf16.msra.mxu0 %v5109
  %5448 = vmatprep.subr.bf16.mxu0 %v5102
  %5449 = vmatpush1.bf16.msra.mxu0 %v5101
  %5450 = vmatprep.subr.bf16.mxu0 %v5094
  %5451 = vmatpush1.bf16.msra.mxu0 %v5093
  %5452 = vmatprep.subr.bf16.mxu0 %v5086
  %5453 = vmatpush1.bf16.msra.mxu0 %v5085
  %5454 = vmatprep.subr.bf16.mxu0 %v5078
  %5455 = vmatpush1.bf16.msra.mxu0 %v5077
  %5456 = vmatprep.subr.bf16.mxu0 %v5070
  %5457 = vmatpush1.bf16.msra.mxu0 %v5069
  %5458 = vmatprep.subr.bf16.mxu0 %v5190
  %5459 = vmatpush2.bf16.msra.mxu0 %v5189
  %5460 = vmatprep.subr.bf16.mxu0 %v5182
  %5461 = vmatpush2.bf16.msra.mxu0 %v5181
  %5462 = vmatprep.subr.bf16.mxu0 %v5174
  %5463 = vmatpush2.bf16.msra.mxu0 %v5173
  %5464 = vmatprep.subr.bf16.mxu0 %v5166
  %5465 = vmatpush2.bf16.msra.mxu0 %v5165
  %5466 = vmatprep.subr.bf16.mxu0 %v5158
  %5467 = vmatpush2.bf16.msra.mxu0 %v5157
  %5468 = vmatprep.subr.bf16.mxu0 %v5150
  %5469 = vmatpush2.bf16.msra.mxu0 %v5149
  %5470 = vmatprep.subr.bf16.mxu0 %v5142
  %5471 = vmatpush2.bf16.msra.mxu0 %v5141
  %5472 = vmatprep.subr.bf16.mxu0 %v5134
  %5473 = vmatpush2.bf16.msra.mxu0 %v5133
  %5474 = vmatprep.mubr.bf16.mxu0 %v4512
  %5475 = vmatmul.mubr.bf16.gmra.mxu0 %v4511
  %v5476 = vpop.f32.mrf.mxu0
  %v5477 = vadd.f32 %v4673, %v5476
  %v5478 = vpop.f32.mrf.mxu0
  %v5479 = vadd.f32 %v4675, %v5478
  %v5480 = vpop.f32.mrf.mxu0
  %v5481 = vpop.f32.mrf.mxu0
  %5482 = vdwg.mxu0
  %v5483 = vadd.f32 %v5354, %v2550
  %v5484 = vadd.f32 %v5356, %v2554
  %v5485 = vadd.f32 %v5395, %v2558
  %v5486 = vadd.f32 %v5397, %v2562
  %v5487 = vadd.f32 %v5436, %v2566
  %v5488 = vadd.f32 %v5438, %v2570
  %v5489 = vadd.f32 %v5477, %v2574
  %v5490 = vadd.f32 %v5479, %v2578
  %v5491 = vxor.u32 %v5483, 2147483648
  %v5492 = vxor.u32 %v5484, 2147483648
  %v5493 = vmul.f32 %v5491, 1.442695
  %v5494 = vpow.pop %v5493
  %v5495 = vmul.f32 %v5492, 1.442695
  %v5496 = vpow.pop %v5495
  %v5497 = vadd.f32 %v5494, 1.0
  %v5498 = vadd.f32 %v5496, 1.0
  %v5499 = vrcp.pop %v5497
  %v5500 = vmul.f32 1.0, %v5499
  %v5501 = vrcp.pop %v5498
  %v5502 = vmul.f32 1.0, %v5501
  %v5503 = vxor.u32 %v5485, 2147483648
  %v5504 = vxor.u32 %v5486, 2147483648
  %v5505 = vmul.f32 %v5503, 1.442695
  %v5506 = vpow.pop %v5505
  %v5507 = vmul.f32 %v5504, 1.442695
  %v5508 = vpow.pop %v5507
  %v5509 = vadd.f32 %v5506, 1.0
  %v5510 = vadd.f32 %v5508, 1.0
  %v5511 = vrcp.pop %v5509
  %v5512 = vmul.f32 1.0, %v5511
  %v5513 = vrcp.pop %v5510
  %v5514 = vmul.f32 1.0, %v5513
  %v5515 = vtanh.pop %v5487
  %v5516 = vtanh.pop %v5488
  %v5517 = vxor.u32 %v5489, 2147483648
  %v5518 = vxor.u32 %v5490, 2147483648
  %v5519 = vmul.f32 %v5517, 1.442695
  %v5520 = vpow.pop %v5519
  %v5521 = vmul.f32 %v5518, 1.442695
  %v5522 = vpow.pop %v5521
  %v5523 = vadd.f32 %v5520, 1.0
  %v5524 = vadd.f32 %v5522, 1.0
  %v5525 = vrcp.pop %v5523
  %v5526 = vmul.f32 1.0, %v5525
  %v5527 = vrcp.pop %v5524
  %v5528 = vmul.f32 1.0, %v5527
  %v5531 = vrot.slane %v4373, 6
  %v5532 = vrot.slane %v4374, 6
  %v5535 = vmul.f32 %v5512, %v5531
  %v5536 = vmul.f32 %v5514, %v5532
  %v5537 = vmul.f32 %v5500, %v5515
  %v5538 = vmul.f32 %v5502, %v5516
  %v5539 = vadd.f32 %v5535, %v5537
  %v5540 = vadd.f32 %v5536, %v5538
  %v5541 = vtanh.pop %v5539
  %v5542 = vtanh.pop %v5540
  %v5543 = vmul.f32 %v5526, %v5541
  %v5544 = vmul.f32 %v5528, %v5542
  %v5545 = vpack.c.bf16 %v5543, %v5543
  %v5546 = vpack.c.bf16 %v5544, %v5544
  %5547 = vmatprep.subr.bf16.mxu0 %v3181
  %5548 = vmatpush1.bf16.msra.mxu0 %v3180
  %5549 = vmatprep.subr.bf16.mxu0 %v3173
  %5550 = vmatpush1.bf16.msra.mxu0 %v3172
  %5551 = vmatprep.subr.bf16.mxu0 %v3165
  %5552 = vmatpush1.bf16.msra.mxu0 %v3164
  %5553 = vmatprep.subr.bf16.mxu0 %v3157
  %5554 = vmatpush1.bf16.msra.mxu0 %v3156
  %5555 = vmatprep.subr.bf16.mxu0 %v3149
  %5556 = vmatpush1.bf16.msra.mxu0 %v3148
  %5557 = vmatprep.subr.bf16.mxu0 %v3141
  %5558 = vmatpush1.bf16.msra.mxu0 %v3140
  %5559 = vmatprep.subr.bf16.mxu0 %v3133
  %5560 = vmatpush1.bf16.msra.mxu0 %v3132
  %5561 = vmatprep.subr.bf16.mxu0 %v3125
  %5562 = vmatpush1.bf16.msra.mxu0 %v3124
  %5563 = vmatprep.subr.bf16.mxu0 %v3245
  %5564 = vmatpush2.bf16.msra.mxu0 %v3244
  %5565 = vmatprep.subr.bf16.mxu0 %v3237
  %5566 = vmatpush2.bf16.msra.mxu0 %v3236
  %5567 = vmatprep.subr.bf16.mxu0 %v3229
  %5568 = vmatpush2.bf16.msra.mxu0 %v3228
  %5569 = vmatprep.subr.bf16.mxu0 %v3221
  %5570 = vmatpush2.bf16.msra.mxu0 %v3220
  %5571 = vmatprep.subr.bf16.mxu0 %v3213
  %5572 = vmatpush2.bf16.msra.mxu0 %v3212
  %5573 = vmatprep.subr.bf16.mxu0 %v3205
  %5574 = vmatpush2.bf16.msra.mxu0 %v3204
  %5575 = vmatprep.subr.bf16.mxu0 %v3197
  %5576 = vmatpush2.bf16.msra.mxu0 %v3196
  %5577 = vmatprep.subr.bf16.mxu0 %v3189
  %5578 = vmatpush2.bf16.msra.mxu0 %v3188
  %5579 = vmatprep.mubr.bf16.mxu0 %v5546
  %5580 = vmatmul.mubr.bf16.gmra.mxu0 %v5545
  %v5581 = vpop.f32.mrf.mxu0
  %v5582 = vadd.f32 0.0, %v5581
  %v5583 = vpop.f32.mrf.mxu0
  %v5584 = vadd.f32 0.0, %v5583
  %v5585 = vpop.f32.mrf.mxu0
  %v5586 = vpop.f32.mrf.mxu0
  %5587 = vdwg.mxu0
  %5588 = vmatprep.subr.bf16.mxu0 %v3183
  %5589 = vmatpush1.bf16.msra.mxu0 %v3182
  %5590 = vmatprep.subr.bf16.mxu0 %v3175
  %5591 = vmatpush1.bf16.msra.mxu0 %v3174
  %5592 = vmatprep.subr.bf16.mxu0 %v3167
  %5593 = vmatpush1.bf16.msra.mxu0 %v3166
  %5594 = vmatprep.subr.bf16.mxu0 %v3159
  %5595 = vmatpush1.bf16.msra.mxu0 %v3158
  %5596 = vmatprep.subr.bf16.mxu0 %v3151
  %5597 = vmatpush1.bf16.msra.mxu0 %v3150
  %5598 = vmatprep.subr.bf16.mxu0 %v3143
  %5599 = vmatpush1.bf16.msra.mxu0 %v3142
  %5600 = vmatprep.subr.bf16.mxu0 %v3135
  %5601 = vmatpush1.bf16.msra.mxu0 %v3134
  %5602 = vmatprep.subr.bf16.mxu0 %v3127
  %5603 = vmatpush1.bf16.msra.mxu0 %v3126
  %5604 = vmatprep.subr.bf16.mxu0 %v3247
  %5605 = vmatpush2.bf16.msra.mxu0 %v3246
  %5606 = vmatprep.subr.bf16.mxu0 %v3239
  %5607 = vmatpush2.bf16.msra.mxu0 %v3238
  %5608 = vmatprep.subr.bf16.mxu0 %v3231
  %5609 = vmatpush2.bf16.msra.mxu0 %v3230
  %5610 = vmatprep.subr.bf16.mxu0 %v3223
  %5611 = vmatpush2.bf16.msra.mxu0 %v3222
  %5612 = vmatprep.subr.bf16.mxu0 %v3215
  %5613 = vmatpush2.bf16.msra.mxu0 %v3214
  %5614 = vmatprep.subr.bf16.mxu0 %v3207
  %5615 = vmatpush2.bf16.msra.mxu0 %v3206
  %5616 = vmatprep.subr.bf16.mxu0 %v3199
  %5617 = vmatpush2.bf16.msra.mxu0 %v3198
  %5618 = vmatprep.subr.bf16.mxu0 %v3191
  %5619 = vmatpush2.bf16.msra.mxu0 %v3190
  %5620 = vmatprep.mubr.bf16.mxu0 %v5546
  %5621 = vmatmul.mubr.bf16.gmra.mxu0 %v5545
  %v5622 = vpop.f32.mrf.mxu0
  %v5623 = vadd.f32 0.0, %v5622
  %v5624 = vpop.f32.mrf.mxu0
  %v5625 = vadd.f32 0.0, %v5624
  %v5626 = vpop.f32.mrf.mxu0
  %v5627 = vpop.f32.mrf.mxu0
  %5628 = vdwg.mxu0
  %5629 = vmatprep.subr.bf16.mxu0 %v3185
  %5630 = vmatpush1.bf16.msra.mxu0 %v3184
  %5631 = vmatprep.subr.bf16.mxu0 %v3177
  %5632 = vmatpush1.bf16.msra.mxu0 %v3176
  %5633 = vmatprep.subr.bf16.mxu0 %v3169
  %5634 = vmatpush1.bf16.msra.mxu0 %v3168
  %5635 = vmatprep.subr.bf16.mxu0 %v3161
  %5636 = vmatpush1.bf16.msra.mxu0 %v3160
  %5637 = vmatprep.subr.bf16.mxu0 %v3153
  %5638 = vmatpush1.bf16.msra.mxu0 %v3152
  %5639 = vmatprep.subr.bf16.mxu0 %v3145
  %5640 = vmatpush1.bf16.msra.mxu0 %v3144
  %5641 = vmatprep.subr.bf16.mxu0 %v3137
  %5642 = vmatpush1.bf16.msra.mxu0 %v3136
  %5643 = vmatprep.subr.bf16.mxu0 %v3129
  %5644 = vmatpush1.bf16.msra.mxu0 %v3128
  %5645 = vmatprep.subr.bf16.mxu0 %v3249
  %5646 = vmatpush2.bf16.msra.mxu0 %v3248
  %5647 = vmatprep.subr.bf16.mxu0 %v3241
  %5648 = vmatpush2.bf16.msra.mxu0 %v3240
  %5649 = vmatprep.subr.bf16.mxu0 %v3233
  %5650 = vmatpush2.bf16.msra.mxu0 %v3232
  %5651 = vmatprep.subr.bf16.mxu0 %v3225
  %5652 = vmatpush2.bf16.msra.mxu0 %v3224
  %5653 = vmatprep.subr.bf16.mxu0 %v3217
  %5654 = vmatpush2.bf16.msra.mxu0 %v3216
  %5655 = vmatprep.subr.bf16.mxu0 %v3209
  %5656 = vmatpush2.bf16.msra.mxu0 %v3208
  %5657 = vmatprep.subr.bf16.mxu0 %v3201
  %5658 = vmatpush2.bf16.msra.mxu0 %v3200
  %5659 = vmatprep.subr.bf16.mxu0 %v3193
  %5660 = vmatpush2.bf16.msra.mxu0 %v3192
  %5661 = vmatprep.mubr.bf16.mxu0 %v5546
  %5662 = vmatmul.mubr.bf16.gmra.mxu0 %v5545
  %v5663 = vpop.f32.mrf.mxu0
  %v5664 = vadd.f32 0.0, %v5663
  %v5665 = vpop.f32.mrf.mxu0
  %v5666 = vadd.f32 0.0, %v5665
  %v5667 = vpop.f32.mrf.mxu0
  %v5668 = vpop.f32.mrf.mxu0
  %5669 = vdwg.mxu0
  %5670 = vmatprep.subr.bf16.mxu0 %v3187
  %5671 = vmatpush1.bf16.msra.mxu0 %v3186
  %5672 = vmatprep.subr.bf16.mxu0 %v3179
  %5673 = vmatpush1.bf16.msra.mxu0 %v3178
  %5674 = vmatprep.subr.bf16.mxu0 %v3171
  %5675 = vmatpush1.bf16.msra.mxu0 %v3170
  %5676 = vmatprep.subr.bf16.mxu0 %v3163
  %5677 = vmatpush1.bf16.msra.mxu0 %v3162
  %5678 = vmatprep.subr.bf16.mxu0 %v3155
  %5679 = vmatpush1.bf16.msra.mxu0 %v3154
  %5680 = vmatprep.subr.bf16.mxu0 %v3147
  %5681 = vmatpush1.bf16.msra.mxu0 %v3146
  %5682 = vmatprep.subr.bf16.mxu0 %v3139
  %5683 = vmatpush1.bf16.msra.mxu0 %v3138
  %5684 = vmatprep.subr.bf16.mxu0 %v3131
  %5685 = vmatpush1.bf16.msra.mxu0 %v3130
  %5686 = vmatprep.subr.bf16.mxu0 %v3251
  %5687 = vmatpush2.bf16.msra.mxu0 %v3250
  %5688 = vmatprep.subr.bf16.mxu0 %v3243
  %5689 = vmatpush2.bf16.msra.mxu0 %v3242
  %5690 = vmatprep.subr.bf16.mxu0 %v3235
  %5691 = vmatpush2.bf16.msra.mxu0 %v3234
  %5692 = vmatprep.subr.bf16.mxu0 %v3227
  %5693 = vmatpush2.bf16.msra.mxu0 %v3226
  %5694 = vmatprep.subr.bf16.mxu0 %v3219
  %5695 = vmatpush2.bf16.msra.mxu0 %v3218
  %5696 = vmatprep.subr.bf16.mxu0 %v3211
  %5697 = vmatpush2.bf16.msra.mxu0 %v3210
  %5698 = vmatprep.subr.bf16.mxu0 %v3203
  %5699 = vmatpush2.bf16.msra.mxu0 %v3202
  %5700 = vmatprep.subr.bf16.mxu0 %v3195
  %5701 = vmatpush2.bf16.msra.mxu0 %v3194
  %5702 = vmatprep.mubr.bf16.mxu0 %v5546
  %5703 = vmatmul.mubr.bf16.gmra.mxu0 %v5545
  %v5704 = vpop.f32.mrf.mxu0
  %v5705 = vadd.f32 0.0, %v5704
  %v5706 = vpop.f32.mrf.mxu0
  %v5707 = vadd.f32 0.0, %v5706
  %v5708 = vpop.f32.mrf.mxu0
  %v5709 = vpop.f32.mrf.mxu0
  %5710 = vdwg.mxu0
  %5711 = vmatprep.subr.bf16.mxu0 %v5120
  %5712 = vmatpush1.bf16.msra.mxu0 %v5119
  %5713 = vmatprep.subr.bf16.mxu0 %v5112
  %5714 = vmatpush1.bf16.msra.mxu0 %v5111
  %5715 = vmatprep.subr.bf16.mxu0 %v5104
  %5716 = vmatpush1.bf16.msra.mxu0 %v5103
  %5717 = vmatprep.subr.bf16.mxu0 %v5096
  %5718 = vmatpush1.bf16.msra.mxu0 %v5095
  %5719 = vmatprep.subr.bf16.mxu0 %v5088
  %5720 = vmatpush1.bf16.msra.mxu0 %v5087
  %5721 = vmatprep.subr.bf16.mxu0 %v5080
  %5722 = vmatpush1.bf16.msra.mxu0 %v5079
  %5723 = vmatprep.subr.bf16.mxu0 %v5072
  %5724 = vmatpush1.bf16.msra.mxu0 %v5071
  %5725 = vmatprep.subr.bf16.mxu0 %v5064
  %5726 = vmatpush1.bf16.msra.mxu0 %v5063
  %5727 = vmatprep.subr.bf16.mxu0 %v5184
  %5728 = vmatpush2.bf16.msra.mxu0 %v5183
  %5729 = vmatprep.subr.bf16.mxu0 %v5176
  %5730 = vmatpush2.bf16.msra.mxu0 %v5175
  %5731 = vmatprep.subr.bf16.mxu0 %v5168
  %5732 = vmatpush2.bf16.msra.mxu0 %v5167
  %5733 = vmatprep.subr.bf16.mxu0 %v5160
  %5734 = vmatpush2.bf16.msra.mxu0 %v5159
  %5735 = vmatprep.subr.bf16.mxu0 %v5152
  %5736 = vmatpush2.bf16.msra.mxu0 %v5151
  %5737 = vmatprep.subr.bf16.mxu0 %v5144
  %5738 = vmatpush2.bf16.msra.mxu0 %v5143
  %5739 = vmatprep.subr.bf16.mxu0 %v5136
  %5740 = vmatpush2.bf16.msra.mxu0 %v5135
  %5741 = vmatprep.subr.bf16.mxu0 %v5128
  %5742 = vmatpush2.bf16.msra.mxu0 %v5127
  %5743 = vmatprep.mubr.bf16.mxu0 %v5546
  %5744 = vmatmul.mubr.bf16.gmra.mxu0 %v5545
  %v5745 = vpop.f32.mrf.mxu0
  %v5746 = vadd.f32 %v5582, %v5745
  %v5747 = vpop.f32.mrf.mxu0
  %v5748 = vadd.f32 %v5584, %v5747
  %v5749 = vpop.f32.mrf.mxu0
  %v5750 = vpop.f32.mrf.mxu0
  %5751 = vdwg.mxu0
  %5752 = vmatprep.subr.bf16.mxu0 %v5122
  %5753 = vmatpush1.bf16.msra.mxu0 %v5121
  %5754 = vmatprep.subr.bf16.mxu0 %v5114
  %5755 = vmatpush1.bf16.msra.mxu0 %v5113
  %5756 = vmatprep.subr.bf16.mxu0 %v5106
  %5757 = vmatpush1.bf16.msra.mxu0 %v5105
  %5758 = vmatprep.subr.bf16.mxu0 %v5098
  %5759 = vmatpush1.bf16.msra.mxu0 %v5097
  %5760 = vmatprep.subr.bf16.mxu0 %v5090
  %5761 = vmatpush1.bf16.msra.mxu0 %v5089
  %5762 = vmatprep.subr.bf16.mxu0 %v5082
  %5763 = vmatpush1.bf16.msra.mxu0 %v5081
  %5764 = vmatprep.subr.bf16.mxu0 %v5074
  %5765 = vmatpush1.bf16.msra.mxu0 %v5073
  %5766 = vmatprep.subr.bf16.mxu0 %v5066
  %5767 = vmatpush1.bf16.msra.mxu0 %v5065
  %5768 = vmatprep.subr.bf16.mxu0 %v5186
  %5769 = vmatpush2.bf16.msra.mxu0 %v5185
  %5770 = vmatprep.subr.bf16.mxu0 %v5178
  %5771 = vmatpush2.bf16.msra.mxu0 %v5177
  %5772 = vmatprep.subr.bf16.mxu0 %v5170
  %5773 = vmatpush2.bf16.msra.mxu0 %v5169
  %5774 = vmatprep.subr.bf16.mxu0 %v5162
  %5775 = vmatpush2.bf16.msra.mxu0 %v5161
  %5776 = vmatprep.subr.bf16.mxu0 %v5154
  %5777 = vmatpush2.bf16.msra.mxu0 %v5153
  %5778 = vmatprep.subr.bf16.mxu0 %v5146
  %5779 = vmatpush2.bf16.msra.mxu0 %v5145
  %5780 = vmatprep.subr.bf16.mxu0 %v5138
  %5781 = vmatpush2.bf16.msra.mxu0 %v5137
  %5782 = vmatprep.subr.bf16.mxu0 %v5130
  %5783 = vmatpush2.bf16.msra.mxu0 %v5129
  %5784 = vmatprep.mubr.bf16.mxu0 %v5546
  %5785 = vmatmul.mubr.bf16.gmra.mxu0 %v5545
  %v5786 = vpop.f32.mrf.mxu0
  %v5787 = vadd.f32 %v5623, %v5786
  %v5788 = vpop.f32.mrf.mxu0
  %v5789 = vadd.f32 %v5625, %v5788
  %v5790 = vpop.f32.mrf.mxu0
  %v5791 = vpop.f32.mrf.mxu0
  %5792 = vdwg.mxu0
  %5793 = vmatprep.subr.bf16.mxu0 %v5124
  %5794 = vmatpush1.bf16.msra.mxu0 %v5123
  %5795 = vmatprep.subr.bf16.mxu0 %v5116
  %5796 = vmatpush1.bf16.msra.mxu0 %v5115
  %5797 = vmatprep.subr.bf16.mxu0 %v5108
  %5798 = vmatpush1.bf16.msra.mxu0 %v5107
  %5799 = vmatprep.subr.bf16.mxu0 %v5100
  %5800 = vmatpush1.bf16.msra.mxu0 %v5099
  %5801 = vmatprep.subr.bf16.mxu0 %v5092
  %5802 = vmatpush1.bf16.msra.mxu0 %v5091
  %5803 = vmatprep.subr.bf16.mxu0 %v5084
  %5804 = vmatpush1.bf16.msra.mxu0 %v5083
  %5805 = vmatprep.subr.bf16.mxu0 %v5076
  %5806 = vmatpush1.bf16.msra.mxu0 %v5075
  %5807 = vmatprep.subr.bf16.mxu0 %v5068
  %5808 = vmatpush1.bf16.msra.mxu0 %v5067
  %5809 = vmatprep.subr.bf16.mxu0 %v5188
  %5810 = vmatpush2.bf16.msra.mxu0 %v5187
  %5811 = vmatprep.subr.bf16.mxu0 %v5180
  %5812 = vmatpush2.bf16.msra.mxu0 %v5179
  %5813 = vmatprep.subr.bf16.mxu0 %v5172
  %5814 = vmatpush2.bf16.msra.mxu0 %v5171
  %5815 = vmatprep.subr.bf16.mxu0 %v5164
  %5816 = vmatpush2.bf16.msra.mxu0 %v5163
  %5817 = vmatprep.subr.bf16.mxu0 %v5156
  %5818 = vmatpush2.bf16.msra.mxu0 %v5155
  %5819 = vmatprep.subr.bf16.mxu0 %v5148
  %5820 = vmatpush2.bf16.msra.mxu0 %v5147
  %5821 = vmatprep.subr.bf16.mxu0 %v5140
  %5822 = vmatpush2.bf16.msra.mxu0 %v5139
  %5823 = vmatprep.subr.bf16.mxu0 %v5132
  %5824 = vmatpush2.bf16.msra.mxu0 %v5131
  %5825 = vmatprep.mubr.bf16.mxu0 %v5546
  %5826 = vmatmul.mubr.bf16.gmra.mxu0 %v5545
  %v5827 = vpop.f32.mrf.mxu0
  %v5828 = vadd.f32 %v5664, %v5827
  %v5829 = vpop.f32.mrf.mxu0
  %v5830 = vadd.f32 %v5666, %v5829
  %v5831 = vpop.f32.mrf.mxu0
  %v5832 = vpop.f32.mrf.mxu0
  %5833 = vdwg.mxu0
  %5834 = vmatprep.subr.bf16.mxu0 %v5126
  %5835 = vmatpush1.bf16.msra.mxu0 %v5125
  %5836 = vmatprep.subr.bf16.mxu0 %v5118
  %5837 = vmatpush1.bf16.msra.mxu0 %v5117
  %5838 = vmatprep.subr.bf16.mxu0 %v5110
  %5839 = vmatpush1.bf16.msra.mxu0 %v5109
  %5840 = vmatprep.subr.bf16.mxu0 %v5102
  %5841 = vmatpush1.bf16.msra.mxu0 %v5101
  %5842 = vmatprep.subr.bf16.mxu0 %v5094
  %5843 = vmatpush1.bf16.msra.mxu0 %v5093
  %5844 = vmatprep.subr.bf16.mxu0 %v5086
  %5845 = vmatpush1.bf16.msra.mxu0 %v5085
  %5846 = vmatprep.subr.bf16.mxu0 %v5078
  %5847 = vmatpush1.bf16.msra.mxu0 %v5077
  %5848 = vmatprep.subr.bf16.mxu0 %v5070
  %5849 = vmatpush1.bf16.msra.mxu0 %v5069
  %5850 = vmatprep.subr.bf16.mxu0 %v5190
  %5851 = vmatpush2.bf16.msra.mxu0 %v5189
  %5852 = vmatprep.subr.bf16.mxu0 %v5182
  %5853 = vmatpush2.bf16.msra.mxu0 %v5181
  %5854 = vmatprep.subr.bf16.mxu0 %v5174
  %5855 = vmatpush2.bf16.msra.mxu0 %v5173
  %5856 = vmatprep.subr.bf16.mxu0 %v5166
  %5857 = vmatpush2.bf16.msra.mxu0 %v5165
  %5858 = vmatprep.subr.bf16.mxu0 %v5158
  %5859 = vmatpush2.bf16.msra.mxu0 %v5157
  %5860 = vmatprep.subr.bf16.mxu0 %v5150
  %5861 = vmatpush2.bf16.msra.mxu0 %v5149
  %5862 = vmatprep.subr.bf16.mxu0 %v5142
  %5863 = vmatpush2.bf16.msra.mxu0 %v5141
  %5864 = vmatprep.subr.bf16.mxu0 %v5134
  %5865 = vmatpush2.bf16.msra.mxu0 %v5133
  %5866 = vmatprep.mubr.bf16.mxu0 %v5546
  %5867 = vmatmul.mubr.bf16.gmra.mxu0 %v5545
  %v5868 = vpop.f32.mrf.mxu0
  %v5869 = vadd.f32 %v5705, %v5868
  %v5870 = vpop.f32.mrf.mxu0
  %v5871 = vadd.f32 %v5707, %v5870
  %v5872 = vpop.f32.mrf.mxu0
  %v5873 = vpop.f32.mrf.mxu0
  %5874 = vdwg.mxu0
  %v5875 = vadd.f32 %v5746, %v2550
  %v5876 = vadd.f32 %v5748, %v2554
  %v5877 = vadd.f32 %v5787, %v2558
  %v5878 = vadd.f32 %v5789, %v2562
  %v5879 = vadd.f32 %v5828, %v2566
  %v5880 = vadd.f32 %v5830, %v2570
  %v5881 = vadd.f32 %v5869, %v2574
  %v5882 = vadd.f32 %v5871, %v2578
  %v5883 = vxor.u32 %v5875, 2147483648
  %v5884 = vxor.u32 %v5876, 2147483648
  %v5885 = vmul.f32 %v5883, 1.442695
  %v5886 = vpow.pop %v5885
  %v5887 = vmul.f32 %v5884, 1.442695
  %v5888 = vpow.pop %v5887
  %v5889 = vadd.f32 %v5886, 1.0
  %v5890 = vadd.f32 %v5888, 1.0
  %v5891 = vrcp.pop %v5889
  %v5892 = vmul.f32 1.0, %v5891
  %v5893 = vrcp.pop %v5890
  %v5894 = vmul.f32 1.0, %v5893
  %v5895 = vxor.u32 %v5877, 2147483648
  %v5896 = vxor.u32 %v5878, 2147483648
  %v5897 = vmul.f32 %v5895, 1.442695
  %v5898 = vpow.pop %v5897
  %v5899 = vmul.f32 %v5896, 1.442695
  %v5900 = vpow.pop %v5899
  %v5901 = vadd.f32 %v5898, 1.0
  %v5902 = vadd.f32 %v5900, 1.0
  %v5903 = vrcp.pop %v5901
  %v5904 = vmul.f32 1.0, %v5903
  %v5905 = vrcp.pop %v5902
  %v5906 = vmul.f32 1.0, %v5905
  %v5907 = vtanh.pop %v5879
  %v5908 = vtanh.pop %v5880
  %v5909 = vxor.u32 %v5881, 2147483648
  %v5910 = vxor.u32 %v5882, 2147483648
  %v5911 = vmul.f32 %v5909, 1.442695
  %v5912 = vpow.pop %v5911
  %v5913 = vmul.f32 %v5910, 1.442695
  %v5914 = vpow.pop %v5913
  %v5915 = vadd.f32 %v5912, 1.0
  %v5916 = vadd.f32 %v5914, 1.0
  %v5917 = vrcp.pop %v5915
  %v5918 = vmul.f32 1.0, %v5917
  %v5919 = vrcp.pop %v5916
  %v5920 = vmul.f32 1.0, %v5919
  %v5921 = vmul.f32 %v5904, %v5539
  %v5922 = vmul.f32 %v5906, %v5540
  %v5923 = vmul.f32 %v5892, %v5907
  %v5924 = vmul.f32 %v5894, %v5908
  %v5925 = vadd.f32 %v5921, %v5923
  %v5926 = vadd.f32 %v5922, %v5924
  %v5927 = vtanh.pop %v5925
  %v5928 = vtanh.pop %v5926
  %v5929 = vmul.f32 %v5918, %v5927
  %v5930 = vmul.f32 %v5920, %v5928
  %v5931 = vpack.c.bf16 %v5929, %v5929
  %v5932 = vpack.c.bf16 %v5930, %v5930
  %5933 = vmatprep.subr.bf16.mxu0 %v3181
  %5934 = vmatpush1.bf16.msra.mxu0 %v3180
  %5935 = vmatprep.subr.bf16.mxu0 %v3173
  %5936 = vmatpush1.bf16.msra.mxu0 %v3172
  %5937 = vmatprep.subr.bf16.mxu0 %v3165
  %5938 = vmatpush1.bf16.msra.mxu0 %v3164
  %5939 = vmatprep.subr.bf16.mxu0 %v3157
  %5940 = vmatpush1.bf16.msra.mxu0 %v3156
  %5941 = vmatprep.subr.bf16.mxu0 %v3149
  %5942 = vmatpush1.bf16.msra.mxu0 %v3148
  %5943 = vmatprep.subr.bf16.mxu0 %v3141
  %5944 = vmatpush1.bf16.msra.mxu0 %v3140
  %5945 = vmatprep.subr.bf16.mxu0 %v3133
  %5946 = vmatpush1.bf16.msra.mxu0 %v3132
  %5947 = vmatprep.subr.bf16.mxu0 %v3125
  %5948 = vmatpush1.bf16.msra.mxu0 %v3124
  %5949 = vmatprep.subr.bf16.mxu0 %v3245
  %5950 = vmatpush2.bf16.msra.mxu0 %v3244
  %5951 = vmatprep.subr.bf16.mxu0 %v3237
  %5952 = vmatpush2.bf16.msra.mxu0 %v3236
  %5953 = vmatprep.subr.bf16.mxu0 %v3229
  %5954 = vmatpush2.bf16.msra.mxu0 %v3228
  %5955 = vmatprep.subr.bf16.mxu0 %v3221
  %5956 = vmatpush2.bf16.msra.mxu0 %v3220
  %5957 = vmatprep.subr.bf16.mxu0 %v3213
  %5958 = vmatpush2.bf16.msra.mxu0 %v3212
  %5959 = vmatprep.subr.bf16.mxu0 %v3205
  %5960 = vmatpush2.bf16.msra.mxu0 %v3204
  %5961 = vmatprep.subr.bf16.mxu0 %v3197
  %5962 = vmatpush2.bf16.msra.mxu0 %v3196
  %5963 = vmatprep.subr.bf16.mxu0 %v3189
  %5964 = vmatpush2.bf16.msra.mxu0 %v3188
  %5965 = vmatprep.mubr.bf16.mxu0 %v5932
  %5966 = vmatmul.mubr.bf16.gmra.mxu0 %v5931
  %v5967 = vpop.f32.mrf.mxu0
  %v5968 = vadd.f32 0.0, %v5967
  %v5969 = vpop.f32.mrf.mxu0
  %v5970 = vadd.f32 0.0, %v5969
  %v5971 = vpop.f32.mrf.mxu0
  %v5972 = vpop.f32.mrf.mxu0
  %5973 = vdwg.mxu0
  %5974 = vmatprep.subr.bf16.mxu0 %v3183
  %5975 = vmatpush1.bf16.msra.mxu0 %v3182
  %5976 = vmatprep.subr.bf16.mxu0 %v3175
  %5977 = vmatpush1.bf16.msra.mxu0 %v3174
  %5978 = vmatprep.subr.bf16.mxu0 %v3167
  %5979 = vmatpush1.bf16.msra.mxu0 %v3166
  %5980 = vmatprep.subr.bf16.mxu0 %v3159
  %5981 = vmatpush1.bf16.msra.mxu0 %v3158
  %5982 = vmatprep.subr.bf16.mxu0 %v3151
  %5983 = vmatpush1.bf16.msra.mxu0 %v3150
  %5984 = vmatprep.subr.bf16.mxu0 %v3143
  %5985 = vmatpush1.bf16.msra.mxu0 %v3142
  %5986 = vmatprep.subr.bf16.mxu0 %v3135
  %5987 = vmatpush1.bf16.msra.mxu0 %v3134
  %5988 = vmatprep.subr.bf16.mxu0 %v3127
  %5989 = vmatpush1.bf16.msra.mxu0 %v3126
  %5990 = vmatprep.subr.bf16.mxu0 %v3247
  %5991 = vmatpush2.bf16.msra.mxu0 %v3246
  %5992 = vmatprep.subr.bf16.mxu0 %v3239
  %5993 = vmatpush2.bf16.msra.mxu0 %v3238
  %5994 = vmatprep.subr.bf16.mxu0 %v3231
  %5995 = vmatpush2.bf16.msra.mxu0 %v3230
  %5996 = vmatprep.subr.bf16.mxu0 %v3223
  %5997 = vmatpush2.bf16.msra.mxu0 %v3222
  %5998 = vmatprep.subr.bf16.mxu0 %v3215
  %5999 = vmatpush2.bf16.msra.mxu0 %v3214
  %6000 = vmatprep.subr.bf16.mxu0 %v3207
  %6001 = vmatpush2.bf16.msra.mxu0 %v3206
  %6002 = vmatprep.subr.bf16.mxu0 %v3199
  %6003 = vmatpush2.bf16.msra.mxu0 %v3198
  %6004 = vmatprep.subr.bf16.mxu0 %v3191
  %6005 = vmatpush2.bf16.msra.mxu0 %v3190
  %6006 = vmatprep.mubr.bf16.mxu0 %v5932
  %6007 = vmatmul.mubr.bf16.gmra.mxu0 %v5931
  %v6008 = vpop.f32.mrf.mxu0
  %v6009 = vadd.f32 0.0, %v6008
  %v6010 = vpop.f32.mrf.mxu0
  %v6011 = vadd.f32 0.0, %v6010
  %v6012 = vpop.f32.mrf.mxu0
  %v6013 = vpop.f32.mrf.mxu0
  %6014 = vdwg.mxu0
  %6015 = vmatprep.subr.bf16.mxu0 %v3185
  %6016 = vmatpush1.bf16.msra.mxu0 %v3184
  %6017 = vmatprep.subr.bf16.mxu0 %v3177
  %6018 = vmatpush1.bf16.msra.mxu0 %v3176
  %6019 = vmatprep.subr.bf16.mxu0 %v3169
  %6020 = vmatpush1.bf16.msra.mxu0 %v3168
  %6021 = vmatprep.subr.bf16.mxu0 %v3161
  %6022 = vmatpush1.bf16.msra.mxu0 %v3160
  %6023 = vmatprep.subr.bf16.mxu0 %v3153
  %6024 = vmatpush1.bf16.msra.mxu0 %v3152
  %6025 = vmatprep.subr.bf16.mxu0 %v3145
  %6026 = vmatpush1.bf16.msra.mxu0 %v3144
  %6027 = vmatprep.subr.bf16.mxu0 %v3137
  %6028 = vmatpush1.bf16.msra.mxu0 %v3136
  %6029 = vmatprep.subr.bf16.mxu0 %v3129
  %6030 = vmatpush1.bf16.msra.mxu0 %v3128
  %6031 = vmatprep.subr.bf16.mxu0 %v3249
  %6032 = vmatpush2.bf16.msra.mxu0 %v3248
  %6033 = vmatprep.subr.bf16.mxu0 %v3241
  %6034 = vmatpush2.bf16.msra.mxu0 %v3240
  %6035 = vmatprep.subr.bf16.mxu0 %v3233
  %6036 = vmatpush2.bf16.msra.mxu0 %v3232
  %6037 = vmatprep.subr.bf16.mxu0 %v3225
  %6038 = vmatpush2.bf16.msra.mxu0 %v3224
  %6039 = vmatprep.subr.bf16.mxu0 %v3217
  %6040 = vmatpush2.bf16.msra.mxu0 %v3216
  %6041 = vmatprep.subr.bf16.mxu0 %v3209
  %6042 = vmatpush2.bf16.msra.mxu0 %v3208
  %6043 = vmatprep.subr.bf16.mxu0 %v3201
  %6044 = vmatpush2.bf16.msra.mxu0 %v3200
  %6045 = vmatprep.subr.bf16.mxu0 %v3193
  %6046 = vmatpush2.bf16.msra.mxu0 %v3192
  %6047 = vmatprep.mubr.bf16.mxu0 %v5932
  %6048 = vmatmul.mubr.bf16.gmra.mxu0 %v5931
  %v6049 = vpop.f32.mrf.mxu0
  %v6050 = vadd.f32 0.0, %v6049
  %v6051 = vpop.f32.mrf.mxu0
  %v6052 = vadd.f32 0.0, %v6051
  %v6053 = vpop.f32.mrf.mxu0
  %v6054 = vpop.f32.mrf.mxu0
  %6055 = vdwg.mxu0
  %6056 = vmatprep.subr.bf16.mxu0 %v3187
  %6057 = vmatpush1.bf16.msra.mxu0 %v3186
  %6058 = vmatprep.subr.bf16.mxu0 %v3179
  %6059 = vmatpush1.bf16.msra.mxu0 %v3178
  %6060 = vmatprep.subr.bf16.mxu0 %v3171
  %6061 = vmatpush1.bf16.msra.mxu0 %v3170
  %6062 = vmatprep.subr.bf16.mxu0 %v3163
  %6063 = vmatpush1.bf16.msra.mxu0 %v3162
  %6064 = vmatprep.subr.bf16.mxu0 %v3155
  %6065 = vmatpush1.bf16.msra.mxu0 %v3154
  %6066 = vmatprep.subr.bf16.mxu0 %v3147
  %6067 = vmatpush1.bf16.msra.mxu0 %v3146
  %6068 = vmatprep.subr.bf16.mxu0 %v3139
  %6069 = vmatpush1.bf16.msra.mxu0 %v3138
  %6070 = vmatprep.subr.bf16.mxu0 %v3131
  %6071 = vmatpush1.bf16.msra.mxu0 %v3130
  %6072 = vmatprep.subr.bf16.mxu0 %v3251
  %6073 = vmatpush2.bf16.msra.mxu0 %v3250
  %6074 = vmatprep.subr.bf16.mxu0 %v3243
  %6075 = vmatpush2.bf16.msra.mxu0 %v3242
  %6076 = vmatprep.subr.bf16.mxu0 %v3235
  %6077 = vmatpush2.bf16.msra.mxu0 %v3234
  %6078 = vmatprep.subr.bf16.mxu0 %v3227
  %6079 = vmatpush2.bf16.msra.mxu0 %v3226
  %6080 = vmatprep.subr.bf16.mxu0 %v3219
  %6081 = vmatpush2.bf16.msra.mxu0 %v3218
  %6082 = vmatprep.subr.bf16.mxu0 %v3211
  %6083 = vmatpush2.bf16.msra.mxu0 %v3210
  %6084 = vmatprep.subr.bf16.mxu0 %v3203
  %6085 = vmatpush2.bf16.msra.mxu0 %v3202
  %6086 = vmatprep.subr.bf16.mxu0 %v3195
  %6087 = vmatpush2.bf16.msra.mxu0 %v3194
  %6088 = vmatprep.mubr.bf16.mxu0 %v5932
  %6089 = vmatmul.mubr.bf16.gmra.mxu0 %v5931
  %v6090 = vpop.f32.mrf.mxu0
  %v6091 = vadd.f32 0.0, %v6090
  %v6092 = vpop.f32.mrf.mxu0
  %v6093 = vadd.f32 0.0, %v6092
  %v6094 = vpop.f32.mrf.mxu0
  %v6095 = vpop.f32.mrf.mxu0
  %6096 = vdwg.mxu0
  %6097 = vmatprep.subr.bf16.mxu0 %v5120
  %6098 = vmatpush1.bf16.msra.mxu0 %v5119
  %6099 = vmatprep.subr.bf16.mxu0 %v5112
  %6100 = vmatpush1.bf16.msra.mxu0 %v5111
  %6101 = vmatprep.subr.bf16.mxu0 %v5104
  %6102 = vmatpush1.bf16.msra.mxu0 %v5103
  %6103 = vmatprep.subr.bf16.mxu0 %v5096
  %6104 = vmatpush1.bf16.msra.mxu0 %v5095
  %6105 = vmatprep.subr.bf16.mxu0 %v5088
  %6106 = vmatpush1.bf16.msra.mxu0 %v5087
  %6107 = vmatprep.subr.bf16.mxu0 %v5080
  %6108 = vmatpush1.bf16.msra.mxu0 %v5079
  %6109 = vmatprep.subr.bf16.mxu0 %v5072
  %6110 = vmatpush1.bf16.msra.mxu0 %v5071
  %6111 = vmatprep.subr.bf16.mxu0 %v5064
  %6112 = vmatpush1.bf16.msra.mxu0 %v5063
  %6113 = vmatprep.subr.bf16.mxu0 %v5184
  %6114 = vmatpush2.bf16.msra.mxu0 %v5183
  %6115 = vmatprep.subr.bf16.mxu0 %v5176
  %6116 = vmatpush2.bf16.msra.mxu0 %v5175
  %6117 = vmatprep.subr.bf16.mxu0 %v5168
  %6118 = vmatpush2.bf16.msra.mxu0 %v5167
  %6119 = vmatprep.subr.bf16.mxu0 %v5160
  %6120 = vmatpush2.bf16.msra.mxu0 %v5159
  %6121 = vmatprep.subr.bf16.mxu0 %v5152
  %6122 = vmatpush2.bf16.msra.mxu0 %v5151
  %6123 = vmatprep.subr.bf16.mxu0 %v5144
  %6124 = vmatpush2.bf16.msra.mxu0 %v5143
  %6125 = vmatprep.subr.bf16.mxu0 %v5136
  %6126 = vmatpush2.bf16.msra.mxu0 %v5135
  %6127 = vmatprep.subr.bf16.mxu0 %v5128
  %6128 = vmatpush2.bf16.msra.mxu0 %v5127
  %6129 = vmatprep.mubr.bf16.mxu0 %v5932
  %6130 = vmatmul.mubr.bf16.gmra.mxu0 %v5931
  %v6131 = vpop.f32.mrf.mxu0
  %v6132 = vadd.f32 %v5968, %v6131
  %v6133 = vpop.f32.mrf.mxu0
  %v6134 = vadd.f32 %v5970, %v6133
  %v6135 = vpop.f32.mrf.mxu0
  %v6136 = vpop.f32.mrf.mxu0
  %6137 = vdwg.mxu0
  %6138 = vmatprep.subr.bf16.mxu0 %v5122
  %6139 = vmatpush1.bf16.msra.mxu0 %v5121
  %6140 = vmatprep.subr.bf16.mxu0 %v5114
  %6141 = vmatpush1.bf16.msra.mxu0 %v5113
  %6142 = vmatprep.subr.bf16.mxu0 %v5106
  %6143 = vmatpush1.bf16.msra.mxu0 %v5105
  %6144 = vmatprep.subr.bf16.mxu0 %v5098
  %6145 = vmatpush1.bf16.msra.mxu0 %v5097
  %6146 = vmatprep.subr.bf16.mxu0 %v5090
  %6147 = vmatpush1.bf16.msra.mxu0 %v5089
  %6148 = vmatprep.subr.bf16.mxu0 %v5082
  %6149 = vmatpush1.bf16.msra.mxu0 %v5081
  %6150 = vmatprep.subr.bf16.mxu0 %v5074
  %6151 = vmatpush1.bf16.msra.mxu0 %v5073
  %6152 = vmatprep.subr.bf16.mxu0 %v5066
  %6153 = vmatpush1.bf16.msra.mxu0 %v5065
  %6154 = vmatprep.subr.bf16.mxu0 %v5186
  %6155 = vmatpush2.bf16.msra.mxu0 %v5185
  %6156 = vmatprep.subr.bf16.mxu0 %v5178
  %6157 = vmatpush2.bf16.msra.mxu0 %v5177
  %6158 = vmatprep.subr.bf16.mxu0 %v5170
  %6159 = vmatpush2.bf16.msra.mxu0 %v5169
  %6160 = vmatprep.subr.bf16.mxu0 %v5162
  %6161 = vmatpush2.bf16.msra.mxu0 %v5161
  %6162 = vmatprep.subr.bf16.mxu0 %v5154
  %6163 = vmatpush2.bf16.msra.mxu0 %v5153
  %6164 = vmatprep.subr.bf16.mxu0 %v5146
  %6165 = vmatpush2.bf16.msra.mxu0 %v5145
  %6166 = vmatprep.subr.bf16.mxu0 %v5138
  %6167 = vmatpush2.bf16.msra.mxu0 %v5137
  %6168 = vmatprep.subr.bf16.mxu0 %v5130
  %6169 = vmatpush2.bf16.msra.mxu0 %v5129
  %6170 = vmatprep.mubr.bf16.mxu0 %v5932
  %6171 = vmatmul.mubr.bf16.gmra.mxu0 %v5931
  %v6172 = vpop.f32.mrf.mxu0
  %v6173 = vadd.f32 %v6009, %v6172
  %v6174 = vpop.f32.mrf.mxu0
  %v6175 = vadd.f32 %v6011, %v6174
  %v6176 = vpop.f32.mrf.mxu0
  %v6177 = vpop.f32.mrf.mxu0
  %6178 = vdwg.mxu0
  %6179 = vmatprep.subr.bf16.mxu0 %v5124
  %6180 = vmatpush1.bf16.msra.mxu0 %v5123
  %6181 = vmatprep.subr.bf16.mxu0 %v5116
  %6182 = vmatpush1.bf16.msra.mxu0 %v5115
  %6183 = vmatprep.subr.bf16.mxu0 %v5108
  %6184 = vmatpush1.bf16.msra.mxu0 %v5107
  %6185 = vmatprep.subr.bf16.mxu0 %v5100
  %6186 = vmatpush1.bf16.msra.mxu0 %v5099
  %6187 = vmatprep.subr.bf16.mxu0 %v5092
  %6188 = vmatpush1.bf16.msra.mxu0 %v5091
  %6189 = vmatprep.subr.bf16.mxu0 %v5084
  %6190 = vmatpush1.bf16.msra.mxu0 %v5083
  %6191 = vmatprep.subr.bf16.mxu0 %v5076
  %6192 = vmatpush1.bf16.msra.mxu0 %v5075
  %6193 = vmatprep.subr.bf16.mxu0 %v5068
  %6194 = vmatpush1.bf16.msra.mxu0 %v5067
  %6195 = vmatprep.subr.bf16.mxu0 %v5188
  %6196 = vmatpush2.bf16.msra.mxu0 %v5187
  %6197 = vmatprep.subr.bf16.mxu0 %v5180
  %6198 = vmatpush2.bf16.msra.mxu0 %v5179
  %6199 = vmatprep.subr.bf16.mxu0 %v5172
  %6200 = vmatpush2.bf16.msra.mxu0 %v5171
  %6201 = vmatprep.subr.bf16.mxu0 %v5164
  %6202 = vmatpush2.bf16.msra.mxu0 %v5163
  %6203 = vmatprep.subr.bf16.mxu0 %v5156
  %6204 = vmatpush2.bf16.msra.mxu0 %v5155
  %6205 = vmatprep.subr.bf16.mxu0 %v5148
  %6206 = vmatpush2.bf16.msra.mxu0 %v5147
  %6207 = vmatprep.subr.bf16.mxu0 %v5140
  %6208 = vmatpush2.bf16.msra.mxu0 %v5139
  %6209 = vmatprep.subr.bf16.mxu0 %v5132
  %6210 = vmatpush2.bf16.msra.mxu0 %v5131
  %6211 = vmatprep.mubr.bf16.mxu0 %v5932
  %6212 = vmatmul.mubr.bf16.gmra.mxu0 %v5931
  %v6213 = vpop.f32.mrf.mxu0
  %v6214 = vadd.f32 %v6050, %v6213
  %v6215 = vpop.f32.mrf.mxu0
  %v6216 = vadd.f32 %v6052, %v6215
  %v6217 = vpop.f32.mrf.mxu0
  %v6218 = vpop.f32.mrf.mxu0
  %6219 = vdwg.mxu0
  %6220 = vmatprep.subr.bf16.mxu0 %v5126
  %6221 = vmatpush1.bf16.msra.mxu0 %v5125
  %6222 = vmatprep.subr.bf16.mxu0 %v5118
  %6223 = vmatpush1.bf16.msra.mxu0 %v5117
  %6224 = vmatprep.subr.bf16.mxu0 %v5110
  %6225 = vmatpush1.bf16.msra.mxu0 %v5109
  %6226 = vmatprep.subr.bf16.mxu0 %v5102
  %6227 = vmatpush1.bf16.msra.mxu0 %v5101
  %6228 = vmatprep.subr.bf16.mxu0 %v5094
  %6229 = vmatpush1.bf16.msra.mxu0 %v5093
  %6230 = vmatprep.subr.bf16.mxu0 %v5086
  %6231 = vmatpush1.bf16.msra.mxu0 %v5085
  %6232 = vmatprep.subr.bf16.mxu0 %v5078
  %6233 = vmatpush1.bf16.msra.mxu0 %v5077
  %6234 = vmatprep.subr.bf16.mxu0 %v5070
  %6235 = vmatpush1.bf16.msra.mxu0 %v5069
  %6236 = vmatprep.subr.bf16.mxu0 %v5190
  %6237 = vmatpush2.bf16.msra.mxu0 %v5189
  %6238 = vmatprep.subr.bf16.mxu0 %v5182
  %6239 = vmatpush2.bf16.msra.mxu0 %v5181
  %6240 = vmatprep.subr.bf16.mxu0 %v5174
  %6241 = vmatpush2.bf16.msra.mxu0 %v5173
  %6242 = vmatprep.subr.bf16.mxu0 %v5166
  %6243 = vmatpush2.bf16.msra.mxu0 %v5165
  %6244 = vmatprep.subr.bf16.mxu0 %v5158
  %6245 = vmatpush2.bf16.msra.mxu0 %v5157
  %6246 = vmatprep.subr.bf16.mxu0 %v5150
  %6247 = vmatpush2.bf16.msra.mxu0 %v5149
  %6248 = vmatprep.subr.bf16.mxu0 %v5142
  %6249 = vmatpush2.bf16.msra.mxu0 %v5141
  %6250 = vmatprep.subr.bf16.mxu0 %v5134
  %6251 = vmatpush2.bf16.msra.mxu0 %v5133
  %6252 = vmatprep.mubr.bf16.mxu0 %v5932
  %6253 = vmatmul.mubr.bf16.gmra.mxu0 %v5931
  %v6254 = vpop.f32.mrf.mxu0
  %v6255 = vadd.f32 %v6091, %v6254
  %v6256 = vpop.f32.mrf.mxu0
  %v6257 = vadd.f32 %v6093, %v6256
  %v6258 = vpop.f32.mrf.mxu0
  %v6259 = vpop.f32.mrf.mxu0
  %6260 = vdwg.mxu0
  %v6261 = vadd.f32 %v6132, %v2550
  %v6262 = vadd.f32 %v6134, %v2554
  %v6263 = vadd.f32 %v6173, %v2558
  %v6264 = vadd.f32 %v6175, %v2562
  %v6265 = vadd.f32 %v6214, %v2566
  %v6266 = vadd.f32 %v6216, %v2570
  %v6267 = vadd.f32 %v6255, %v2574
  %v6268 = vadd.f32 %v6257, %v2578
  %v6269 = vxor.u32 %v6261, 2147483648
  %v6270 = vxor.u32 %v6262, 2147483648
  %v6271 = vmul.f32 %v6269, 1.442695
  %v6272 = vpow.pop %v6271
  %v6273 = vmul.f32 %v6270, 1.442695
  %v6274 = vpow.pop %v6273
  %v6275 = vadd.f32 %v6272, 1.0
  %v6276 = vadd.f32 %v6274, 1.0
  %v6277 = vrcp.pop %v6275
  %v6278 = vmul.f32 1.0, %v6277
  %v6279 = vrcp.pop %v6276
  %v6280 = vmul.f32 1.0, %v6279
  %v6281 = vxor.u32 %v6263, 2147483648
  %v6282 = vxor.u32 %v6264, 2147483648
  %v6283 = vmul.f32 %v6281, 1.442695
  %v6284 = vpow.pop %v6283
  %v6285 = vmul.f32 %v6282, 1.442695
  %v6286 = vpow.pop %v6285
  %v6287 = vadd.f32 %v6284, 1.0
  %v6288 = vadd.f32 %v6286, 1.0
  %v6289 = vrcp.pop %v6287
  %v6290 = vmul.f32 1.0, %v6289
  %v6291 = vrcp.pop %v6288
  %v6292 = vmul.f32 1.0, %v6291
  %v6293 = vtanh.pop %v6265
  %v6294 = vtanh.pop %v6266
  %v6295 = vxor.u32 %v6267, 2147483648
  %v6296 = vxor.u32 %v6268, 2147483648
  %v6297 = vmul.f32 %v6295, 1.442695
  %v6298 = vpow.pop %v6297
  %v6299 = vmul.f32 %v6296, 1.442695
  %v6300 = vpow.pop %v6299
  %v6301 = vadd.f32 %v6298, 1.0
  %v6302 = vadd.f32 %v6300, 1.0
  %v6303 = vrcp.pop %v6301
  %v6304 = vmul.f32 1.0, %v6303
  %v6305 = vrcp.pop %v6302
  %v6306 = vmul.f32 1.0, %v6305
  %v6307 = vmul.f32 %v6290, %v5925
  %v6308 = vmul.f32 %v6292, %v5926
  %v6309 = vmul.f32 %v6278, %v6293
  %v6310 = vmul.f32 %v6280, %v6294
  %v6311 = vadd.f32 %v6307, %v6309
  %v6312 = vadd.f32 %v6308, %v6310
  %v6313 = vtanh.pop %v6311
  %v6314 = vtanh.pop %v6312
  %v6315 = vmul.f32 %v6304, %v6313
  %v6316 = vmul.f32 %v6306, %v6314
  %v6319 = vrot.slane %v5929, 6
  %v6320 = vrot.slane %v5930, 6
  %v6325 = vrot.slane %v6315, 4
  %v6326 = vrot.slane %v6316, 4
  %vm6329 = vcmask 1041408
  %v6330 = vsel %vm6329, %v3609, %v3861
  %v6331 = vsel %vm6329, %v3610, %v3862
  %v6332 = vsel %vm948, %v6330, %v4119
  %v6333 = vsel %vm948, %v6331, %v4120
  %vm6334 = vcmask 1045504
  %v6335 = vsel %vm6334, %v6332, %v4377
  %v6336 = vsel %vm6334, %v6333, %v4378
  %v6337 = vsel %vm6329, %v5543, %v6319
  %v6338 = vsel %vm6329, %v5544, %v6320
  %v6339 = vsel %vm948, %v6337, %v6325
  %v6340 = vsel %vm948, %v6338, %v6326
  %v6341 = vpack.c.bf16 %v6339, %v6335
  %v6342 = vpack.c.bf16 %v6340, %v6336
  %v6343 = vld [vmem:[%s15] sm:$0xf]
  %v6344 = vld [vmem:[%s15 + $0x4] sm:$0xf]
  %v6345 = vld [vmem:[%s15 + $0x8] sm:$0xf]
  %v6346 = vld [vmem:[%s15 + $0xc] sm:$0xf]
  %v6347 = vld [vmem:[%s15 + $0x10] sm:$0xf]
  %v6348 = vld [vmem:[%s15 + $0x14] sm:$0xf]
  %v6349 = vld [vmem:[%s15 + $0x18] sm:$0xf]
  %v6350 = vld [vmem:[%s15 + $0x1c] sm:$0xf]
  %v6351 = vld [vmem:[%s15 + $0x20] sm:$0xf]
  %v6352 = vld [vmem:[%s15 + $0x24] sm:$0xf]
  %v6353 = vld [vmem:[%s15 + $0x28] sm:$0xf]
  %v6354 = vld [vmem:[%s15 + $0x2c] sm:$0xf]
  %v6355 = vld [vmem:[%s15 + $0x30] sm:$0xf]
  %v6356 = vld [vmem:[%s15 + $0x34] sm:$0xf]
  %v6357 = vld [vmem:[%s15 + $0x38] sm:$0xf]
  %v6358 = vld [vmem:[%s15 + $0x3c] sm:$0xf]
  %v6359 = vld [vmem:[%s16] sm:$0x1]
  %v6361 = vlaneseq
  %v6362 = vshrl.u32 %v6361, 7
  %v6363 = vsub.s32 0, %v6362
  %v6364 = vrot.slane %v6359, %v6363
  %v6382 = vunpack.c.l.b16 %v6343
  %v6383 = vunpack.c.l.b16 %v6344
  %v6384 = vunpack.c.l.b16 %v6345
  %v6385 = vunpack.c.l.b16 %v6346
  %v6386 = vunpack.c.l.b16 %v6347
  %v6387 = vunpack.c.l.b16 %v6348
  %v6388 = vunpack.c.l.b16 %v6349
  %v6389 = vunpack.c.l.b16 %v6350
  %v6390 = vunpack.c.l.b16 %v6351
  %v6391 = vunpack.c.l.b16 %v6352
  %v6392 = vunpack.c.l.b16 %v6353
  %v6393 = vunpack.c.l.b16 %v6354
  %v6394 = vunpack.c.l.b16 %v6355
  %v6395 = vunpack.c.l.b16 %v6356
  %v6396 = vunpack.c.l.b16 %v6357
  %v6397 = vunpack.c.l.b16 %v6358
  %v6398 = vpack.c.b16 %v6383, %v6382
  %v6399 = vpack.c.b16 %v6385, %v6384
  %v6400 = vpack.c.b16 %v6387, %v6386
  %v6401 = vpack.c.b16 %v6389, %v6388
  %v6402 = vpack.c.b16 %v6391, %v6390
  %v6403 = vpack.c.b16 %v6393, %v6392
  %v6404 = vpack.c.b16 %v6395, %v6394
  %v6405 = vpack.c.b16 %v6397, %v6396
  %6414 = vmatprep.subr.bf16.mxu0 0
  %6415 = vmatpush1.bf16.msra.mxu0 %v6405
  %6416 = vmatprep.subr.bf16.mxu0 0
  %6417 = vmatpush1.bf16.msra.mxu0 %v6404
  %6418 = vmatprep.subr.bf16.mxu0 0
  %6419 = vmatpush1.bf16.msra.mxu0 %v6403
  %6420 = vmatprep.subr.bf16.mxu0 0
  %6421 = vmatpush1.bf16.msra.mxu0 %v6402
  %6422 = vmatprep.subr.bf16.mxu0 0
  %6423 = vmatpush1.bf16.msra.mxu0 %v6401
  %6424 = vmatprep.subr.bf16.mxu0 0
  %6425 = vmatpush1.bf16.msra.mxu0 %v6400
  %6426 = vmatprep.subr.bf16.mxu0 0
  %6427 = vmatpush1.bf16.msra.mxu0 %v6399
  %6428 = vmatprep.subr.bf16.mxu0 0
  %6429 = vmatpush1.bf16.msra.mxu0 %v6398
  %6430 = vmatprep.subr.bf16.mxu0 0
  %6431 = vmatpush2.bf16.msra.mxu0 0
  %6432 = vmatprep.subr.bf16.mxu0 0
  %6433 = vmatpush2.bf16.msra.mxu0 0
  %6434 = vmatprep.subr.bf16.mxu0 0
  %6435 = vmatpush2.bf16.msra.mxu0 0
  %6436 = vmatprep.subr.bf16.mxu0 0
  %6437 = vmatpush2.bf16.msra.mxu0 0
  %6438 = vmatprep.subr.bf16.mxu0 0
  %6439 = vmatpush2.bf16.msra.mxu0 0
  %6440 = vmatprep.subr.bf16.mxu0 0
  %6441 = vmatpush2.bf16.msra.mxu0 0
  %6442 = vmatprep.subr.bf16.mxu0 0
  %6443 = vmatpush2.bf16.msra.mxu0 0
  %6444 = vmatprep.subr.bf16.mxu0 0
  %6445 = vmatpush2.bf16.msra.mxu0 0
  %6446 = vmatprep.mubr.bf16.mxu0 0
  %6447 = vmatmul.mubr.bf16.gmra.mxu0 %v6341
  %v6448 = vpop.f32.mrf.mxu0
  %v6449 = vadd.f32 %v6364, %v6448
  %v6450 = vpop.f32.mrf.mxu0
  %v6451 = vpop.f32.mrf.mxu0
  %v6452 = vadd.f32 %v6364, %v6451
  %v6453 = vpop.f32.mrf.mxu0
  %6454 = vdwg.mxu0
  %6455 = vst [vmem:[%s19] sm:$0xff] %v6449
  %6456 = vst [vmem:[%s19 + $0x8] sm:$0x3f] %v6452
  %s6457 = smul.u32 4, 16
  %s6458 = smul.u32 %s6457, 8
  %s6459 = sshll.u32 %s6458, 4
  %6460 = dma.done %s654, %s6459
  %v6461 = vld [vmem:[#allocation4] sm:$0xff]
  %v6462 = vld [vmem:[#allocation4 + $0x8] sm:$0xff]
  %v6463 = vld [vmem:[#allocation4 + $0x10] sm:$0xff]
  %v6464 = vld [vmem:[#allocation4 + $0x18] sm:$0xff]
  %v6465 = vld [vmem:[#allocation4 + $0x20] sm:$0xff]
  %v6466 = vld [vmem:[#allocation4 + $0x28] sm:$0xff]
  %v6467 = vld [vmem:[#allocation4 + $0x30] sm:$0xff]
  %v6468 = vld [vmem:[#allocation4 + $0x38] sm:$0xff]
  %v6469 = vld [vmem:[#allocation4 + $0x40] sm:$0xff]
  %v6470 = vld [vmem:[#allocation4 + $0x48] sm:$0xff]
  %v6471 = vld [vmem:[#allocation4 + $0x50] sm:$0xff]
  %v6472 = vld [vmem:[#allocation4 + $0x58] sm:$0xff]
  %v6473 = vld [vmem:[#allocation4 + $0x60] sm:$0xff]
  %v6474 = vld [vmem:[#allocation4 + $0x68] sm:$0xff]
  %v6475 = vld [vmem:[#allocation4 + $0x70] sm:$0xff]
  %v6476 = vld [vmem:[#allocation4 + $0x78] sm:$0xff]
  %v6477 = vld [vmem:[#allocation4 + $0x80] sm:$0xff]
  %v6478 = vld [vmem:[#allocation4 + $0x88] sm:$0xff]
  %v6479 = vld [vmem:[#allocation4 + $0x90] sm:$0xff]
  %v6480 = vld [vmem:[#allocation4 + $0x98] sm:$0xff]
  %v6481 = vld [vmem:[#allocation4 + $0xa0] sm:$0xff]
  %v6482 = vld [vmem:[#allocation4 + $0xa8] sm:$0xff]
  %v6483 = vld [vmem:[#allocation4 + $0xb0] sm:$0xff]
  %v6484 = vld [vmem:[#allocation4 + $0xb8] sm:$0xff]
  %v6485 = vld [vmem:[#allocation4 + $0xc0] sm:$0xff]
  %v6486 = vld [vmem:[#allocation4 + $0xc8] sm:$0xff]
  %v6487 = vld [vmem:[#allocation4 + $0xd0] sm:$0xff]
  %v6488 = vld [vmem:[#allocation4 + $0xd8] sm:$0xff]
  %v6489 = vld [vmem:[#allocation4 + $0xe0] sm:$0xff]
  %v6490 = vld [vmem:[#allocation4 + $0xe8] sm:$0xff]
  %v6491 = vld [vmem:[#allocation4 + $0xf0] sm:$0xff]
  %v6492 = vld [vmem:[#allocation4 + $0xf8] sm:$0xff]
  %v6493 = vld [vmem:[#allocation4 + $0x100] sm:$0xff]
  %v6494 = vld [vmem:[#allocation4 + $0x108] sm:$0xff]
  %v6495 = vld [vmem:[#allocation4 + $0x110] sm:$0xff]
  %v6496 = vld [vmem:[#allocation4 + $0x118] sm:$0xff]
  %v6497 = vld [vmem:[#allocation4 + $0x120] sm:$0xff]
  %v6498 = vld [vmem:[#allocation4 + $0x128] sm:$0xff]
  %v6499 = vld [vmem:[#allocation4 + $0x130] sm:$0xff]
  %v6500 = vld [vmem:[#allocation4 + $0x138] sm:$0xff]
  %v6501 = vld [vmem:[#allocation4 + $0x140] sm:$0xff]
  %v6502 = vld [vmem:[#allocation4 + $0x148] sm:$0xff]
  %v6503 = vld [vmem:[#allocation4 + $0x150] sm:$0xff]
  %v6504 = vld [vmem:[#allocation4 + $0x158] sm:$0xff]
  %v6505 = vld [vmem:[#allocation4 + $0x160] sm:$0xff]
  %v6506 = vld [vmem:[#allocation4 + $0x168] sm:$0xff]
  %v6507 = vld [vmem:[#allocation4 + $0x170] sm:$0xff]
  %v6508 = vld [vmem:[#allocation4 + $0x178] sm:$0xff]
  %v6509 = vld [vmem:[#allocation4 + $0x180] sm:$0xff]
  %v6510 = vld [vmem:[#allocation4 + $0x188] sm:$0xff]
  %v6511 = vld [vmem:[#allocation4 + $0x190] sm:$0xff]
  %v6512 = vld [vmem:[#allocation4 + $0x198] sm:$0xff]
  %v6513 = vld [vmem:[#allocation4 + $0x1a0] sm:$0xff]
  %v6514 = vld [vmem:[#allocation4 + $0x1a8] sm:$0xff]
  %v6515 = vld [vmem:[#allocation4 + $0x1b0] sm:$0xff]
  %v6516 = vld [vmem:[#allocation4 + $0x1b8] sm:$0xff]
  %v6517 = vld [vmem:[#allocation4 + $0x1c0] sm:$0xff]
  %v6518 = vld [vmem:[#allocation4 + $0x1c8] sm:$0xff]
  %v6519 = vld [vmem:[#allocation4 + $0x1d0] sm:$0xff]
  %v6520 = vld [vmem:[#allocation4 + $0x1d8] sm:$0xff]
  %v6521 = vld [vmem:[#allocation4 + $0x1e0] sm:$0xff]
  %v6522 = vld [vmem:[#allocation4 + $0x1e8] sm:$0xff]
  %v6523 = vld [vmem:[#allocation4 + $0x1f0] sm:$0xff]
  %v6524 = vld [vmem:[#allocation4 + $0x1f8] sm:$0xff]
  %v6525 = vld [vmem:[%s18] sm:$0xff]
  %v6527 = vlaneseq
  %v6528 = vshrl.u32 %v6527, 7
  %v6529 = vsub.s32 0, %v6528
  %v6530 = vrot.slane %v6525, %v6529
  %v6531 = vlaneseq
  %v6532 = vshrl.u32 %v6531, 7
  %v6533 = vsub.s32 1, %v6532
  %v6534 = vrot.slane %v6525, %v6533
  %v6535 = vlaneseq
  %v6536 = vshrl.u32 %v6535, 7
  %v6537 = vsub.s32 2, %v6536
  %v6538 = vrot.slane %v6525, %v6537
  %v6539 = vlaneseq
  %v6540 = vshrl.u32 %v6539, 7
  %v6541 = vsub.s32 3, %v6540
  %v6542 = vrot.slane %v6525, %v6541
  %v6543 = vlaneseq
  %v6544 = vshrl.u32 %v6543, 7
  %v6545 = vsub.s32 4, %v6544
  %v6546 = vrot.slane %v6525, %v6545
  %v6547 = vlaneseq
  %v6548 = vshrl.u32 %v6547, 7
  %v6549 = vsub.s32 5, %v6548
  %v6550 = vrot.slane %v6525, %v6549
  %v6551 = vlaneseq
  %v6552 = vshrl.u32 %v6551, 7
  %v6553 = vsub.s32 6, %v6552
  %v6554 = vrot.slane %v6525, %v6553
  %v6555 = vlaneseq
  %v6556 = vshrl.u32 %v6555, 7
  %v6557 = vsub.s32 7, %v6556
  %v6558 = vrot.slane %v6525, %v6557
  %v6631 = vunpack.c.l.b16 %v6461
  %v6632 = vunpack.c.h.b16 %v6461
  %v6633 = vunpack.c.l.b16 %v6462
  %v6634 = vunpack.c.h.b16 %v6462
  %v6635 = vunpack.c.l.b16 %v6463
  %v6636 = vunpack.c.h.b16 %v6463
  %v6637 = vunpack.c.l.b16 %v6464
  %v6638 = vunpack.c.h.b16 %v6464
  %v6639 = vunpack.c.l.b16 %v6465
  %v6640 = vunpack.c.h.b16 %v6465
  %v6641 = vunpack.c.l.b16 %v6466
  %v6642 = vunpack.c.h.b16 %v6466
  %v6643 = vunpack.c.l.b16 %v6467
  %v6644 = vunpack.c.h.b16 %v6467
  %v6645 = vunpack.c.l.b16 %v6468
  %v6646 = vunpack.c.h.b16 %v6468
  %v6647 = vunpack.c.l.b16 %v6469
  %v6648 = vunpack.c.h.b16 %v6469
  %v6649 = vunpack.c.l.b16 %v6470
  %v6650 = vunpack.c.h.b16 %v6470
  %v6651 = vunpack.c.l.b16 %v6471
  %v6652 = vunpack.c.h.b16 %v6471
  %v6653 = vunpack.c.l.b16 %v6472
  %v6654 = vunpack.c.h.b16 %v6472
  %v6655 = vunpack.c.l.b16 %v6473
  %v6656 = vunpack.c.h.b16 %v6473
  %v6657 = vunpack.c.l.b16 %v6474
  %v6658 = vunpack.c.h.b16 %v6474
  %v6659 = vunpack.c.l.b16 %v6475
  %v6660 = vunpack.c.h.b16 %v6475
  %v6661 = vunpack.c.l.b16 %v6476
  %v6662 = vunpack.c.h.b16 %v6476
  %v6663 = vunpack.c.l.b16 %v6477
  %v6664 = vunpack.c.h.b16 %v6477
  %v6665 = vunpack.c.l.b16 %v6478
  %v6666 = vunpack.c.h.b16 %v6478
  %v6667 = vunpack.c.l.b16 %v6479
  %v6668 = vunpack.c.h.b16 %v6479
  %v6669 = vunpack.c.l.b16 %v6480
  %v6670 = vunpack.c.h.b16 %v6480
  %v6671 = vunpack.c.l.b16 %v6481
  %v6672 = vunpack.c.h.b16 %v6481
  %v6673 = vunpack.c.l.b16 %v6482
  %v6674 = vunpack.c.h.b16 %v6482
  %v6675 = vunpack.c.l.b16 %v6483
  %v6676 = vunpack.c.h.b16 %v6483
  %v6677 = vunpack.c.l.b16 %v6484
  %v6678 = vunpack.c.h.b16 %v6484
  %v6679 = vunpack.c.l.b16 %v6485
  %v6680 = vunpack.c.h.b16 %v6485
  %v6681 = vunpack.c.l.b16 %v6486
  %v6682 = vunpack.c.h.b16 %v6486
  %v6683 = vunpack.c.l.b16 %v6487
  %v6684 = vunpack.c.h.b16 %v6487
  %v6685 = vunpack.c.l.b16 %v6488
  %v6686 = vunpack.c.h.b16 %v6488
  %v6687 = vunpack.c.l.b16 %v6489
  %v6688 = vunpack.c.h.b16 %v6489
  %v6689 = vunpack.c.l.b16 %v6490
  %v6690 = vunpack.c.h.b16 %v6490
  %v6691 = vunpack.c.l.b16 %v6491
  %v6692 = vunpack.c.h.b16 %v6491
  %v6693 = vunpack.c.l.b16 %v6492
  %v6694 = vunpack.c.h.b16 %v6492
  %v6695 = vunpack.c.l.b16 %v6493
  %v6696 = vunpack.c.h.b16 %v6493
  %v6697 = vunpack.c.l.b16 %v6494
  %v6698 = vunpack.c.h.b16 %v6494
  %v6699 = vunpack.c.l.b16 %v6495
  %v6700 = vunpack.c.h.b16 %v6495
  %v6701 = vunpack.c.l.b16 %v6496
  %v6702 = vunpack.c.h.b16 %v6496
  %v6703 = vunpack.c.l.b16 %v6497
  %v6704 = vunpack.c.h.b16 %v6497
  %v6705 = vunpack.c.l.b16 %v6498
  %v6706 = vunpack.c.h.b16 %v6498
  %v6707 = vunpack.c.l.b16 %v6499
  %v6708 = vunpack.c.h.b16 %v6499
  %v6709 = vunpack.c.l.b16 %v6500
  %v6710 = vunpack.c.h.b16 %v6500
  %v6711 = vunpack.c.l.b16 %v6501
  %v6712 = vunpack.c.h.b16 %v6501
  %v6713 = vunpack.c.l.b16 %v6502
  %v6714 = vunpack.c.h.b16 %v6502
  %v6715 = vunpack.c.l.b16 %v6503
  %v6716 = vunpack.c.h.b16 %v6503
  %v6717 = vunpack.c.l.b16 %v6504
  %v6718 = vunpack.c.h.b16 %v6504
  %v6719 = vunpack.c.l.b16 %v6505
  %v6720 = vunpack.c.h.b16 %v6505
  %v6721 = vunpack.c.l.b16 %v6506
  %v6722 = vunpack.c.h.b16 %v6506
  %v6723 = vunpack.c.l.b16 %v6507
  %v6724 = vunpack.c.h.b16 %v6507
  %v6725 = vunpack.c.l.b16 %v6508
  %v6726 = vunpack.c.h.b16 %v6508
  %v6727 = vunpack.c.l.b16 %v6509
  %v6728 = vunpack.c.h.b16 %v6509
  %v6729 = vunpack.c.l.b16 %v6510
  %v6730 = vunpack.c.h.b16 %v6510
  %v6731 = vunpack.c.l.b16 %v6511
  %v6732 = vunpack.c.h.b16 %v6511
  %v6733 = vunpack.c.l.b16 %v6512
  %v6734 = vunpack.c.h.b16 %v6512
  %v6735 = vunpack.c.l.b16 %v6513
  %v6736 = vunpack.c.h.b16 %v6513
  %v6737 = vunpack.c.l.b16 %v6514
  %v6738 = vunpack.c.h.b16 %v6514
  %v6739 = vunpack.c.l.b16 %v6515
  %v6740 = vunpack.c.h.b16 %v6515
  %v6741 = vunpack.c.l.b16 %v6516
  %v6742 = vunpack.c.h.b16 %v6516
  %v6743 = vunpack.c.l.b16 %v6517
  %v6744 = vunpack.c.h.b16 %v6517
  %v6745 = vunpack.c.l.b16 %v6518
  %v6746 = vunpack.c.h.b16 %v6518
  %v6747 = vunpack.c.l.b16 %v6519
  %v6748 = vunpack.c.h.b16 %v6519
  %v6749 = vunpack.c.l.b16 %v6520
  %v6750 = vunpack.c.h.b16 %v6520
  %v6751 = vunpack.c.l.b16 %v6521
  %v6752 = vunpack.c.h.b16 %v6521
  %v6753 = vunpack.c.l.b16 %v6522
  %v6754 = vunpack.c.h.b16 %v6522
  %v6755 = vunpack.c.l.b16 %v6523
  %v6756 = vunpack.c.h.b16 %v6523
  %v6757 = vunpack.c.l.b16 %v6524
  %v6758 = vunpack.c.h.b16 %v6524
  %v6759 = vpack.c.b16 %v6639, %v6631
  %v6760 = vpack.c.b16 %v6640, %v6632
  %v6761 = vpack.c.b16 %v6641, %v6633
  %v6762 = vpack.c.b16 %v6642, %v6634
  %v6763 = vpack.c.b16 %v6643, %v6635
  %v6764 = vpack.c.b16 %v6644, %v6636
  %v6765 = vpack.c.b16 %v6645, %v6637
  %v6766 = vpack.c.b16 %v6646, %v6638
  %v6767 = vpack.c.b16 %v6655, %v6647
  %v6768 = vpack.c.b16 %v6656, %v6648
  %v6769 = vpack.c.b16 %v6657, %v6649
  %v6770 = vpack.c.b16 %v6658, %v6650
  %v6771 = vpack.c.b16 %v6659, %v6651
  %v6772 = vpack.c.b16 %v6660, %v6652
  %v6773 = vpack.c.b16 %v6661, %v6653
  %v6774 = vpack.c.b16 %v6662, %v6654
  %v6775 = vpack.c.b16 %v6671, %v6663
  %v6776 = vpack.c.b16 %v6672, %v6664
  %v6777 = vpack.c.b16 %v6673, %v6665
  %v6778 = vpack.c.b16 %v6674, %v6666
  %v6779 = vpack.c.b16 %v6675, %v6667
  %v6780 = vpack.c.b16 %v6676, %v6668
  %v6781 = vpack.c.b16 %v6677, %v6669
  %v6782 = vpack.c.b16 %v6678, %v6670
  %v6783 = vpack.c.b16 %v6687, %v6679
  %v6784 = vpack.c.b16 %v6688, %v6680
  %v6785 = vpack.c.b16 %v6689, %v6681
  %v6786 = vpack.c.b16 %v6690, %v6682
  %v6787 = vpack.c.b16 %v6691, %v6683
  %v6788 = vpack.c.b16 %v6692, %v6684
  %v6789 = vpack.c.b16 %v6693, %v6685
  %v6790 = vpack.c.b16 %v6694, %v6686
  %v6791 = vpack.c.b16 %v6703, %v6695
  %v6792 = vpack.c.b16 %v6704, %v6696
  %v6793 = vpack.c.b16 %v6705, %v6697
  %v6794 = vpack.c.b16 %v6706, %v6698
  %v6795 = vpack.c.b16 %v6707, %v6699
  %v6796 = vpack.c.b16 %v6708, %v6700
  %v6797 = vpack.c.b16 %v6709, %v6701
  %v6798 = vpack.c.b16 %v6710, %v6702
  %v6799 = vpack.c.b16 %v6719, %v6711
  %v6800 = vpack.c.b16 %v6720, %v6712
  %v6801 = vpack.c.b16 %v6721, %v6713
  %v6802 = vpack.c.b16 %v6722, %v6714
  %v6803 = vpack.c.b16 %v6723, %v6715
  %v6804 = vpack.c.b16 %v6724, %v6716
  %v6805 = vpack.c.b16 %v6725, %v6717
  %v6806 = vpack.c.b16 %v6726, %v6718
  %v6807 = vpack.c.b16 %v6735, %v6727
  %v6808 = vpack.c.b16 %v6736, %v6728
  %v6809 = vpack.c.b16 %v6737, %v6729
  %v6810 = vpack.c.b16 %v6738, %v6730
  %v6811 = vpack.c.b16 %v6739, %v6731
  %v6812 = vpack.c.b16 %v6740, %v6732
  %v6813 = vpack.c.b16 %v6741, %v6733
  %v6814 = vpack.c.b16 %v6742, %v6734
  %v6815 = vpack.c.b16 %v6751, %v6743
  %v6816 = vpack.c.b16 %v6752, %v6744
  %v6817 = vpack.c.b16 %v6753, %v6745
  %v6818 = vpack.c.b16 %v6754, %v6746
  %v6819 = vpack.c.b16 %v6755, %v6747
  %v6820 = vpack.c.b16 %v6756, %v6748
  %v6821 = vpack.c.b16 %v6757, %v6749
  %v6822 = vpack.c.b16 %v6758, %v6750
  %6887 = vmatprep.subr.bf16.mxu0 %v6816
  %6888 = vmatpush1.bf16.msra.mxu0 %v6815
  %6889 = vmatprep.subr.bf16.mxu0 %v6808
  %6890 = vmatpush1.bf16.msra.mxu0 %v6807
  %6891 = vmatprep.subr.bf16.mxu0 %v6800
  %6892 = vmatpush1.bf16.msra.mxu0 %v6799
  %6893 = vmatprep.subr.bf16.mxu0 %v6792
  %6894 = vmatpush1.bf16.msra.mxu0 %v6791
  %6895 = vmatprep.subr.bf16.mxu0 %v6784
  %6896 = vmatpush1.bf16.msra.mxu0 %v6783
  %6897 = vmatprep.subr.bf16.mxu0 %v6776
  %6898 = vmatpush1.bf16.msra.mxu0 %v6775
  %6899 = vmatprep.subr.bf16.mxu0 %v6768
  %6900 = vmatpush1.bf16.msra.mxu0 %v6767
  %6901 = vmatprep.subr.bf16.mxu0 %v6760
  %6902 = vmatpush1.bf16.msra.mxu0 %v6759
  %6903 = vmatprep.subr.bf16.mxu0 0
  %6904 = vmatpush2.bf16.msra.mxu0 0
  %6905 = vmatprep.subr.bf16.mxu0 0
  %6906 = vmatpush2.bf16.msra.mxu0 0
  %6907 = vmatprep.subr.bf16.mxu0 0
  %6908 = vmatpush2.bf16.msra.mxu0 0
  %6909 = vmatprep.subr.bf16.mxu0 0
  %6910 = vmatpush2.bf16.msra.mxu0 0
  %6911 = vmatprep.subr.bf16.mxu0 0
  %6912 = vmatpush2.bf16.msra.mxu0 0
  %6913 = vmatprep.subr.bf16.mxu0 0
  %6914 = vmatpush2.bf16.msra.mxu0 0
  %6915 = vmatprep.subr.bf16.mxu0 0
  %6916 = vmatpush2.bf16.msra.mxu0 0
  %6917 = vmatprep.subr.bf16.mxu0 0
  %6918 = vmatpush2.bf16.msra.mxu0 0
  %6919 = vmatprep.mubr.bf16.mxu0 0
  %6920 = vmatmul.mubr.bf16.gmra.mxu0 %v6342
  %v6921 = vpop.f32.mrf.mxu0
  %v6922 = vadd.f32 %v6530, %v6921
  %v6923 = vpop.f32.mrf.mxu0
  %v6924 = vadd.f32 %v6534, %v6923
  %v6925 = vpop.f32.mrf.mxu0
  %v6926 = vadd.f32 %v6530, %v6925
  %v6927 = vpop.f32.mrf.mxu0
  %v6928 = vadd.f32 %v6534, %v6927
  %6929 = vdwg.mxu0
  %6930 = vmatprep.subr.bf16.mxu0 %v6818
  %6931 = vmatpush1.bf16.msra.mxu0 %v6817
  %6932 = vmatprep.subr.bf16.mxu0 %v6810
  %6933 = vmatpush1.bf16.msra.mxu0 %v6809
  %6934 = vmatprep.subr.bf16.mxu0 %v6802
  %6935 = vmatpush1.bf16.msra.mxu0 %v6801
  %6936 = vmatprep.subr.bf16.mxu0 %v6794
  %6937 = vmatpush1.bf16.msra.mxu0 %v6793
  %6938 = vmatprep.subr.bf16.mxu0 %v6786
  %6939 = vmatpush1.bf16.msra.mxu0 %v6785
  %6940 = vmatprep.subr.bf16.mxu0 %v6778
  %6941 = vmatpush1.bf16.msra.mxu0 %v6777
  %6942 = vmatprep.subr.bf16.mxu0 %v6770
  %6943 = vmatpush1.bf16.msra.mxu0 %v6769
  %6944 = vmatprep.subr.bf16.mxu0 %v6762
  %6945 = vmatpush1.bf16.msra.mxu0 %v6761
  %6946 = vmatprep.subr.bf16.mxu0 0
  %6947 = vmatpush2.bf16.msra.mxu0 0
  %6948 = vmatprep.subr.bf16.mxu0 0
  %6949 = vmatpush2.bf16.msra.mxu0 0
  %6950 = vmatprep.subr.bf16.mxu0 0
  %6951 = vmatpush2.bf16.msra.mxu0 0
  %6952 = vmatprep.subr.bf16.mxu0 0
  %6953 = vmatpush2.bf16.msra.mxu0 0
  %6954 = vmatprep.subr.bf16.mxu0 0
  %6955 = vmatpush2.bf16.msra.mxu0 0
  %6956 = vmatprep.subr.bf16.mxu0 0
  %6957 = vmatpush2.bf16.msra.mxu0 0
  %6958 = vmatprep.subr.bf16.mxu0 0
  %6959 = vmatpush2.bf16.msra.mxu0 0
  %6960 = vmatprep.subr.bf16.mxu0 0
  %6961 = vmatpush2.bf16.msra.mxu0 0
  %6962 = vmatprep.mubr.bf16.mxu0 0
  %6963 = vmatmul.mubr.bf16.gmra.mxu0 %v6342
  %v6964 = vpop.f32.mrf.mxu0
  %v6965 = vadd.f32 %v6538, %v6964
  %v6966 = vpop.f32.mrf.mxu0
  %v6967 = vadd.f32 %v6542, %v6966
  %v6968 = vpop.f32.mrf.mxu0
  %v6969 = vadd.f32 %v6538, %v6968
  %v6970 = vpop.f32.mrf.mxu0
  %v6971 = vadd.f32 %v6542, %v6970
  %6972 = vdwg.mxu0
  %6973 = vmatprep.subr.bf16.mxu0 %v6820
  %6974 = vmatpush1.bf16.msra.mxu0 %v6819
  %6975 = vmatprep.subr.bf16.mxu0 %v6812
  %6976 = vmatpush1.bf16.msra.mxu0 %v6811
  %6977 = vmatprep.subr.bf16.mxu0 %v6804
  %6978 = vmatpush1.bf16.msra.mxu0 %v6803
  %6979 = vmatprep.subr.bf16.mxu0 %v6796
  %6980 = vmatpush1.bf16.msra.mxu0 %v6795
  %6981 = vmatprep.subr.bf16.mxu0 %v6788
  %6982 = vmatpush1.bf16.msra.mxu0 %v6787
  %6983 = vmatprep.subr.bf16.mxu0 %v6780
  %6984 = vmatpush1.bf16.msra.mxu0 %v6779
  %6985 = vmatprep.subr.bf16.mxu0 %v6772
  %6986 = vmatpush1.bf16.msra.mxu0 %v6771
  %6987 = vmatprep.subr.bf16.mxu0 %v6764
  %6988 = vmatpush1.bf16.msra.mxu0 %v6763
  %6989 = vmatprep.subr.bf16.mxu0 0
  %6990 = vmatpush2.bf16.msra.mxu0 0
  %6991 = vmatprep.subr.bf16.mxu0 0
  %6992 = vmatpush2.bf16.msra.mxu0 0
  %6993 = vmatprep.subr.bf16.mxu0 0
  %6994 = vmatpush2.bf16.msra.mxu0 0
  %6995 = vmatprep.subr.bf16.mxu0 0
  %6996 = vmatpush2.bf16.msra.mxu0 0
  %6997 = vmatprep.subr.bf16.mxu0 0
  %6998 = vmatpush2.bf16.msra.mxu0 0
  %6999 = vmatprep.subr.bf16.mxu0 0
  %7000 = vmatpush2.bf16.msra.mxu0 0
  %7001 = vmatprep.subr.bf16.mxu0 0
  %7002 = vmatpush2.bf16.msra.mxu0 0
  %7003 = vmatprep.subr.bf16.mxu0 0
  %7004 = vmatpush2.bf16.msra.mxu0 0
  %7005 = vmatprep.mubr.bf16.mxu0 0
  %7006 = vmatmul.mubr.bf16.gmra.mxu0 %v6342
  %v7007 = vpop.f32.mrf.mxu0
  %v7008 = vadd.f32 %v6546, %v7007
  %v7009 = vpop.f32.mrf.mxu0
  %v7010 = vadd.f32 %v6550, %v7009
  %v7011 = vpop.f32.mrf.mxu0
  %v7012 = vadd.f32 %v6546, %v7011
  %v7013 = vpop.f32.mrf.mxu0
  %v7014 = vadd.f32 %v6550, %v7013
  %7015 = vdwg.mxu0
  %7016 = vmatprep.subr.bf16.mxu0 %v6822
  %7017 = vmatpush1.bf16.msra.mxu0 %v6821
  %7018 = vmatprep.subr.bf16.mxu0 %v6814
  %7019 = vmatpush1.bf16.msra.mxu0 %v6813
  %7020 = vmatprep.subr.bf16.mxu0 %v6806
  %7021 = vmatpush1.bf16.msra.mxu0 %v6805
  %7022 = vmatprep.subr.bf16.mxu0 %v6798
  %7023 = vmatpush1.bf16.msra.mxu0 %v6797
  %7024 = vmatprep.subr.bf16.mxu0 %v6790
  %7025 = vmatpush1.bf16.msra.mxu0 %v6789
  %7026 = vmatprep.subr.bf16.mxu0 %v6782
  %7027 = vmatpush1.bf16.msra.mxu0 %v6781
  %7028 = vmatprep.subr.bf16.mxu0 %v6774
  %7029 = vmatpush1.bf16.msra.mxu0 %v6773
  %7030 = vmatprep.subr.bf16.mxu0 %v6766
  %7031 = vmatpush1.bf16.msra.mxu0 %v6765
  %7032 = vmatprep.subr.bf16.mxu0 0
  %7033 = vmatpush2.bf16.msra.mxu0 0
  %7034 = vmatprep.subr.bf16.mxu0 0
  %7035 = vmatpush2.bf16.msra.mxu0 0
  %7036 = vmatprep.subr.bf16.mxu0 0
  %7037 = vmatpush2.bf16.msra.mxu0 0
  %7038 = vmatprep.subr.bf16.mxu0 0
  %7039 = vmatpush2.bf16.msra.mxu0 0
  %7040 = vmatprep.subr.bf16.mxu0 0
  %7041 = vmatpush2.bf16.msra.mxu0 0
  %7042 = vmatprep.subr.bf16.mxu0 0
  %7043 = vmatpush2.bf16.msra.mxu0 0
  %7044 = vmatprep.subr.bf16.mxu0 0
  %7045 = vmatpush2.bf16.msra.mxu0 0
  %7046 = vmatprep.subr.bf16.mxu0 0
  %7047 = vmatpush2.bf16.msra.mxu0 0
  %7048 = vmatprep.mubr.bf16.mxu0 0
  %7049 = vmatmul.mubr.bf16.gmra.mxu0 %v6342
  %v7050 = vpop.f32.mrf.mxu0
  %v7051 = vadd.f32 %v6554, %v7050
  %v7052 = vpop.f32.mrf.mxu0
  %v7053 = vadd.f32 %v6558, %v7052
  %v7054 = vpop.f32.mrf.mxu0
  %v7055 = vadd.f32 %v6554, %v7054
  %v7056 = vpop.f32.mrf.mxu0
  %v7057 = vadd.f32 %v6558, %v7056
  %7058 = vdwg.mxu0
  %7059 = vst [vmem:[%s20] sm:$0xff] %v6922
  %7060 = vst [vmem:[%s20 + $0x8] sm:$0xff] %v6924
  %7061 = vst [vmem:[%s20 + $0x10] sm:$0xff] %v6965
  %7062 = vst [vmem:[%s20 + $0x18] sm:$0xff] %v6967
  %7063 = vst [vmem:[%s20 + $0x20] sm:$0xff] %v7008
  %7064 = vst [vmem:[%s20 + $0x28] sm:$0xff] %v7010
  %7065 = vst [vmem:[%s20 + $0x30] sm:$0xff] %v7051
  %7066 = vst [vmem:[%s20 + $0x38] sm:$0xff] %v7053
  %7067 = vst [vmem:[%s20 + $0x40] sm:$0x3f] %v6926
  %7068 = vst [vmem:[%s20 + $0x48] sm:$0x3f] %v6928
  %7069 = vst [vmem:[%s20 + $0x50] sm:$0x3f] %v6969
  %7070 = vst [vmem:[%s20 + $0x58] sm:$0x3f] %v6971
  %7071 = vst [vmem:[%s20 + $0x60] sm:$0x3f] %v7012
  %7072 = vst [vmem:[%s20 + $0x68] sm:$0x3f] %v7014
  %7073 = vst [vmem:[%s20 + $0x70] sm:$0x3f] %v7055
  %7074 = vst [vmem:[%s20 + $0x78] sm:$0x3f] %v7057
  // Predicated region
  $region168: #{forward.1} parent=0 // pred_check
    _
  $region169: #{forward.1} parent=0 // pred_check_branch
    %7076 = sbr.rel (0) target = $region171
  $region170: #{forward.1} parent=0 // pred_region
    _
  $region171: #{forward.1} parent=0 // pred_fallthru
    _
  // Predicated region
  $region172: #{forward.1} parent=0 // pred_check
    _
  $region173: #{forward.1} parent=0 // pred_check_branch
    %7078 = sbr.rel (0) target = $region175
  $region174: #{forward.1} parent=0 // pred_region
    _
  $region175: #{forward.1} parent=0 // pred_fallthru
    _
  // Predicated region
  $region176: #{forward.1} parent=0 // pred_check
    _
  $region177: #{forward.1} parent=0 // pred_check_branch
    %7080 = sbr.rel (0) target = $region179
  $region178: #{forward.1} parent=0 // pred_region
    _
  $region179: #{forward.1} parent=0 // pred_fallthru
    _
  // Predicated region
  $region180: #{forward.1} parent=0 // pred_check
    _
  $region181: #{forward.1} parent=0 // pred_check_branch
    %7082 = sbr.rel (0) target = $region183
  $region182: #{forward.1} parent=0 // pred_region
    _
  $region183: #{forward.1} parent=0 // pred_fallthru
    _
  %7083 = vsyncmov [#allocation5]
  %s7084 = vpop.sfrf %7083
  %p7085 = scmp.eq.s32.totalorder %s7084, 0
  %p7086 = pneg %p7085
  %7088 = shalt.err (%p7086)
  %s7089 = scalar_lea.sflag [#allocation5], 1
  %7090 = vsyncmov %s7089
  %s7091 = vpop.sfrf %7090
  %p7092 = scmp.eq.s32.totalorder %s7091, 0
  %p7093 = pneg %p7092
  %7095 = shalt.err (%p7093)
  %s7096 = scalar_lea.sflag [#allocation5], 2
  %7097 = vsyncmov %s7096
  %s7098 = vpop.sfrf %7097
  %p7099 = scmp.eq.s32.totalorder %s7098, 0
  %p7100 = pneg %p7099
  %7102 = shalt.err (%p7100)

</llo_original>
